<compile_context>
chip_gen: v6e
topology: v6e:2x2x1
jax: 0.10.0
libtpu: 0.0.40
codegen_flags: <defaults>
</compile_context>

<pallas_src>
import functools
import numpy as np
import jax
import jax.numpy as jnp
from jax.experimental import pallas as pl
from jax.experimental.pallas import tpu as pltpu

EPS = 1e-5  # nn.LayerNorm default eps


# ---------------------------------------------------------------------------
# small math helpers usable inside Pallas kernels
# ---------------------------------------------------------------------------
def _layernorm(x, g, b):
    mean = jnp.mean(x, axis=-1, keepdims=True)
    var = jnp.mean(jnp.square(x - mean), axis=-1, keepdims=True)
    return (x - mean) * jax.lax.rsqrt(var + EPS) * g + b


def _gelu_tanh(x):
    # tanh form of GELU: the transcendental maps to the EUP slot.
    # Max abs deviation from torch.nn.GELU (erf form) is ~3e-4.
    c = 0.7978845608028654  # sqrt(2/pi)
    return 0.5 * x * (1.0 + jnp.tanh(c * (x + 0.044715 * x * x * x)))


# ---------------------------------------------------------------------------
# generation-aware VMEM / tiling heuristics
# ---------------------------------------------------------------------------
@functools.lru_cache(maxsize=None)
def _vmem_capacity():
    try:
        return int(pltpu.get_tpu_info().vmem_capacity_bytes)
    except Exception:
        return 128 * 1024 * 1024  # v5e / v6e default


def _small_vmem():
    # v7x TensorCores only have 64 MiB of VMEM.
    return _vmem_capacity() <= 64 * 1024 * 1024


def _vmem_limit(est_bytes):
    cap = _vmem_capacity()
    # ~48 MiB ceiling on 64 MiB parts (v7x), 96 MiB on 128 MiB parts (v5e/v6e)
    hi = min(max(cap - 16 * 1024 * 1024, cap * 3 // 4), 96 * 1024 * 1024)
    return int(min(hi, max(32 * 1024 * 1024, int(est_bytes))))


def _mlp_max_rows():
    return 512 if _small_vmem() else 1536


def _attn_max_rows():
    return 512 if _small_vmem() else 1536


def _choose_row_tile(T, max_rows=1024):
    # Row tiles must be multiples of 8 (sublanes) or equal the full extent T.
    divs = [d for d in range(8, min(T, max_rows) + 1, 8) if T % d == 0]
    # Prefer >=2 grid steps when tiles stay large (keeps both v7x TCs busy).
    multi = [d for d in divs if T // d >= 2]
    if multi and max(multi) >= 256:
        return max(multi)
    if divs:
        return max(divs)
    return T  # full extent is always BlockSpec-legal


def _choose_window_batch(BW, N, nW, max_rows=1024):
    # WB must divide BW and either divide nW or be a multiple of nW so the
    # per-window-type (mask / validity) block stays a rectangular BlockSpec
    # block with a simple modular index_map.
    batch = BW // nW
    cands = {d for d in range(1, nW + 1) if nW % d == 0}
    cands |= {nW * d for d in range(1, batch + 1) if batch % d == 0}
    cands = sorted(wb for wb in cands if BW % wb == 0 and wb * N <= max_rows)
    if not cands:
        return 1
    multi = [wb for wb in cands if BW // wb >= 2]  # >=2 steps (v7x megacore)
    return max(multi) if multi else max(cands)


# ---------------------------------------------------------------------------
# Pallas kernel 1: window attention (WB windows per grid step, norm1 fused)
# ---------------------------------------------------------------------------
def _attn_kernel(x_ref, g_ref, b_ref, qkvw_ref, qkvb_ref, projw_ref, projb_ref,
                 rb_ref, *rest, num_heads, has_mask, has_valid):
    refs = list(rest)
    o_ref = refs.pop()
    mask_ref = refs.pop(0) if has_mask else None
    valid_ref = refs.pop(0) if has_valid else None

    WB, N, C = x_ref.shape
    hd = C // num_heads

    # norm1 fused in (saves an HBM round trip for the normed activations)
    x = x_ref[...].astype(jnp.float32).reshape(WB * N, C)
    x = _layernorm(x, g_ref[...], b_ref[...])
    if has_valid:
        # torch pads the *normed* activations with zeros -> zero padded tokens
        # after the LayerNorm so they enter QKV as exact zeros.
        x = (x.reshape(WB, N, C) * valid_ref[...]).reshape(WB * N, C)

    # QKV projection: one MXU GEMM over all WB*N tokens (bf16 in, f32 acc).
    # The 1/sqrt(hd) scale is pre-folded into the Q columns of W / b.
    qkv = jnp.dot(x.astype(jnp.bfloat16), qkvw_ref[...],
                  preferred_element_type=jnp.float32) + qkvb_ref[0]
    qkv = qkv.reshape(WB, N, 3 * C)

    rel_bias = rb_ref[...]                        # (num_heads, N, N) f32
    mask = mask_ref[...] if has_mask else None    # (WB, N, N) f32

    # TODO(synk): collapse the per-head loop into a single head-batched softmax
    # ('bnhd,bmhd->bhnm' / 'bhnm,bmhd->bnhd') once Mosaic dot_general reliably
    # supports two batch dimensions; the per-head loop below only uses proven
    # single-batch-dim einsums.
    acc = jnp.zeros((WB * N, C), jnp.float32)
    for h in range(num_heads):                    # static unroll, window-batched
        q = qkv[:, :, h * hd:(h + 1) * hd]
        k = qkv[:, :, C + h * hd:C + (h + 1) * hd]
        v = qkv[:, :, 2 * C + h * hd:2 * C + (h + 1) * hd]
        s = jnp.einsum('bnd,bmd->bnm',
                       q.astype(jnp.bfloat16), k.astype(jnp.bfloat16),
                       preferred_element_type=jnp.float32)       # (WB, N, N)
        s = s + rel_bias[h][None]
        if has_mask:
            s = s + mask
        # softmax in f32; divide replaced by an EUP reciprocal
        s = s - jnp.max(s, axis=-1, keepdims=True)
        p = jnp.exp(s)
        p = p * pl.reciprocal(jnp.sum(p, axis=-1, keepdims=True), approx=True)
        o_h = jnp.einsum('bnm,bmd->bnd',
                         p.astype(jnp.bfloat16), v.astype(jnp.bfloat16),
                         preferred_element_type=jnp.float32)     # (WB, N, hd)
        # accumulate the output projection per head: no (WB*N, C) scratch,
        # no sub-128-lane masked stores, no full re-read before the proj GEMM.
        acc = acc + jnp.dot(o_h.reshape(WB * N, hd).astype(jnp.bfloat16),
                            projw_ref[h * hd:(h + 1) * hd, :],
                            preferred_element_type=jnp.float32)

    o_ref[...] = (acc + projb_ref[0]).reshape(WB, N, C).astype(o_ref.dtype)


def window_attention_pallas(xw, p, mask, valid, num_heads, n_window_types):
    BW, N, C = xw.shape
    nW = n_window_types
    WB = _choose_window_batch(BW, N, nW, max_rows=_attn_max_rows())
    grid = (BW // WB,)

    has_mask = mask is not None
    has_valid = valid is not None

    if WB <= nW:                       # WB divides nW: modular block index
        nb = nW // WB
        win_map = lambda i: (i % nb, 0, 0)
    else:                              # WB multiple of nW: pre-tile (tiny) so
        if has_mask:                   # the block is constant (DMA'd once)
            mask = jnp.tile(mask, (WB // nW, 1, 1))
        if has_valid:
            valid = jnp.tile(valid, (WB // nW, 1, 1))
        win_map = lambda i: (0, 0, 0)

    in_specs = [
        pl.BlockSpec((WB, N, C), lambda i: (i, 0, 0)),
        pl.BlockSpec((1, C), lambda i: (0, 0)),
        pl.BlockSpec((1, C), lambda i: (0, 0)),
        # TODO(synk): single-buffer (pl.Buffered(1)) these constant-index
        # weight blocks on 64 MiB-VMEM parts once verified on v7x.
        pl.BlockSpec((C, 3 * C), lambda i: (0, 0)),
        pl.BlockSpec((1, 3 * C), lambda i: (0, 0)),
        pl.BlockSpec((C, C), lambda i: (0, 0)),
        pl.BlockSpec((1, C), lambda i: (0, 0)),
        pl.BlockSpec((num_heads, N, N), lambda i: (0, 0, 0)),
    ]
    args = [xw, p["norm1_g"], p["norm1_b"], p["qkv_w"], p["qkv_b"],
            p["proj_w"], p["proj_b"], p["rel_bias"]]
    if has_mask:
        in_specs.append(pl.BlockSpec((WB, N, N), win_map))
        args.append(mask)
    if has_valid:
        in_specs.append(pl.BlockSpec((WB, N, 1), win_map))
        args.append(valid)

    est = (2 * (2 * WB * N * C * 4)                          # x in + out (dbl-buffered)
           + 2 * (3 * C * C * 2 + C * C * 2                  # bf16 qkv / proj weights
                  + 3 * C * 4 + C * 4 + 2 * C * 4            # biases + norm params
                  + num_heads * N * N * 4
                  + (WB * N * N * 4 if has_mask else 0)
                  + (WB * N * 4 if has_valid else 0))
           + WB * N * 3 * C * 4 + WB * N * C * 4 + 2 * WB * N * N * 4
           + (8 << 20))

    kernel = functools.partial(_attn_kernel, num_heads=num_heads,
                               has_mask=has_mask, has_valid=has_valid)
    return pl.pallas_call(
        kernel,
        out_shape=jax.ShapeDtypeStruct((BW, N, C), xw.dtype),
        grid=grid,
        in_specs=in_specs,
        out_specs=pl.BlockSpec((WB, N, C), lambda i: (i, 0, 0)),
        compiler_params=pltpu.CompilerParams(
            dimension_semantics=("parallel",),
            vmem_limit_bytes=_vmem_limit(est)),
    )(*args)


# ---------------------------------------------------------------------------
# Pallas kernel 2: fused   x = shortcut + attn ;  x = x + MLP(LN2(x))
# ---------------------------------------------------------------------------
def _mlp_block_kernel(sc_ref, ao_ref, g_ref, b_ref, w1_ref, b1_ref,
                      w2_ref, b2_ref, o_ref):
    x = sc_ref[...].astype(jnp.float32) + ao_ref[...].astype(jnp.float32)
    y = _layernorm(x, g_ref[...], b_ref[...])
    h = jnp.dot(y.astype(jnp.bfloat16), w1_ref[...],
                preferred_element_type=jnp.float32) + b1_ref[0]
    h = _gelu_tanh(h)
    m = jnp.dot(h.astype(jnp.bfloat16), w2_ref[...],
                preferred_element_type=jnp.float32) + b2_ref[0]
    o_ref[...] = (x + m).astype(o_ref.dtype)


def mlp_block_pallas(shortcut2d, attn2d, p):
    T, C = shortcut2d.shape
    Hd = p["fc1_w"].shape[1]
    tm = _choose_row_tile(T, max_rows=_mlp_max_rows())
    est = (2 * (2 * tm * C * 4) + 2 * tm * C * 4
           + 2 * (C * Hd * 2 + Hd * C * 2 + Hd * 4 + C * 4 + 2 * C * 4)
           + tm * Hd * 4 + 3 * tm * C * 4
           + (8 << 20))
    return pl.pallas_call(
        _mlp_block_kernel,
        out_shape=jax.ShapeDtypeStruct((T, C), shortcut2d.dtype),
        grid=(T // tm,),
        in_specs=[
            pl.BlockSpec((tm, C), lambda i: (i, 0)),
            pl.BlockSpec((tm, C), lambda i: (i, 0)),
            pl.BlockSpec((1, C), lambda i: (0, 0)),
            pl.BlockSpec((1, C), lambda i: (0, 0)),
            pl.BlockSpec((C, Hd), lambda i: (0, 0)),
            pl.BlockSpec((1, Hd), lambda i: (0, 0)),
            pl.BlockSpec((Hd, C), lambda i: (0, 0)),
            pl.BlockSpec((1, C), lambda i: (0, 0)),
        ],
        out_specs=pl.BlockSpec((tm, C), lambda i: (i, 0)),
        compiler_params=pltpu.CompilerParams(
            dimension_semantics=("parallel",),
            vmem_limit_bytes=_vmem_limit(est)),
    )(shortcut2d, attn2d, p["norm2_g"], p["norm2_b"],
      p["fc1_w"], p["fc1_b"], p["fc2_w"], p["fc2_b"])


# ---------------------------------------------------------------------------
# glue: window partition / reverse, masks, parameter prep, block/layer forward
# ---------------------------------------------------------------------------
def _window_partition(x, ws):
    B, Hp, Wp, C = x.shape
    x = x.reshape(B, Hp // ws, ws, Wp // ws, ws, C)
    x = jnp.transpose(x, (0, 1, 3, 2, 4, 5))
    return x.reshape(-1, ws * ws, C)


def _window_reverse(w, ws, Hp, Wp):
    C = w.shape[-1]
    B = w.shape[0] // ((Hp // ws) * (Wp // ws))
    x = w.reshape(B, Hp // ws, Wp // ws, ws, ws, C)
    x = jnp.transpose(x, (0, 1, 3, 2, 4, 5))
    return x.reshape(B, Hp, Wp, C)


def build_attn_mask(H, W, ws):
    shift = ws // 2
    Hp = int(np.ceil(H / ws)) * ws
    Wp = int(np.ceil(W / ws)) * ws
    img_mask = np.zeros((1, Hp, Wp, 1), np.float32)
    slices = (slice(0, -ws), slice(-ws, -shift), slice(-shift, None))
    cnt = 0
    for h in slices:
        for w in slices:
            img_mask[:, h, w, :] = cnt
            cnt += 1
    mw = img_mask.reshape(1, Hp // ws, ws, Wp // ws, ws, 1)
    mw = mw.transpose(0, 1, 3, 2, 4, 5).reshape(-1, ws * ws)
    am = mw[:, None, :] - mw[:, :, None]
    am = np.where(am != 0, -100.0, 0.0).astype(np.float32)
    return jnp.asarray(am)  # (nW, N, N)


def _valid_window_mask(H, W, Hp, Wp, ws, shift):
    # 1.0 for real tokens, 0.0 for zero-padded tokens, after the same
    # roll + window-partition layout as the activations (static numpy).
    vm = np.zeros((1, Hp, Wp, 1), np.float32)
    vm[:, :H, :W, :] = 1.0
    if shift > 0:
        vm = np.roll(vm, shift=(-shift, -shift), axis=(1, 2))
    vm = vm.reshape(1, Hp // ws, ws, Wp // ws, ws, 1)
    vm = vm.transpose(0, 1, 3, 2, 4, 5).reshape(-1, ws * ws, 1)
    return jnp.asarray(vm)  # (nW, N, 1)


def _prepare_block_params(p, num_heads):
    # Done once per block: fold 1/sqrt(hd) into the Q part of qkv, cast all
    # GEMM weights to bf16, reshape biases/norm params for the kernels.
    C = p["proj_w"].shape[0]
    Hd = p["fc1_w"].shape[1]
    hd = C // num_heads
    scale = hd ** -0.5
    scale_vec = jnp.concatenate([jnp.full((C,), scale, jnp.float32),
                                 jnp.ones((2 * C,), jnp.float32)])
    return {
        "norm1_g": p["norm1_g"].reshape(1, C),
        "norm1_b": p["norm1_b"].reshape(1, C),
        "qkv_w": (p["qkv_w"] * scale_vec[None, :]).astype(jnp.bfloat16),
        "qkv_b": (p["qkv_b"] * scale_vec).reshape(1, 3 * C),
        "proj_w": p["proj_w"].astype(jnp.bfloat16),
        "proj_b": p["proj_b"].reshape(1, C),
        "rel_bias": p["rel_bias"],                       # (num_heads, N, N) f32
        "norm2_g": p["norm2_g"].reshape(1, C),
        "norm2_b": p["norm2_b"].reshape(1, C),
        "fc1_w": p["fc1_w"].astype(jnp.bfloat16),
        "fc1_b": p["fc1_b"].reshape(1, Hd),
        "fc2_w": p["fc2_w"].astype(jnp.bfloat16),
        "fc2_b": p["fc2_b"].reshape(1, C),
    }


def swin_block_forward(x, p, H, W, ws, shift, attn_mask, num_heads):
    B, L, C = x.shape
    shortcut = x

    pad_r = (ws - W % ws) % ws
    pad_b = (ws - H % ws) % ws
    Hp, Wp = H + pad_b, W + pad_r
    nW = (Hp // ws) * (Wp // ws)

    xs = x.reshape(B, H, W, C)
    if pad_r > 0 or pad_b > 0:
        # pad the *raw* activations with zeros; the attention kernel runs
        # norm1 and zeroes padded tokens via the validity mask (matches torch).
        xs = jnp.pad(xs, ((0, 0), (0, pad_b), (0, pad_r), (0, 0)))
        valid = _valid_window_mask(H, W, Hp, Wp, ws, shift)
    else:
        valid = None

    if shift > 0:
        xs = jnp.roll(xs, shift=(-shift, -shift), axis=(1, 2))
        mask = attn_mask                       # (nW, N, N), added in-kernel
    else:
        mask = None

    # TODO(synk): fold window partition/reverse into the attention kernel's
    # in/out index_maps (strip-shaped blocks over a (B, Hp/ws) grid) to remove
    # ~2 full-activation HBM round trips per block; kept as XLA glue for
    # lowering robustness (ws is usually not a multiple of 8).
    xw = _window_partition(xs, ws)                                   # (B*nW,N,C)
    aw = window_attention_pallas(xw, p, mask, valid, num_heads, nW)
    xr = _window_reverse(aw, ws, Hp, Wp)

    if shift > 0:
        xr = jnp.roll(xr, shift=(shift, shift), axis=(1, 2))
    if pad_r > 0 or pad_b > 0:
        xr = xr[:, :H, :W, :]
    attn_out = xr.reshape(B, L, C)

    # fused: residual + norm2 + MLP + residual (Pallas)
    out = mlp_block_pallas(shortcut.reshape(B * L, C),
                           attn_out.reshape(B * L, C), p)
    return out.reshape(B, L, C)


def basic_layer_forward(x, params_list, H, W, ws, num_heads):
    attn_mask = build_attn_mask(H, W, ws)
    for i, raw in enumerate(params_list):
        p = _prepare_block_params(raw, num_heads)
        shift = 0 if i % 2 == 0 else ws // 2
        x = swin_block_forward(x, p, H, W, ws, shift, attn_mask, num_heads)
    # downsample is None -> (x, H, W, x, H, W)
    return x, H, W, x, H, W


# ---------------------------------------------------------------------------
# deterministic parameter init (synthetic; mirrors module __init__ shapes)
# ---------------------------------------------------------------------------
def _relative_position_index(ws):
    coords = np.stack(np.meshgrid(np.arange(ws), np.arange(ws), indexing="ij"))
    cf = coords.reshape(2, -1)
    rel = cf[:, :, None] - cf[:, None, :]
    rel = rel.transpose(1, 2, 0).astype(np.int64)
    rel[:, :, 0] += ws - 1
    rel[:, :, 1] += ws - 1
    rel[:, :, 0] *= 2 * ws - 1
    return rel.sum(-1)  # (N, N)


def init_block_params(key, dim, num_heads, ws, mlp_ratio):
    N = ws * ws
    hidden = int(dim * mlp_ratio)
    k = jax.random.split(key, 9)
    std = 0.02
    f32 = jnp.float32
    table = std * jax.random.normal(k[0], ((2 * ws - 1) * (2 * ws - 1), num_heads), f32)
    rel_idx = _relative_position_index(ws)
    rel_bias = jnp.transpose(table[rel_idx.reshape(-1)].reshape(N, N, num_heads), (2, 0, 1))
    return {
        "norm1_g": jnp.ones((dim,), f32),
        "norm1_b": jnp.zeros((dim,), f32),
        "qkv_w": std * jax.random.normal(k[1], (dim, 3 * dim), f32),
        "qkv_b": std * jax.random.normal(k[2], (3 * dim,), f32),
        "proj_w": std * jax.random.normal(k[3], (dim, dim), f32),
        "proj_b": std * jax.random.normal(k[4], (dim,), f32),
        "rel_bias": rel_bias,
        "norm2_g": jnp.ones((dim,), f32),
        "norm2_b": jnp.zeros((dim,), f32),
        "fc1_w": std * jax.random.normal(k[5], (dim, hidden), f32),
        "fc1_b": std * jax.random.normal(k[6], (hidden,), f32),
        "fc2_w": std * jax.random.normal(k[7], (hidden, dim), f32),
        "fc2_b": std * jax.random.normal(k[8], (dim,), f32),
    }


# ---------------------------------------------------------------------------
# pure-JAX reference (mirrors the PyTorch forward) for the correctness check
# ---------------------------------------------------------------------------
def _ref_block(x, p, H, W, ws, shift, attn_mask, num_heads):
    B, L, C = x.shape
    scale = (C // num_heads) ** -0.5
    shortcut = x
    xn = _layernorm(x, p["norm1_g"], p["norm1_b"]).reshape(B, H, W, C)
    pad_r = (ws - W % ws) % ws
    pad_b = (ws - H % ws) % ws
    xn = jnp.pad(xn, ((0, 0), (0, pad_b), (0, pad_r), (0, 0)))
    Hp, Wp = H + pad_b, W + pad_r
    if shift > 0:
        xn = jnp.roll(xn, shift=(-shift, -shift), axis=(1, 2))
    xw = _window_partition(xn, ws)
    BW, N, _ = xw.shape
    qkv = xw @ p["qkv_w"] + p["qkv_b"]
    qkv = qkv.reshape(BW, N, 3, num_heads, C // num_heads).transpose(2, 0, 3, 1, 4)
    q, k, v = qkv[0] * scale, qkv[1], qkv[2]
    attn = q @ jnp.swapaxes(k, -2, -1) + p["rel_bias"][None]
    if shift > 0:
        nW = attn_mask.shape[0]
        attn = attn.reshape(BW // nW, nW, num_heads, N, N) + attn_mask[None, :, None]
        attn = attn.reshape(BW, num_heads, N, N)
    attn = jax.nn.softmax(attn, axis=-1)
    aw = (attn @ v).transpose(0, 2, 1, 3).reshape(BW, N, C)
    aw = aw @ p["proj_w"] + p["proj_b"]
    xr = _window_reverse(aw, ws, Hp, Wp)
    if shift > 0:
        xr = jnp.roll(xr, shift=(shift, shift), axis=(1, 2))
    xr = xr[:, :H, :W, :].reshape(B, L, C)
    x = shortcut + xr
    y = _layernorm(x, p["norm2_g"], p["norm2_b"])
    h = y @ p["fc1_w"] + p["fc1_b"]
    h = 0.5 * h * (1.0 + jax.scipy.special.erf(h / jnp.sqrt(2.0)))
    return x + (h @ p["fc2_w"] + p["fc2_b"])


def reference_basic_layer(x, params_list, H, W, ws, num_heads):
    attn_mask = build_attn_mask(H, W, ws)
    for i, p in enumerate(params_list):
        shift = 0 if i % 2 == 0 else ws // 2
        x = _ref_block(x, p, H, W, ws, shift, attn_mask, num_heads)
    return x


# ---------------------------------------------------------------------------
if __name__ == "__main__":
    def run_case(B, H, W, C, num_heads, window_size, depth, mlp_ratio, seed):
        key = jax.random.PRNGKey(seed)
        key, kx = jax.random.split(key)
        x = jax.random.normal(kx, (B, H * W, C), jnp.float32)

        params_list = []
        for _ in range(depth):
            key, kb = jax.random.split(key)
            params_list.append(init_block_params(kb, C, num_heads, window_size, mlp_ratio))

        fwd = jax.jit(basic_layer_forward, static_argnums=(2, 3, 4, 5))
        out, Ho, Wo, out_down, Hd_, Wd_ = fwd(x, params_list, H, W, window_size, num_heads)
        out = jax.block_until_ready(out)

        ref = reference_basic_layer(x, params_list, H, W, window_size, num_heads)
        np.testing.assert_allclose(np.asarray(out), np.asarray(ref), atol=2e-2, rtol=2e-2)
        assert out.shape == (B, H * W, C)
        assert (int(Ho), int(Wo), int(Hd_), int(Wd_)) == (H, W, H, W)

    # no-padding case: norm1 fused into the attention kernel, block 1 uses the
    # shifted-window mask path (rel_bias + mask added separately in-kernel).
    run_case(B=2, H=8, W=8, C=32, num_heads=4, window_size=4, depth=2,
             mlp_ratio=4.0, seed=0)
    # padded case (H, W not multiples of the window) exercises the fused
    # norm1 + token-validity-mask path.
    run_case(B=2, H=6, W=6, C=32, num_heads=4, window_size=4, depth=2,
             mlp_ratio=4.0, seed=1)

    print("KERNEL_OK")
</pallas_src>

<mosaic_0001>
module attributes {stable_mosaic.version = 11 : i64} {
  func.func @_attn_kernel(%arg0: i32, %arg1: memref<4x16x32xf32, #tpu.memory_space<vmem>>, %arg2: memref<1x32xf32, #tpu.memory_space<vmem>>, %arg3: memref<1x32xf32, #tpu.memory_space<vmem>>, %arg4: memref<32x96xbf16, #tpu.memory_space<vmem>>, %arg5: memref<1x96xf32, #tpu.memory_space<vmem>>, %arg6: memref<32x32xbf16, #tpu.memory_space<vmem>>, %arg7: memref<1x32xf32, #tpu.memory_space<vmem>>, %arg8: memref<4x16x16xf32, #tpu.memory_space<vmem>>, %arg9: memref<4x16x32xf32, #tpu.memory_space<vmem>>) attributes {dimension_semantics = [#tpu.dimension_semantics<parallel>], iteration_bounds = array<i64: 2>, scalar_prefetch = 0 : i64, scratch_operands = 0 : i64, tpu.core_type = #tpu.core_type<tc>, window_params = [{transform_indices = @transform_0, window_bounds = array<i64: 4, 16, 32>}, {pipeline_mode = #tpu.pipeline_mode<synchronous>, transform_indices = @transform_1, window_bounds = array<i64: 1, 32>}, {pipeline_mode = #tpu.pipeline_mode<synchronous>, transform_indices = @transform_2, window_bounds = array<i64: 1, 32>}, {pipeline_mode = #tpu.pipeline_mode<synchronous>, transform_indices = @transform_3, window_bounds = array<i64: 32, 96>}, {pipeline_mode = #tpu.pipeline_mode<synchronous>, transform_indices = @transform_4, window_bounds = array<i64: 1, 96>}, {pipeline_mode = #tpu.pipeline_mode<synchronous>, transform_indices = @transform_5, window_bounds = array<i64: 32, 32>}, {pipeline_mode = #tpu.pipeline_mode<synchronous>, transform_indices = @transform_6, window_bounds = array<i64: 1, 32>}, {pipeline_mode = #tpu.pipeline_mode<synchronous>, transform_indices = @transform_7, window_bounds = array<i64: 4, 16, 16>}, {transform_indices = @transform_8, window_bounds = array<i64: 4, 16, 32>}]} {
    %c0 = arith.constant 0 : index
    %c0_0 = arith.constant 0 : index
    %c0_1 = arith.constant 0 : index
    %0 = vector.load %arg1[%c0, %c0_0, %c0_1] : memref<4x16x32xf32, #tpu.memory_space<vmem>>, vector<4x16x32xf32>
    %1 = vector.shape_cast %0 : vector<4x16x32xf32> to vector<64x32xf32>
    %c0_2 = arith.constant 0 : index
    %c0_3 = arith.constant 0 : index
    %2 = vector.load %arg2[%c0_2, %c0_3] : memref<1x32xf32, #tpu.memory_space<vmem>>, vector<1x32xf32>
    %c0_4 = arith.constant 0 : index
    %c0_5 = arith.constant 0 : index
    %3 = vector.load %arg3[%c0_4, %c0_5] : memref<1x32xf32, #tpu.memory_space<vmem>>, vector<1x32xf32>
    %cst = arith.constant dense<0.000000e+00> : vector<64xf32>
    %4 = vector.multi_reduction <add>, %1, %cst [1] : vector<64x32xf32> to vector<64xf32>
    %5 = vector.shape_cast %4 : vector<64xf32> to vector<64x1xf32>
    %cst_6 = arith.constant 3.200000e+01 : f32
    %6 = vector.broadcast %cst_6 : f32 to vector<64x1xf32>
    %7 = arith.divf %5, %6 : vector<64x1xf32>
    %8 = vector.broadcast %7 : vector<64x1xf32> to vector<64x32xf32>
    %9 = arith.subf %1, %8 : vector<64x32xf32>
    %10 = arith.mulf %9, %9 : vector<64x32xf32>
    %cst_7 = arith.constant dense<0.000000e+00> : vector<64xf32>
    %11 = vector.multi_reduction <add>, %10, %cst_7 [1] : vector<64x32xf32> to vector<64xf32>
    %12 = vector.shape_cast %11 : vector<64xf32> to vector<64x1xf32>
    %cst_8 = arith.constant 3.200000e+01 : f32
    %13 = vector.broadcast %cst_8 : f32 to vector<64x1xf32>
    %14 = arith.divf %12, %13 : vector<64x1xf32>
    %15 = vector.broadcast %7 : vector<64x1xf32> to vector<64x32xf32>
    %16 = arith.subf %1, %15 : vector<64x32xf32>
    %cst_9 = arith.constant 9.99999974E-6 : f32
    %17 = vector.broadcast %cst_9 : f32 to vector<64x1xf32>
    %18 = arith.addf %14, %17 : vector<64x1xf32>
    %19 = math.rsqrt %18 : vector<64x1xf32>
    %20 = vector.broadcast %19 : vector<64x1xf32> to vector<64x32xf32>
    %21 = arith.mulf %16, %20 : vector<64x32xf32>
    %22 = vector.broadcast %2 : vector<1x32xf32> to vector<64x32xf32>
    %23 = arith.mulf %21, %22 : vector<64x32xf32>
    %24 = vector.broadcast %3 : vector<1x32xf32> to vector<64x32xf32>
    %25 = arith.addf %23, %24 : vector<64x32xf32>
    %26 = arith.truncf %25 : vector<64x32xf32> to vector<64x32xbf16>
    %c0_10 = arith.constant 0 : index
    %c0_11 = arith.constant 0 : index
    %27 = vector.load %arg4[%c0_10, %c0_11] : memref<32x96xbf16, #tpu.memory_space<vmem>>, vector<32x96xbf16>
    %cst_12 = arith.constant dense<0.000000e+00> : vector<64x96xf32>
    %28 = tpu.matmul %26, %27, %cst_12 {dimension_numbers = #tpu.dot_dimension_numbers<[1], [0], [0], [1], [0, 0, 1, 1], [], []>} : vector<64x32xbf16>, vector<32x96xbf16>, vector<64x96xf32> -> vector<64x96xf32>
    %c0_13 = arith.constant 0 : index
    %c0_14 = arith.constant 0 : index
    %29 = vector.load %arg5[%c0_13, %c0_14] : memref<1x96xf32, #tpu.memory_space<vmem>>, vector<1x96xf32>
    %30 = vector.shape_cast %29 : vector<1x96xf32> to vector<96xf32>
    %31 = vector.shape_cast %30 : vector<96xf32> to vector<1x96xf32>
    %32 = vector.broadcast %31 : vector<1x96xf32> to vector<64x96xf32>
    %33 = arith.addf %28, %32 : vector<64x96xf32>
    %34 = vector.shape_cast %33 : vector<64x96xf32> to vector<4x16x96xf32>
    %c0_15 = arith.constant 0 : index
    %c0_16 = arith.constant 0 : index
    %c0_17 = arith.constant 0 : index
    %35 = vector.load %arg8[%c0_15, %c0_16, %c0_17] : memref<4x16x16xf32, #tpu.memory_space<vmem>>, vector<4x16x16xf32>
    %cst_18 = arith.constant 0.000000e+00 : f32
    %36 = vector.broadcast %cst_18 : f32 to vector<64x32xf32>
    %37 = vector.extract_strided_slice %34 {offsets = [0, 0, 0], sizes = [4, 16, 8], strides = [1, 1, 1]} : vector<4x16x96xf32> to vector<4x16x8xf32>
    %38 = vector.extract_strided_slice %34 {offsets = [0, 0, 32], sizes = [4, 16, 8], strides = [1, 1, 1]} : vector<4x16x96xf32> to vector<4x16x8xf32>
    %39 = vector.extract_strided_slice %34 {offsets = [0, 0, 64], sizes = [4, 16, 8], strides = [1, 1, 1]} : vector<4x16x96xf32> to vector<4x16x8xf32>
    %40 = arith.truncf %37 : vector<4x16x8xf32> to vector<4x16x8xbf16>
    %41 = arith.truncf %38 : vector<4x16x8xf32> to vector<4x16x8xbf16>
    "tpu.trace_start"() <{level = 10 : i32, message = "bnd,bmd->bnm"}> : () -> ()
    %cst_19 = arith.constant dense<0.000000e+00> : vector<4x16x16xf32>
    %42 = tpu.matmul %40, %41, %cst_19 {dimension_numbers = #tpu.dot_dimension_numbers<[2], [2], [1], [1], [0, 0, 0, 1, 1, 1], [0], [0]>} : vector<4x16x8xbf16>, vector<4x16x8xbf16>, vector<4x16x16xf32> -> vector<4x16x16xf32>
    "tpu.trace_stop"() : () -> ()
    %43 = vector.extract_strided_slice %35 {offsets = [0, 0, 0], sizes = [1, 16, 16], strides = [1, 1, 1]} : vector<4x16x16xf32> to vector<1x16x16xf32>
    %44 = vector.shape_cast %43 : vector<1x16x16xf32> to vector<16x16xf32>
    %45 = vector.shape_cast %44 : vector<16x16xf32> to vector<1x16x16xf32>
    %46 = vector.broadcast %45 : vector<1x16x16xf32> to vector<4x16x16xf32>
    %47 = arith.addf %42, %46 : vector<4x16x16xf32>
    %cst_20 = arith.constant dense<0xFF800000> : vector<4x16xf32>
    %48 = vector.multi_reduction <maximumf>, %47, %cst_20 [2] : vector<4x16x16xf32> to vector<4x16xf32>
    %49 = vector.shape_cast %48 : vector<4x16xf32> to vector<4x16x1xf32>
    %50 = vector.broadcast %49 : vector<4x16x1xf32> to vector<4x16x16xf32>
    %51 = arith.subf %47, %50 : vector<4x16x16xf32>
    %52 = math.exp %51 : vector<4x16x16xf32>
    %cst_21 = arith.constant dense<0.000000e+00> : vector<4x16xf32>
    %53 = vector.multi_reduction <add>, %52, %cst_21 [2] : vector<4x16x16xf32> to vector<4x16xf32>
    %54 = vector.shape_cast %53 : vector<4x16xf32> to vector<4x16x1xf32>
    %55 = tpu.reciprocal %54 {approx = true} : vector<4x16x1xf32> -> vector<4x16x1xf32>
    %56 = vector.broadcast %55 : vector<4x16x1xf32> to vector<4x16x16xf32>
    %57 = arith.mulf %52, %56 : vector<4x16x16xf32>
    %58 = arith.truncf %57 : vector<4x16x16xf32> to vector<4x16x16xbf16>
    %59 = arith.truncf %39 : vector<4x16x8xf32> to vector<4x16x8xbf16>
    "tpu.trace_start"() <{level = 10 : i32, message = "bnm,bmd->bnd"}> : () -> ()
    %cst_22 = arith.constant dense<0.000000e+00> : vector<4x16x8xf32>
    %60 = tpu.matmul %58, %59, %cst_22 {dimension_numbers = #tpu.dot_dimension_numbers<[2], [1], [1], [2], [0, 0, 0, 1, 1, 2], [0], [0]>} : vector<4x16x16xbf16>, vector<4x16x8xbf16>, vector<4x16x8xf32> -> vector<4x16x8xf32>
    "tpu.trace_stop"() : () -> ()
    %61 = vector.shape_cast %60 : vector<4x16x8xf32> to vector<64x8xf32>
    %62 = arith.truncf %61 : vector<64x8xf32> to vector<64x8xbf16>
    %c0_23 = arith.constant 0 : index
    %c0_24 = arith.constant 0 : index
    %63 = vector.load %arg6[%c0_23, %c0_24] : memref<32x32xbf16, #tpu.memory_space<vmem>>, vector<8x32xbf16>
    %cst_25 = arith.constant dense<0.000000e+00> : vector<64x32xf32>
    %64 = tpu.matmul %62, %63, %cst_25 {dimension_numbers = #tpu.dot_dimension_numbers<[1], [0], [0], [1], [0, 0, 1, 1], [], []>} : vector<64x8xbf16>, vector<8x32xbf16>, vector<64x32xf32> -> vector<64x32xf32>
    %65 = arith.addf %36, %64 : vector<64x32xf32>
    %66 = vector.extract_strided_slice %34 {offsets = [0, 0, 8], sizes = [4, 16, 8], strides = [1, 1, 1]} : vector<4x16x96xf32> to vector<4x16x8xf32>
    %67 = vector.extract_strided_slice %34 {offsets = [0, 0, 40], sizes = [4, 16, 8], strides = [1, 1, 1]} : vector<4x16x96xf32> to vector<4x16x8xf32>
    %68 = vector.extract_strided_slice %34 {offsets = [0, 0, 72], sizes = [4, 16, 8], strides = [1, 1, 1]} : vector<4x16x96xf32> to vector<4x16x8xf32>
    %69 = arith.truncf %66 : vector<4x16x8xf32> to vector<4x16x8xbf16>
    %70 = arith.truncf %67 : vector<4x16x8xf32> to vector<4x16x8xbf16>
    "tpu.trace_start"() <{level = 10 : i32, message = "bnd,bmd->bnm"}> : () -> ()
    %cst_26 = arith.constant dense<0.000000e+00> : vector<4x16x16xf32>
    %71 = tpu.matmul %69, %70, %cst_26 {dimension_numbers = #tpu.dot_dimension_numbers<[2], [2], [1], [1], [0, 0, 0, 1, 1, 1], [0], [0]>} : vector<4x16x8xbf16>, vector<4x16x8xbf16>, vector<4x16x16xf32> -> vector<4x16x16xf32>
    "tpu.trace_stop"() : () -> ()
    %72 = vector.extract_strided_slice %35 {offsets = [1, 0, 0], sizes = [1, 16, 16], strides = [1, 1, 1]} : vector<4x16x16xf32> to vector<1x16x16xf32>
    %73 = vector.shape_cast %72 : vector<1x16x16xf32> to vector<16x16xf32>
    %74 = vector.shape_cast %73 : vector<16x16xf32> to vector<1x16x16xf32>
    %75 = vector.broadcast %74 : vector<1x16x16xf32> to vector<4x16x16xf32>
    %76 = arith.addf %71, %75 : vector<4x16x16xf32>
    %cst_27 = arith.constant dense<0xFF800000> : vector<4x16xf32>
    %77 = vector.multi_reduction <maximumf>, %76, %cst_27 [2] : vector<4x16x16xf32> to vector<4x16xf32>
    %78 = vector.shape_cast %77 : vector<4x16xf32> to vector<4x16x1xf32>
    %79 = vector.broadcast %78 : vector<4x16x1xf32> to vector<4x16x16xf32>
    %80 = arith.subf %76, %79 : vector<4x16x16xf32>
    %81 = math.exp %80 : vector<4x16x16xf32>
    %cst_28 = arith.constant dense<0.000000e+00> : vector<4x16xf32>
    %82 = vector.multi_reduction <add>, %81, %cst_28 [2] : vector<4x16x16xf32> to vector<4x16xf32>
    %83 = vector.shape_cast %82 : vector<4x16xf32> to vector<4x16x1xf32>
    %84 = tpu.reciprocal %83 {approx = true} : vector<4x16x1xf32> -> vector<4x16x1xf32>
    %85 = vector.broadcast %84 : vector<4x16x1xf32> to vector<4x16x16xf32>
    %86 = arith.mulf %81, %85 : vector<4x16x16xf32>
    %87 = arith.truncf %86 : vector<4x16x16xf32> to vector<4x16x16xbf16>
    %88 = arith.truncf %68 : vector<4x16x8xf32> to vector<4x16x8xbf16>
    "tpu.trace_start"() <{level = 10 : i32, message = "bnm,bmd->bnd"}> : () -> ()
    %cst_29 = arith.constant dense<0.000000e+00> : vector<4x16x8xf32>
    %89 = tpu.matmul %87, %88, %cst_29 {dimension_numbers = #tpu.dot_dimension_numbers<[2], [1], [1], [2], [0, 0, 0, 1, 1, 2], [0], [0]>} : vector<4x16x16xbf16>, vector<4x16x8xbf16>, vector<4x16x8xf32> -> vector<4x16x8xf32>
    "tpu.trace_stop"() : () -> ()
    %90 = vector.shape_cast %89 : vector<4x16x8xf32> to vector<64x8xf32>
    %91 = arith.truncf %90 : vector<64x8xf32> to vector<64x8xbf16>
    %c8 = arith.constant 8 : index
    %c0_30 = arith.constant 0 : index
    %92 = vector.load %arg6[%c8, %c0_30] : memref<32x32xbf16, #tpu.memory_space<vmem>>, vector<8x32xbf16>
    %cst_31 = arith.constant dense<0.000000e+00> : vector<64x32xf32>
    %93 = tpu.matmul %91, %92, %cst_31 {dimension_numbers = #tpu.dot_dimension_numbers<[1], [0], [0], [1], [0, 0, 1, 1], [], []>} : vector<64x8xbf16>, vector<8x32xbf16>, vector<64x32xf32> -> vector<64x32xf32>
    %94 = arith.addf %65, %93 : vector<64x32xf32>
    %95 = vector.extract_strided_slice %34 {offsets = [0, 0, 16], sizes = [4, 16, 8], strides = [1, 1, 1]} : vector<4x16x96xf32> to vector<4x16x8xf32>
    %96 = vector.extract_strided_slice %34 {offsets = [0, 0, 48], sizes = [4, 16, 8], strides = [1, 1, 1]} : vector<4x16x96xf32> to vector<4x16x8xf32>
    %97 = vector.extract_strided_slice %34 {offsets = [0, 0, 80], sizes = [4, 16, 8], strides = [1, 1, 1]} : vector<4x16x96xf32> to vector<4x16x8xf32>
    %98 = arith.truncf %95 : vector<4x16x8xf32> to vector<4x16x8xbf16>
    %99 = arith.truncf %96 : vector<4x16x8xf32> to vector<4x16x8xbf16>
    "tpu.trace_start"() <{level = 10 : i32, message = "bnd,bmd->bnm"}> : () -> ()
    %cst_32 = arith.constant dense<0.000000e+00> : vector<4x16x16xf32>
    %100 = tpu.matmul %98, %99, %cst_32 {dimension_numbers = #tpu.dot_dimension_numbers<[2], [2], [1], [1], [0, 0, 0, 1, 1, 1], [0], [0]>} : vector<4x16x8xbf16>, vector<4x16x8xbf16>, vector<4x16x16xf32> -> vector<4x16x16xf32>
    "tpu.trace_stop"() : () -> ()
    %101 = vector.extract_strided_slice %35 {offsets = [2, 0, 0], sizes = [1, 16, 16], strides = [1, 1, 1]} : vector<4x16x16xf32> to vector<1x16x16xf32>
    %102 = vector.shape_cast %101 : vector<1x16x16xf32> to vector<16x16xf32>
    %103 = vector.shape_cast %102 : vector<16x16xf32> to vector<1x16x16xf32>
    %104 = vector.broadcast %103 : vector<1x16x16xf32> to vector<4x16x16xf32>
    %105 = arith.addf %100, %104 : vector<4x16x16xf32>
    %cst_33 = arith.constant dense<0xFF800000> : vector<4x16xf32>
    %106 = vector.multi_reduction <maximumf>, %105, %cst_33 [2] : vector<4x16x16xf32> to vector<4x16xf32>
    %107 = vector.shape_cast %106 : vector<4x16xf32> to vector<4x16x1xf32>
    %108 = vector.broadcast %107 : vector<4x16x1xf32> to vector<4x16x16xf32>
    %109 = arith.subf %105, %108 : vector<4x16x16xf32>
    %110 = math.exp %109 : vector<4x16x16xf32>
    %cst_34 = arith.constant dense<0.000000e+00> : vector<4x16xf32>
    %111 = vector.multi_reduction <add>, %110, %cst_34 [2] : vector<4x16x16xf32> to vector<4x16xf32>
    %112 = vector.shape_cast %111 : vector<4x16xf32> to vector<4x16x1xf32>
    %113 = tpu.reciprocal %112 {approx = true} : vector<4x16x1xf32> -> vector<4x16x1xf32>
    %114 = vector.broadcast %113 : vector<4x16x1xf32> to vector<4x16x16xf32>
    %115 = arith.mulf %110, %114 : vector<4x16x16xf32>
    %116 = arith.truncf %115 : vector<4x16x16xf32> to vector<4x16x16xbf16>
    %117 = arith.truncf %97 : vector<4x16x8xf32> to vector<4x16x8xbf16>
    "tpu.trace_start"() <{level = 10 : i32, message = "bnm,bmd->bnd"}> : () -> ()
    %cst_35 = arith.constant dense<0.000000e+00> : vector<4x16x8xf32>
    %118 = tpu.matmul %116, %117, %cst_35 {dimension_numbers = #tpu.dot_dimension_numbers<[2], [1], [1], [2], [0, 0, 0, 1, 1, 2], [0], [0]>} : vector<4x16x16xbf16>, vector<4x16x8xbf16>, vector<4x16x8xf32> -> vector<4x16x8xf32>
    "tpu.trace_stop"() : () -> ()
    %119 = vector.shape_cast %118 : vector<4x16x8xf32> to vector<64x8xf32>
    %120 = arith.truncf %119 : vector<64x8xf32> to vector<64x8xbf16>
    %c16 = arith.constant 16 : index
    %c0_36 = arith.constant 0 : index
    %121 = vector.load %arg6[%c16, %c0_36] : memref<32x32xbf16, #tpu.memory_space<vmem>>, vector<8x32xbf16>
    %cst_37 = arith.constant dense<0.000000e+00> : vector<64x32xf32>
    %122 = tpu.matmul %120, %121, %cst_37 {dimension_numbers = #tpu.dot_dimension_numbers<[1], [0], [0], [1], [0, 0, 1, 1], [], []>} : vector<64x8xbf16>, vector<8x32xbf16>, vector<64x32xf32> -> vector<64x32xf32>
    %123 = arith.addf %94, %122 : vector<64x32xf32>
    %124 = vector.extract_strided_slice %34 {offsets = [0, 0, 24], sizes = [4, 16, 8], strides = [1, 1, 1]} : vector<4x16x96xf32> to vector<4x16x8xf32>
    %125 = vector.extract_strided_slice %34 {offsets = [0, 0, 56], sizes = [4, 16, 8], strides = [1, 1, 1]} : vector<4x16x96xf32> to vector<4x16x8xf32>
    %126 = vector.extract_strided_slice %34 {offsets = [0, 0, 88], sizes = [4, 16, 8], strides = [1, 1, 1]} : vector<4x16x96xf32> to vector<4x16x8xf32>
    %127 = arith.truncf %124 : vector<4x16x8xf32> to vector<4x16x8xbf16>
    %128 = arith.truncf %125 : vector<4x16x8xf32> to vector<4x16x8xbf16>
    "tpu.trace_start"() <{level = 10 : i32, message = "bnd,bmd->bnm"}> : () -> ()
    %cst_38 = arith.constant dense<0.000000e+00> : vector<4x16x16xf32>
    %129 = tpu.matmul %127, %128, %cst_38 {dimension_numbers = #tpu.dot_dimension_numbers<[2], [2], [1], [1], [0, 0, 0, 1, 1, 1], [0], [0]>} : vector<4x16x8xbf16>, vector<4x16x8xbf16>, vector<4x16x16xf32> -> vector<4x16x16xf32>
    "tpu.trace_stop"() : () -> ()
    %130 = vector.extract_strided_slice %35 {offsets = [3, 0, 0], sizes = [1, 16, 16], strides = [1, 1, 1]} : vector<4x16x16xf32> to vector<1x16x16xf32>
    %131 = vector.shape_cast %130 : vector<1x16x16xf32> to vector<16x16xf32>
    %132 = vector.shape_cast %131 : vector<16x16xf32> to vector<1x16x16xf32>
    %133 = vector.broadcast %132 : vector<1x16x16xf32> to vector<4x16x16xf32>
    %134 = arith.addf %129, %133 : vector<4x16x16xf32>
    %cst_39 = arith.constant dense<0xFF800000> : vector<4x16xf32>
    %135 = vector.multi_reduction <maximumf>, %134, %cst_39 [2] : vector<4x16x16xf32> to vector<4x16xf32>
    %136 = vector.shape_cast %135 : vector<4x16xf32> to vector<4x16x1xf32>
    %137 = vector.broadcast %136 : vector<4x16x1xf32> to vector<4x16x16xf32>
    %138 = arith.subf %134, %137 : vector<4x16x16xf32>
    %139 = math.exp %138 : vector<4x16x16xf32>
    %cst_40 = arith.constant dense<0.000000e+00> : vector<4x16xf32>
    %140 = vector.multi_reduction <add>, %139, %cst_40 [2] : vector<4x16x16xf32> to vector<4x16xf32>
    %141 = vector.shape_cast %140 : vector<4x16xf32> to vector<4x16x1xf32>
    %142 = tpu.reciprocal %141 {approx = true} : vector<4x16x1xf32> -> vector<4x16x1xf32>
    %143 = vector.broadcast %142 : vector<4x16x1xf32> to vector<4x16x16xf32>
    %144 = arith.mulf %139, %143 : vector<4x16x16xf32>
    %145 = arith.truncf %144 : vector<4x16x16xf32> to vector<4x16x16xbf16>
    %146 = arith.truncf %126 : vector<4x16x8xf32> to vector<4x16x8xbf16>
    "tpu.trace_start"() <{level = 10 : i32, message = "bnm,bmd->bnd"}> : () -> ()
    %cst_41 = arith.constant dense<0.000000e+00> : vector<4x16x8xf32>
    %147 = tpu.matmul %145, %146, %cst_41 {dimension_numbers = #tpu.dot_dimension_numbers<[2], [1], [1], [2], [0, 0, 0, 1, 1, 2], [0], [0]>} : vector<4x16x16xbf16>, vector<4x16x8xbf16>, vector<4x16x8xf32> -> vector<4x16x8xf32>
    "tpu.trace_stop"() : () -> ()
    %148 = vector.shape_cast %147 : vector<4x16x8xf32> to vector<64x8xf32>
    %149 = arith.truncf %148 : vector<64x8xf32> to vector<64x8xbf16>
    %c24 = arith.constant 24 : index
    %c0_42 = arith.constant 0 : index
    %150 = vector.load %arg6[%c24, %c0_42] : memref<32x32xbf16, #tpu.memory_space<vmem>>, vector<8x32xbf16>
    %cst_43 = arith.constant dense<0.000000e+00> : vector<64x32xf32>
    %151 = tpu.matmul %149, %150, %cst_43 {dimension_numbers = #tpu.dot_dimension_numbers<[1], [0], [0], [1], [0, 0, 1, 1], [], []>} : vector<64x8xbf16>, vector<8x32xbf16>, vector<64x32xf32> -> vector<64x32xf32>
    %152 = arith.addf %123, %151 : vector<64x32xf32>
    %c0_44 = arith.constant 0 : index
    %c0_45 = arith.constant 0 : index
    %153 = vector.load %arg7[%c0_44, %c0_45] : memref<1x32xf32, #tpu.memory_space<vmem>>, vector<1x32xf32>
    %154 = vector.shape_cast %153 : vector<1x32xf32> to vector<32xf32>
    %155 = vector.shape_cast %154 : vector<32xf32> to vector<1x32xf32>
    %156 = vector.broadcast %155 : vector<1x32xf32> to vector<64x32xf32>
    %157 = arith.addf %152, %156 : vector<64x32xf32>
    %158 = vector.shape_cast %157 : vector<64x32xf32> to vector<4x16x32xf32>
    %c0_46 = arith.constant 0 : index
    %c0_47 = arith.constant 0 : index
    %c0_48 = arith.constant 0 : index
    %159 = vector.load %arg9[%c0_46, %c0_47, %c0_48] : memref<4x16x32xf32, #tpu.memory_space<vmem>>, vector<4x16x32xf32>
    tpu.vector_store %arg9[%c0_46, %c0_47, %c0_48], %158 {strides = array<i32>} : memref<4x16x32xf32, #tpu.memory_space<vmem>>, vector<4x16x32xf32>,
    return
  }
  func.func @transform_0(%arg0: i32) -> (i32, i32, i32) {
    %c0_i32 = arith.constant 0 : i32
    %c0_i32_0 = arith.constant 0 : i32
    %c0_i32_1 = arith.constant 0 : i32
    return %arg0, %c0_i32, %c0_i32_0 : i32, i32, i32
  }
  func.func @transform_1(%arg0: i32) -> (i32, i32) {
    %c0_i32 = arith.constant 0 : i32
    %c0_i32_0 = arith.constant 0 : i32
    %c0_i32_1 = arith.constant 0 : i32
    return %c0_i32, %c0_i32_0 : i32, i32
  }
  func.func @transform_2(%arg0: i32) -> (i32, i32) {
    %c0_i32 = arith.constant 0 : i32
    %c0_i32_0 = arith.constant 0 : i32
    %c0_i32_1 = arith.constant 0 : i32
    return %c0_i32, %c0_i32_0 : i32, i32
  }
  func.func @transform_3(%arg0: i32) -> (i32, i32) {
    %c0_i32 = arith.constant 0 : i32
    %c0_i32_0 = arith.constant 0 : i32
    %c0_i32_1 = arith.constant 0 : i32
    return %c0_i32, %c0_i32_0 : i32, i32
  }
  func.func @transform_4(%arg0: i32) -> (i32, i32) {
    %c0_i32 = arith.constant 0 : i32
    %c0_i32_0 = arith.constant 0 : i32
    %c0_i32_1 = arith.constant 0 : i32
    return %c0_i32, %c0_i32_0 : i32, i32
  }
  func.func @transform_5(%arg0: i32) -> (i32, i32) {
    %c0_i32 = arith.constant 0 : i32
    %c0_i32_0 = arith.constant 0 : i32
    %c0_i32_1 = arith.constant 0 : i32
    return %c0_i32, %c0_i32_0 : i32, i32
  }
  func.func @transform_6(%arg0: i32) -> (i32, i32) {
    %c0_i32 = arith.constant 0 : i32
    %c0_i32_0 = arith.constant 0 : i32
    %c0_i32_1 = arith.constant 0 : i32
    return %c0_i32, %c0_i32_0 : i32, i32
  }
  func.func @transform_7(%arg0: i32) -> (i32, i32, i32) {
    %c0_i32 = arith.constant 0 : i32
    %c0_i32_0 = arith.constant 0 : i32
    %c0_i32_1 = arith.constant 0 : i32
    %c0_i32_2 = arith.constant 0 : i32
    return %c0_i32, %c0_i32_0, %c0_i32_1 : i32, i32, i32
  }
  func.func @transform_8(%arg0: i32) -> (i32, i32, i32) {
    %c0_i32 = arith.constant 0 : i32
    %c0_i32_0 = arith.constant 0 : i32
    %c0_i32_1 = arith.constant 0 : i32
    return %arg0, %c0_i32, %c0_i32_0 : i32, i32, i32
  }
}

module attributes {stable_mosaic.version = 11 : i64} {
  func.func @_mlp_block_kernel(%arg0: i32, %arg1: memref<128x32xf32, #tpu.memory_space<vmem>>, %arg2: memref<128x32xf32, #tpu.memory_space<vmem>>, %arg3: memref<1x32xf32, #tpu.memory_space<vmem>>, %arg4: memref<1x32xf32, #tpu.memory_space<vmem>>, %arg5: memref<32x128xbf16, #tpu.memory_space<vmem>>, %arg6: memref<1x128xf32, #tpu.memory_space<vmem>>, %arg7: memref<128x32xbf16, #tpu.memory_space<vmem>>, %arg8: memref<1x32xf32, #tpu.memory_space<vmem>>, %arg9: memref<128x32xf32, #tpu.memory_space<vmem>>) attributes {dimension_semantics = [#tpu.dimension_semantics<parallel>], iteration_bounds = array<i64: 1>, scalar_prefetch = 0 : i64, scratch_operands = 0 : i64, tpu.core_type = #tpu.core_type<tc>, window_params = [{transform_indices = @transform_0, window_bounds = array<i64: 128, 32>}, {transform_indices = @transform_1, window_bounds = array<i64: 128, 32>}, {pipeline_mode = #tpu.pipeline_mode<synchronous>, transform_indices = @transform_2, window_bounds = array<i64: 1, 32>}, {pipeline_mode = #tpu.pipeline_mode<synchronous>, transform_indices = @transform_3, window_bounds = array<i64: 1, 32>}, {pipeline_mode = #tpu.pipeline_mode<synchronous>, transform_indices = @transform_4, window_bounds = array<i64: 32, 128>}, {pipeline_mode = #tpu.pipeline_mode<synchronous>, transform_indices = @transform_5, window_bounds = array<i64: 1, 128>}, {pipeline_mode = #tpu.pipeline_mode<synchronous>, transform_indices = @transform_6, window_bounds = array<i64: 128, 32>}, {pipeline_mode = #tpu.pipeline_mode<synchronous>, transform_indices = @transform_7, window_bounds = array<i64: 1, 32>}, {transform_indices = @transform_8, window_bounds = array<i64: 128, 32>}]} {
    %c0 = arith.constant 0 : index
    %c0_0 = arith.constant 0 : index
    %0 = vector.load %arg1[%c0, %c0_0] : memref<128x32xf32, #tpu.memory_space<vmem>>, vector<128x32xf32>
    %c0_1 = arith.constant 0 : index
    %c0_2 = arith.constant 0 : index
    %1 = vector.load %arg2[%c0_1, %c0_2] : memref<128x32xf32, #tpu.memory_space<vmem>>, vector<128x32xf32>
    %2 = arith.addf %0, %1 : vector<128x32xf32>
    %c0_3 = arith.constant 0 : index
    %c0_4 = arith.constant 0 : index
    %3 = vector.load %arg3[%c0_3, %c0_4] : memref<1x32xf32, #tpu.memory_space<vmem>>, vector<1x32xf32>
    %c0_5 = arith.constant 0 : index
    %c0_6 = arith.constant 0 : index
    %4 = vector.load %arg4[%c0_5, %c0_6] : memref<1x32xf32, #tpu.memory_space<vmem>>, vector<1x32xf32>
    %cst = arith.constant dense<0.000000e+00> : vector<128xf32>
    %5 = vector.multi_reduction <add>, %2, %cst [1] : vector<128x32xf32> to vector<128xf32>
    %6 = vector.shape_cast %5 : vector<128xf32> to vector<128x1xf32>
    %cst_7 = arith.constant 3.200000e+01 : f32
    %7 = vector.broadcast %cst_7 : f32 to vector<128x1xf32>
    %8 = arith.divf %6, %7 : vector<128x1xf32>
    %9 = vector.broadcast %8 : vector<128x1xf32> to vector<128x32xf32>
    %10 = arith.subf %2, %9 : vector<128x32xf32>
    %11 = arith.mulf %10, %10 : vector<128x32xf32>
    %cst_8 = arith.constant dense<0.000000e+00> : vector<128xf32>
    %12 = vector.multi_reduction <add>, %11, %cst_8 [1] : vector<128x32xf32> to vector<128xf32>
    %13 = vector.shape_cast %12 : vector<128xf32> to vector<128x1xf32>
    %cst_9 = arith.constant 3.200000e+01 : f32
    %14 = vector.broadcast %cst_9 : f32 to vector<128x1xf32>
    %15 = arith.divf %13, %14 : vector<128x1xf32>
    %16 = vector.broadcast %8 : vector<128x1xf32> to vector<128x32xf32>
    %17 = arith.subf %2, %16 : vector<128x32xf32>
    %cst_10 = arith.constant 9.99999974E-6 : f32
    %18 = vector.broadcast %cst_10 : f32 to vector<128x1xf32>
    %19 = arith.addf %15, %18 : vector<128x1xf32>
    %20 = math.rsqrt %19 : vector<128x1xf32>
    %21 = vector.broadcast %20 : vector<128x1xf32> to vector<128x32xf32>
    %22 = arith.mulf %17, %21 : vector<128x32xf32>
    %23 = vector.broadcast %3 : vector<1x32xf32> to vector<128x32xf32>
    %24 = arith.mulf %22, %23 : vector<128x32xf32>
    %25 = vector.broadcast %4 : vector<1x32xf32> to vector<128x32xf32>
    %26 = arith.addf %24, %25 : vector<128x32xf32>
    %27 = arith.truncf %26 : vector<128x32xf32> to vector<128x32xbf16>
    %c0_11 = arith.constant 0 : index
    %c0_12 = arith.constant 0 : index
    %28 = vector.load %arg5[%c0_11, %c0_12] : memref<32x128xbf16, #tpu.memory_space<vmem>>, vector<32x128xbf16>
    %cst_13 = arith.constant dense<0.000000e+00> : vector<128x128xf32>
    %29 = tpu.matmul %27, %28, %cst_13 {dimension_numbers = #tpu.dot_dimension_numbers<[1], [0], [0], [1], [0, 0, 1, 1], [], []>} : vector<128x32xbf16>, vector<32x128xbf16>, vector<128x128xf32> -> vector<128x128xf32>
    %c0_14 = arith.constant 0 : index
    %c0_15 = arith.constant 0 : index
    %30 = vector.load %arg6[%c0_14, %c0_15] : memref<1x128xf32, #tpu.memory_space<vmem>>, vector<1x128xf32>
    %31 = vector.shape_cast %30 : vector<1x128xf32> to vector<128xf32>
    %32 = vector.shape_cast %31 : vector<128xf32> to vector<1x128xf32>
    %33 = vector.broadcast %32 : vector<1x128xf32> to vector<128x128xf32>
    %34 = arith.addf %29, %33 : vector<128x128xf32>
    %cst_16 = arith.constant 5.000000e-01 : f32
    %35 = vector.broadcast %cst_16 : f32 to vector<128x128xf32>
    %36 = arith.mulf %35, %34 : vector<128x128xf32>
    %cst_17 = arith.constant 4.471500e-02 : f32
    %37 = vector.broadcast %cst_17 : f32 to vector<128x128xf32>
    %38 = arith.mulf %37, %34 : vector<128x128xf32>
    %39 = arith.mulf %38, %34 : vector<128x128xf32>
    %40 = arith.mulf %39, %34 : vector<128x128xf32>
    %41 = arith.addf %34, %40 : vector<128x128xf32>
    %cst_18 = arith.constant 0.797884583 : f32
    %42 = vector.broadcast %cst_18 : f32 to vector<128x128xf32>
    %43 = arith.mulf %42, %41 : vector<128x128xf32>
    %44 = math.tanh %43 : vector<128x128xf32>
    %cst_19 = arith.constant 1.000000e+00 : f32
    %45 = vector.broadcast %cst_19 : f32 to vector<128x128xf32>
    %46 = arith.addf %45, %44 : vector<128x128xf32>
    %47 = arith.mulf %36, %46 : vector<128x128xf32>
    %48 = arith.truncf %47 : vector<128x128xf32> to vector<128x128xbf16>
    %c0_20 = arith.constant 0 : index
    %c0_21 = arith.constant 0 : index
    %49 = vector.load %arg7[%c0_20, %c0_21] : memref<128x32xbf16, #tpu.memory_space<vmem>>, vector<128x32xbf16>
    %cst_22 = arith.constant dense<0.000000e+00> : vector<128x32xf32>
    %50 = tpu.matmul %48, %49, %cst_22 {dimension_numbers = #tpu.dot_dimension_numbers<[1], [0], [0], [1], [0, 0, 1, 1], [], []>} : vector<128x128xbf16>, vector<128x32xbf16>, vector<128x32xf32> -> vector<128x32xf32>
    %c0_23 = arith.constant 0 : index
    %c0_24 = arith.constant 0 : index
    %51 = vector.load %arg8[%c0_23, %c0_24] : memref<1x32xf32, #tpu.memory_space<vmem>>, vector<1x32xf32>
    %52 = vector.shape_cast %51 : vector<1x32xf32> to vector<32xf32>
    %53 = vector.shape_cast %52 : vector<32xf32> to vector<1x32xf32>
    %54 = vector.broadcast %53 : vector<1x32xf32> to vector<128x32xf32>
    %55 = arith.addf %50, %54 : vector<128x32xf32>
    %56 = arith.addf %2, %55 : vector<128x32xf32>
    %c0_25 = arith.constant 0 : index
    %c0_26 = arith.constant 0 : index
    %57 = vector.load %arg9[%c0_25, %c0_26] : memref<128x32xf32, #tpu.memory_space<vmem>>, vector<128x32xf32>
    tpu.vector_store %arg9[%c0_25, %c0_26], %56 {strides = array<i32>} : memref<128x32xf32, #tpu.memory_space<vmem>>, vector<128x32xf32>,
    return
  }
  func.func @transform_0(%arg0: i32) -> (i32, i32) {
    %c0_i32 = arith.constant 0 : i32
    %c0_i32_0 = arith.constant 0 : i32
    return %arg0, %c0_i32 : i32, i32
  }
  func.func @transform_1(%arg0: i32) -> (i32, i32) {
    %c0_i32 = arith.constant 0 : i32
    %c0_i32_0 = arith.constant 0 : i32
    return %arg0, %c0_i32 : i32, i32
  }
  func.func @transform_2(%arg0: i32) -> (i32, i32) {
    %c0_i32 = arith.constant 0 : i32
    %c0_i32_0 = arith.constant 0 : i32
    %c0_i32_1 = arith.constant 0 : i32
    return %c0_i32, %c0_i32_0 : i32, i32
  }
  func.func @transform_3(%arg0: i32) -> (i32, i32) {
    %c0_i32 = arith.constant 0 : i32
    %c0_i32_0 = arith.constant 0 : i32
    %c0_i32_1 = arith.constant 0 : i32
    return %c0_i32, %c0_i32_0 : i32, i32
  }
  func.func @transform_4(%arg0: i32) -> (i32, i32) {
    %c0_i32 = arith.constant 0 : i32
    %c0_i32_0 = arith.constant 0 : i32
    %c0_i32_1 = arith.constant 0 : i32
    return %c0_i32, %c0_i32_0 : i32, i32
  }
  func.func @transform_5(%arg0: i32) -> (i32, i32) {
    %c0_i32 = arith.constant 0 : i32
    %c0_i32_0 = arith.constant 0 : i32
    %c0_i32_1 = arith.constant 0 : i32
    return %c0_i32, %c0_i32_0 : i32, i32
  }
  func.func @transform_6(%arg0: i32) -> (i32, i32) {
    %c0_i32 = arith.constant 0 : i32
    %c0_i32_0 = arith.constant 0 : i32
    %c0_i32_1 = arith.constant 0 : i32
    return %c0_i32, %c0_i32_0 : i32, i32
  }
  func.func @transform_7(%arg0: i32) -> (i32, i32) {
    %c0_i32 = arith.constant 0 : i32
    %c0_i32_0 = arith.constant 0 : i32
    %c0_i32_1 = arith.constant 0 : i32
    return %c0_i32, %c0_i32_0 : i32, i32
  }
  func.func @transform_8(%arg0: i32) -> (i32, i32) {
    %c0_i32 = arith.constant 0 : i32
    %c0_i32_0 = arith.constant 0 : i32
    return %arg0, %c0_i32 : i32, i32
  }
}

module attributes {stable_mosaic.version = 11 : i64} {
  func.func @_attn_kernel(%arg0: i32, %arg1: memref<4x16x32xf32, #tpu.memory_space<vmem>>, %arg2: memref<1x32xf32, #tpu.memory_space<vmem>>, %arg3: memref<1x32xf32, #tpu.memory_space<vmem>>, %arg4: memref<32x96xbf16, #tpu.memory_space<vmem>>, %arg5: memref<1x96xf32, #tpu.memory_space<vmem>>, %arg6: memref<32x32xbf16, #tpu.memory_space<vmem>>, %arg7: memref<1x32xf32, #tpu.memory_space<vmem>>, %arg8: memref<4x16x16xf32, #tpu.memory_space<vmem>>, %arg9: memref<4x16x16xf32, #tpu.memory_space<vmem>>, %arg10: memref<4x16x32xf32, #tpu.memory_space<vmem>>) attributes {dimension_semantics = [#tpu.dimension_semantics<parallel>], iteration_bounds = array<i64: 2>, scalar_prefetch = 0 : i64, scratch_operands = 0 : i64, tpu.core_type = #tpu.core_type<tc>, window_params = [{transform_indices = @transform_0, window_bounds = array<i64: 4, 16, 32>}, {pipeline_mode = #tpu.pipeline_mode<synchronous>, transform_indices = @transform_1, window_bounds = array<i64: 1, 32>}, {pipeline_mode = #tpu.pipeline_mode<synchronous>, transform_indices = @transform_2, window_bounds = array<i64: 1, 32>}, {pipeline_mode = #tpu.pipeline_mode<synchronous>, transform_indices = @transform_3, window_bounds = array<i64: 32, 96>}, {pipeline_mode = #tpu.pipeline_mode<synchronous>, transform_indices = @transform_4, window_bounds = array<i64: 1, 96>}, {pipeline_mode = #tpu.pipeline_mode<synchronous>, transform_indices = @transform_5, window_bounds = array<i64: 32, 32>}, {pipeline_mode = #tpu.pipeline_mode<synchronous>, transform_indices = @transform_6, window_bounds = array<i64: 1, 32>}, {pipeline_mode = #tpu.pipeline_mode<synchronous>, transform_indices = @transform_7, window_bounds = array<i64: 4, 16, 16>}, {transform_indices = @transform_8, window_bounds = array<i64: 4, 16, 16>}, {transform_indices = @transform_9, window_bounds = array<i64: 4, 16, 32>}]} {
    %c0 = arith.constant 0 : index
    %c0_0 = arith.constant 0 : index
    %c0_1 = arith.constant 0 : index
    %0 = vector.load %arg1[%c0, %c0_0, %c0_1] : memref<4x16x32xf32, #tpu.memory_space<vmem>>, vector<4x16x32xf32>
    %1 = vector.shape_cast %0 : vector<4x16x32xf32> to vector<64x32xf32>
    %c0_2 = arith.constant 0 : index
    %c0_3 = arith.constant 0 : index
    %2 = vector.load %arg2[%c0_2, %c0_3] : memref<1x32xf32, #tpu.memory_space<vmem>>, vector<1x32xf32>
    %c0_4 = arith.constant 0 : index
    %c0_5 = arith.constant 0 : index
    %3 = vector.load %arg3[%c0_4, %c0_5] : memref<1x32xf32, #tpu.memory_space<vmem>>, vector<1x32xf32>
    %cst = arith.constant dense<0.000000e+00> : vector<64xf32>
    %4 = vector.multi_reduction <add>, %1, %cst [1] : vector<64x32xf32> to vector<64xf32>
    %5 = vector.shape_cast %4 : vector<64xf32> to vector<64x1xf32>
    %cst_6 = arith.constant 3.200000e+01 : f32
    %6 = vector.broadcast %cst_6 : f32 to vector<64x1xf32>
    %7 = arith.divf %5, %6 : vector<64x1xf32>
    %8 = vector.broadcast %7 : vector<64x1xf32> to vector<64x32xf32>
    %9 = arith.subf %1, %8 : vector<64x32xf32>
    %10 = arith.mulf %9, %9 : vector<64x32xf32>
    %cst_7 = arith.constant dense<0.000000e+00> : vector<64xf32>
    %11 = vector.multi_reduction <add>, %10, %cst_7 [1] : vector<64x32xf32> to vector<64xf32>
    %12 = vector.shape_cast %11 : vector<64xf32> to vector<64x1xf32>
    %cst_8 = arith.constant 3.200000e+01 : f32
    %13 = vector.broadcast %cst_8 : f32 to vector<64x1xf32>
    %14 = arith.divf %12, %13 : vector<64x1xf32>
    %15 = vector.broadcast %7 : vector<64x1xf32> to vector<64x32xf32>
    %16 = arith.subf %1, %15 : vector<64x32xf32>
    %cst_9 = arith.constant 9.99999974E-6 : f32
    %17 = vector.broadcast %cst_9 : f32 to vector<64x1xf32>
    %18 = arith.addf %14, %17 : vector<64x1xf32>
    %19 = math.rsqrt %18 : vector<64x1xf32>
    %20 = vector.broadcast %19 : vector<64x1xf32> to vector<64x32xf32>
    %21 = arith.mulf %16, %20 : vector<64x32xf32>
    %22 = vector.broadcast %2 : vector<1x32xf32> to vector<64x32xf32>
    %23 = arith.mulf %21, %22 : vector<64x32xf32>
    %24 = vector.broadcast %3 : vector<1x32xf32> to vector<64x32xf32>
    %25 = arith.addf %23, %24 : vector<64x32xf32>
    %26 = arith.truncf %25 : vector<64x32xf32> to vector<64x32xbf16>
    %c0_10 = arith.constant 0 : index
    %c0_11 = arith.constant 0 : index
    %27 = vector.load %arg4[%c0_10, %c0_11] : memref<32x96xbf16, #tpu.memory_space<vmem>>, vector<32x96xbf16>
    %cst_12 = arith.constant dense<0.000000e+00> : vector<64x96xf32>
    %28 = tpu.matmul %26, %27, %cst_12 {dimension_numbers = #tpu.dot_dimension_numbers<[1], [0], [0], [1], [0, 0, 1, 1], [], []>} : vector<64x32xbf16>, vector<32x96xbf16>, vector<64x96xf32> -> vector<64x96xf32>
    %c0_13 = arith.constant 0 : index
    %c0_14 = arith.constant 0 : index
    %29 = vector.load %arg5[%c0_13, %c0_14] : memref<1x96xf32, #tpu.memory_space<vmem>>, vector<1x96xf32>
    %30 = vector.shape_cast %29 : vector<1x96xf32> to vector<96xf32>
    %31 = vector.shape_cast %30 : vector<96xf32> to vector<1x96xf32>
    %32 = vector.broadcast %31 : vector<1x96xf32> to vector<64x96xf32>
    %33 = arith.addf %28, %32 : vector<64x96xf32>
    %34 = vector.shape_cast %33 : vector<64x96xf32> to vector<4x16x96xf32>
    %c0_15 = arith.constant 0 : index
    %c0_16 = arith.constant 0 : index
    %c0_17 = arith.constant 0 : index
    %35 = vector.load %arg8[%c0_15, %c0_16, %c0_17] : memref<4x16x16xf32, #tpu.memory_space<vmem>>, vector<4x16x16xf32>
    %c0_18 = arith.constant 0 : index
    %c0_19 = arith.constant 0 : index
    %c0_20 = arith.constant 0 : index
    %36 = vector.load %arg9[%c0_18, %c0_19, %c0_20] : memref<4x16x16xf32, #tpu.memory_space<vmem>>, vector<4x16x16xf32>
    %cst_21 = arith.constant 0.000000e+00 : f32
    %37 = vector.broadcast %cst_21 : f32 to vector<64x32xf32>
    %38 = vector.extract_strided_slice %34 {offsets = [0, 0, 0], sizes = [4, 16, 8], strides = [1, 1, 1]} : vector<4x16x96xf32> to vector<4x16x8xf32>
    %39 = vector.extract_strided_slice %34 {offsets = [0, 0, 32], sizes = [4, 16, 8], strides = [1, 1, 1]} : vector<4x16x96xf32> to vector<4x16x8xf32>
    %40 = vector.extract_strided_slice %34 {offsets = [0, 0, 64], sizes = [4, 16, 8], strides = [1, 1, 1]} : vector<4x16x96xf32> to vector<4x16x8xf32>
    %41 = arith.truncf %38 : vector<4x16x8xf32> to vector<4x16x8xbf16>
    %42 = arith.truncf %39 : vector<4x16x8xf32> to vector<4x16x8xbf16>
    "tpu.trace_start"() <{level = 10 : i32, message = "bnd,bmd->bnm"}> : () -> ()
    %cst_22 = arith.constant dense<0.000000e+00> : vector<4x16x16xf32>
    %43 = tpu.matmul %41, %42, %cst_22 {dimension_numbers = #tpu.dot_dimension_numbers<[2], [2], [1], [1], [0, 0, 0, 1, 1, 1], [0], [0]>} : vector<4x16x8xbf16>, vector<4x16x8xbf16>, vector<4x16x16xf32> -> vector<4x16x16xf32>
    "tpu.trace_stop"() : () -> ()
    %44 = vector.extract_strided_slice %35 {offsets = [0, 0, 0], sizes = [1, 16, 16], strides = [1, 1, 1]} : vector<4x16x16xf32> to vector<1x16x16xf32>
    %45 = vector.shape_cast %44 : vector<1x16x16xf32> to vector<16x16xf32>
    %46 = vector.shape_cast %45 : vector<16x16xf32> to vector<1x16x16xf32>
    %47 = vector.broadcast %46 : vector<1x16x16xf32> to vector<4x16x16xf32>
    %48 = arith.addf %43, %47 : vector<4x16x16xf32>
    %49 = arith.addf %48, %36 : vector<4x16x16xf32>
    %cst_23 = arith.constant dense<0xFF800000> : vector<4x16xf32>
    %50 = vector.multi_reduction <maximumf>, %49, %cst_23 [2] : vector<4x16x16xf32> to vector<4x16xf32>
    %51 = vector.shape_cast %50 : vector<4x16xf32> to vector<4x16x1xf32>
    %52 = vector.broadcast %51 : vector<4x16x1xf32> to vector<4x16x16xf32>
    %53 = arith.subf %49, %52 : vector<4x16x16xf32>
    %54 = math.exp %53 : vector<4x16x16xf32>
    %cst_24 = arith.constant dense<0.000000e+00> : vector<4x16xf32>
    %55 = vector.multi_reduction <add>, %54, %cst_24 [2] : vector<4x16x16xf32> to vector<4x16xf32>
    %56 = vector.shape_cast %55 : vector<4x16xf32> to vector<4x16x1xf32>
    %57 = tpu.reciprocal %56 {approx = true} : vector<4x16x1xf32> -> vector<4x16x1xf32>
    %58 = vector.broadcast %57 : vector<4x16x1xf32> to vector<4x16x16xf32>
    %59 = arith.mulf %54, %58 : vector<4x16x16xf32>
    %60 = arith.truncf %59 : vector<4x16x16xf32> to vector<4x16x16xbf16>
    %61 = arith.truncf %40 : vector<4x16x8xf32> to vector<4x16x8xbf16>
    "tpu.trace_start"() <{level = 10 : i32, message = "bnm,bmd->bnd"}> : () -> ()
    %cst_25 = arith.constant dense<0.000000e+00> : vector<4x16x8xf32>
    %62 = tpu.matmul %60, %61, %cst_25 {dimension_numbers = #tpu.dot_dimension_numbers<[2], [1], [1], [2], [0, 0, 0, 1, 1, 2], [0], [0]>} : vector<4x16x16xbf16>, vector<4x16x8xbf16>, vector<4x16x8xf32> -> vector<4x16x8xf32>
    "tpu.trace_stop"() : () -> ()
    %63 = vector.shape_cast %62 : vector<4x16x8xf32> to vector<64x8xf32>
    %64 = arith.truncf %63 : vector<64x8xf32> to vector<64x8xbf16>
    %c0_26 = arith.constant 0 : index
    %c0_27 = arith.constant 0 : index
    %65 = vector.load %arg6[%c0_26, %c0_27] : memref<32x32xbf16, #tpu.memory_space<vmem>>, vector<8x32xbf16>
    %cst_28 = arith.constant dense<0.000000e+00> : vector<64x32xf32>
    %66 = tpu.matmul %64, %65, %cst_28 {dimension_numbers = #tpu.dot_dimension_numbers<[1], [0], [0], [1], [0, 0, 1, 1], [], []>} : vector<64x8xbf16>, vector<8x32xbf16>, vector<64x32xf32> -> vector<64x32xf32>
    %67 = arith.addf %37, %66 : vector<64x32xf32>
    %68 = vector.extract_strided_slice %34 {offsets = [0, 0, 8], sizes = [4, 16, 8], strides = [1, 1, 1]} : vector<4x16x96xf32> to vector<4x16x8xf32>
    %69 = vector.extract_strided_slice %34 {offsets = [0, 0, 40], sizes = [4, 16, 8], strides = [1, 1, 1]} : vector<4x16x96xf32> to vector<4x16x8xf32>
    %70 = vector.extract_strided_slice %34 {offsets = [0, 0, 72], sizes = [4, 16, 8], strides = [1, 1, 1]} : vector<4x16x96xf32> to vector<4x16x8xf32>
    %71 = arith.truncf %68 : vector<4x16x8xf32> to vector<4x16x8xbf16>
    %72 = arith.truncf %69 : vector<4x16x8xf32> to vector<4x16x8xbf16>
    "tpu.trace_start"() <{level = 10 : i32, message = "bnd,bmd->bnm"}> : () -> ()
    %cst_29 = arith.constant dense<0.000000e+00> : vector<4x16x16xf32>
    %73 = tpu.matmul %71, %72, %cst_29 {dimension_numbers = #tpu.dot_dimension_numbers<[2], [2], [1], [1], [0, 0, 0, 1, 1, 1], [0], [0]>} : vector<4x16x8xbf16>, vector<4x16x8xbf16>, vector<4x16x16xf32> -> vector<4x16x16xf32>
    "tpu.trace_stop"() : () -> ()
    %74 = vector.extract_strided_slice %35 {offsets = [1, 0, 0], sizes = [1, 16, 16], strides = [1, 1, 1]} : vector<4x16x16xf32> to vector<1x16x16xf32>
    %75 = vector.shape_cast %74 : vector<1x16x16xf32> to vector<16x16xf32>
    %76 = vector.shape_cast %75 : vector<16x16xf32> to vector<1x16x16xf32>
    %77 = vector.broadcast %76 : vector<1x16x16xf32> to vector<4x16x16xf32>
    %78 = arith.addf %73, %77 : vector<4x16x16xf32>
    %79 = arith.addf %78, %36 : vector<4x16x16xf32>
    %cst_30 = arith.constant dense<0xFF800000> : vector<4x16xf32>
    %80 = vector.multi_reduction <maximumf>, %79, %cst_30 [2] : vector<4x16x16xf32> to vector<4x16xf32>
    %81 = vector.shape_cast %80 : vector<4x16xf32> to vector<4x16x1xf32>
    %82 = vector.broadcast %81 : vector<4x16x1xf32> to vector<4x16x16xf32>
    %83 = arith.subf %79, %82 : vector<4x16x16xf32>
    %84 = math.exp %83 : vector<4x16x16xf32>
    %cst_31 = arith.constant dense<0.000000e+00> : vector<4x16xf32>
    %85 = vector.multi_reduction <add>, %84, %cst_31 [2] : vector<4x16x16xf32> to vector<4x16xf32>
    %86 = vector.shape_cast %85 : vector<4x16xf32> to vector<4x16x1xf32>
    %87 = tpu.reciprocal %86 {approx = true} : vector<4x16x1xf32> -> vector<4x16x1xf32>
    %88 = vector.broadcast %87 : vector<4x16x1xf32> to vector<4x16x16xf32>
    %89 = arith.mulf %84, %88 : vector<4x16x16xf32>
    %90 = arith.truncf %89 : vector<4x16x16xf32> to vector<4x16x16xbf16>
    %91 = arith.truncf %70 : vector<4x16x8xf32> to vector<4x16x8xbf16>
    "tpu.trace_start"() <{level = 10 : i32, message = "bnm,bmd->bnd"}> : () -> ()
    %cst_32 = arith.constant dense<0.000000e+00> : vector<4x16x8xf32>
    %92 = tpu.matmul %90, %91, %cst_32 {dimension_numbers = #tpu.dot_dimension_numbers<[2], [1], [1], [2], [0, 0, 0, 1, 1, 2], [0], [0]>} : vector<4x16x16xbf16>, vector<4x16x8xbf16>, vector<4x16x8xf32> -> vector<4x16x8xf32>
    "tpu.trace_stop"() : () -> ()
    %93 = vector.shape_cast %92 : vector<4x16x8xf32> to vector<64x8xf32>
    %94 = arith.truncf %93 : vector<64x8xf32> to vector<64x8xbf16>
    %c8 = arith.constant 8 : index
    %c0_33 = arith.constant 0 : index
    %95 = vector.load %arg6[%c8, %c0_33] : memref<32x32xbf16, #tpu.memory_space<vmem>>, vector<8x32xbf16>
    %cst_34 = arith.constant dense<0.000000e+00> : vector<64x32xf32>
    %96 = tpu.matmul %94, %95, %cst_34 {dimension_numbers = #tpu.dot_dimension_numbers<[1], [0], [0], [1], [0, 0, 1, 1], [], []>} : vector<64x8xbf16>, vector<8x32xbf16>, vector<64x32xf32> -> vector<64x32xf32>
    %97 = arith.addf %67, %96 : vector<64x32xf32>
    %98 = vector.extract_strided_slice %34 {offsets = [0, 0, 16], sizes = [4, 16, 8], strides = [1, 1, 1]} : vector<4x16x96xf32> to vector<4x16x8xf32>
    %99 = vector.extract_strided_slice %34 {offsets = [0, 0, 48], sizes = [4, 16, 8], strides = [1, 1, 1]} : vector<4x16x96xf32> to vector<4x16x8xf32>
    %100 = vector.extract_strided_slice %34 {offsets = [0, 0, 80], sizes = [4, 16, 8], strides = [1, 1, 1]} : vector<4x16x96xf32> to vector<4x16x8xf32>
    %101 = arith.truncf %98 : vector<4x16x8xf32> to vector<4x16x8xbf16>
    %102 = arith.truncf %99 : vector<4x16x8xf32> to vector<4x16x8xbf16>
    "tpu.trace_start"() <{level = 10 : i32, message = "bnd,bmd->bnm"}> : () -> ()
    %cst_35 = arith.constant dense<0.000000e+00> : vector<4x16x16xf32>
    %103 = tpu.matmul %101, %102, %cst_35 {dimension_numbers = #tpu.dot_dimension_numbers<[2], [2], [1], [1], [0, 0, 0, 1, 1, 1], [0], [0]>} : vector<4x16x8xbf16>, vector<4x16x8xbf16>, vector<4x16x16xf32> -> vector<4x16x16xf32>
    "tpu.trace_stop"() : () -> ()
    %104 = vector.extract_strided_slice %35 {offsets = [2, 0, 0], sizes = [1, 16, 16], strides = [1, 1, 1]} : vector<4x16x16xf32> to vector<1x16x16xf32>
    %105 = vector.shape_cast %104 : vector<1x16x16xf32> to vector<16x16xf32>
    %106 = vector.shape_cast %105 : vector<16x16xf32> to vector<1x16x16xf32>
    %107 = vector.broadcast %106 : vector<1x16x16xf32> to vector<4x16x16xf32>
    %108 = arith.addf %103, %107 : vector<4x16x16xf32>
    %109 = arith.addf %108, %36 : vector<4x16x16xf32>
    %cst_36 = arith.constant dense<0xFF800000> : vector<4x16xf32>
    %110 = vector.multi_reduction <maximumf>, %109, %cst_36 [2] : vector<4x16x16xf32> to vector<4x16xf32>
    %111 = vector.shape_cast %110 : vector<4x16xf32> to vector<4x16x1xf32>
    %112 = vector.broadcast %111 : vector<4x16x1xf32> to vector<4x16x16xf32>
    %113 = arith.subf %109, %112 : vector<4x16x16xf32>
    %114 = math.exp %113 : vector<4x16x16xf32>
    %cst_37 = arith.constant dense<0.000000e+00> : vector<4x16xf32>
    %115 = vector.multi_reduction <add>, %114, %cst_37 [2] : vector<4x16x16xf32> to vector<4x16xf32>
    %116 = vector.shape_cast %115 : vector<4x16xf32> to vector<4x16x1xf32>
    %117 = tpu.reciprocal %116 {approx = true} : vector<4x16x1xf32> -> vector<4x16x1xf32>
    %118 = vector.broadcast %117 : vector<4x16x1xf32> to vector<4x16x16xf32>
    %119 = arith.mulf %114, %118 : vector<4x16x16xf32>
    %120 = arith.truncf %119 : vector<4x16x16xf32> to vector<4x16x16xbf16>
    %121 = arith.truncf %100 : vector<4x16x8xf32> to vector<4x16x8xbf16>
    "tpu.trace_start"() <{level = 10 : i32, message = "bnm,bmd->bnd"}> : () -> ()
    %cst_38 = arith.constant dense<0.000000e+00> : vector<4x16x8xf32>
    %122 = tpu.matmul %120, %121, %cst_38 {dimension_numbers = #tpu.dot_dimension_numbers<[2], [1], [1], [2], [0, 0, 0, 1, 1, 2], [0], [0]>} : vector<4x16x16xbf16>, vector<4x16x8xbf16>, vector<4x16x8xf32> -> vector<4x16x8xf32>
    "tpu.trace_stop"() : () -> ()
    %123 = vector.shape_cast %122 : vector<4x16x8xf32> to vector<64x8xf32>
    %124 = arith.truncf %123 : vector<64x8xf32> to vector<64x8xbf16>
    %c16 = arith.constant 16 : index
    %c0_39 = arith.constant 0 : index
    %125 = vector.load %arg6[%c16, %c0_39] : memref<32x32xbf16, #tpu.memory_space<vmem>>, vector<8x32xbf16>
    %cst_40 = arith.constant dense<0.000000e+00> : vector<64x32xf32>
    %126 = tpu.matmul %124, %125, %cst_40 {dimension_numbers = #tpu.dot_dimension_numbers<[1], [0], [0], [1], [0, 0, 1, 1], [], []>} : vector<64x8xbf16>, vector<8x32xbf16>, vector<64x32xf32> -> vector<64x32xf32>
    %127 = arith.addf %97, %126 : vector<64x32xf32>
    %128 = vector.extract_strided_slice %34 {offsets = [0, 0, 24], sizes = [4, 16, 8], strides = [1, 1, 1]} : vector<4x16x96xf32> to vector<4x16x8xf32>
    %129 = vector.extract_strided_slice %34 {offsets = [0, 0, 56], sizes = [4, 16, 8], strides = [1, 1, 1]} : vector<4x16x96xf32> to vector<4x16x8xf32>
    %130 = vector.extract_strided_slice %34 {offsets = [0, 0, 88], sizes = [4, 16, 8], strides = [1, 1, 1]} : vector<4x16x96xf32> to vector<4x16x8xf32>
    %131 = arith.truncf %128 : vector<4x16x8xf32> to vector<4x16x8xbf16>
    %132 = arith.truncf %129 : vector<4x16x8xf32> to vector<4x16x8xbf16>
    "tpu.trace_start"() <{level = 10 : i32, message = "bnd,bmd->bnm"}> : () -> ()
    %cst_41 = arith.constant dense<0.000000e+00> : vector<4x16x16xf32>
    %133 = tpu.matmul %131, %132, %cst_41 {dimension_numbers = #tpu.dot_dimension_numbers<[2], [2], [1], [1], [0, 0, 0, 1, 1, 1], [0], [0]>} : vector<4x16x8xbf16>, vector<4x16x8xbf16>, vector<4x16x16xf32> -> vector<4x16x16xf32>
    "tpu.trace_stop"() : () -> ()
    %134 = vector.extract_strided_slice %35 {offsets = [3, 0, 0], sizes = [1, 16, 16], strides = [1, 1, 1]} : vector<4x16x16xf32> to vector<1x16x16xf32>
    %135 = vector.shape_cast %134 : vector<1x16x16xf32> to vector<16x16xf32>
    %136 = vector.shape_cast %135 : vector<16x16xf32> to vector<1x16x16xf32>
    %137 = vector.broadcast %136 : vector<1x16x16xf32> to vector<4x16x16xf32>
    %138 = arith.addf %133, %137 : vector<4x16x16xf32>
    %139 = arith.addf %138, %36 : vector<4x16x16xf32>
    %cst_42 = arith.constant dense<0xFF800000> : vector<4x16xf32>
    %140 = vector.multi_reduction <maximumf>, %139, %cst_42 [2] : vector<4x16x16xf32> to vector<4x16xf32>
    %141 = vector.shape_cast %140 : vector<4x16xf32> to vector<4x16x1xf32>
    %142 = vector.broadcast %141 : vector<4x16x1xf32> to vector<4x16x16xf32>
    %143 = arith.subf %139, %142 : vector<4x16x16xf32>
    %144 = math.exp %143 : vector<4x16x16xf32>
    %cst_43 = arith.constant dense<0.000000e+00> : vector<4x16xf32>
    %145 = vector.multi_reduction <add>, %144, %cst_43 [2] : vector<4x16x16xf32> to vector<4x16xf32>
    %146 = vector.shape_cast %145 : vector<4x16xf32> to vector<4x16x1xf32>
    %147 = tpu.reciprocal %146 {approx = true} : vector<4x16x1xf32> -> vector<4x16x1xf32>
    %148 = vector.broadcast %147 : vector<4x16x1xf32> to vector<4x16x16xf32>
    %149 = arith.mulf %144, %148 : vector<4x16x16xf32>
    %150 = arith.truncf %149 : vector<4x16x16xf32> to vector<4x16x16xbf16>
    %151 = arith.truncf %130 : vector<4x16x8xf32> to vector<4x16x8xbf16>
    "tpu.trace_start"() <{level = 10 : i32, message = "bnm,bmd->bnd"}> : () -> ()
    %cst_44 = arith.constant dense<0.000000e+00> : vector<4x16x8xf32>
    %152 = tpu.matmul %150, %151, %cst_44 {dimension_numbers = #tpu.dot_dimension_numbers<[2], [1], [1], [2], [0, 0, 0, 1, 1, 2], [0], [0]>} : vector<4x16x16xbf16>, vector<4x16x8xbf16>, vector<4x16x8xf32> -> vector<4x16x8xf32>
    "tpu.trace_stop"() : () -> ()
    %153 = vector.shape_cast %152 : vector<4x16x8xf32> to vector<64x8xf32>
    %154 = arith.truncf %153 : vector<64x8xf32> to vector<64x8xbf16>
    %c24 = arith.constant 24 : index
    %c0_45 = arith.constant 0 : index
    %155 = vector.load %arg6[%c24, %c0_45] : memref<32x32xbf16, #tpu.memory_space<vmem>>, vector<8x32xbf16>
    %cst_46 = arith.constant dense<0.000000e+00> : vector<64x32xf32>
    %156 = tpu.matmul %154, %155, %cst_46 {dimension_numbers = #tpu.dot_dimension_numbers<[1], [0], [0], [1], [0, 0, 1, 1], [], []>} : vector<64x8xbf16>, vector<8x32xbf16>, vector<64x32xf32> -> vector<64x32xf32>
    %157 = arith.addf %127, %156 : vector<64x32xf32>
    %c0_47 = arith.constant 0 : index
    %c0_48 = arith.constant 0 : index
    %158 = vector.load %arg7[%c0_47, %c0_48] : memref<1x32xf32, #tpu.memory_space<vmem>>, vector<1x32xf32>
    %159 = vector.shape_cast %158 : vector<1x32xf32> to vector<32xf32>
    %160 = vector.shape_cast %159 : vector<32xf32> to vector<1x32xf32>
    %161 = vector.broadcast %160 : vector<1x32xf32> to vector<64x32xf32>
    %162 = arith.addf %157, %161 : vector<64x32xf32>
    %163 = vector.shape_cast %162 : vector<64x32xf32> to vector<4x16x32xf32>
    %c0_49 = arith.constant 0 : index
    %c0_50 = arith.constant 0 : index
    %c0_51 = arith.constant 0 : index
    %164 = vector.load %arg10[%c0_49, %c0_50, %c0_51] : memref<4x16x32xf32, #tpu.memory_space<vmem>>, vector<4x16x32xf32>
    tpu.vector_store %arg10[%c0_49, %c0_50, %c0_51], %163 {strides = array<i32>} : memref<4x16x32xf32, #tpu.memory_space<vmem>>, vector<4x16x32xf32>,
    return
  }
  func.func @transform_0(%arg0: i32) -> (i32, i32, i32) {
    %c0_i32 = arith.constant 0 : i32
    %c0_i32_0 = arith.constant 0 : i32
    %c0_i32_1 = arith.constant 0 : i32
    return %arg0, %c0_i32, %c0_i32_0 : i32, i32, i32
  }
  func.func @transform_1(%arg0: i32) -> (i32, i32) {
    %c0_i32 = arith.constant 0 : i32
    %c0_i32_0 = arith.constant 0 : i32
    %c0_i32_1 = arith.constant 0 : i32
    return %c0_i32, %c0_i32_0 : i32, i32
  }
  func.func @transform_2(%arg0: i32) -> (i32, i32) {
    %c0_i32 = arith.constant 0 : i32
    %c0_i32_0 = arith.constant 0 : i32
    %c0_i32_1 = arith.constant 0 : i32
    return %c0_i32, %c0_i32_0 : i32, i32
  }
  func.func @transform_3(%arg0: i32) -> (i32, i32) {
    %c0_i32 = arith.constant 0 : i32
    %c0_i32_0 = arith.constant 0 : i32
    %c0_i32_1 = arith.constant 0 : i32
    return %c0_i32, %c0_i32_0 : i32, i32
  }
  func.func @transform_4(%arg0: i32) -> (i32, i32) {
    %c0_i32 = arith.constant 0 : i32
    %c0_i32_0 = arith.constant 0 : i32
    %c0_i32_1 = arith.constant 0 : i32
    return %c0_i32, %c0_i32_0 : i32, i32
  }
  func.func @transform_5(%arg0: i32) -> (i32, i32) {
    %c0_i32 = arith.constant 0 : i32
    %c0_i32_0 = arith.constant 0 : i32
    %c0_i32_1 = arith.constant 0 : i32
    return %c0_i32, %c0_i32_0 : i32, i32
  }
  func.func @transform_6(%arg0: i32) -> (i32, i32) {
    %c0_i32 = arith.constant 0 : i32
    %c0_i32_0 = arith.constant 0 : i32
    %c0_i32_1 = arith.constant 0 : i32
    return %c0_i32, %c0_i32_0 : i32, i32
  }
  func.func @transform_7(%arg0: i32) -> (i32, i32, i32) {
    %c0_i32 = arith.constant 0 : i32
    %c0_i32_0 = arith.constant 0 : i32
    %c0_i32_1 = arith.constant 0 : i32
    %c0_i32_2 = arith.constant 0 : i32
    return %c0_i32, %c0_i32_0, %c0_i32_1 : i32, i32, i32
  }
  func.func @transform_8(%arg0: i32) -> (i32, i32, i32) {
    %c1_i32 = arith.constant 1 : i32
    %c0_i32 = arith.constant 0 : i32
    %0 = arith.cmpi eq, %c1_i32, %c0_i32 : i32
    %c1_i32_0 = arith.constant 1 : i32
    %1 = arith.select %0, %c1_i32_0, %c1_i32 : i32
    %2 = arith.remsi %arg0, %1 : i32
    %c0_i32_1 = arith.constant 0 : i32
    %3 = arith.cmpi ne, %2, %c0_i32_1 : i32
    %c0_i32_2 = arith.constant 0 : i32
    %4 = arith.cmpi slt, %2, %c0_i32_2 : i32
    %c0_i32_3 = arith.constant 0 : i32
    %5 = arith.cmpi slt, %1, %c0_i32_3 : i32
    %6 = arith.xori %4, %5 : i1
    %7 = arith.andi %6, %3 : i1
    %8 = arith.addi %2, %1 : i32
    %9 = arith.select %7, %8, %2 : i32
    %c0_i32_4 = arith.constant 0 : i32
    %c0_i32_5 = arith.constant 0 : i32
    %c0_i32_6 = arith.constant 0 : i32
    return %9, %c0_i32_4, %c0_i32_5 : i32, i32, i32
  }
  func.func @transform_9(%arg0: i32) -> (i32, i32, i32) {
    %c0_i32 = arith.constant 0 : i32
    %c0_i32_0 = arith.constant 0 : i32
    %c0_i32_1 = arith.constant 0 : i32
    return %arg0, %c0_i32, %c0_i32_0 : i32, i32, i32
  }
}

</mosaic_0001>

<llo_original>
// kernel: basic_layer_forward.5
$region0: #{basic_layer_forward.5}
  #allocation0 [shape = 'u32[]', space=smem, size = 0x4, offset = 0x4, fixed_abs, tag = 'smem constant byte address 0x4 - core index']
  #allocation1 [shape = 'u32[144,128]{1,0:T(1,128)}', space=vmem, size = 0x12000, scoped, tag = 'internal scratch']
  %s0 = inlined_call_operand.vmem [shape: f32[128,32], index: 0, kind: input, shape index: {}]
  %s1 = inlined_call_operand.vmem [shape: f32[128,32], index: 1, kind: input, shape index: {}]
  %s2 = inlined_call_operand.vmem [shape: f32[1,32], index: 2, kind: input, shape index: {}]
  %s3 = inlined_call_operand.vmem [shape: f32[1,32], index: 3, kind: input, shape index: {}]
  %s4 = inlined_call_operand.vmem [shape: bf16[32,128], index: 4, kind: input, shape index: {}]
  %s5 = inlined_call_operand.vmem [shape: f32[1,128], index: 5, kind: input, shape index: {}]
  %s6 = inlined_call_operand.vmem [shape: bf16[128,32], index: 6, kind: input, shape index: {}]
  %s7 = inlined_call_operand.vmem [shape: f32[1,32], index: 7, kind: input, shape index: {}]
  %s8 = inlined_call_operand.vmem [shape: f32[128,32], index: 8, kind: output, shape index: {}]
  %s9 = sld [smem:[#allocation0]]
  $region42: #{basic_layer_forward.5} parent=0
    _
  %s11 = ssub.s32 1, %s9
  %s12 = scalar_select 0, %s11, %s9
  // Predicated region
  $region2: #{basic_layer_forward.5} parent=0 // pred_check
    _
  $region3: #{basic_layer_forward.5} parent=0 // pred_check_branch
    %14 = sbr.rel (0) target = $region5
  $region4: #{basic_layer_forward.5} parent=0 // pred_region
    _
  $region5: #{basic_layer_forward.5} parent=0 // pred_fallthru
    _
  // Predicated region
  $region6: #{basic_layer_forward.5} parent=0 // pred_check
    _
  $region7: #{basic_layer_forward.5} parent=0 // pred_check_branch
    %16 = sbr.rel (0) target = $region9
  $region8: #{basic_layer_forward.5} parent=0 // pred_region
    _
  $region9: #{basic_layer_forward.5} parent=0 // pred_fallthru
    _
  // Predicated region
  $region10: #{basic_layer_forward.5} parent=0 // pred_check
    _
  $region11: #{basic_layer_forward.5} parent=0 // pred_check_branch
    %18 = sbr.rel (0) target = $region13
  $region12: #{basic_layer_forward.5} parent=0 // pred_region
    _
  $region13: #{basic_layer_forward.5} parent=0 // pred_fallthru
    _
  // Predicated region
  $region14: #{basic_layer_forward.5} parent=0 // pred_check
    _
  $region15: #{basic_layer_forward.5} parent=0 // pred_check_branch
    %20 = sbr.rel (0) target = $region17
  $region16: #{basic_layer_forward.5} parent=0 // pred_region
    _
  $region17: #{basic_layer_forward.5} parent=0 // pred_fallthru
    _
  // Predicated region
  $region18: #{basic_layer_forward.5} parent=0 // pred_check
    _
  $region19: #{basic_layer_forward.5} parent=0 // pred_check_branch
    %22 = sbr.rel (0) target = $region21
  $region20: #{basic_layer_forward.5} parent=0 // pred_region
    _
  $region21: #{basic_layer_forward.5} parent=0 // pred_fallthru
    _
  // Predicated region
  $region22: #{basic_layer_forward.5} parent=0 // pred_check
    _
  $region23: #{basic_layer_forward.5} parent=0 // pred_check_branch
    %24 = sbr.rel (0) target = $region25
  $region24: #{basic_layer_forward.5} parent=0 // pred_region
    _
  $region25: #{basic_layer_forward.5} parent=0 // pred_fallthru
    _
  // Predicated region
  $region26: #{basic_layer_forward.5} parent=0 // pred_check
    _
  $region27: #{basic_layer_forward.5} parent=0 // pred_check_branch
    %26 = sbr.rel (0) target = $region29
  $region28: #{basic_layer_forward.5} parent=0 // pred_region
    _
  $region29: #{basic_layer_forward.5} parent=0 // pred_fallthru
    _
  // Predicated region
  $region30: #{basic_layer_forward.5} parent=0 // pred_check
    _
  $region31: #{basic_layer_forward.5} parent=0 // pred_check_branch
    %28 = sbr.rel (0) target = $region33
  $region32: #{basic_layer_forward.5} parent=0 // pred_region
    _
  $region33: #{basic_layer_forward.5} parent=0 // pred_fallthru
    _
  %v30 = vld [vmem:[%s0] sm:$0xff]
  %v31 = vld [vmem:[%s0 + $0x8] sm:$0xff]
  %v32 = vld [vmem:[%s0 + $0x10] sm:$0xff]
  %v33 = vld [vmem:[%s0 + $0x18] sm:$0xff]
  %v34 = vld [vmem:[%s0 + $0x20] sm:$0xff]
  %v35 = vld [vmem:[%s0 + $0x28] sm:$0xff]
  %v36 = vld [vmem:[%s0 + $0x30] sm:$0xff]
  %v37 = vld [vmem:[%s0 + $0x38] sm:$0xff]
  %v38 = vld [vmem:[%s0 + $0x40] sm:$0xff]
  %v39 = vld [vmem:[%s0 + $0x48] sm:$0xff]
  %v40 = vld [vmem:[%s0 + $0x50] sm:$0xff]
  %v41 = vld [vmem:[%s0 + $0x58] sm:$0xff]
  %v42 = vld [vmem:[%s0 + $0x60] sm:$0xff]
  %v43 = vld [vmem:[%s0 + $0x68] sm:$0xff]
  %v44 = vld [vmem:[%s0 + $0x70] sm:$0xff]
  %v45 = vld [vmem:[%s0 + $0x78] sm:$0xff]
  %v46 = vld [vmem:[%s1] sm:$0xff]
  %v47 = vld [vmem:[%s1 + $0x8] sm:$0xff]
  %v48 = vld [vmem:[%s1 + $0x10] sm:$0xff]
  %v49 = vld [vmem:[%s1 + $0x18] sm:$0xff]
  %v50 = vld [vmem:[%s1 + $0x20] sm:$0xff]
  %v51 = vld [vmem:[%s1 + $0x28] sm:$0xff]
  %v52 = vld [vmem:[%s1 + $0x30] sm:$0xff]
  %v53 = vld [vmem:[%s1 + $0x38] sm:$0xff]
  %v54 = vld [vmem:[%s1 + $0x40] sm:$0xff]
  %v55 = vld [vmem:[%s1 + $0x48] sm:$0xff]
  %v56 = vld [vmem:[%s1 + $0x50] sm:$0xff]
  %v57 = vld [vmem:[%s1 + $0x58] sm:$0xff]
  %v58 = vld [vmem:[%s1 + $0x60] sm:$0xff]
  %v59 = vld [vmem:[%s1 + $0x68] sm:$0xff]
  %v60 = vld [vmem:[%s1 + $0x70] sm:$0xff]
  %v61 = vld [vmem:[%s1 + $0x78] sm:$0xff]
  %v62 = vadd.f32 %v30, %v46
  %v63 = vadd.f32 %v31, %v47
  %v64 = vadd.f32 %v32, %v48
  %v65 = vadd.f32 %v33, %v49
  %v66 = vadd.f32 %v34, %v50
  %v67 = vadd.f32 %v35, %v51
  %v68 = vadd.f32 %v36, %v52
  %v69 = vadd.f32 %v37, %v53
  %v70 = vadd.f32 %v38, %v54
  %v71 = vadd.f32 %v39, %v55
  %v72 = vadd.f32 %v40, %v56
  %v73 = vadd.f32 %v41, %v57
  %v74 = vadd.f32 %v42, %v58
  %v75 = vadd.f32 %v43, %v59
  %v76 = vadd.f32 %v44, %v60
  %v77 = vadd.f32 %v45, %v61
  %v78 = vld [vmem:[%s2] sm:$0x1]
  %v79 = vld [vmem:[%s3] sm:$0x1]
  %vm80 = vcmask 261120
  %v81 = vsel %vm80, %v62, 0.0
  %82 = vadd.xlane.f32.xlu0 %v81
  %v83 = vpop.xlane.xlu0 %82
  %v84 = vsel %vm80, %v63, 0.0
  %85 = vadd.xlane.f32.xlu0 %v84
  %v86 = vpop.xlane.xlu0 %85
  %v87 = vsel %vm80, %v64, 0.0
  %88 = vadd.xlane.f32.xlu0 %v87
  %v89 = vpop.xlane.xlu0 %88
  %v90 = vsel %vm80, %v65, 0.0
  %91 = vadd.xlane.f32.xlu0 %v90
  %v92 = vpop.xlane.xlu0 %91
  %v93 = vsel %vm80, %v66, 0.0
  %94 = vadd.xlane.f32.xlu0 %v93
  %v95 = vpop.xlane.xlu0 %94
  %v96 = vsel %vm80, %v67, 0.0
  %97 = vadd.xlane.f32.xlu0 %v96
  %v98 = vpop.xlane.xlu0 %97
  %v99 = vsel %vm80, %v68, 0.0
  %100 = vadd.xlane.f32.xlu0 %v99
  %v101 = vpop.xlane.xlu0 %100
  %v102 = vsel %vm80, %v69, 0.0
  %103 = vadd.xlane.f32.xlu0 %v102
  %v104 = vpop.xlane.xlu0 %103
  %v105 = vsel %vm80, %v70, 0.0
  %106 = vadd.xlane.f32.xlu0 %v105
  %v107 = vpop.xlane.xlu0 %106
  %v108 = vsel %vm80, %v71, 0.0
  %109 = vadd.xlane.f32.xlu0 %v108
  %v110 = vpop.xlane.xlu0 %109
  %v111 = vsel %vm80, %v72, 0.0
  %112 = vadd.xlane.f32.xlu0 %v111
  %v113 = vpop.xlane.xlu0 %112
  %v114 = vsel %vm80, %v73, 0.0
  %115 = vadd.xlane.f32.xlu0 %v114
  %v116 = vpop.xlane.xlu0 %115
  %v117 = vsel %vm80, %v74, 0.0
  %118 = vadd.xlane.f32.xlu0 %v117
  %v119 = vpop.xlane.xlu0 %118
  %v120 = vsel %vm80, %v75, 0.0
  %121 = vadd.xlane.f32.xlu0 %v120
  %v122 = vpop.xlane.xlu0 %121
  %v123 = vsel %vm80, %v76, 0.0
  %124 = vadd.xlane.f32.xlu0 %v123
  %v125 = vpop.xlane.xlu0 %124
  %v126 = vsel %vm80, %v77, 0.0
  %127 = vadd.xlane.f32.xlu0 %v126
  %v128 = vpop.xlane.xlu0 %127
  %v129 = vrcp.pop 32.0
  %v130 = vmul.f32 %v83, %v129
  %v131 = vmul.f32 %v86, %v129
  %v132 = vmul.f32 %v89, %v129
  %v133 = vmul.f32 %v92, %v129
  %v134 = vmul.f32 %v95, %v129
  %v135 = vmul.f32 %v98, %v129
  %v136 = vmul.f32 %v101, %v129
  %v137 = vmul.f32 %v104, %v129
  %v138 = vmul.f32 %v107, %v129
  %v139 = vmul.f32 %v110, %v129
  %v140 = vmul.f32 %v113, %v129
  %v141 = vmul.f32 %v116, %v129
  %v142 = vmul.f32 %v119, %v129
  %v143 = vmul.f32 %v122, %v129
  %v144 = vmul.f32 %v125, %v129
  %v145 = vmul.f32 %v128, %v129
  %v146 = vsub.f32 %v62, %v130
  %v147 = vsub.f32 %v63, %v131
  %v148 = vsub.f32 %v64, %v132
  %v149 = vsub.f32 %v65, %v133
  %v150 = vsub.f32 %v66, %v134
  %v151 = vsub.f32 %v67, %v135
  %v152 = vsub.f32 %v68, %v136
  %v153 = vsub.f32 %v69, %v137
  %v154 = vsub.f32 %v70, %v138
  %v155 = vsub.f32 %v71, %v139
  %v156 = vsub.f32 %v72, %v140
  %v157 = vsub.f32 %v73, %v141
  %v158 = vsub.f32 %v74, %v142
  %v159 = vsub.f32 %v75, %v143
  %v160 = vsub.f32 %v76, %v144
  %v161 = vsub.f32 %v77, %v145
  %v162 = vmul.f32 %v146, %v146
  %v163 = vmul.f32 %v147, %v147
  %v164 = vmul.f32 %v148, %v148
  %v165 = vmul.f32 %v149, %v149
  %v166 = vmul.f32 %v150, %v150
  %v167 = vmul.f32 %v151, %v151
  %v168 = vmul.f32 %v152, %v152
  %v169 = vmul.f32 %v153, %v153
  %v170 = vmul.f32 %v154, %v154
  %v171 = vmul.f32 %v155, %v155
  %v172 = vmul.f32 %v156, %v156
  %v173 = vmul.f32 %v157, %v157
  %v174 = vmul.f32 %v158, %v158
  %v175 = vmul.f32 %v159, %v159
  %v176 = vmul.f32 %v160, %v160
  %v177 = vmul.f32 %v161, %v161
  %v178 = vsel %vm80, %v162, 0.0
  %179 = vadd.xlane.f32.xlu0 %v178
  %v180 = vpop.xlane.xlu0 %179
  %v181 = vsel %vm80, %v163, 0.0
  %182 = vadd.xlane.f32.xlu0 %v181
  %v183 = vpop.xlane.xlu0 %182
  %v184 = vsel %vm80, %v164, 0.0
  %185 = vadd.xlane.f32.xlu0 %v184
  %v186 = vpop.xlane.xlu0 %185
  %v187 = vsel %vm80, %v165, 0.0
  %188 = vadd.xlane.f32.xlu0 %v187
  %v189 = vpop.xlane.xlu0 %188
  %v190 = vsel %vm80, %v166, 0.0
  %191 = vadd.xlane.f32.xlu0 %v190
  %v192 = vpop.xlane.xlu0 %191
  %v193 = vsel %vm80, %v167, 0.0
  %194 = vadd.xlane.f32.xlu0 %v193
  %v195 = vpop.xlane.xlu0 %194
  %v196 = vsel %vm80, %v168, 0.0
  %197 = vadd.xlane.f32.xlu0 %v196
  %v198 = vpop.xlane.xlu0 %197
  %v199 = vsel %vm80, %v169, 0.0
  %200 = vadd.xlane.f32.xlu0 %v199
  %v201 = vpop.xlane.xlu0 %200
  %v202 = vsel %vm80, %v170, 0.0
  %203 = vadd.xlane.f32.xlu0 %v202
  %v204 = vpop.xlane.xlu0 %203
  %v205 = vsel %vm80, %v171, 0.0
  %206 = vadd.xlane.f32.xlu0 %v205
  %v207 = vpop.xlane.xlu0 %206
  %v208 = vsel %vm80, %v172, 0.0
  %209 = vadd.xlane.f32.xlu0 %v208
  %v210 = vpop.xlane.xlu0 %209
  %v211 = vsel %vm80, %v173, 0.0
  %212 = vadd.xlane.f32.xlu0 %v211
  %v213 = vpop.xlane.xlu0 %212
  %v214 = vsel %vm80, %v174, 0.0
  %215 = vadd.xlane.f32.xlu0 %v214
  %v216 = vpop.xlane.xlu0 %215
  %v217 = vsel %vm80, %v175, 0.0
  %218 = vadd.xlane.f32.xlu0 %v217
  %v219 = vpop.xlane.xlu0 %218
  %v220 = vsel %vm80, %v176, 0.0
  %221 = vadd.xlane.f32.xlu0 %v220
  %v222 = vpop.xlane.xlu0 %221
  %v223 = vsel %vm80, %v177, 0.0
  %224 = vadd.xlane.f32.xlu0 %v223
  %v225 = vpop.xlane.xlu0 %224
  %v226 = vmul.f32 %v180, %v129
  %v227 = vmul.f32 %v183, %v129
  %v228 = vmul.f32 %v186, %v129
  %v229 = vmul.f32 %v189, %v129
  %v230 = vmul.f32 %v192, %v129
  %v231 = vmul.f32 %v195, %v129
  %v232 = vmul.f32 %v198, %v129
  %v233 = vmul.f32 %v201, %v129
  %v234 = vmul.f32 %v204, %v129
  %v235 = vmul.f32 %v207, %v129
  %v236 = vmul.f32 %v210, %v129
  %v237 = vmul.f32 %v213, %v129
  %v238 = vmul.f32 %v216, %v129
  %v239 = vmul.f32 %v219, %v129
  %v240 = vmul.f32 %v222, %v129
  %v241 = vmul.f32 %v225, %v129
  %v242 = vadd.f32 %v226, 1e-05
  %v243 = vadd.f32 %v227, 1e-05
  %v244 = vadd.f32 %v228, 1e-05
  %v245 = vadd.f32 %v229, 1e-05
  %v246 = vadd.f32 %v230, 1e-05
  %v247 = vadd.f32 %v231, 1e-05
  %v248 = vadd.f32 %v232, 1e-05
  %v249 = vadd.f32 %v233, 1e-05
  %v250 = vadd.f32 %v234, 1e-05
  %v251 = vadd.f32 %v235, 1e-05
  %v252 = vadd.f32 %v236, 1e-05
  %v253 = vadd.f32 %v237, 1e-05
  %v254 = vadd.f32 %v238, 1e-05
  %v255 = vadd.f32 %v239, 1e-05
  %v256 = vadd.f32 %v240, 1e-05
  %v257 = vadd.f32 %v241, 1e-05
  %v258 = vrsqrt.pop %v242
  %v259 = vrsqrt.pop %v243
  %v260 = vrsqrt.pop %v244
  %v261 = vrsqrt.pop %v245
  %v262 = vrsqrt.pop %v246
  %v263 = vrsqrt.pop %v247
  %v264 = vrsqrt.pop %v248
  %v265 = vrsqrt.pop %v249
  %v266 = vrsqrt.pop %v250
  %v267 = vrsqrt.pop %v251
  %v268 = vrsqrt.pop %v252
  %v269 = vrsqrt.pop %v253
  %v270 = vrsqrt.pop %v254
  %v271 = vrsqrt.pop %v255
  %v272 = vrsqrt.pop %v256
  %v273 = vrsqrt.pop %v257
  %v274 = vmul.f32 %v146, %v258
  %v275 = vmul.f32 %v147, %v259
  %v276 = vmul.f32 %v148, %v260
  %v277 = vmul.f32 %v149, %v261
  %v278 = vmul.f32 %v150, %v262
  %v279 = vmul.f32 %v151, %v263
  %v280 = vmul.f32 %v152, %v264
  %v281 = vmul.f32 %v153, %v265
  %v282 = vmul.f32 %v154, %v266
  %v283 = vmul.f32 %v155, %v267
  %v284 = vmul.f32 %v156, %v268
  %v285 = vmul.f32 %v157, %v269
  %v286 = vmul.f32 %v158, %v270
  %v287 = vmul.f32 %v159, %v271
  %v288 = vmul.f32 %v160, %v272
  %v289 = vmul.f32 %v161, %v273
  %v291 = vlaneseq
  %v292 = vshrl.u32 %v291, 7
  %v293 = vsub.s32 0, %v292
  %v294 = vrot.slane %v78, %v293
  %v296 = vmul.f32 %v274, %v294
  %v297 = vmul.f32 %v275, %v294
  %v298 = vmul.f32 %v276, %v294
  %v299 = vmul.f32 %v277, %v294
  %v300 = vmul.f32 %v278, %v294
  %v301 = vmul.f32 %v279, %v294
  %v302 = vmul.f32 %v280, %v294
  %v303 = vmul.f32 %v281, %v294
  %v304 = vmul.f32 %v282, %v294
  %v305 = vmul.f32 %v283, %v294
  %v306 = vmul.f32 %v284, %v294
  %v307 = vmul.f32 %v285, %v294
  %v308 = vmul.f32 %v286, %v294
  %v309 = vmul.f32 %v287, %v294
  %v310 = vmul.f32 %v288, %v294
  %v311 = vmul.f32 %v289, %v294
  %v313 = vlaneseq
  %v314 = vshrl.u32 %v313, 7
  %v315 = vsub.s32 0, %v314
  %v316 = vrot.slane %v79, %v315
  %v318 = vadd.f32 %v296, %v316
  %v319 = vadd.f32 %v297, %v316
  %v320 = vadd.f32 %v298, %v316
  %v321 = vadd.f32 %v299, %v316
  %v322 = vadd.f32 %v300, %v316
  %v323 = vadd.f32 %v301, %v316
  %v324 = vadd.f32 %v302, %v316
  %v325 = vadd.f32 %v303, %v316
  %v326 = vadd.f32 %v304, %v316
  %v327 = vadd.f32 %v305, %v316
  %v328 = vadd.f32 %v306, %v316
  %v329 = vadd.f32 %v307, %v316
  %v330 = vadd.f32 %v308, %v316
  %v331 = vadd.f32 %v309, %v316
  %v332 = vadd.f32 %v310, %v316
  %v333 = vadd.f32 %v311, %v316
  %v334 = vpack.c.bf16 %v319, %v318
  %v335 = vpack.c.bf16 %v321, %v320
  %v336 = vpack.c.bf16 %v323, %v322
  %v337 = vpack.c.bf16 %v325, %v324
  %v338 = vpack.c.bf16 %v327, %v326
  %v339 = vpack.c.bf16 %v329, %v328
  %v340 = vpack.c.bf16 %v331, %v330
  %v341 = vpack.c.bf16 %v333, %v332
  %v342 = vld [vmem:[%s4] sm:$0xf]
  %v343 = vld [vmem:[%s4 + $0x4] sm:$0xf]
  %v344 = vld [vmem:[%s4 + $0x8] sm:$0xf]
  %v345 = vld [vmem:[%s4 + $0xc] sm:$0xf]
  %v346 = vld [vmem:[%s5] sm:$0x1]
  %v348 = vlaneseq
  %v349 = vshrl.u32 %v348, 7
  %v350 = vsub.s32 0, %v349
  %v351 = vrot.slane %v346, %v350
  %v357 = vunpack.c.l.b16 %v342
  %v358 = vunpack.c.l.b16 %v343
  %v359 = vunpack.c.l.b16 %v344
  %v360 = vunpack.c.l.b16 %v345
  %v361 = vpack.c.b16 %v358, %v357
  %v362 = vpack.c.b16 %v360, %v359
  %v366 = vsel %vm80, %v334, 0
  %v369 = vsel %vm80, %v335, 0
  %v372 = vsel %vm80, %v336, 0
  %v375 = vsel %vm80, %v337, 0
  %v378 = vsel %vm80, %v338, 0
  %v381 = vsel %vm80, %v339, 0
  %v384 = vsel %vm80, %v340, 0
  %v387 = vsel %vm80, %v341, 0
  %389 = vmatprep.subr.bf16.mxu0 0
  %390 = vmatpush1.bf16.msra.mxu0 0
  %391 = vmatprep.subr.bf16.mxu0 0
  %392 = vmatpush1.bf16.msra.mxu0 0
  %393 = vmatprep.subr.bf16.mxu0 0
  %394 = vmatpush1.bf16.msra.mxu0 0
  %395 = vmatprep.subr.bf16.mxu0 0
  %396 = vmatpush1.bf16.msra.mxu0 0
  %397 = vmatprep.subr.bf16.mxu0 0
  %398 = vmatpush1.bf16.msra.mxu0 0
  %399 = vmatprep.subr.bf16.mxu0 0
  %400 = vmatpush1.bf16.msra.mxu0 0
  %401 = vmatprep.subr.bf16.mxu0 0
  %402 = vmatpush1.bf16.msra.mxu0 %v362
  %403 = vmatprep.subr.bf16.mxu0 0
  %404 = vmatpush1.bf16.msra.mxu0 %v361
  %405 = vmatprep.subr.bf16.mxu0 0
  %406 = vmatpush2.bf16.msra.mxu0 0
  %407 = vmatprep.subr.bf16.mxu0 0
  %408 = vmatpush2.bf16.msra.mxu0 0
  %409 = vmatprep.subr.bf16.mxu0 0
  %410 = vmatpush2.bf16.msra.mxu0 0
  %411 = vmatprep.subr.bf16.mxu0 0
  %412 = vmatpush2.bf16.msra.mxu0 0
  %413 = vmatprep.subr.bf16.mxu0 0
  %414 = vmatpush2.bf16.msra.mxu0 0
  %415 = vmatprep.subr.bf16.mxu0 0
  %416 = vmatpush2.bf16.msra.mxu0 0
  %417 = vmatprep.subr.bf16.mxu0 0
  %418 = vmatpush2.bf16.msra.mxu0 0
  %419 = vmatprep.subr.bf16.mxu0 0
  %420 = vmatpush2.bf16.msra.mxu0 0
  %421 = vmatprep.mubr.bf16.mxu0 0
  %422 = vmatmul.mubr.bf16.gmra.mxu0 %v366
  %v423 = vpop.f32.mrf.mxu0
  %v424 = vadd.f32 %v351, %v423
  %v425 = vpop.f32.mrf.mxu0
  %v426 = vpop.f32.mrf.mxu0
  %v427 = vadd.f32 %v351, %v426
  %v428 = vpop.f32.mrf.mxu0
  %429 = vmatprep.mubr.bf16.mxu0 0
  %430 = vmatmul.mubr.bf16.gmra.mxu0 %v369
  %v431 = vpop.f32.mrf.mxu0
  %v432 = vadd.f32 %v351, %v431
  %v433 = vpop.f32.mrf.mxu0
  %v434 = vpop.f32.mrf.mxu0
  %v435 = vadd.f32 %v351, %v434
  %v436 = vpop.f32.mrf.mxu0
  %437 = vmatprep.mubr.bf16.mxu0 0
  %438 = vmatmul.mubr.bf16.gmra.mxu0 %v372
  %v439 = vpop.f32.mrf.mxu0
  %v440 = vadd.f32 %v351, %v439
  %v441 = vpop.f32.mrf.mxu0
  %v442 = vpop.f32.mrf.mxu0
  %v443 = vadd.f32 %v351, %v442
  %v444 = vpop.f32.mrf.mxu0
  %445 = vmatprep.mubr.bf16.mxu0 0
  %446 = vmatmul.mubr.bf16.gmra.mxu0 %v375
  %v447 = vpop.f32.mrf.mxu0
  %v448 = vadd.f32 %v351, %v447
  %v449 = vpop.f32.mrf.mxu0
  %v450 = vpop.f32.mrf.mxu0
  %v451 = vadd.f32 %v351, %v450
  %v452 = vpop.f32.mrf.mxu0
  %453 = vmatprep.mubr.bf16.mxu0 0
  %454 = vmatmul.mubr.bf16.gmra.mxu0 %v378
  %v455 = vpop.f32.mrf.mxu0
  %v456 = vadd.f32 %v351, %v455
  %v457 = vpop.f32.mrf.mxu0
  %v458 = vpop.f32.mrf.mxu0
  %v459 = vadd.f32 %v351, %v458
  %v460 = vpop.f32.mrf.mxu0
  %461 = vmatprep.mubr.bf16.mxu0 0
  %462 = vmatmul.mubr.bf16.gmra.mxu0 %v381
  %v463 = vpop.f32.mrf.mxu0
  %v464 = vadd.f32 %v351, %v463
  %v465 = vpop.f32.mrf.mxu0
  %v466 = vpop.f32.mrf.mxu0
  %v467 = vadd.f32 %v351, %v466
  %v468 = vpop.f32.mrf.mxu0
  %469 = vmatprep.mubr.bf16.mxu0 0
  %470 = vmatmul.mubr.bf16.gmra.mxu0 %v384
  %v471 = vpop.f32.mrf.mxu0
  %v472 = vadd.f32 %v351, %v471
  %v473 = vpop.f32.mrf.mxu0
  %v474 = vpop.f32.mrf.mxu0
  %v475 = vadd.f32 %v351, %v474
  %v476 = vpop.f32.mrf.mxu0
  %477 = vmatprep.mubr.bf16.mxu0 0
  %478 = vmatmul.mubr.bf16.gmra.mxu0 %v387
  %v479 = vpop.f32.mrf.mxu0
  %v480 = vadd.f32 %v351, %v479
  %v481 = vpop.f32.mrf.mxu0
  %v482 = vpop.f32.mrf.mxu0
  %v483 = vadd.f32 %v351, %v482
  %v484 = vpop.f32.mrf.mxu0
  %485 = vdwg.mxu0
  %v486 = vmul.f32 %v424, 0.5
  %v487 = vmul.f32 %v427, 0.5
  %v488 = vmul.f32 %v432, 0.5
  %v489 = vmul.f32 %v435, 0.5
  %v490 = vmul.f32 %v440, 0.5
  %v491 = vmul.f32 %v443, 0.5
  %v492 = vmul.f32 %v448, 0.5
  %v493 = vmul.f32 %v451, 0.5
  %v494 = vmul.f32 %v456, 0.5
  %v495 = vmul.f32 %v459, 0.5
  %v496 = vmul.f32 %v464, 0.5
  %v497 = vmul.f32 %v467, 0.5
  %v498 = vmul.f32 %v472, 0.5
  %v499 = vmul.f32 %v475, 0.5
  %v500 = vmul.f32 %v480, 0.5
  %v501 = vmul.f32 %v483, 0.5
  %v502 = vmul.f32 %v424, 0.044715
  %v503 = vmul.f32 %v427, 0.044715
  %v504 = vmul.f32 %v432, 0.044715
  %v505 = vmul.f32 %v435, 0.044715
  %v506 = vmul.f32 %v440, 0.044715
  %v507 = vmul.f32 %v443, 0.044715
  %v508 = vmul.f32 %v448, 0.044715
  %v509 = vmul.f32 %v451, 0.044715
  %v510 = vmul.f32 %v456, 0.044715
  %v511 = vmul.f32 %v459, 0.044715
  %v512 = vmul.f32 %v464, 0.044715
  %v513 = vmul.f32 %v467, 0.044715
  %v514 = vmul.f32 %v472, 0.044715
  %v515 = vmul.f32 %v475, 0.044715
  %v516 = vmul.f32 %v480, 0.044715
  %v517 = vmul.f32 %v483, 0.044715
  %v518 = vmul.f32 %v502, %v424
  %v519 = vmul.f32 %v503, %v427
  %v520 = vmul.f32 %v504, %v432
  %v521 = vmul.f32 %v505, %v435
  %v522 = vmul.f32 %v506, %v440
  %v523 = vmul.f32 %v507, %v443
  %v524 = vmul.f32 %v508, %v448
  %v525 = vmul.f32 %v509, %v451
  %v526 = vmul.f32 %v510, %v456
  %v527 = vmul.f32 %v511, %v459
  %v528 = vmul.f32 %v512, %v464
  %v529 = vmul.f32 %v513, %v467
  %v530 = vmul.f32 %v514, %v472
  %v531 = vmul.f32 %v515, %v475
  %v532 = vmul.f32 %v516, %v480
  %v533 = vmul.f32 %v517, %v483
  %v534 = vmul.f32 %v518, %v424
  %v535 = vmul.f32 %v519, %v427
  %v536 = vmul.f32 %v520, %v432
  %v537 = vmul.f32 %v521, %v435
  %v538 = vmul.f32 %v522, %v440
  %v539 = vmul.f32 %v523, %v443
  %v540 = vmul.f32 %v524, %v448
  %v541 = vmul.f32 %v525, %v451
  %v542 = vmul.f32 %v526, %v456
  %v543 = vmul.f32 %v527, %v459
  %v544 = vmul.f32 %v528, %v464
  %v545 = vmul.f32 %v529, %v467
  %v546 = vmul.f32 %v530, %v472
  %v547 = vmul.f32 %v531, %v475
  %v548 = vmul.f32 %v532, %v480
  %v549 = vmul.f32 %v533, %v483
  %v550 = vadd.f32 %v424, %v534
  %v551 = vadd.f32 %v427, %v535
  %v552 = vadd.f32 %v432, %v536
  %v553 = vadd.f32 %v435, %v537
  %v554 = vadd.f32 %v440, %v538
  %v555 = vadd.f32 %v443, %v539
  %v556 = vadd.f32 %v448, %v540
  %v557 = vadd.f32 %v451, %v541
  %v558 = vadd.f32 %v456, %v542
  %v559 = vadd.f32 %v459, %v543
  %v560 = vadd.f32 %v464, %v544
  %v561 = vadd.f32 %v467, %v545
  %v562 = vadd.f32 %v472, %v546
  %v563 = vadd.f32 %v475, %v547
  %v564 = vadd.f32 %v480, %v548
  %v565 = vadd.f32 %v483, %v549
  %v566 = vmul.f32 %v550, 0.7978846
  %v567 = vmul.f32 %v551, 0.7978846
  %v568 = vmul.f32 %v552, 0.7978846
  %v569 = vmul.f32 %v553, 0.7978846
  %v570 = vmul.f32 %v554, 0.7978846
  %v571 = vmul.f32 %v555, 0.7978846
  %v572 = vmul.f32 %v556, 0.7978846
  %v573 = vmul.f32 %v557, 0.7978846
  %v574 = vmul.f32 %v558, 0.7978846
  %v575 = vmul.f32 %v559, 0.7978846
  %v576 = vmul.f32 %v560, 0.7978846
  %v577 = vmul.f32 %v561, 0.7978846
  %v578 = vmul.f32 %v562, 0.7978846
  %v579 = vmul.f32 %v563, 0.7978846
  %v580 = vmul.f32 %v564, 0.7978846
  %v581 = vmul.f32 %v565, 0.7978846
  %v582 = vtanh.pop %v566
  %v583 = vtanh.pop %v567
  %v584 = vtanh.pop %v568
  %v585 = vtanh.pop %v569
  %v586 = vtanh.pop %v570
  %v587 = vtanh.pop %v571
  %v588 = vtanh.pop %v572
  %v589 = vtanh.pop %v573
  %v590 = vtanh.pop %v574
  %v591 = vtanh.pop %v575
  %v592 = vtanh.pop %v576
  %v593 = vtanh.pop %v577
  %v594 = vtanh.pop %v578
  %v595 = vtanh.pop %v579
  %v596 = vtanh.pop %v580
  %v597 = vtanh.pop %v581
  %v598 = vadd.f32 %v582, 1.0
  %v599 = vadd.f32 %v583, 1.0
  %v600 = vadd.f32 %v584, 1.0
  %v601 = vadd.f32 %v585, 1.0
  %v602 = vadd.f32 %v586, 1.0
  %v603 = vadd.f32 %v587, 1.0
  %v604 = vadd.f32 %v588, 1.0
  %v605 = vadd.f32 %v589, 1.0
  %v606 = vadd.f32 %v590, 1.0
  %v607 = vadd.f32 %v591, 1.0
  %v608 = vadd.f32 %v592, 1.0
  %v609 = vadd.f32 %v593, 1.0
  %v610 = vadd.f32 %v594, 1.0
  %v611 = vadd.f32 %v595, 1.0
  %v612 = vadd.f32 %v596, 1.0
  %v613 = vadd.f32 %v597, 1.0
  %v614 = vmul.f32 %v486, %v598
  %v615 = vmul.f32 %v487, %v599
  %v616 = vmul.f32 %v488, %v600
  %v617 = vmul.f32 %v489, %v601
  %v618 = vmul.f32 %v490, %v602
  %v619 = vmul.f32 %v491, %v603
  %v620 = vmul.f32 %v492, %v604
  %v621 = vmul.f32 %v493, %v605
  %v622 = vmul.f32 %v494, %v606
  %v623 = vmul.f32 %v495, %v607
  %v624 = vmul.f32 %v496, %v608
  %v625 = vmul.f32 %v497, %v609
  %v626 = vmul.f32 %v498, %v610
  %v627 = vmul.f32 %v499, %v611
  %v628 = vmul.f32 %v500, %v612
  %v629 = vmul.f32 %v501, %v613
  %v630 = vpack.c.bf16 %v615, %v614
  %v631 = vpack.c.bf16 %v617, %v616
  %v632 = vpack.c.bf16 %v619, %v618
  %v633 = vpack.c.bf16 %v621, %v620
  %v634 = vpack.c.bf16 %v623, %v622
  %v635 = vpack.c.bf16 %v625, %v624
  %v636 = vpack.c.bf16 %v627, %v626
  %v637 = vpack.c.bf16 %v629, %v628
  %v638 = vld [vmem:[%s6] sm:$0xf]
  %v639 = vld [vmem:[%s6 + $0x4] sm:$0xf]
  %v640 = vld [vmem:[%s6 + $0x8] sm:$0xf]
  %v641 = vld [vmem:[%s6 + $0xc] sm:$0xf]
  %v642 = vld [vmem:[%s6 + $0x10] sm:$0xf]
  %v643 = vld [vmem:[%s6 + $0x14] sm:$0xf]
  %v644 = vld [vmem:[%s6 + $0x18] sm:$0xf]
  %v645 = vld [vmem:[%s6 + $0x1c] sm:$0xf]
  %v646 = vld [vmem:[%s6 + $0x20] sm:$0xf]
  %v647 = vld [vmem:[%s6 + $0x24] sm:$0xf]
  %v648 = vld [vmem:[%s6 + $0x28] sm:$0xf]
  %v649 = vld [vmem:[%s6 + $0x2c] sm:$0xf]
  %v650 = vld [vmem:[%s6 + $0x30] sm:$0xf]
  %v651 = vld [vmem:[%s6 + $0x34] sm:$0xf]
  %v652 = vld [vmem:[%s6 + $0x38] sm:$0xf]
  %v653 = vld [vmem:[%s6 + $0x3c] sm:$0xf]
  %v654 = vld [vmem:[%s7] sm:$0x1]
  %v656 = vlaneseq
  %v657 = vshrl.u32 %v656, 7
  %v658 = vsub.s32 0, %v657
  %v659 = vrot.slane %v654, %v658
  %v677 = vunpack.c.l.b16 %v638
  %v678 = vunpack.c.l.b16 %v639
  %v679 = vunpack.c.l.b16 %v640
  %v680 = vunpack.c.l.b16 %v641
  %v681 = vunpack.c.l.b16 %v642
  %v682 = vunpack.c.l.b16 %v643
  %v683 = vunpack.c.l.b16 %v644
  %v684 = vunpack.c.l.b16 %v645
  %v685 = vunpack.c.l.b16 %v646
  %v686 = vunpack.c.l.b16 %v647
  %v687 = vunpack.c.l.b16 %v648
  %v688 = vunpack.c.l.b16 %v649
  %v689 = vunpack.c.l.b16 %v650
  %v690 = vunpack.c.l.b16 %v651
  %v691 = vunpack.c.l.b16 %v652
  %v692 = vunpack.c.l.b16 %v653
  %v693 = vpack.c.b16 %v678, %v677
  %v694 = vpack.c.b16 %v680, %v679
  %v695 = vpack.c.b16 %v682, %v681
  %v696 = vpack.c.b16 %v684, %v683
  %v697 = vpack.c.b16 %v686, %v685
  %v698 = vpack.c.b16 %v688, %v687
  %v699 = vpack.c.b16 %v690, %v689
  %v700 = vpack.c.b16 %v692, %v691
  %709 = vmatprep.subr.bf16.mxu0 0
  %710 = vmatpush1.bf16.msra.mxu0 %v700
  %711 = vmatprep.subr.bf16.mxu0 0
  %712 = vmatpush1.bf16.msra.mxu0 %v699
  %713 = vmatprep.subr.bf16.mxu0 0
  %714 = vmatpush1.bf16.msra.mxu0 %v698
  %715 = vmatprep.subr.bf16.mxu0 0
  %716 = vmatpush1.bf16.msra.mxu0 %v697
  %717 = vmatprep.subr.bf16.mxu0 0
  %718 = vmatpush1.bf16.msra.mxu0 %v696
  %719 = vmatprep.subr.bf16.mxu0 0
  %720 = vmatpush1.bf16.msra.mxu0 %v695
  %721 = vmatprep.subr.bf16.mxu0 0
  %722 = vmatpush1.bf16.msra.mxu0 %v694
  %723 = vmatprep.subr.bf16.mxu0 0
  %724 = vmatpush1.bf16.msra.mxu0 %v693
  %725 = vmatprep.subr.bf16.mxu0 0
  %726 = vmatpush2.bf16.msra.mxu0 0
  %727 = vmatprep.subr.bf16.mxu0 0
  %728 = vmatpush2.bf16.msra.mxu0 0
  %729 = vmatprep.subr.bf16.mxu0 0
  %730 = vmatpush2.bf16.msra.mxu0 0
  %731 = vmatprep.subr.bf16.mxu0 0
  %732 = vmatpush2.bf16.msra.mxu0 0
  %733 = vmatprep.subr.bf16.mxu0 0
  %734 = vmatpush2.bf16.msra.mxu0 0
  %735 = vmatprep.subr.bf16.mxu0 0
  %736 = vmatpush2.bf16.msra.mxu0 0
  %737 = vmatprep.subr.bf16.mxu0 0
  %738 = vmatpush2.bf16.msra.mxu0 0
  %739 = vmatprep.subr.bf16.mxu0 0
  %740 = vmatpush2.bf16.msra.mxu0 0
  %741 = vmatprep.mubr.bf16.mxu0 0
  %742 = vmatmul.mubr.bf16.gmra.mxu0 %v630
  %v743 = vpop.f32.mrf.mxu0
  %v744 = vadd.f32 %v659, %v743
  %v745 = vpop.f32.mrf.mxu0
  %v746 = vpop.f32.mrf.mxu0
  %v747 = vadd.f32 %v659, %v746
  %v748 = vpop.f32.mrf.mxu0
  %749 = vmatprep.mubr.bf16.mxu0 0
  %750 = vmatmul.mubr.bf16.gmra.mxu0 %v631
  %v751 = vpop.f32.mrf.mxu0
  %v752 = vadd.f32 %v659, %v751
  %v753 = vpop.f32.mrf.mxu0
  %v754 = vpop.f32.mrf.mxu0
  %v755 = vadd.f32 %v659, %v754
  %v756 = vpop.f32.mrf.mxu0
  %757 = vmatprep.mubr.bf16.mxu0 0
  %758 = vmatmul.mubr.bf16.gmra.mxu0 %v632
  %v759 = vpop.f32.mrf.mxu0
  %v760 = vadd.f32 %v659, %v759
  %v761 = vpop.f32.mrf.mxu0
  %v762 = vpop.f32.mrf.mxu0
  %v763 = vadd.f32 %v659, %v762
  %v764 = vpop.f32.mrf.mxu0
  %765 = vmatprep.mubr.bf16.mxu0 0
  %766 = vmatmul.mubr.bf16.gmra.mxu0 %v633
  %v767 = vpop.f32.mrf.mxu0
  %v768 = vadd.f32 %v659, %v767
  %v769 = vpop.f32.mrf.mxu0
  %v770 = vpop.f32.mrf.mxu0
  %v771 = vadd.f32 %v659, %v770
  %v772 = vpop.f32.mrf.mxu0
  %773 = vmatprep.mubr.bf16.mxu0 0
  %774 = vmatmul.mubr.bf16.gmra.mxu0 %v634
  %v775 = vpop.f32.mrf.mxu0
  %v776 = vadd.f32 %v659, %v775
  %v777 = vpop.f32.mrf.mxu0
  %v778 = vpop.f32.mrf.mxu0
  %v779 = vadd.f32 %v659, %v778
  %v780 = vpop.f32.mrf.mxu0
  %781 = vmatprep.mubr.bf16.mxu0 0
  %782 = vmatmul.mubr.bf16.gmra.mxu0 %v635
  %v783 = vpop.f32.mrf.mxu0
  %v784 = vadd.f32 %v659, %v783
  %v785 = vpop.f32.mrf.mxu0
  %v786 = vpop.f32.mrf.mxu0
  %v787 = vadd.f32 %v659, %v786
  %v788 = vpop.f32.mrf.mxu0
  %789 = vmatprep.mubr.bf16.mxu0 0
  %790 = vmatmul.mubr.bf16.gmra.mxu0 %v636
  %v791 = vpop.f32.mrf.mxu0
  %v792 = vadd.f32 %v659, %v791
  %v793 = vpop.f32.mrf.mxu0
  %v794 = vpop.f32.mrf.mxu0
  %v795 = vadd.f32 %v659, %v794
  %v796 = vpop.f32.mrf.mxu0
  %797 = vmatprep.mubr.bf16.mxu0 0
  %798 = vmatmul.mubr.bf16.gmra.mxu0 %v637
  %v799 = vpop.f32.mrf.mxu0
  %v800 = vadd.f32 %v659, %v799
  %v801 = vpop.f32.mrf.mxu0
  %v802 = vpop.f32.mrf.mxu0
  %v803 = vadd.f32 %v659, %v802
  %v804 = vpop.f32.mrf.mxu0
  %805 = vdwg.mxu0
  %v806 = vadd.f32 %v62, %v744
  %v807 = vadd.f32 %v63, %v747
  %v808 = vadd.f32 %v64, %v752
  %v809 = vadd.f32 %v65, %v755
  %v810 = vadd.f32 %v66, %v760
  %v811 = vadd.f32 %v67, %v763
  %v812 = vadd.f32 %v68, %v768
  %v813 = vadd.f32 %v69, %v771
  %v814 = vadd.f32 %v70, %v776
  %v815 = vadd.f32 %v71, %v779
  %v816 = vadd.f32 %v72, %v784
  %v817 = vadd.f32 %v73, %v787
  %v818 = vadd.f32 %v74, %v792
  %v819 = vadd.f32 %v75, %v795
  %v820 = vadd.f32 %v76, %v800
  %v821 = vadd.f32 %v77, %v803
  %822 = vst.msk [vmem:[%s8] sm:$0xff] %vm80, %v806
  %823 = vst.msk [vmem:[%s8 + $0x8] sm:$0xff] %vm80, %v807
  %824 = vst.msk [vmem:[%s8 + $0x10] sm:$0xff] %vm80, %v808
  %825 = vst.msk [vmem:[%s8 + $0x18] sm:$0xff] %vm80, %v809
  %826 = vst.msk [vmem:[%s8 + $0x20] sm:$0xff] %vm80, %v810
  %827 = vst.msk [vmem:[%s8 + $0x28] sm:$0xff] %vm80, %v811
  %828 = vst.msk [vmem:[%s8 + $0x30] sm:$0xff] %vm80, %v812
  %829 = vst.msk [vmem:[%s8 + $0x38] sm:$0xff] %vm80, %v813
  %830 = vst.msk [vmem:[%s8 + $0x40] sm:$0xff] %vm80, %v814
  %831 = vst.msk [vmem:[%s8 + $0x48] sm:$0xff] %vm80, %v815
  %832 = vst.msk [vmem:[%s8 + $0x50] sm:$0xff] %vm80, %v816
  %833 = vst.msk [vmem:[%s8 + $0x58] sm:$0xff] %vm80, %v817
  %834 = vst.msk [vmem:[%s8 + $0x60] sm:$0xff] %vm80, %v818
  %835 = vst.msk [vmem:[%s8 + $0x68] sm:$0xff] %vm80, %v819
  %836 = vst.msk [vmem:[%s8 + $0x70] sm:$0xff] %vm80, %v820
  %837 = vst.msk [vmem:[%s8 + $0x78] sm:$0xff] %vm80, %v821
  // Predicated region
  $region34: #{basic_layer_forward.5} parent=0 // pred_check
    _
  $region35: #{basic_layer_forward.5} parent=0 // pred_check_branch
    %839 = sbr.rel (0) target = $region37
  $region36: #{basic_layer_forward.5} parent=0 // pred_region
    _
  $region37: #{basic_layer_forward.5} parent=0 // pred_fallthru
    _
  // Predicated region
  $region38: #{basic_layer_forward.5} parent=0 // pred_check
    _
  $region39: #{basic_layer_forward.5} parent=0 // pred_check_branch
    %841 = sbr.rel (0) target = $region41
  $region40: #{basic_layer_forward.5} parent=0 // pred_region
    _
  $region41: #{basic_layer_forward.5} parent=0 // pred_fallthru
    _

// kernel: basic_layer_forward.4
$region0: #{basic_layer_forward.4}
  #allocation0 [shape = 'u32[]', space=smem, size = 0x4, offset = 0x4, fixed_abs, tag = 'smem constant byte address 0x4 - core index']
  #allocation1 [shape = 'u32[144,128]{1,0:T(1,128)}', space=vmem, size = 0x12000, scoped, tag = 'internal scratch']
  %s0 = inlined_call_operand.vmem [shape: f32[8,16,32], index: 0, kind: input, shape index: {}]
  %s1 = inlined_call_operand.vmem [shape: f32[1,32], index: 1, kind: input, shape index: {}]
  %s2 = inlined_call_operand.vmem [shape: f32[1,32], index: 2, kind: input, shape index: {}]
  %s3 = inlined_call_operand.vmem [shape: bf16[32,96], index: 3, kind: input, shape index: {}]
  %s4 = inlined_call_operand.vmem [shape: f32[1,96], index: 4, kind: input, shape index: {}]
  %s5 = inlined_call_operand.vmem [shape: bf16[32,32], index: 5, kind: input, shape index: {}]
  %s6 = inlined_call_operand.vmem [shape: f32[1,32], index: 6, kind: input, shape index: {}]
  %s7 = inlined_call_operand.vmem [shape: f32[4,16,16], index: 7, kind: input, shape index: {}]
  %s8 = inlined_call_operand.vmem [shape: f32[8,16,32], index: 8, kind: output, shape index: {}]
  %s9 = sld [smem:[#allocation0]]
  $region65: #{basic_layer_forward.4} parent=0
    _
  %s11 = ssub.s32 1, %s9
  %s12 = scalar_select 0, %s11, %s9
  loop: start=0, step=1, limit=4
  $region2: #{basic_layer_forward.4} parent=0 // loop_pre_header
    _
  $region3: #{basic_layer_forward.4} parent=0 // loop_header
    %s14 = sphi 0, %s18
    %p15 = scmp.ge.s32.totalorder %s14, 4
    %s24 = sphi 0, %s26
    %s27 = sphi 0, %s24
    %s28 = sphi 0, %s27
    %s44 = sphi 0, %s28
    %s48 = sphi 0, %s48
    %s50 = sphi 0, %s48
    %s51 = sphi 0, %s50
    %s65 = sphi 0, %s51
    %s69 = sphi 0, %s69
    %s71 = sphi 0, %s69
    %s72 = sphi 0, %s71
    %s86 = sphi 0, %s72
    %s90 = sphi 0, %s90
    %s92 = sphi 0, %s90
    %s93 = sphi 0, %s92
    %s107 = sphi 0, %s93
    %s111 = sphi 0, %s111
    %s113 = sphi 0, %s111
    %s114 = sphi 0, %s113
    %s128 = sphi 0, %s114
    %s132 = sphi 0, %s132
    %s134 = sphi 0, %s132
    %s135 = sphi 0, %s134
    %s149 = sphi 0, %s135
    %s153 = sphi 0, %s153
    %s155 = sphi 0, %s153
    %s156 = sphi 0, %s155
    %s170 = sphi 0, %s156
    %s174 = sphi 0, %s174
    %s176 = sphi 0, %s174
    %s177 = sphi 0, %s176
    %s191 = sphi 0, %s177
    %s197 = sphi 0, %s199
    %s200 = sphi 0, %s197
    %s201 = sphi 0, %s200
    %s217 = sphi 0, %s201
  $region4: #{basic_layer_forward.4} parent=0 // loop_header_branch
    %17 = sbr.rel (%p15) target = $region8
  $region5: #{basic_layer_forward.4} parent=0 // loop_body
    %s19 = ssub.s32 %s14, 1
    %s20 = ssub.s32 %s14, 2
    %s21 = sadd.s32 %s14, 1
    %s22 = ssub.s32 %s14, %s21
    %p23 = scmp.eq.s32.totalorder %s22, 0
    %s25 = sadd.s32 %s24, 1
    %s26 = scalar_select %p23, %s24, %s25
    %p29 = pneg %p23
    %p30 = scmp.eq.s32.totalorder %s14, 1
    %p31 = por %p29, %p30
    %p32 = scmp.ne.s32.totalorder %s24, %s27
    %p33 = scmp.eq.s32.totalorder %s14, 0
    %p34 = por %p32, %p33
    %p35 = scmp.ne.s32.totalorder %s24, %s27
    %p36 = scmp.eq.s32.totalorder %s19, 1
    %p37 = por %p35, %p36
    %p38 = scmp.ne.s32.totalorder %s27, %s28
    %p39 = scmp.eq.s32.totalorder %s19, 0
    %p40 = por %p38, %p39
    %p41 = scmp.ne.s32.totalorder %s27, %s28
    %p42 = scmp.eq.s32.totalorder %s20, 1
    %p43 = por %p41, %p42
    %p45 = scmp.ne.s32.totalorder %s28, %s44
    %p46 = scmp.eq.s32.totalorder %s20, 0
    %p47 = por %p45, %p46
    %s49 = sadd.s32 %s48, 1
    %p52 = scmp.eq.s32.totalorder %s14, 1
    %p53 = scmp.ne.s32.totalorder %s48, %s50
    %p54 = scmp.eq.s32.totalorder %s14, 0
    %p55 = por %p53, %p54
    %p56 = scmp.ne.s32.totalorder %s48, %s50
    %p57 = scmp.eq.s32.totalorder %s19, 1
    %p58 = por %p56, %p57
    %p59 = scmp.ne.s32.totalorder %s50, %s51
    %p60 = scmp.eq.s32.totalorder %s19, 0
    %p61 = por %p59, %p60
    %p62 = scmp.ne.s32.totalorder %s50, %s51
    %p63 = scmp.eq.s32.totalorder %s20, 1
    %p64 = por %p62, %p63
    %p66 = scmp.ne.s32.totalorder %s51, %s65
    %p67 = scmp.eq.s32.totalorder %s20, 0
    %p68 = por %p66, %p67
    %s70 = sadd.s32 %s69, 1
    %p73 = scmp.eq.s32.totalorder %s14, 1
    %p74 = scmp.ne.s32.totalorder %s69, %s71
    %p75 = scmp.eq.s32.totalorder %s14, 0
    %p76 = por %p74, %p75
    %p77 = scmp.ne.s32.totalorder %s69, %s71
    %p78 = scmp.eq.s32.totalorder %s19, 1
    %p79 = por %p77, %p78
    %p80 = scmp.ne.s32.totalorder %s71, %s72
    %p81 = scmp.eq.s32.totalorder %s19, 0
    %p82 = por %p80, %p81
    %p83 = scmp.ne.s32.totalorder %s71, %s72
    %p84 = scmp.eq.s32.totalorder %s20, 1
    %p85 = por %p83, %p84
    %p87 = scmp.ne.s32.totalorder %s72, %s86
    %p88 = scmp.eq.s32.totalorder %s20, 0
    %p89 = por %p87, %p88
    %s91 = sadd.s32 %s90, 1
    %p94 = scmp.eq.s32.totalorder %s14, 1
    %p95 = scmp.ne.s32.totalorder %s90, %s92
    %p96 = scmp.eq.s32.totalorder %s14, 0
    %p97 = por %p95, %p96
    %p98 = scmp.ne.s32.totalorder %s90, %s92
    %p99 = scmp.eq.s32.totalorder %s19, 1
    %p100 = por %p98, %p99
    %p101 = scmp.ne.s32.totalorder %s92, %s93
    %p102 = scmp.eq.s32.totalorder %s19, 0
    %p103 = por %p101, %p102
    %p104 = scmp.ne.s32.totalorder %s92, %s93
    %p105 = scmp.eq.s32.totalorder %s20, 1
    %p106 = por %p104, %p105
    %p108 = scmp.ne.s32.totalorder %s93, %s107
    %p109 = scmp.eq.s32.totalorder %s20, 0
    %p110 = por %p108, %p109
    %s112 = sadd.s32 %s111, 1
    %p115 = scmp.eq.s32.totalorder %s14, 1
    %p116 = scmp.ne.s32.totalorder %s111, %s113
    %p117 = scmp.eq.s32.totalorder %s14, 0
    %p118 = por %p116, %p117
    %p119 = scmp.ne.s32.totalorder %s111, %s113
    %p120 = scmp.eq.s32.totalorder %s19, 1
    %p121 = por %p119, %p120
    %p122 = scmp.ne.s32.totalorder %s113, %s114
    %p123 = scmp.eq.s32.totalorder %s19, 0
    %p124 = por %p122, %p123
    %p125 = scmp.ne.s32.totalorder %s113, %s114
    %p126 = scmp.eq.s32.totalorder %s20, 1
    %p127 = por %p125, %p126
    %p129 = scmp.ne.s32.totalorder %s114, %s128
    %p130 = scmp.eq.s32.totalorder %s20, 0
    %p131 = por %p129, %p130
    %s133 = sadd.s32 %s132, 1
    %p136 = scmp.eq.s32.totalorder %s14, 1
    %p137 = scmp.ne.s32.totalorder %s132, %s134
    %p138 = scmp.eq.s32.totalorder %s14, 0
    %p139 = por %p137, %p138
    %p140 = scmp.ne.s32.totalorder %s132, %s134
    %p141 = scmp.eq.s32.totalorder %s19, 1
    %p142 = por %p140, %p141
    %p143 = scmp.ne.s32.totalorder %s134, %s135
    %p144 = scmp.eq.s32.totalorder %s19, 0
    %p145 = por %p143, %p144
    %p146 = scmp.ne.s32.totalorder %s134, %s135
    %p147 = scmp.eq.s32.totalorder %s20, 1
    %p148 = por %p146, %p147
    %p150 = scmp.ne.s32.totalorder %s135, %s149
    %p151 = scmp.eq.s32.totalorder %s20, 0
    %p152 = por %p150, %p151
    %s154 = sadd.s32 %s153, 1
    %p157 = scmp.eq.s32.totalorder %s14, 1
    %p158 = scmp.ne.s32.totalorder %s153, %s155
    %p159 = scmp.eq.s32.totalorder %s14, 0
    %p160 = por %p158, %p159
    %p161 = scmp.ne.s32.totalorder %s153, %s155
    %p162 = scmp.eq.s32.totalorder %s19, 1
    %p163 = por %p161, %p162
    %p164 = scmp.ne.s32.totalorder %s155, %s156
    %p165 = scmp.eq.s32.totalorder %s19, 0
    %p166 = por %p164, %p165
    %p167 = scmp.ne.s32.totalorder %s155, %s156
    %p168 = scmp.eq.s32.totalorder %s20, 1
    %p169 = por %p167, %p168
    %p171 = scmp.ne.s32.totalorder %s156, %s170
    %p172 = scmp.eq.s32.totalorder %s20, 0
    %p173 = por %p171, %p172
    %s175 = sadd.s32 %s174, 1
    %p178 = scmp.eq.s32.totalorder %s14, 1
    %p179 = scmp.ne.s32.totalorder %s174, %s176
    %p180 = scmp.eq.s32.totalorder %s14, 0
    %p181 = por %p179, %p180
    %p182 = scmp.ne.s32.totalorder %s174, %s176
    %p183 = scmp.eq.s32.totalorder %s19, 1
    %p184 = por %p182, %p183
    %p185 = scmp.ne.s32.totalorder %s176, %s177
    %p186 = scmp.eq.s32.totalorder %s19, 0
    %p187 = por %p185, %p186
    %p188 = scmp.ne.s32.totalorder %s176, %s177
    %p189 = scmp.eq.s32.totalorder %s20, 1
    %p190 = por %p188, %p189
    %p192 = scmp.ne.s32.totalorder %s177, %s191
    %p193 = scmp.eq.s32.totalorder %s20, 0
    %p194 = por %p192, %p193
    %s195 = ssub.s32 %s14, %s21
    %p196 = scmp.eq.s32.totalorder %s195, 0
    %s198 = sadd.s32 %s197, 1
    %s199 = scalar_select %p196, %s197, %s198
    %p202 = pneg %p196
    %p203 = scmp.eq.s32.totalorder %s14, 1
    %p204 = por %p202, %p203
    %p205 = scmp.ne.s32.totalorder %s197, %s200
    %p206 = scmp.eq.s32.totalorder %s14, 0
    %p207 = por %p205, %p206
    %p208 = scmp.ne.s32.totalorder %s197, %s200
    %p209 = scmp.eq.s32.totalorder %s19, 1
    %p210 = por %p208, %p209
    %p211 = scmp.ne.s32.totalorder %s200, %s201
    %p212 = scmp.eq.s32.totalorder %s19, 0
    %p213 = por %p211, %p212
    %p214 = scmp.ne.s32.totalorder %s200, %s201
    %p215 = scmp.eq.s32.totalorder %s20, 1
    %p216 = por %p214, %p215
    %p218 = scmp.ne.s32.totalorder %s201, %s217
    %p219 = scmp.eq.s32.totalorder %s20, 0
    %p220 = por %p218, %p219
    %p221 = scmp.le.s32.totalorder 1, %s14
    %p222 = scmp.lt.s32.totalorder %s14, 3
    %p223 = pnand %p221, %p222
    %p224 = pneg %p223
    // Predicated region
    $region9: #{basic_layer_forward.4} parent=5 // pred_check
      _
    $region10: #{basic_layer_forward.4} parent=5 // pred_check_branch
      %226 = sbr.rel (%p223) target = $region12
    $region11: #{basic_layer_forward.4} parent=5 // pred_region
      %s227 = ssub.s32 %s14, 1
      // Predicated region
      $region13: #{basic_layer_forward.4} parent=11 // pred_check
        %p228 = pneg %p61
      $region14: #{basic_layer_forward.4} parent=11 // pred_check_branch
        %230 = sbr.rel (%p228) target = $region16
      $region15: #{basic_layer_forward.4} parent=11 // pred_region
        _
      $region16: #{basic_layer_forward.4} parent=11 // pred_fallthru
        _
      // Predicated region
      $region17: #{basic_layer_forward.4} parent=11 // pred_check
        %p231 = pneg %p82
      $region18: #{basic_layer_forward.4} parent=11 // pred_check_branch
        %233 = sbr.rel (%p231) target = $region20
      $region19: #{basic_layer_forward.4} parent=11 // pred_region
        _
      $region20: #{basic_layer_forward.4} parent=11 // pred_fallthru
        _
      // Predicated region
      $region21: #{basic_layer_forward.4} parent=11 // pred_check
        %p234 = pneg %p103
      $region22: #{basic_layer_forward.4} parent=11 // pred_check_branch
        %236 = sbr.rel (%p234) target = $region24
      $region23: #{basic_layer_forward.4} parent=11 // pred_region
        _
      $region24: #{basic_layer_forward.4} parent=11 // pred_fallthru
        _
      // Predicated region
      $region25: #{basic_layer_forward.4} parent=11 // pred_check
        %p237 = pneg %p124
      $region26: #{basic_layer_forward.4} parent=11 // pred_check_branch
        %239 = sbr.rel (%p237) target = $region28
      $region27: #{basic_layer_forward.4} parent=11 // pred_region
        _
      $region28: #{basic_layer_forward.4} parent=11 // pred_fallthru
        _
      // Predicated region
      $region29: #{basic_layer_forward.4} parent=11 // pred_check
        %p240 = pneg %p145
      $region30: #{basic_layer_forward.4} parent=11 // pred_check_branch
        %242 = sbr.rel (%p240) target = $region32
      $region31: #{basic_layer_forward.4} parent=11 // pred_region
        _
      $region32: #{basic_layer_forward.4} parent=11 // pred_fallthru
        _
      // Predicated region
      $region33: #{basic_layer_forward.4} parent=11 // pred_check
        %p243 = pneg %p166
      $region34: #{basic_layer_forward.4} parent=11 // pred_check_branch
        %245 = sbr.rel (%p243) target = $region36
      $region35: #{basic_layer_forward.4} parent=11 // pred_region
        _
      $region36: #{basic_layer_forward.4} parent=11 // pred_fallthru
        _
      // Predicated region
      $region37: #{basic_layer_forward.4} parent=11 // pred_check
        %p246 = pneg %p187
      $region38: #{basic_layer_forward.4} parent=11 // pred_check_branch
        %248 = sbr.rel (%p246) target = $region40
      $region39: #{basic_layer_forward.4} parent=11 // pred_region
        _
      $region40: #{basic_layer_forward.4} parent=11 // pred_fallthru
        _
    $region12: #{basic_layer_forward.4} parent=5 // pred_fallthru
      _
    %p249 = scmp.lt.s32.totalorder %s14, 2
    // Predicated region
    $region41: #{basic_layer_forward.4} parent=5 // pred_check
      %p250 = pneg %p249
    $region42: #{basic_layer_forward.4} parent=5 // pred_check_branch
      %252 = sbr.rel (%p250) target = $region44
    $region43: #{basic_layer_forward.4} parent=5 // pred_region
      // Predicated region
      $region45: #{basic_layer_forward.4} parent=43 // pred_check
        %p253 = pneg %p34
      $region46: #{basic_layer_forward.4} parent=43 // pred_check_branch
        %255 = sbr.rel (%p253) target = $region48
      $region47: #{basic_layer_forward.4} parent=43 // pred_region
        %s256 = smul.u32 4, %s14
        %p257 = scmp.lt.s32.totalorder %s256, 7
        %s258 = scalar_select %p257, %s256, 7
        %s259 = smul.addr %s258, 2
        %s260 = smul.addr %s259, 8
        %s261 = scalar_lea.vmem %s0, %s260
        %s262 = smul.u32 4, %s14
      $region48: #{basic_layer_forward.4} parent=43 // pred_fallthru
        _
    $region44: #{basic_layer_forward.4} parent=5 // pred_fallthru
      _
    %p263 = scmp.le.s32.totalorder 1, %s14
    %p264 = scmp.lt.s32.totalorder %s14, 3
    %p265 = pnand %p263, %p264
    %p266 = pneg %p265
    // Predicated region
    $region49: #{basic_layer_forward.4} parent=5 // pred_check
      _
    $region50: #{basic_layer_forward.4} parent=5 // pred_check_branch
      %268 = sbr.rel (%p265) target = $region52
    $region51: #{basic_layer_forward.4} parent=5 // pred_region
      %s269 = ssub.s32 %s14, 1
      %s270 = smul.u32 4, %s19
      %p271 = scmp.lt.s32.totalorder %s270, 7
      %s272 = scalar_select %p271, %s270, 7
      %s273 = smul.addr %s272, 2
      %s274 = smul.addr %s273, 8
      %s275 = scalar_lea.vmem %s0, %s274
      %p276 = pneg %p40
      %p277 = pneg %p37
      %p278 = pneg %p61
      %p279 = pneg %p58
      %p280 = pneg %p82
      %p281 = pneg %p79
      %p282 = pneg %p103
      %p283 = pneg %p100
      %p284 = pneg %p124
      %p285 = pneg %p121
      %p286 = pneg %p145
      %p287 = pneg %p142
      %p288 = pneg %p166
      %p289 = pneg %p163
      %p290 = pneg %p187
      %p291 = pneg %p184
      %p292 = pneg %p213
      %p293 = pneg %p210
      %s294 = smul.u32 4, %s19
      %p295 = scmp.lt.s32.totalorder %s294, 7
      %s296 = scalar_select %p295, %s294, 7
      %s297 = smul.addr %s296, 2
      %s298 = smul.addr %s297, 8
      %s299 = scalar_lea.vmem %s8, %s298
      %s300 = smul.u32 4, %s19
      %p301 = scmp.lt.s32.totalorder %s300, 7
      %s302 = scalar_select %p301, %s300, 7
      %s303 = smul.addr %s302, 2
      %s304 = smul.addr %s303, 8
      %s305 = scalar_lea.vmem %s0, %s304
      %s306 = smul.u32 4, %s19
      %s307 = smul.u32 4, %s19
      %p308 = scmp.lt.s32.totalorder %s307, 7
      %s309 = scalar_select %p308, %s307, 7
      %s310 = smul.addr %s309, 2
      %s311 = smul.addr %s310, 8
      %s312 = scalar_lea.vmem %s8, %s311
      %s313 = smul.u32 4, %s19
      %v315 = vld [vmem:[%s305] sm:$0xff]
      %v316 = vld [vmem:[%s305 + $0x8] sm:$0xff]
      %v317 = vld [vmem:[%s305 + $0x10] sm:$0xff]
      %v318 = vld [vmem:[%s305 + $0x18] sm:$0xff]
      %v319 = vld [vmem:[%s305 + $0x20] sm:$0xff]
      %v320 = vld [vmem:[%s305 + $0x28] sm:$0xff]
      %v321 = vld [vmem:[%s305 + $0x30] sm:$0xff]
      %v322 = vld [vmem:[%s305 + $0x38] sm:$0xff]
      %v323 = vld [vmem:[%s1] sm:$0x1]
      %v324 = vld [vmem:[%s2] sm:$0x1]
      %vm325 = vcmask 261120
      %v326 = vsel %vm325, %v315, 0.0
      %327 = vadd.xlane.f32.xlu0 %v326
      %v328 = vpop.xlane.xlu0 %327
      %v329 = vsel %vm325, %v316, 0.0
      %330 = vadd.xlane.f32.xlu0 %v329
      %v331 = vpop.xlane.xlu0 %330
      %v332 = vsel %vm325, %v317, 0.0
      %333 = vadd.xlane.f32.xlu0 %v332
      %v334 = vpop.xlane.xlu0 %333
      %v335 = vsel %vm325, %v318, 0.0
      %336 = vadd.xlane.f32.xlu0 %v335
      %v337 = vpop.xlane.xlu0 %336
      %v338 = vsel %vm325, %v319, 0.0
      %339 = vadd.xlane.f32.xlu0 %v338
      %v340 = vpop.xlane.xlu0 %339
      %v341 = vsel %vm325, %v320, 0.0
      %342 = vadd.xlane.f32.xlu0 %v341
      %v343 = vpop.xlane.xlu0 %342
      %v344 = vsel %vm325, %v321, 0.0
      %345 = vadd.xlane.f32.xlu0 %v344
      %v346 = vpop.xlane.xlu0 %345
      %v347 = vsel %vm325, %v322, 0.0
      %348 = vadd.xlane.f32.xlu0 %v347
      %v349 = vpop.xlane.xlu0 %348
      %v350 = vrcp.pop 32.0
      %v351 = vmul.f32 %v328, %v350
      %v352 = vmul.f32 %v331, %v350
      %v353 = vmul.f32 %v334, %v350
      %v354 = vmul.f32 %v337, %v350
      %v355 = vmul.f32 %v340, %v350
      %v356 = vmul.f32 %v343, %v350
      %v357 = vmul.f32 %v346, %v350
      %v358 = vmul.f32 %v349, %v350
      %v359 = vsub.f32 %v315, %v351
      %v360 = vsub.f32 %v316, %v352
      %v361 = vsub.f32 %v317, %v353
      %v362 = vsub.f32 %v318, %v354
      %v363 = vsub.f32 %v319, %v355
      %v364 = vsub.f32 %v320, %v356
      %v365 = vsub.f32 %v321, %v357
      %v366 = vsub.f32 %v322, %v358
      %v367 = vmul.f32 %v359, %v359
      %v368 = vmul.f32 %v360, %v360
      %v369 = vmul.f32 %v361, %v361
      %v370 = vmul.f32 %v362, %v362
      %v371 = vmul.f32 %v363, %v363
      %v372 = vmul.f32 %v364, %v364
      %v373 = vmul.f32 %v365, %v365
      %v374 = vmul.f32 %v366, %v366
      %v375 = vsel %vm325, %v367, 0.0
      %376 = vadd.xlane.f32.xlu0 %v375
      %v377 = vpop.xlane.xlu0 %376
      %v378 = vsel %vm325, %v368, 0.0
      %379 = vadd.xlane.f32.xlu0 %v378
      %v380 = vpop.xlane.xlu0 %379
      %v381 = vsel %vm325, %v369, 0.0
      %382 = vadd.xlane.f32.xlu0 %v381
      %v383 = vpop.xlane.xlu0 %382
      %v384 = vsel %vm325, %v370, 0.0
      %385 = vadd.xlane.f32.xlu0 %v384
      %v386 = vpop.xlane.xlu0 %385
      %v387 = vsel %vm325, %v371, 0.0
      %388 = vadd.xlane.f32.xlu0 %v387
      %v389 = vpop.xlane.xlu0 %388
      %v390 = vsel %vm325, %v372, 0.0
      %391 = vadd.xlane.f32.xlu0 %v390
      %v392 = vpop.xlane.xlu0 %391
      %v393 = vsel %vm325, %v373, 0.0
      %394 = vadd.xlane.f32.xlu0 %v393
      %v395 = vpop.xlane.xlu0 %394
      %v396 = vsel %vm325, %v374, 0.0
      %397 = vadd.xlane.f32.xlu0 %v396
      %v398 = vpop.xlane.xlu0 %397
      %v399 = vmul.f32 %v377, %v350
      %v400 = vmul.f32 %v380, %v350
      %v401 = vmul.f32 %v383, %v350
      %v402 = vmul.f32 %v386, %v350
      %v403 = vmul.f32 %v389, %v350
      %v404 = vmul.f32 %v392, %v350
      %v405 = vmul.f32 %v395, %v350
      %v406 = vmul.f32 %v398, %v350
      %v407 = vadd.f32 %v399, 1e-05
      %v408 = vadd.f32 %v400, 1e-05
      %v409 = vadd.f32 %v401, 1e-05
      %v410 = vadd.f32 %v402, 1e-05
      %v411 = vadd.f32 %v403, 1e-05
      %v412 = vadd.f32 %v404, 1e-05
      %v413 = vadd.f32 %v405, 1e-05
      %v414 = vadd.f32 %v406, 1e-05
      %v415 = vrsqrt.pop %v407
      %v416 = vrsqrt.pop %v408
      %v417 = vrsqrt.pop %v409
      %v418 = vrsqrt.pop %v410
      %v419 = vrsqrt.pop %v411
      %v420 = vrsqrt.pop %v412
      %v421 = vrsqrt.pop %v413
      %v422 = vrsqrt.pop %v414
      %v423 = vmul.f32 %v359, %v415
      %v424 = vmul.f32 %v360, %v416
      %v425 = vmul.f32 %v361, %v417
      %v426 = vmul.f32 %v362, %v418
      %v427 = vmul.f32 %v363, %v419
      %v428 = vmul.f32 %v364, %v420
      %v429 = vmul.f32 %v365, %v421
      %v430 = vmul.f32 %v366, %v422
      %v432 = vlaneseq
      %v433 = vshrl.u32 %v432, 7
      %v434 = vsub.s32 0, %v433
      %v435 = vrot.slane %v323, %v434
      %v437 = vmul.f32 %v423, %v435
      %v438 = vmul.f32 %v424, %v435
      %v439 = vmul.f32 %v425, %v435
      %v440 = vmul.f32 %v426, %v435
      %v441 = vmul.f32 %v427, %v435
      %v442 = vmul.f32 %v428, %v435
      %v443 = vmul.f32 %v429, %v435
      %v444 = vmul.f32 %v430, %v435
      %v446 = vlaneseq
      %v447 = vshrl.u32 %v446, 7
      %v448 = vsub.s32 0, %v447
      %v449 = vrot.slane %v324, %v448
      %v451 = vadd.f32 %v437, %v449
      %v452 = vadd.f32 %v438, %v449
      %v453 = vadd.f32 %v439, %v449
      %v454 = vadd.f32 %v440, %v449
      %v455 = vadd.f32 %v441, %v449
      %v456 = vadd.f32 %v442, %v449
      %v457 = vadd.f32 %v443, %v449
      %v458 = vadd.f32 %v444, %v449
      %v459 = vpack.c.bf16 %v452, %v451
      %v460 = vpack.c.bf16 %v454, %v453
      %v461 = vpack.c.bf16 %v456, %v455
      %v462 = vpack.c.bf16 %v458, %v457
      %v463 = vld [vmem:[%s3] sm:$0xf]
      %v464 = vld [vmem:[%s3 + $0x4] sm:$0xf]
      %v465 = vld [vmem:[%s3 + $0x8] sm:$0xf]
      %v466 = vld [vmem:[%s3 + $0xc] sm:$0xf]
      %v467 = vld [vmem:[%s4] sm:$0x1]
      %v469 = vlaneseq
      %v470 = vshrl.u32 %v469, 7
      %v471 = vsub.s32 0, %v470
      %v472 = vrot.slane %v467, %v471
      %v478 = vunpack.c.l.b16 %v463
      %v479 = vunpack.c.l.b16 %v464
      %v480 = vunpack.c.l.b16 %v465
      %v481 = vunpack.c.l.b16 %v466
      %v482 = vpack.c.b16 %v479, %v478
      %v483 = vpack.c.b16 %v481, %v480
      %v487 = vsel %vm325, %v459, 0
      %v490 = vsel %vm325, %v460, 0
      %v493 = vsel %vm325, %v461, 0
      %v496 = vsel %vm325, %v462, 0
      %498 = vmatprep.subr.bf16.mxu0 0
      %499 = vmatpush1.bf16.msra.mxu0 0
      %500 = vmatprep.subr.bf16.mxu0 0
      %501 = vmatpush1.bf16.msra.mxu0 0
      %502 = vmatprep.subr.bf16.mxu0 0
      %503 = vmatpush1.bf16.msra.mxu0 0
      %504 = vmatprep.subr.bf16.mxu0 0
      %505 = vmatpush1.bf16.msra.mxu0 0
      %506 = vmatprep.subr.bf16.mxu0 0
      %507 = vmatpush1.bf16.msra.mxu0 0
      %508 = vmatprep.subr.bf16.mxu0 0
      %509 = vmatpush1.bf16.msra.mxu0 0
      %510 = vmatprep.subr.bf16.mxu0 0
      %511 = vmatpush1.bf16.msra.mxu0 %v483
      %512 = vmatprep.subr.bf16.mxu0 0
      %513 = vmatpush1.bf16.msra.mxu0 %v482
      %514 = vmatprep.subr.bf16.mxu0 0
      %515 = vmatpush2.bf16.msra.mxu0 0
      %516 = vmatprep.subr.bf16.mxu0 0
      %517 = vmatpush2.bf16.msra.mxu0 0
      %518 = vmatprep.subr.bf16.mxu0 0
      %519 = vmatpush2.bf16.msra.mxu0 0
      %520 = vmatprep.subr.bf16.mxu0 0
      %521 = vmatpush2.bf16.msra.mxu0 0
      %522 = vmatprep.subr.bf16.mxu0 0
      %523 = vmatpush2.bf16.msra.mxu0 0
      %524 = vmatprep.subr.bf16.mxu0 0
      %525 = vmatpush2.bf16.msra.mxu0 0
      %526 = vmatprep.subr.bf16.mxu0 0
      %527 = vmatpush2.bf16.msra.mxu0 0
      %528 = vmatprep.subr.bf16.mxu0 0
      %529 = vmatpush2.bf16.msra.mxu0 0
      %530 = vmatprep.mubr.bf16.mxu0 0
      %531 = vmatmul.mubr.bf16.gmra.mxu0 %v487
      %v532 = vpop.f32.mrf.mxu0
      %v533 = vadd.f32 %v472, %v532
      %v534 = vpop.f32.mrf.mxu0
      %v535 = vpop.f32.mrf.mxu0
      %v536 = vadd.f32 %v472, %v535
      %v537 = vpop.f32.mrf.mxu0
      %538 = vmatprep.mubr.bf16.mxu0 0
      %539 = vmatmul.mubr.bf16.gmra.mxu0 %v490
      %v540 = vpop.f32.mrf.mxu0
      %v541 = vadd.f32 %v472, %v540
      %v542 = vpop.f32.mrf.mxu0
      %v543 = vpop.f32.mrf.mxu0
      %v544 = vadd.f32 %v472, %v543
      %v545 = vpop.f32.mrf.mxu0
      %546 = vmatprep.mubr.bf16.mxu0 0
      %547 = vmatmul.mubr.bf16.gmra.mxu0 %v493
      %v548 = vpop.f32.mrf.mxu0
      %v549 = vadd.f32 %v472, %v548
      %v550 = vpop.f32.mrf.mxu0
      %v551 = vpop.f32.mrf.mxu0
      %v552 = vadd.f32 %v472, %v551
      %v553 = vpop.f32.mrf.mxu0
      %554 = vmatprep.mubr.bf16.mxu0 0
      %555 = vmatmul.mubr.bf16.gmra.mxu0 %v496
      %v556 = vpop.f32.mrf.mxu0
      %v557 = vadd.f32 %v472, %v556
      %v558 = vpop.f32.mrf.mxu0
      %v559 = vpop.f32.mrf.mxu0
      %v560 = vadd.f32 %v472, %v559
      %v561 = vpop.f32.mrf.mxu0
      %562 = vdwg.mxu0
      %v563 = vld [vmem:[%s7] sm:$0xff]
      %v564 = vld [vmem:[%s7 + $0x8] sm:$0xff]
      %v565 = vld [vmem:[%s7 + $0x10] sm:$0xff]
      %v566 = vld [vmem:[%s7 + $0x18] sm:$0xff]
      %v567 = vld [vmem:[%s7 + $0x20] sm:$0xff]
      %v568 = vld [vmem:[%s7 + $0x28] sm:$0xff]
      %v569 = vld [vmem:[%s7 + $0x30] sm:$0xff]
      %v570 = vld [vmem:[%s7 + $0x38] sm:$0xff]
      %v571 = vpack.c.bf16 %v536, %v533
      %v572 = vpack.c.bf16 %v544, %v541
      %v573 = vpack.c.bf16 %v552, %v549
      %v574 = vpack.c.bf16 %v560, %v557
      %576 = vrot.lane.b32.xlu0 %v571, 96
      %v577 = vpop.permute.xlu0 %576
      %vm578 = vcmask 64512
      %v580 = vsel %vm578, %v571, 0
      %v583 = vsel %vm578, %v577, 0
      %585 = vmatprep.subr.bf16.mxu0 0
      %586 = vmatpush1.bf16.xpose.msra.mxu0 0
      %587 = vmatprep.subr.bf16.mxu0 0
      %588 = vmatpush1.bf16.xpose.msra.mxu0 0
      %589 = vmatprep.subr.bf16.mxu0 0
      %590 = vmatpush1.bf16.xpose.msra.mxu0 0
      %591 = vmatprep.subr.bf16.mxu0 0
      %592 = vmatpush1.bf16.xpose.msra.mxu0 0
      %593 = vmatprep.subr.bf16.mxu0 0
      %594 = vmatpush1.bf16.xpose.msra.mxu0 0
      %595 = vmatprep.subr.bf16.mxu0 0
      %596 = vmatpush1.bf16.xpose.msra.mxu0 0
      %597 = vmatprep.subr.bf16.mxu0 0
      %598 = vmatpush1.bf16.xpose.msra.mxu0 0
      %599 = vmatprep.subr.bf16.mxu0 0
      %600 = vmatpush1.bf16.xpose.msra.mxu0 %v583
      %601 = vmatprep.subr.bf16.mxu0 0
      %602 = vmatpush2.bf16.xpose.msra.mxu0 0
      %603 = vmatprep.subr.bf16.mxu0 0
      %604 = vmatpush2.bf16.xpose.msra.mxu0 0
      %605 = vmatprep.subr.bf16.mxu0 0
      %606 = vmatpush2.bf16.xpose.msra.mxu0 0
      %607 = vmatprep.subr.bf16.mxu0 0
      %608 = vmatpush2.bf16.xpose.msra.mxu0 0
      %609 = vmatprep.subr.bf16.mxu0 0
      %610 = vmatpush2.bf16.xpose.msra.mxu0 0
      %611 = vmatprep.subr.bf16.mxu0 0
      %612 = vmatpush2.bf16.xpose.msra.mxu0 0
      %613 = vmatprep.subr.bf16.mxu0 0
      %614 = vmatpush2.bf16.xpose.msra.mxu0 0
      %615 = vmatprep.subr.bf16.mxu0 0
      %616 = vmatpush2.bf16.xpose.msra.mxu0 0
      %617 = vmatprep.mubr.bf16.mxu0 0
      %618 = vmatmul.mubr.bf16.gmra.mxu0 %v580
      %v619 = vpop.f32.mrf.mxu0
      %v620 = vadd.f32 %v563, %v619
      %v621 = vpop.f32.mrf.mxu0
      %v622 = vpop.f32.mrf.mxu0
      %v623 = vadd.f32 %v564, %v622
      %v624 = vpop.f32.mrf.mxu0
      %625 = vdwg.mxu0
      %627 = vrot.lane.b32.xlu0 %v572, 96
      %v628 = vpop.permute.xlu0 %627
      %v630 = vsel %vm578, %v572, 0
      %v633 = vsel %vm578, %v628, 0
      %635 = vmatprep.subr.bf16.mxu0 0
      %636 = vmatpush1.bf16.xpose.msra.mxu0 0
      %637 = vmatprep.subr.bf16.mxu0 0
      %638 = vmatpush1.bf16.xpose.msra.mxu0 0
      %639 = vmatprep.subr.bf16.mxu0 0
      %640 = vmatpush1.bf16.xpose.msra.mxu0 0
      %641 = vmatprep.subr.bf16.mxu0 0
      %642 = vmatpush1.bf16.xpose.msra.mxu0 0
      %643 = vmatprep.subr.bf16.mxu0 0
      %644 = vmatpush1.bf16.xpose.msra.mxu0 0
      %645 = vmatprep.subr.bf16.mxu0 0
      %646 = vmatpush1.bf16.xpose.msra.mxu0 0
      %647 = vmatprep.subr.bf16.mxu0 0
      %648 = vmatpush1.bf16.xpose.msra.mxu0 0
      %649 = vmatprep.subr.bf16.mxu0 0
      %650 = vmatpush1.bf16.xpose.msra.mxu0 %v633
      %651 = vmatprep.subr.bf16.mxu0 0
      %652 = vmatpush2.bf16.xpose.msra.mxu0 0
      %653 = vmatprep.subr.bf16.mxu0 0
      %654 = vmatpush2.bf16.xpose.msra.mxu0 0
      %655 = vmatprep.subr.bf16.mxu0 0
      %656 = vmatpush2.bf16.xpose.msra.mxu0 0
      %657 = vmatprep.subr.bf16.mxu0 0
      %658 = vmatpush2.bf16.xpose.msra.mxu0 0
      %659 = vmatprep.subr.bf16.mxu0 0
      %660 = vmatpush2.bf16.xpose.msra.mxu0 0
      %661 = vmatprep.subr.bf16.mxu0 0
      %662 = vmatpush2.bf16.xpose.msra.mxu0 0
      %663 = vmatprep.subr.bf16.mxu0 0
      %664 = vmatpush2.bf16.xpose.msra.mxu0 0
      %665 = vmatprep.subr.bf16.mxu0 0
      %666 = vmatpush2.bf16.xpose.msra.mxu0 0
      %667 = vmatprep.mubr.bf16.mxu0 0
      %668 = vmatmul.mubr.bf16.gmra.mxu0 %v630
      %v669 = vpop.f32.mrf.mxu0
      %v670 = vadd.f32 %v563, %v669
      %v671 = vpop.f32.mrf.mxu0
      %v672 = vpop.f32.mrf.mxu0
      %v673 = vadd.f32 %v564, %v672
      %v674 = vpop.f32.mrf.mxu0
      %675 = vdwg.mxu0
      %677 = vrot.lane.b32.xlu0 %v573, 96
      %v678 = vpop.permute.xlu0 %677
      %v680 = vsel %vm578, %v573, 0
      %v683 = vsel %vm578, %v678, 0
      %685 = vmatprep.subr.bf16.mxu0 0
      %686 = vmatpush1.bf16.xpose.msra.mxu0 0
      %687 = vmatprep.subr.bf16.mxu0 0
      %688 = vmatpush1.bf16.xpose.msra.mxu0 0
      %689 = vmatprep.subr.bf16.mxu0 0
      %690 = vmatpush1.bf16.xpose.msra.mxu0 0
      %691 = vmatprep.subr.bf16.mxu0 0
      %692 = vmatpush1.bf16.xpose.msra.mxu0 0
      %693 = vmatprep.subr.bf16.mxu0 0
      %694 = vmatpush1.bf16.xpose.msra.mxu0 0
      %695 = vmatprep.subr.bf16.mxu0 0
      %696 = vmatpush1.bf16.xpose.msra.mxu0 0
      %697 = vmatprep.subr.bf16.mxu0 0
      %698 = vmatpush1.bf16.xpose.msra.mxu0 0
      %699 = vmatprep.subr.bf16.mxu0 0
      %700 = vmatpush1.bf16.xpose.msra.mxu0 %v683
      %701 = vmatprep.subr.bf16.mxu0 0
      %702 = vmatpush2.bf16.xpose.msra.mxu0 0
      %703 = vmatprep.subr.bf16.mxu0 0
      %704 = vmatpush2.bf16.xpose.msra.mxu0 0
      %705 = vmatprep.subr.bf16.mxu0 0
      %706 = vmatpush2.bf16.xpose.msra.mxu0 0
      %707 = vmatprep.subr.bf16.mxu0 0
      %708 = vmatpush2.bf16.xpose.msra.mxu0 0
      %709 = vmatprep.subr.bf16.mxu0 0
      %710 = vmatpush2.bf16.xpose.msra.mxu0 0
      %711 = vmatprep.subr.bf16.mxu0 0
      %712 = vmatpush2.bf16.xpose.msra.mxu0 0
      %713 = vmatprep.subr.bf16.mxu0 0
      %714 = vmatpush2.bf16.xpose.msra.mxu0 0
      %715 = vmatprep.subr.bf16.mxu0 0
      %716 = vmatpush2.bf16.xpose.msra.mxu0 0
      %717 = vmatprep.mubr.bf16.mxu0 0
      %718 = vmatmul.mubr.bf16.gmra.mxu0 %v680
      %v719 = vpop.f32.mrf.mxu0
      %v720 = vadd.f32 %v563, %v719
      %v721 = vpop.f32.mrf.mxu0
      %v722 = vpop.f32.mrf.mxu0
      %v723 = vadd.f32 %v564, %v722
      %v724 = vpop.f32.mrf.mxu0
      %725 = vdwg.mxu0
      %727 = vrot.lane.b32.xlu0 %v574, 96
      %v728 = vpop.permute.xlu0 %727
      %v730 = vsel %vm578, %v574, 0
      %v733 = vsel %vm578, %v728, 0
      %735 = vmatprep.subr.bf16.mxu0 0
      %736 = vmatpush1.bf16.xpose.msra.mxu0 0
      %737 = vmatprep.subr.bf16.mxu0 0
      %738 = vmatpush1.bf16.xpose.msra.mxu0 0
      %739 = vmatprep.subr.bf16.mxu0 0
      %740 = vmatpush1.bf16.xpose.msra.mxu0 0
      %741 = vmatprep.subr.bf16.mxu0 0
      %742 = vmatpush1.bf16.xpose.msra.mxu0 0
      %743 = vmatprep.subr.bf16.mxu0 0
      %744 = vmatpush1.bf16.xpose.msra.mxu0 0
      %745 = vmatprep.subr.bf16.mxu0 0
      %746 = vmatpush1.bf16.xpose.msra.mxu0 0
      %747 = vmatprep.subr.bf16.mxu0 0
      %748 = vmatpush1.bf16.xpose.msra.mxu0 0
      %749 = vmatprep.subr.bf16.mxu0 0
      %750 = vmatpush1.bf16.xpose.msra.mxu0 %v733
      %751 = vmatprep.subr.bf16.mxu0 0
      %752 = vmatpush2.bf16.xpose.msra.mxu0 0
      %753 = vmatprep.subr.bf16.mxu0 0
      %754 = vmatpush2.bf16.xpose.msra.mxu0 0
      %755 = vmatprep.subr.bf16.mxu0 0
      %756 = vmatpush2.bf16.xpose.msra.mxu0 0
      %757 = vmatprep.subr.bf16.mxu0 0
      %758 = vmatpush2.bf16.xpose.msra.mxu0 0
      %759 = vmatprep.subr.bf16.mxu0 0
      %760 = vmatpush2.bf16.xpose.msra.mxu0 0
      %761 = vmatprep.subr.bf16.mxu0 0
      %762 = vmatpush2.bf16.xpose.msra.mxu0 0
      %763 = vmatprep.subr.bf16.mxu0 0
      %764 = vmatpush2.bf16.xpose.msra.mxu0 0
      %765 = vmatprep.subr.bf16.mxu0 0
      %766 = vmatpush2.bf16.xpose.msra.mxu0 0
      %767 = vmatprep.mubr.bf16.mxu0 0
      %768 = vmatmul.mubr.bf16.gmra.mxu0 %v730
      %v769 = vpop.f32.mrf.mxu0
      %v770 = vadd.f32 %v563, %v769
      %v771 = vpop.f32.mrf.mxu0
      %v772 = vpop.f32.mrf.mxu0
      %v773 = vadd.f32 %v564, %v772
      %v774 = vpop.f32.mrf.mxu0
      %775 = vdwg.mxu0
      %vm776 = vcmask 130048
      %v777 = vsel %vm776, %v620, -inf
      %778 = vmax.xlane.f32.xlu0 %v777
      %v779 = vpop.xlane.xlu0 %778
      %v780 = vsel %vm776, %v623, -inf
      %781 = vmax.xlane.f32.xlu0 %v780
      %v782 = vpop.xlane.xlu0 %781
      %v783 = vsel %vm776, %v670, -inf
      %784 = vmax.xlane.f32.xlu0 %v783
      %v785 = vpop.xlane.xlu0 %784
      %v786 = vsel %vm776, %v673, -inf
      %787 = vmax.xlane.f32.xlu0 %v786
      %v788 = vpop.xlane.xlu0 %787
      %v789 = vsel %vm776, %v720, -inf
      %790 = vmax.xlane.f32.xlu0 %v789
      %v791 = vpop.xlane.xlu0 %790
      %v792 = vsel %vm776, %v723, -inf
      %793 = vmax.xlane.f32.xlu0 %v792
      %v794 = vpop.xlane.xlu0 %793
      %v795 = vsel %vm776, %v770, -inf
      %796 = vmax.xlane.f32.xlu0 %v795
      %v797 = vpop.xlane.xlu0 %796
      %v798 = vsel %vm776, %v773, -inf
      %799 = vmax.xlane.f32.xlu0 %v798
      %v800 = vpop.xlane.xlu0 %799
      %v801 = vsub.f32 %v620, %v779
      %v802 = vsub.f32 %v623, %v782
      %v803 = vsub.f32 %v670, %v785
      %v804 = vsub.f32 %v673, %v788
      %v805 = vsub.f32 %v720, %v791
      %v806 = vsub.f32 %v723, %v794
      %v807 = vsub.f32 %v770, %v797
      %v808 = vsub.f32 %v773, %v800
      %v809 = vmul.f32 %v801, 1.442695
      %v810 = vpow.pop %v809
      %v811 = vmul.f32 %v802, 1.442695
      %v812 = vpow.pop %v811
      %v813 = vmul.f32 %v803, 1.442695
      %v814 = vpow.pop %v813
      %v815 = vmul.f32 %v804, 1.442695
      %v816 = vpow.pop %v815
      %v817 = vmul.f32 %v805, 1.442695
      %v818 = vpow.pop %v817
      %v819 = vmul.f32 %v806, 1.442695
      %v820 = vpow.pop %v819
      %v821 = vmul.f32 %v807, 1.442695
      %v822 = vpow.pop %v821
      %v823 = vmul.f32 %v808, 1.442695
      %v824 = vpow.pop %v823
      %v825 = vsel %vm776, %v810, 0.0
      %826 = vadd.xlane.f32.xlu0 %v825
      %v827 = vpop.xlane.xlu0 %826
      %v828 = vsel %vm776, %v812, 0.0
      %829 = vadd.xlane.f32.xlu0 %v828
      %v830 = vpop.xlane.xlu0 %829
      %v831 = vsel %vm776, %v814, 0.0
      %832 = vadd.xlane.f32.xlu0 %v831
      %v833 = vpop.xlane.xlu0 %832
      %v834 = vsel %vm776, %v816, 0.0
      %835 = vadd.xlane.f32.xlu0 %v834
      %v836 = vpop.xlane.xlu0 %835
      %v837 = vsel %vm776, %v818, 0.0
      %838 = vadd.xlane.f32.xlu0 %v837
      %v839 = vpop.xlane.xlu0 %838
      %v840 = vsel %vm776, %v820, 0.0
      %841 = vadd.xlane.f32.xlu0 %v840
      %v842 = vpop.xlane.xlu0 %841
      %v843 = vsel %vm776, %v822, 0.0
      %844 = vadd.xlane.f32.xlu0 %v843
      %v845 = vpop.xlane.xlu0 %844
      %v846 = vsel %vm776, %v824, 0.0
      %847 = vadd.xlane.f32.xlu0 %v846
      %v848 = vpop.xlane.xlu0 %847
      %v849 = vrcp.pop %v827
      %v850 = vrcp.pop %v830
      %v851 = vrcp.pop %v833
      %v852 = vrcp.pop %v836
      %v853 = vrcp.pop %v839
      %v854 = vrcp.pop %v842
      %v855 = vrcp.pop %v845
      %v856 = vrcp.pop %v848
      %v857 = vmul.f32 %v810, %v849
      %v858 = vmul.f32 %v812, %v850
      %v859 = vmul.f32 %v814, %v851
      %v860 = vmul.f32 %v816, %v852
      %v861 = vmul.f32 %v818, %v853
      %v862 = vmul.f32 %v820, %v854
      %v863 = vmul.f32 %v822, %v855
      %v864 = vmul.f32 %v824, %v856
      %v865 = vpack.c.bf16 %v858, %v857
      %v866 = vpack.c.bf16 %v860, %v859
      %v867 = vpack.c.bf16 %v862, %v861
      %v868 = vpack.c.bf16 %v864, %v863
      %869 = vrot.lane.b32.xlu0 %v571, 64
      %v870 = vpop.permute.xlu0 %869
      %v873 = vsel %vm776, %v865, 0
      %875 = vmatprep.subr.bf16.mxu0 0
      %876 = vmatpush1.bf16.msra.mxu0 0
      %877 = vmatprep.subr.bf16.mxu0 0
      %878 = vmatpush1.bf16.msra.mxu0 0
      %879 = vmatprep.subr.bf16.mxu0 0
      %880 = vmatpush1.bf16.msra.mxu0 0
      %881 = vmatprep.subr.bf16.mxu0 0
      %882 = vmatpush1.bf16.msra.mxu0 0
      %883 = vmatprep.subr.bf16.mxu0 0
      %884 = vmatpush1.bf16.msra.mxu0 0
      %885 = vmatprep.subr.bf16.mxu0 0
      %886 = vmatpush1.bf16.msra.mxu0 0
      %887 = vmatprep.subr.bf16.mxu0 0
      %888 = vmatpush1.bf16.msra.mxu0 0
      %889 = vmatprep.subr.bf16.mxu0 0
      %890 = vmatpush1.bf16.msra.mxu0 %v870
      %891 = vmatprep.subr.bf16.mxu0 0
      %892 = vmatpush2.bf16.msra.mxu0 0
      %893 = vmatprep.subr.bf16.mxu0 0
      %894 = vmatpush2.bf16.msra.mxu0 0
      %895 = vmatprep.subr.bf16.mxu0 0
      %896 = vmatpush2.bf16.msra.mxu0 0
      %897 = vmatprep.subr.bf16.mxu0 0
      %898 = vmatpush2.bf16.msra.mxu0 0
      %899 = vmatprep.subr.bf16.mxu0 0
      %900 = vmatpush2.bf16.msra.mxu0 0
      %901 = vmatprep.subr.bf16.mxu0 0
      %902 = vmatpush2.bf16.msra.mxu0 0
      %903 = vmatprep.subr.bf16.mxu0 0
      %904 = vmatpush2.bf16.msra.mxu0 0
      %905 = vmatprep.subr.bf16.mxu0 0
      %906 = vmatpush2.bf16.msra.mxu0 0
      %907 = vmatprep.mubr.bf16.mxu0 0
      %908 = vmatmul.mubr.bf16.gmra.mxu0 %v873
      %v909 = vpop.f32.mrf.mxu0
      %v910 = vadd.f32 0.0, %v909
      %v911 = vpop.f32.mrf.mxu0
      %v912 = vpop.f32.mrf.mxu0
      %v913 = vadd.f32 0.0, %v912
      %v914 = vpop.f32.mrf.mxu0
      %915 = vdwg.mxu0
      %916 = vrot.lane.b32.xlu0 %v572, 64
      %v917 = vpop.permute.xlu0 %916
      %v920 = vsel %vm776, %v866, 0
      %922 = vmatprep.subr.bf16.mxu0 0
      %923 = vmatpush1.bf16.msra.mxu0 0
      %924 = vmatprep.subr.bf16.mxu0 0
      %925 = vmatpush1.bf16.msra.mxu0 0
      %926 = vmatprep.subr.bf16.mxu0 0
      %927 = vmatpush1.bf16.msra.mxu0 0
      %928 = vmatprep.subr.bf16.mxu0 0
      %929 = vmatpush1.bf16.msra.mxu0 0
      %930 = vmatprep.subr.bf16.mxu0 0
      %931 = vmatpush1.bf16.msra.mxu0 0
      %932 = vmatprep.subr.bf16.mxu0 0
      %933 = vmatpush1.bf16.msra.mxu0 0
      %934 = vmatprep.subr.bf16.mxu0 0
      %935 = vmatpush1.bf16.msra.mxu0 0
      %936 = vmatprep.subr.bf16.mxu0 0
      %937 = vmatpush1.bf16.msra.mxu0 %v917
      %938 = vmatprep.subr.bf16.mxu0 0
      %939 = vmatpush2.bf16.msra.mxu0 0
      %940 = vmatprep.subr.bf16.mxu0 0
      %941 = vmatpush2.bf16.msra.mxu0 0
      %942 = vmatprep.subr.bf16.mxu0 0
      %943 = vmatpush2.bf16.msra.mxu0 0
      %944 = vmatprep.subr.bf16.mxu0 0
      %945 = vmatpush2.bf16.msra.mxu0 0
      %946 = vmatprep.subr.bf16.mxu0 0
      %947 = vmatpush2.bf16.msra.mxu0 0
      %948 = vmatprep.subr.bf16.mxu0 0
      %949 = vmatpush2.bf16.msra.mxu0 0
      %950 = vmatprep.subr.bf16.mxu0 0
      %951 = vmatpush2.bf16.msra.mxu0 0
      %952 = vmatprep.subr.bf16.mxu0 0
      %953 = vmatpush2.bf16.msra.mxu0 0
      %954 = vmatprep.mubr.bf16.mxu0 0
      %955 = vmatmul.mubr.bf16.gmra.mxu0 %v920
      %v956 = vpop.f32.mrf.mxu0
      %v957 = vadd.f32 0.0, %v956
      %v958 = vpop.f32.mrf.mxu0
      %v959 = vpop.f32.mrf.mxu0
      %v960 = vadd.f32 0.0, %v959
      %v961 = vpop.f32.mrf.mxu0
      %962 = vdwg.mxu0
      %963 = vrot.lane.b32.xlu0 %v573, 64
      %v964 = vpop.permute.xlu0 %963
      %v967 = vsel %vm776, %v867, 0
      %969 = vmatprep.subr.bf16.mxu0 0
      %970 = vmatpush1.bf16.msra.mxu0 0
      %971 = vmatprep.subr.bf16.mxu0 0
      %972 = vmatpush1.bf16.msra.mxu0 0
      %973 = vmatprep.subr.bf16.mxu0 0
      %974 = vmatpush1.bf16.msra.mxu0 0
      %975 = vmatprep.subr.bf16.mxu0 0
      %976 = vmatpush1.bf16.msra.mxu0 0
      %977 = vmatprep.subr.bf16.mxu0 0
      %978 = vmatpush1.bf16.msra.mxu0 0
      %979 = vmatprep.subr.bf16.mxu0 0
      %980 = vmatpush1.bf16.msra.mxu0 0
      %981 = vmatprep.subr.bf16.mxu0 0
      %982 = vmatpush1.bf16.msra.mxu0 0
      %983 = vmatprep.subr.bf16.mxu0 0
      %984 = vmatpush1.bf16.msra.mxu0 %v964
      %985 = vmatprep.subr.bf16.mxu0 0
      %986 = vmatpush2.bf16.msra.mxu0 0
      %987 = vmatprep.subr.bf16.mxu0 0
      %988 = vmatpush2.bf16.msra.mxu0 0
      %989 = vmatprep.subr.bf16.mxu0 0
      %990 = vmatpush2.bf16.msra.mxu0 0
      %991 = vmatprep.subr.bf16.mxu0 0
      %992 = vmatpush2.bf16.msra.mxu0 0
      %993 = vmatprep.subr.bf16.mxu0 0
      %994 = vmatpush2.bf16.msra.mxu0 0
      %995 = vmatprep.subr.bf16.mxu0 0
      %996 = vmatpush2.bf16.msra.mxu0 0
      %997 = vmatprep.subr.bf16.mxu0 0
      %998 = vmatpush2.bf16.msra.mxu0 0
      %999 = vmatprep.subr.bf16.mxu0 0
      %1000 = vmatpush2.bf16.msra.mxu0 0
      %1001 = vmatprep.mubr.bf16.mxu0 0
      %1002 = vmatmul.mubr.bf16.gmra.mxu0 %v967
      %v1003 = vpop.f32.mrf.mxu0
      %v1004 = vadd.f32 0.0, %v1003
      %v1005 = vpop.f32.mrf.mxu0
      %v1006 = vpop.f32.mrf.mxu0
      %v1007 = vadd.f32 0.0, %v1006
      %v1008 = vpop.f32.mrf.mxu0
      %1009 = vdwg.mxu0
      %1010 = vrot.lane.b32.xlu0 %v574, 64
      %v1011 = vpop.permute.xlu0 %1010
      %v1014 = vsel %vm776, %v868, 0
      %1016 = vmatprep.subr.bf16.mxu0 0
      %1017 = vmatpush1.bf16.msra.mxu0 0
      %1018 = vmatprep.subr.bf16.mxu0 0
      %1019 = vmatpush1.bf16.msra.mxu0 0
      %1020 = vmatprep.subr.bf16.mxu0 0
      %1021 = vmatpush1.bf16.msra.mxu0 0
      %1022 = vmatprep.subr.bf16.mxu0 0
      %1023 = vmatpush1.bf16.msra.mxu0 0
      %1024 = vmatprep.subr.bf16.mxu0 0
      %1025 = vmatpush1.bf16.msra.mxu0 0
      %1026 = vmatprep.subr.bf16.mxu0 0
      %1027 = vmatpush1.bf16.msra.mxu0 0
      %1028 = vmatprep.subr.bf16.mxu0 0
      %1029 = vmatpush1.bf16.msra.mxu0 0
      %1030 = vmatprep.subr.bf16.mxu0 0
      %1031 = vmatpush1.bf16.msra.mxu0 %v1011
      %1032 = vmatprep.subr.bf16.mxu0 0
      %1033 = vmatpush2.bf16.msra.mxu0 0
      %1034 = vmatprep.subr.bf16.mxu0 0
      %1035 = vmatpush2.bf16.msra.mxu0 0
      %1036 = vmatprep.subr.bf16.mxu0 0
      %1037 = vmatpush2.bf16.msra.mxu0 0
      %1038 = vmatprep.subr.bf16.mxu0 0
      %1039 = vmatpush2.bf16.msra.mxu0 0
      %1040 = vmatprep.subr.bf16.mxu0 0
      %1041 = vmatpush2.bf16.msra.mxu0 0
      %1042 = vmatprep.subr.bf16.mxu0 0
      %1043 = vmatpush2.bf16.msra.mxu0 0
      %1044 = vmatprep.subr.bf16.mxu0 0
      %1045 = vmatpush2.bf16.msra.mxu0 0
      %1046 = vmatprep.subr.bf16.mxu0 0
      %1047 = vmatpush2.bf16.msra.mxu0 0
      %1048 = vmatprep.mubr.bf16.mxu0 0
      %1049 = vmatmul.mubr.bf16.gmra.mxu0 %v1014
      %v1050 = vpop.f32.mrf.mxu0
      %v1051 = vadd.f32 0.0, %v1050
      %v1052 = vpop.f32.mrf.mxu0
      %v1053 = vpop.f32.mrf.mxu0
      %v1054 = vadd.f32 0.0, %v1053
      %v1055 = vpop.f32.mrf.mxu0
      %1056 = vdwg.mxu0
      %v1057 = vpack.c.bf16 %v913, %v910
      %v1058 = vpack.c.bf16 %v960, %v957
      %v1059 = vpack.c.bf16 %v1007, %v1004
      %v1060 = vpack.c.bf16 %v1054, %v1051
      %v1061 = vld [vmem:[%s5] sm:$0xf]
      %1062 = vrot.lane.b32.xlu0 %v571, 120
      %v1063 = vpop.permute.xlu0 %1062
      %1064 = vrot.lane.b32.xlu0 %v571, 88
      %v1065 = vpop.permute.xlu0 %1064
      %v1067 = vsel %vm578, %v1063, 0
      %v1070 = vsel %vm578, %v1065, 0
      %1072 = vmatprep.subr.bf16.mxu0 0
      %1073 = vmatpush1.bf16.xpose.msra.mxu0 0
      %1074 = vmatprep.subr.bf16.mxu0 0
      %1075 = vmatpush1.bf16.xpose.msra.mxu0 0
      %1076 = vmatprep.subr.bf16.mxu0 0
      %1077 = vmatpush1.bf16.xpose.msra.mxu0 0
      %1078 = vmatprep.subr.bf16.mxu0 0
      %1079 = vmatpush1.bf16.xpose.msra.mxu0 0
      %1080 = vmatprep.subr.bf16.mxu0 0
      %1081 = vmatpush1.bf16.xpose.msra.mxu0 0
      %1082 = vmatprep.subr.bf16.mxu0 0
      %1083 = vmatpush1.bf16.xpose.msra.mxu0 0
      %1084 = vmatprep.subr.bf16.mxu0 0
      %1085 = vmatpush1.bf16.xpose.msra.mxu0 0
      %1086 = vmatprep.subr.bf16.mxu0 0
      %1087 = vmatpush1.bf16.xpose.msra.mxu0 %v1070
      %1088 = vmatprep.subr.bf16.mxu0 0
      %1089 = vmatpush2.bf16.xpose.msra.mxu0 0
      %1090 = vmatprep.subr.bf16.mxu0 0
      %1091 = vmatpush2.bf16.xpose.msra.mxu0 0
      %1092 = vmatprep.subr.bf16.mxu0 0
      %1093 = vmatpush2.bf16.xpose.msra.mxu0 0
      %1094 = vmatprep.subr.bf16.mxu0 0
      %1095 = vmatpush2.bf16.xpose.msra.mxu0 0
      %1096 = vmatprep.subr.bf16.mxu0 0
      %1097 = vmatpush2.bf16.xpose.msra.mxu0 0
      %1098 = vmatprep.subr.bf16.mxu0 0
      %1099 = vmatpush2.bf16.xpose.msra.mxu0 0
      %1100 = vmatprep.subr.bf16.mxu0 0
      %1101 = vmatpush2.bf16.xpose.msra.mxu0 0
      %1102 = vmatprep.subr.bf16.mxu0 0
      %1103 = vmatpush2.bf16.xpose.msra.mxu0 0
      %1104 = vmatprep.mubr.bf16.mxu0 0
      %1105 = vmatmul.mubr.bf16.gmra.mxu0 %v1067
      %v1106 = vpop.f32.mrf.mxu0
      %v1107 = vadd.f32 %v565, %v1106
      %v1108 = vpop.f32.mrf.mxu0
      %v1109 = vpop.f32.mrf.mxu0
      %v1110 = vadd.f32 %v566, %v1109
      %v1111 = vpop.f32.mrf.mxu0
      %1112 = vdwg.mxu0
      %1113 = vrot.lane.b32.xlu0 %v572, 120
      %v1114 = vpop.permute.xlu0 %1113
      %1115 = vrot.lane.b32.xlu0 %v572, 88
      %v1116 = vpop.permute.xlu0 %1115
      %v1118 = vsel %vm578, %v1114, 0
      %v1121 = vsel %vm578, %v1116, 0
      %1123 = vmatprep.subr.bf16.mxu0 0
      %1124 = vmatpush1.bf16.xpose.msra.mxu0 0
      %1125 = vmatprep.subr.bf16.mxu0 0
      %1126 = vmatpush1.bf16.xpose.msra.mxu0 0
      %1127 = vmatprep.subr.bf16.mxu0 0
      %1128 = vmatpush1.bf16.xpose.msra.mxu0 0
      %1129 = vmatprep.subr.bf16.mxu0 0
      %1130 = vmatpush1.bf16.xpose.msra.mxu0 0
      %1131 = vmatprep.subr.bf16.mxu0 0
      %1132 = vmatpush1.bf16.xpose.msra.mxu0 0
      %1133 = vmatprep.subr.bf16.mxu0 0
      %1134 = vmatpush1.bf16.xpose.msra.mxu0 0
      %1135 = vmatprep.subr.bf16.mxu0 0
      %1136 = vmatpush1.bf16.xpose.msra.mxu0 0
      %1137 = vmatprep.subr.bf16.mxu0 0
      %1138 = vmatpush1.bf16.xpose.msra.mxu0 %v1121
      %1139 = vmatprep.subr.bf16.mxu0 0
      %1140 = vmatpush2.bf16.xpose.msra.mxu0 0
      %1141 = vmatprep.subr.bf16.mxu0 0
      %1142 = vmatpush2.bf16.xpose.msra.mxu0 0
      %1143 = vmatprep.subr.bf16.mxu0 0
      %1144 = vmatpush2.bf16.xpose.msra.mxu0 0
      %1145 = vmatprep.subr.bf16.mxu0 0
      %1146 = vmatpush2.bf16.xpose.msra.mxu0 0
      %1147 = vmatprep.subr.bf16.mxu0 0
      %1148 = vmatpush2.bf16.xpose.msra.mxu0 0
      %1149 = vmatprep.subr.bf16.mxu0 0
      %1150 = vmatpush2.bf16.xpose.msra.mxu0 0
      %1151 = vmatprep.subr.bf16.mxu0 0
      %1152 = vmatpush2.bf16.xpose.msra.mxu0 0
      %1153 = vmatprep.subr.bf16.mxu0 0
      %1154 = vmatpush2.bf16.xpose.msra.mxu0 0
      %1155 = vmatprep.mubr.bf16.mxu0 0
      %1156 = vmatmul.mubr.bf16.gmra.mxu0 %v1118
      %v1157 = vpop.f32.mrf.mxu0
      %v1158 = vadd.f32 %v565, %v1157
      %v1159 = vpop.f32.mrf.mxu0
      %v1160 = vpop.f32.mrf.mxu0
      %v1161 = vadd.f32 %v566, %v1160
      %v1162 = vpop.f32.mrf.mxu0
      %1163 = vdwg.mxu0
      %1164 = vrot.lane.b32.xlu0 %v573, 120
      %v1165 = vpop.permute.xlu0 %1164
      %1166 = vrot.lane.b32.xlu0 %v573, 88
      %v1167 = vpop.permute.xlu0 %1166
      %v1169 = vsel %vm578, %v1165, 0
      %v1172 = vsel %vm578, %v1167, 0
      %1174 = vmatprep.subr.bf16.mxu0 0
      %1175 = vmatpush1.bf16.xpose.msra.mxu0 0
      %1176 = vmatprep.subr.bf16.mxu0 0
      %1177 = vmatpush1.bf16.xpose.msra.mxu0 0
      %1178 = vmatprep.subr.bf16.mxu0 0
      %1179 = vmatpush1.bf16.xpose.msra.mxu0 0
      %1180 = vmatprep.subr.bf16.mxu0 0
      %1181 = vmatpush1.bf16.xpose.msra.mxu0 0
      %1182 = vmatprep.subr.bf16.mxu0 0
      %1183 = vmatpush1.bf16.xpose.msra.mxu0 0
      %1184 = vmatprep.subr.bf16.mxu0 0
      %1185 = vmatpush1.bf16.xpose.msra.mxu0 0
      %1186 = vmatprep.subr.bf16.mxu0 0
      %1187 = vmatpush1.bf16.xpose.msra.mxu0 0
      %1188 = vmatprep.subr.bf16.mxu0 0
      %1189 = vmatpush1.bf16.xpose.msra.mxu0 %v1172
      %1190 = vmatprep.subr.bf16.mxu0 0
      %1191 = vmatpush2.bf16.xpose.msra.mxu0 0
      %1192 = vmatprep.subr.bf16.mxu0 0
      %1193 = vmatpush2.bf16.xpose.msra.mxu0 0
      %1194 = vmatprep.subr.bf16.mxu0 0
      %1195 = vmatpush2.bf16.xpose.msra.mxu0 0
      %1196 = vmatprep.subr.bf16.mxu0 0
      %1197 = vmatpush2.bf16.xpose.msra.mxu0 0
      %1198 = vmatprep.subr.bf16.mxu0 0
      %1199 = vmatpush2.bf16.xpose.msra.mxu0 0
      %1200 = vmatprep.subr.bf16.mxu0 0
      %1201 = vmatpush2.bf16.xpose.msra.mxu0 0
      %1202 = vmatprep.subr.bf16.mxu0 0
      %1203 = vmatpush2.bf16.xpose.msra.mxu0 0
      %1204 = vmatprep.subr.bf16.mxu0 0
      %1205 = vmatpush2.bf16.xpose.msra.mxu0 0
      %1206 = vmatprep.mubr.bf16.mxu0 0
      %1207 = vmatmul.mubr.bf16.gmra.mxu0 %v1169
      %v1208 = vpop.f32.mrf.mxu0
      %v1209 = vadd.f32 %v565, %v1208
      %v1210 = vpop.f32.mrf.mxu0
      %v1211 = vpop.f32.mrf.mxu0
      %v1212 = vadd.f32 %v566, %v1211
      %v1213 = vpop.f32.mrf.mxu0
      %1214 = vdwg.mxu0
      %1215 = vrot.lane.b32.xlu0 %v574, 120
      %v1216 = vpop.permute.xlu0 %1215
      %1217 = vrot.lane.b32.xlu0 %v574, 88
      %v1218 = vpop.permute.xlu0 %1217
      %v1220 = vsel %vm578, %v1216, 0
      %v1223 = vsel %vm578, %v1218, 0
      %1225 = vmatprep.subr.bf16.mxu0 0
      %1226 = vmatpush1.bf16.xpose.msra.mxu0 0
      %1227 = vmatprep.subr.bf16.mxu0 0
      %1228 = vmatpush1.bf16.xpose.msra.mxu0 0
      %1229 = vmatprep.subr.bf16.mxu0 0
      %1230 = vmatpush1.bf16.xpose.msra.mxu0 0
      %1231 = vmatprep.subr.bf16.mxu0 0
      %1232 = vmatpush1.bf16.xpose.msra.mxu0 0
      %1233 = vmatprep.subr.bf16.mxu0 0
      %1234 = vmatpush1.bf16.xpose.msra.mxu0 0
      %1235 = vmatprep.subr.bf16.mxu0 0
      %1236 = vmatpush1.bf16.xpose.msra.mxu0 0
      %1237 = vmatprep.subr.bf16.mxu0 0
      %1238 = vmatpush1.bf16.xpose.msra.mxu0 0
      %1239 = vmatprep.subr.bf16.mxu0 0
      %1240 = vmatpush1.bf16.xpose.msra.mxu0 %v1223
      %1241 = vmatprep.subr.bf16.mxu0 0
      %1242 = vmatpush2.bf16.xpose.msra.mxu0 0
      %1243 = vmatprep.subr.bf16.mxu0 0
      %1244 = vmatpush2.bf16.xpose.msra.mxu0 0
      %1245 = vmatprep.subr.bf16.mxu0 0
      %1246 = vmatpush2.bf16.xpose.msra.mxu0 0
      %1247 = vmatprep.subr.bf16.mxu0 0
      %1248 = vmatpush2.bf16.xpose.msra.mxu0 0
      %1249 = vmatprep.subr.bf16.mxu0 0
      %1250 = vmatpush2.bf16.xpose.msra.mxu0 0
      %1251 = vmatprep.subr.bf16.mxu0 0
      %1252 = vmatpush2.bf16.xpose.msra.mxu0 0
      %1253 = vmatprep.subr.bf16.mxu0 0
      %1254 = vmatpush2.bf16.xpose.msra.mxu0 0
      %1255 = vmatprep.subr.bf16.mxu0 0
      %1256 = vmatpush2.bf16.xpose.msra.mxu0 0
      %1257 = vmatprep.mubr.bf16.mxu0 0
      %1258 = vmatmul.mubr.bf16.gmra.mxu0 %v1220
      %v1259 = vpop.f32.mrf.mxu0
      %v1260 = vadd.f32 %v565, %v1259
      %v1261 = vpop.f32.mrf.mxu0
      %v1262 = vpop.f32.mrf.mxu0
      %v1263 = vadd.f32 %v566, %v1262
      %v1264 = vpop.f32.mrf.mxu0
      %1265 = vdwg.mxu0
      %v1266 = vsel %vm776, %v1107, -inf
      %1267 = vmax.xlane.f32.xlu0 %v1266
      %v1268 = vpop.xlane.xlu0 %1267
      %v1269 = vsel %vm776, %v1110, -inf
      %1270 = vmax.xlane.f32.xlu0 %v1269
      %v1271 = vpop.xlane.xlu0 %1270
      %v1272 = vsel %vm776, %v1158, -inf
      %1273 = vmax.xlane.f32.xlu0 %v1272
      %v1274 = vpop.xlane.xlu0 %1273
      %v1275 = vsel %vm776, %v1161, -inf
      %1276 = vmax.xlane.f32.xlu0 %v1275
      %v1277 = vpop.xlane.xlu0 %1276
      %v1278 = vsel %vm776, %v1209, -inf
      %1279 = vmax.xlane.f32.xlu0 %v1278
      %v1280 = vpop.xlane.xlu0 %1279
      %v1281 = vsel %vm776, %v1212, -inf
      %1282 = vmax.xlane.f32.xlu0 %v1281
      %v1283 = vpop.xlane.xlu0 %1282
      %v1284 = vsel %vm776, %v1260, -inf
      %1285 = vmax.xlane.f32.xlu0 %v1284
      %v1286 = vpop.xlane.xlu0 %1285
      %v1287 = vsel %vm776, %v1263, -inf
      %1288 = vmax.xlane.f32.xlu0 %v1287
      %v1289 = vpop.xlane.xlu0 %1288
      %v1290 = vsub.f32 %v1107, %v1268
      %v1291 = vsub.f32 %v1110, %v1271
      %v1292 = vsub.f32 %v1158, %v1274
      %v1293 = vsub.f32 %v1161, %v1277
      %v1294 = vsub.f32 %v1209, %v1280
      %v1295 = vsub.f32 %v1212, %v1283
      %v1296 = vsub.f32 %v1260, %v1286
      %v1297 = vsub.f32 %v1263, %v1289
      %v1298 = vmul.f32 %v1290, 1.442695
      %v1299 = vpow.pop %v1298
      %v1300 = vmul.f32 %v1291, 1.442695
      %v1301 = vpow.pop %v1300
      %v1302 = vmul.f32 %v1292, 1.442695
      %v1303 = vpow.pop %v1302
      %v1304 = vmul.f32 %v1293, 1.442695
      %v1305 = vpow.pop %v1304
      %v1306 = vmul.f32 %v1294, 1.442695
      %v1307 = vpow.pop %v1306
      %v1308 = vmul.f32 %v1295, 1.442695
      %v1309 = vpow.pop %v1308
      %v1310 = vmul.f32 %v1296, 1.442695
      %v1311 = vpow.pop %v1310
      %v1312 = vmul.f32 %v1297, 1.442695
      %v1313 = vpow.pop %v1312
      %v1314 = vsel %vm776, %v1299, 0.0
      %1315 = vadd.xlane.f32.xlu0 %v1314
      %v1316 = vpop.xlane.xlu0 %1315
      %v1317 = vsel %vm776, %v1301, 0.0
      %1318 = vadd.xlane.f32.xlu0 %v1317
      %v1319 = vpop.xlane.xlu0 %1318
      %v1320 = vsel %vm776, %v1303, 0.0
      %1321 = vadd.xlane.f32.xlu0 %v1320
      %v1322 = vpop.xlane.xlu0 %1321
      %v1323 = vsel %vm776, %v1305, 0.0
      %1324 = vadd.xlane.f32.xlu0 %v1323
      %v1325 = vpop.xlane.xlu0 %1324
      %v1326 = vsel %vm776, %v1307, 0.0
      %1327 = vadd.xlane.f32.xlu0 %v1326
      %v1328 = vpop.xlane.xlu0 %1327
      %v1329 = vsel %vm776, %v1309, 0.0
      %1330 = vadd.xlane.f32.xlu0 %v1329
      %v1331 = vpop.xlane.xlu0 %1330
      %v1332 = vsel %vm776, %v1311, 0.0
      %1333 = vadd.xlane.f32.xlu0 %v1332
      %v1334 = vpop.xlane.xlu0 %1333
      %v1335 = vsel %vm776, %v1313, 0.0
      %1336 = vadd.xlane.f32.xlu0 %v1335
      %v1337 = vpop.xlane.xlu0 %1336
      %v1338 = vrcp.pop %v1316
      %v1339 = vrcp.pop %v1319
      %v1340 = vrcp.pop %v1322
      %v1341 = vrcp.pop %v1325
      %v1342 = vrcp.pop %v1328
      %v1343 = vrcp.pop %v1331
      %v1344 = vrcp.pop %v1334
      %v1345 = vrcp.pop %v1337
      %v1346 = vmul.f32 %v1299, %v1338
      %v1347 = vmul.f32 %v1301, %v1339
      %v1348 = vmul.f32 %v1303, %v1340
      %v1349 = vmul.f32 %v1305, %v1341
      %v1350 = vmul.f32 %v1307, %v1342
      %v1351 = vmul.f32 %v1309, %v1343
      %v1352 = vmul.f32 %v1311, %v1344
      %v1353 = vmul.f32 %v1313, %v1345
      %v1354 = vpack.c.bf16 %v1347, %v1346
      %v1355 = vpack.c.bf16 %v1349, %v1348
      %v1356 = vpack.c.bf16 %v1351, %v1350
      %v1357 = vpack.c.bf16 %v1353, %v1352
      %1358 = vrot.lane.b32.xlu0 %v571, 56
      %v1359 = vpop.permute.xlu0 %1358
      %v1362 = vsel %vm776, %v1354, 0
      %1364 = vmatprep.subr.bf16.mxu0 0
      %1365 = vmatpush1.bf16.msra.mxu0 0
      %1366 = vmatprep.subr.bf16.mxu0 0
      %1367 = vmatpush1.bf16.msra.mxu0 0
      %1368 = vmatprep.subr.bf16.mxu0 0
      %1369 = vmatpush1.bf16.msra.mxu0 0
      %1370 = vmatprep.subr.bf16.mxu0 0
      %1371 = vmatpush1.bf16.msra.mxu0 0
      %1372 = vmatprep.subr.bf16.mxu0 0
      %1373 = vmatpush1.bf16.msra.mxu0 0
      %1374 = vmatprep.subr.bf16.mxu0 0
      %1375 = vmatpush1.bf16.msra.mxu0 0
      %1376 = vmatprep.subr.bf16.mxu0 0
      %1377 = vmatpush1.bf16.msra.mxu0 0
      %1378 = vmatprep.subr.bf16.mxu0 0
      %1379 = vmatpush1.bf16.msra.mxu0 %v1359
      %1380 = vmatprep.subr.bf16.mxu0 0
      %1381 = vmatpush2.bf16.msra.mxu0 0
      %1382 = vmatprep.subr.bf16.mxu0 0
      %1383 = vmatpush2.bf16.msra.mxu0 0
      %1384 = vmatprep.subr.bf16.mxu0 0
      %1385 = vmatpush2.bf16.msra.mxu0 0
      %1386 = vmatprep.subr.bf16.mxu0 0
      %1387 = vmatpush2.bf16.msra.mxu0 0
      %1388 = vmatprep.subr.bf16.mxu0 0
      %1389 = vmatpush2.bf16.msra.mxu0 0
      %1390 = vmatprep.subr.bf16.mxu0 0
      %1391 = vmatpush2.bf16.msra.mxu0 0
      %1392 = vmatprep.subr.bf16.mxu0 0
      %1393 = vmatpush2.bf16.msra.mxu0 0
      %1394 = vmatprep.subr.bf16.mxu0 0
      %1395 = vmatpush2.bf16.msra.mxu0 0
      %1396 = vmatprep.mubr.bf16.mxu0 0
      %1397 = vmatmul.mubr.bf16.gmra.mxu0 %v1362
      %v1398 = vpop.f32.mrf.mxu0
      %v1399 = vadd.f32 0.0, %v1398
      %v1400 = vpop.f32.mrf.mxu0
      %v1401 = vpop.f32.mrf.mxu0
      %v1402 = vadd.f32 0.0, %v1401
      %v1403 = vpop.f32.mrf.mxu0
      %1404 = vdwg.mxu0
      %1405 = vrot.lane.b32.xlu0 %v572, 56
      %v1406 = vpop.permute.xlu0 %1405
      %v1409 = vsel %vm776, %v1355, 0
      %1411 = vmatprep.subr.bf16.mxu0 0
      %1412 = vmatpush1.bf16.msra.mxu0 0
      %1413 = vmatprep.subr.bf16.mxu0 0
      %1414 = vmatpush1.bf16.msra.mxu0 0
      %1415 = vmatprep.subr.bf16.mxu0 0
      %1416 = vmatpush1.bf16.msra.mxu0 0
      %1417 = vmatprep.subr.bf16.mxu0 0
      %1418 = vmatpush1.bf16.msra.mxu0 0
      %1419 = vmatprep.subr.bf16.mxu0 0
      %1420 = vmatpush1.bf16.msra.mxu0 0
      %1421 = vmatprep.subr.bf16.mxu0 0
      %1422 = vmatpush1.bf16.msra.mxu0 0
      %1423 = vmatprep.subr.bf16.mxu0 0
      %1424 = vmatpush1.bf16.msra.mxu0 0
      %1425 = vmatprep.subr.bf16.mxu0 0
      %1426 = vmatpush1.bf16.msra.mxu0 %v1406
      %1427 = vmatprep.subr.bf16.mxu0 0
      %1428 = vmatpush2.bf16.msra.mxu0 0
      %1429 = vmatprep.subr.bf16.mxu0 0
      %1430 = vmatpush2.bf16.msra.mxu0 0
      %1431 = vmatprep.subr.bf16.mxu0 0
      %1432 = vmatpush2.bf16.msra.mxu0 0
      %1433 = vmatprep.subr.bf16.mxu0 0
      %1434 = vmatpush2.bf16.msra.mxu0 0
      %1435 = vmatprep.subr.bf16.mxu0 0
      %1436 = vmatpush2.bf16.msra.mxu0 0
      %1437 = vmatprep.subr.bf16.mxu0 0
      %1438 = vmatpush2.bf16.msra.mxu0 0
      %1439 = vmatprep.subr.bf16.mxu0 0
      %1440 = vmatpush2.bf16.msra.mxu0 0
      %1441 = vmatprep.subr.bf16.mxu0 0
      %1442 = vmatpush2.bf16.msra.mxu0 0
      %1443 = vmatprep.mubr.bf16.mxu0 0
      %1444 = vmatmul.mubr.bf16.gmra.mxu0 %v1409
      %v1445 = vpop.f32.mrf.mxu0
      %v1446 = vadd.f32 0.0, %v1445
      %v1447 = vpop.f32.mrf.mxu0
      %v1448 = vpop.f32.mrf.mxu0
      %v1449 = vadd.f32 0.0, %v1448
      %v1450 = vpop.f32.mrf.mxu0
      %1451 = vdwg.mxu0
      %1452 = vrot.lane.b32.xlu0 %v573, 56
      %v1453 = vpop.permute.xlu0 %1452
      %v1456 = vsel %vm776, %v1356, 0
      %1458 = vmatprep.subr.bf16.mxu0 0
      %1459 = vmatpush1.bf16.msra.mxu0 0
      %1460 = vmatprep.subr.bf16.mxu0 0
      %1461 = vmatpush1.bf16.msra.mxu0 0
      %1462 = vmatprep.subr.bf16.mxu0 0
      %1463 = vmatpush1.bf16.msra.mxu0 0
      %1464 = vmatprep.subr.bf16.mxu0 0
      %1465 = vmatpush1.bf16.msra.mxu0 0
      %1466 = vmatprep.subr.bf16.mxu0 0
      %1467 = vmatpush1.bf16.msra.mxu0 0
      %1468 = vmatprep.subr.bf16.mxu0 0
      %1469 = vmatpush1.bf16.msra.mxu0 0
      %1470 = vmatprep.subr.bf16.mxu0 0
      %1471 = vmatpush1.bf16.msra.mxu0 0
      %1472 = vmatprep.subr.bf16.mxu0 0
      %1473 = vmatpush1.bf16.msra.mxu0 %v1453
      %1474 = vmatprep.subr.bf16.mxu0 0
      %1475 = vmatpush2.bf16.msra.mxu0 0
      %1476 = vmatprep.subr.bf16.mxu0 0
      %1477 = vmatpush2.bf16.msra.mxu0 0
      %1478 = vmatprep.subr.bf16.mxu0 0
      %1479 = vmatpush2.bf16.msra.mxu0 0
      %1480 = vmatprep.subr.bf16.mxu0 0
      %1481 = vmatpush2.bf16.msra.mxu0 0
      %1482 = vmatprep.subr.bf16.mxu0 0
      %1483 = vmatpush2.bf16.msra.mxu0 0
      %1484 = vmatprep.subr.bf16.mxu0 0
      %1485 = vmatpush2.bf16.msra.mxu0 0
      %1486 = vmatprep.subr.bf16.mxu0 0
      %1487 = vmatpush2.bf16.msra.mxu0 0
      %1488 = vmatprep.subr.bf16.mxu0 0
      %1489 = vmatpush2.bf16.msra.mxu0 0
      %1490 = vmatprep.mubr.bf16.mxu0 0
      %1491 = vmatmul.mubr.bf16.gmra.mxu0 %v1456
      %v1492 = vpop.f32.mrf.mxu0
      %v1493 = vadd.f32 0.0, %v1492
      %v1494 = vpop.f32.mrf.mxu0
      %v1495 = vpop.f32.mrf.mxu0
      %v1496 = vadd.f32 0.0, %v1495
      %v1497 = vpop.f32.mrf.mxu0
      %1498 = vdwg.mxu0
      %1499 = vrot.lane.b32.xlu0 %v574, 56
      %v1500 = vpop.permute.xlu0 %1499
      %v1503 = vsel %vm776, %v1357, 0
      %1505 = vmatprep.subr.bf16.mxu0 0
      %1506 = vmatpush1.bf16.msra.mxu0 0
      %1507 = vmatprep.subr.bf16.mxu0 0
      %1508 = vmatpush1.bf16.msra.mxu0 0
      %1509 = vmatprep.subr.bf16.mxu0 0
      %1510 = vmatpush1.bf16.msra.mxu0 0
      %1511 = vmatprep.subr.bf16.mxu0 0
      %1512 = vmatpush1.bf16.msra.mxu0 0
      %1513 = vmatprep.subr.bf16.mxu0 0
      %1514 = vmatpush1.bf16.msra.mxu0 0
      %1515 = vmatprep.subr.bf16.mxu0 0
      %1516 = vmatpush1.bf16.msra.mxu0 0
      %1517 = vmatprep.subr.bf16.mxu0 0
      %1518 = vmatpush1.bf16.msra.mxu0 0
      %1519 = vmatprep.subr.bf16.mxu0 0
      %1520 = vmatpush1.bf16.msra.mxu0 %v1500
      %1521 = vmatprep.subr.bf16.mxu0 0
      %1522 = vmatpush2.bf16.msra.mxu0 0
      %1523 = vmatprep.subr.bf16.mxu0 0
      %1524 = vmatpush2.bf16.msra.mxu0 0
      %1525 = vmatprep.subr.bf16.mxu0 0
      %1526 = vmatpush2.bf16.msra.mxu0 0
      %1527 = vmatprep.subr.bf16.mxu0 0
      %1528 = vmatpush2.bf16.msra.mxu0 0
      %1529 = vmatprep.subr.bf16.mxu0 0
      %1530 = vmatpush2.bf16.msra.mxu0 0
      %1531 = vmatprep.subr.bf16.mxu0 0
      %1532 = vmatpush2.bf16.msra.mxu0 0
      %1533 = vmatprep.subr.bf16.mxu0 0
      %1534 = vmatpush2.bf16.msra.mxu0 0
      %1535 = vmatprep.subr.bf16.mxu0 0
      %1536 = vmatpush2.bf16.msra.mxu0 0
      %1537 = vmatprep.mubr.bf16.mxu0 0
      %1538 = vmatmul.mubr.bf16.gmra.mxu0 %v1503
      %v1539 = vpop.f32.mrf.mxu0
      %v1540 = vadd.f32 0.0, %v1539
      %v1541 = vpop.f32.mrf.mxu0
      %v1542 = vpop.f32.mrf.mxu0
      %v1543 = vadd.f32 0.0, %v1542
      %v1544 = vpop.f32.mrf.mxu0
      %1545 = vdwg.mxu0
      %v1546 = vpack.c.bf16 %v1402, %v1399
      %v1547 = vpack.c.bf16 %v1449, %v1446
      %v1548 = vpack.c.bf16 %v1496, %v1493
      %v1549 = vpack.c.bf16 %v1543, %v1540
      %v1550 = vld [vmem:[%s5 + $0x4] sm:$0xf]
      %v1552 = vsel %vm578, %v1546, 0
      %v1555 = vsel %vm578, %v1547, 0
      %v1558 = vsel %vm578, %v1548, 0
      %v1561 = vsel %vm578, %v1549, 0
      %vm1563 = vcmask 1043456
      %v1565 = vsel %vm1563, %v1550, 0
      %1567 = vmatprep.subr.bf16.mxu0 0
      %1568 = vmatpush1.bf16.msra.mxu0 0
      %1569 = vmatprep.subr.bf16.mxu0 0
      %1570 = vmatpush1.bf16.msra.mxu0 0
      %1571 = vmatprep.subr.bf16.mxu0 0
      %1572 = vmatpush1.bf16.msra.mxu0 0
      %1573 = vmatprep.subr.bf16.mxu0 0
      %1574 = vmatpush1.bf16.msra.mxu0 0
      %1575 = vmatprep.subr.bf16.mxu0 0
      %1576 = vmatpush1.bf16.msra.mxu0 0
      %1577 = vmatprep.subr.bf16.mxu0 0
      %1578 = vmatpush1.bf16.msra.mxu0 0
      %1579 = vmatprep.subr.bf16.mxu0 0
      %1580 = vmatpush1.bf16.msra.mxu0 0
      %1581 = vmatprep.subr.bf16.mxu0 0
      %1582 = vmatpush1.bf16.msra.mxu0 %v1565
      %1583 = vmatprep.subr.bf16.mxu0 0
      %1584 = vmatpush2.bf16.msra.mxu0 0
      %1585 = vmatprep.subr.bf16.mxu0 0
      %1586 = vmatpush2.bf16.msra.mxu0 0
      %1587 = vmatprep.subr.bf16.mxu0 0
      %1588 = vmatpush2.bf16.msra.mxu0 0
      %1589 = vmatprep.subr.bf16.mxu0 0
      %1590 = vmatpush2.bf16.msra.mxu0 0
      %1591 = vmatprep.subr.bf16.mxu0 0
      %1592 = vmatpush2.bf16.msra.mxu0 0
      %1593 = vmatprep.subr.bf16.mxu0 0
      %1594 = vmatpush2.bf16.msra.mxu0 0
      %1595 = vmatprep.subr.bf16.mxu0 0
      %1596 = vmatpush2.bf16.msra.mxu0 0
      %1597 = vmatprep.subr.bf16.mxu0 0
      %1598 = vmatpush2.bf16.msra.mxu0 0
      %1599 = vmatprep.mubr.bf16.mxu0 0
      %1600 = vmatmul.mubr.bf16.gmra.mxu0 %v1552
      %v1601 = vpop.f32.mrf.mxu0
      %v1602 = vadd.f32 0.0, %v1601
      %v1603 = vpop.f32.mrf.mxu0
      %v1604 = vpop.f32.mrf.mxu0
      %v1605 = vadd.f32 0.0, %v1604
      %v1606 = vpop.f32.mrf.mxu0
      %1607 = vmatprep.mubr.bf16.mxu0 0
      %1608 = vmatmul.mubr.bf16.gmra.mxu0 %v1555
      %v1609 = vpop.f32.mrf.mxu0
      %v1610 = vadd.f32 0.0, %v1609
      %v1611 = vpop.f32.mrf.mxu0
      %v1612 = vpop.f32.mrf.mxu0
      %v1613 = vadd.f32 0.0, %v1612
      %v1614 = vpop.f32.mrf.mxu0
      %1615 = vmatprep.mubr.bf16.mxu0 0
      %1616 = vmatmul.mubr.bf16.gmra.mxu0 %v1558
      %v1617 = vpop.f32.mrf.mxu0
      %v1618 = vadd.f32 0.0, %v1617
      %v1619 = vpop.f32.mrf.mxu0
      %v1620 = vpop.f32.mrf.mxu0
      %v1621 = vadd.f32 0.0, %v1620
      %v1622 = vpop.f32.mrf.mxu0
      %1623 = vmatprep.mubr.bf16.mxu0 0
      %1624 = vmatmul.mubr.bf16.gmra.mxu0 %v1561
      %v1625 = vpop.f32.mrf.mxu0
      %v1626 = vadd.f32 0.0, %v1625
      %v1627 = vpop.f32.mrf.mxu0
      %v1628 = vpop.f32.mrf.mxu0
      %v1629 = vadd.f32 0.0, %v1628
      %v1630 = vpop.f32.mrf.mxu0
      %1631 = vdwg.mxu0
      %v1633 = vsel %vm578, %v1057, 0
      %v1636 = vsel %vm578, %v1058, 0
      %v1639 = vsel %vm578, %v1059, 0
      %v1642 = vsel %vm578, %v1060, 0
      %v1645 = vsel %vm1563, %v1061, 0
      %1647 = vmatprep.subr.bf16.mxu0 0
      %1648 = vmatpush1.bf16.msra.mxu0 0
      %1649 = vmatprep.subr.bf16.mxu0 0
      %1650 = vmatpush1.bf16.msra.mxu0 0
      %1651 = vmatprep.subr.bf16.mxu0 0
      %1652 = vmatpush1.bf16.msra.mxu0 0
      %1653 = vmatprep.subr.bf16.mxu0 0
      %1654 = vmatpush1.bf16.msra.mxu0 0
      %1655 = vmatprep.subr.bf16.mxu0 0
      %1656 = vmatpush1.bf16.msra.mxu0 0
      %1657 = vmatprep.subr.bf16.mxu0 0
      %1658 = vmatpush1.bf16.msra.mxu0 0
      %1659 = vmatprep.subr.bf16.mxu0 0
      %1660 = vmatpush1.bf16.msra.mxu0 0
      %1661 = vmatprep.subr.bf16.mxu0 0
      %1662 = vmatpush1.bf16.msra.mxu0 %v1645
      %1663 = vmatprep.subr.bf16.mxu0 0
      %1664 = vmatpush2.bf16.msra.mxu0 0
      %1665 = vmatprep.subr.bf16.mxu0 0
      %1666 = vmatpush2.bf16.msra.mxu0 0
      %1667 = vmatprep.subr.bf16.mxu0 0
      %1668 = vmatpush2.bf16.msra.mxu0 0
      %1669 = vmatprep.subr.bf16.mxu0 0
      %1670 = vmatpush2.bf16.msra.mxu0 0
      %1671 = vmatprep.subr.bf16.mxu0 0
      %1672 = vmatpush2.bf16.msra.mxu0 0
      %1673 = vmatprep.subr.bf16.mxu0 0
      %1674 = vmatpush2.bf16.msra.mxu0 0
      %1675 = vmatprep.subr.bf16.mxu0 0
      %1676 = vmatpush2.bf16.msra.mxu0 0
      %1677 = vmatprep.subr.bf16.mxu0 0
      %1678 = vmatpush2.bf16.msra.mxu0 0
      %1679 = vmatprep.mubr.bf16.mxu0 0
      %1680 = vmatmul.mubr.bf16.gmra.mxu0 %v1633
      %v1681 = vpop.f32.mrf.mxu0
      %v1682 = vadd.f32 %v1602, %v1681
      %v1683 = vpop.f32.mrf.mxu0
      %v1684 = vpop.f32.mrf.mxu0
      %v1685 = vadd.f32 %v1605, %v1684
      %v1686 = vpop.f32.mrf.mxu0
      %1687 = vmatprep.mubr.bf16.mxu0 0
      %1688 = vmatmul.mubr.bf16.gmra.mxu0 %v1636
      %v1689 = vpop.f32.mrf.mxu0
      %v1690 = vadd.f32 %v1610, %v1689
      %v1691 = vpop.f32.mrf.mxu0
      %v1692 = vpop.f32.mrf.mxu0
      %v1693 = vadd.f32 %v1613, %v1692
      %v1694 = vpop.f32.mrf.mxu0
      %1695 = vmatprep.mubr.bf16.mxu0 0
      %1696 = vmatmul.mubr.bf16.gmra.mxu0 %v1639
      %v1697 = vpop.f32.mrf.mxu0
      %v1698 = vadd.f32 %v1618, %v1697
      %v1699 = vpop.f32.mrf.mxu0
      %v1700 = vpop.f32.mrf.mxu0
      %v1701 = vadd.f32 %v1621, %v1700
      %v1702 = vpop.f32.mrf.mxu0
      %1703 = vmatprep.mubr.bf16.mxu0 0
      %1704 = vmatmul.mubr.bf16.gmra.mxu0 %v1642
      %v1705 = vpop.f32.mrf.mxu0
      %v1706 = vadd.f32 %v1626, %v1705
      %v1707 = vpop.f32.mrf.mxu0
      %v1708 = vpop.f32.mrf.mxu0
      %v1709 = vadd.f32 %v1629, %v1708
      %v1710 = vpop.f32.mrf.mxu0
      %1711 = vdwg.mxu0
      %1712 = vrot.lane.b32.xlu0 %v571, 112
      %v1713 = vpop.permute.xlu0 %1712
      %1714 = vrot.lane.b32.xlu0 %v571, 80
      %v1715 = vpop.permute.xlu0 %1714
      %v1717 = vsel %vm578, %v1713, 0
      %v1720 = vsel %vm578, %v1715, 0
      %1722 = vmatprep.subr.bf16.mxu0 0
      %1723 = vmatpush1.bf16.xpose.msra.mxu0 0
      %1724 = vmatprep.subr.bf16.mxu0 0
      %1725 = vmatpush1.bf16.xpose.msra.mxu0 0
      %1726 = vmatprep.subr.bf16.mxu0 0
      %1727 = vmatpush1.bf16.xpose.msra.mxu0 0
      %1728 = vmatprep.subr.bf16.mxu0 0
      %1729 = vmatpush1.bf16.xpose.msra.mxu0 0
      %1730 = vmatprep.subr.bf16.mxu0 0
      %1731 = vmatpush1.bf16.xpose.msra.mxu0 0
      %1732 = vmatprep.subr.bf16.mxu0 0
      %1733 = vmatpush1.bf16.xpose.msra.mxu0 0
      %1734 = vmatprep.subr.bf16.mxu0 0
      %1735 = vmatpush1.bf16.xpose.msra.mxu0 0
      %1736 = vmatprep.subr.bf16.mxu0 0
      %1737 = vmatpush1.bf16.xpose.msra.mxu0 %v1720
      %1738 = vmatprep.subr.bf16.mxu0 0
      %1739 = vmatpush2.bf16.xpose.msra.mxu0 0
      %1740 = vmatprep.subr.bf16.mxu0 0
      %1741 = vmatpush2.bf16.xpose.msra.mxu0 0
      %1742 = vmatprep.subr.bf16.mxu0 0
      %1743 = vmatpush2.bf16.xpose.msra.mxu0 0
      %1744 = vmatprep.subr.bf16.mxu0 0
      %1745 = vmatpush2.bf16.xpose.msra.mxu0 0
      %1746 = vmatprep.subr.bf16.mxu0 0
      %1747 = vmatpush2.bf16.xpose.msra.mxu0 0
      %1748 = vmatprep.subr.bf16.mxu0 0
      %1749 = vmatpush2.bf16.xpose.msra.mxu0 0
      %1750 = vmatprep.subr.bf16.mxu0 0
      %1751 = vmatpush2.bf16.xpose.msra.mxu0 0
      %1752 = vmatprep.subr.bf16.mxu0 0
      %1753 = vmatpush2.bf16.xpose.msra.mxu0 0
      %1754 = vmatprep.mubr.bf16.mxu0 0
      %1755 = vmatmul.mubr.bf16.gmra.mxu0 %v1717
      %v1756 = vpop.f32.mrf.mxu0
      %v1757 = vadd.f32 %v567, %v1756
      %v1758 = vpop.f32.mrf.mxu0
      %v1759 = vpop.f32.mrf.mxu0
      %v1760 = vadd.f32 %v568, %v1759
      %v1761 = vpop.f32.mrf.mxu0
      %1762 = vdwg.mxu0
      %1763 = vrot.lane.b32.xlu0 %v572, 112
      %v1764 = vpop.permute.xlu0 %1763
      %1765 = vrot.lane.b32.xlu0 %v572, 80
      %v1766 = vpop.permute.xlu0 %1765
      %v1768 = vsel %vm578, %v1764, 0
      %v1771 = vsel %vm578, %v1766, 0
      %1773 = vmatprep.subr.bf16.mxu0 0
      %1774 = vmatpush1.bf16.xpose.msra.mxu0 0
      %1775 = vmatprep.subr.bf16.mxu0 0
      %1776 = vmatpush1.bf16.xpose.msra.mxu0 0
      %1777 = vmatprep.subr.bf16.mxu0 0
      %1778 = vmatpush1.bf16.xpose.msra.mxu0 0
      %1779 = vmatprep.subr.bf16.mxu0 0
      %1780 = vmatpush1.bf16.xpose.msra.mxu0 0
      %1781 = vmatprep.subr.bf16.mxu0 0
      %1782 = vmatpush1.bf16.xpose.msra.mxu0 0
      %1783 = vmatprep.subr.bf16.mxu0 0
      %1784 = vmatpush1.bf16.xpose.msra.mxu0 0
      %1785 = vmatprep.subr.bf16.mxu0 0
      %1786 = vmatpush1.bf16.xpose.msra.mxu0 0
      %1787 = vmatprep.subr.bf16.mxu0 0
      %1788 = vmatpush1.bf16.xpose.msra.mxu0 %v1771
      %1789 = vmatprep.subr.bf16.mxu0 0
      %1790 = vmatpush2.bf16.xpose.msra.mxu0 0
      %1791 = vmatprep.subr.bf16.mxu0 0
      %1792 = vmatpush2.bf16.xpose.msra.mxu0 0
      %1793 = vmatprep.subr.bf16.mxu0 0
      %1794 = vmatpush2.bf16.xpose.msra.mxu0 0
      %1795 = vmatprep.subr.bf16.mxu0 0
      %1796 = vmatpush2.bf16.xpose.msra.mxu0 0
      %1797 = vmatprep.subr.bf16.mxu0 0
      %1798 = vmatpush2.bf16.xpose.msra.mxu0 0
      %1799 = vmatprep.subr.bf16.mxu0 0
      %1800 = vmatpush2.bf16.xpose.msra.mxu0 0
      %1801 = vmatprep.subr.bf16.mxu0 0
      %1802 = vmatpush2.bf16.xpose.msra.mxu0 0
      %1803 = vmatprep.subr.bf16.mxu0 0
      %1804 = vmatpush2.bf16.xpose.msra.mxu0 0
      %1805 = vmatprep.mubr.bf16.mxu0 0
      %1806 = vmatmul.mubr.bf16.gmra.mxu0 %v1768
      %v1807 = vpop.f32.mrf.mxu0
      %v1808 = vadd.f32 %v567, %v1807
      %v1809 = vpop.f32.mrf.mxu0
      %v1810 = vpop.f32.mrf.mxu0
      %v1811 = vadd.f32 %v568, %v1810
      %v1812 = vpop.f32.mrf.mxu0
      %1813 = vdwg.mxu0
      %1814 = vrot.lane.b32.xlu0 %v573, 112
      %v1815 = vpop.permute.xlu0 %1814
      %1816 = vrot.lane.b32.xlu0 %v573, 80
      %v1817 = vpop.permute.xlu0 %1816
      %v1819 = vsel %vm578, %v1815, 0
      %v1822 = vsel %vm578, %v1817, 0
      %1824 = vmatprep.subr.bf16.mxu0 0
      %1825 = vmatpush1.bf16.xpose.msra.mxu0 0
      %1826 = vmatprep.subr.bf16.mxu0 0
      %1827 = vmatpush1.bf16.xpose.msra.mxu0 0
      %1828 = vmatprep.subr.bf16.mxu0 0
      %1829 = vmatpush1.bf16.xpose.msra.mxu0 0
      %1830 = vmatprep.subr.bf16.mxu0 0
      %1831 = vmatpush1.bf16.xpose.msra.mxu0 0
      %1832 = vmatprep.subr.bf16.mxu0 0
      %1833 = vmatpush1.bf16.xpose.msra.mxu0 0
      %1834 = vmatprep.subr.bf16.mxu0 0
      %1835 = vmatpush1.bf16.xpose.msra.mxu0 0
      %1836 = vmatprep.subr.bf16.mxu0 0
      %1837 = vmatpush1.bf16.xpose.msra.mxu0 0
      %1838 = vmatprep.subr.bf16.mxu0 0
      %1839 = vmatpush1.bf16.xpose.msra.mxu0 %v1822
      %1840 = vmatprep.subr.bf16.mxu0 0
      %1841 = vmatpush2.bf16.xpose.msra.mxu0 0
      %1842 = vmatprep.subr.bf16.mxu0 0
      %1843 = vmatpush2.bf16.xpose.msra.mxu0 0
      %1844 = vmatprep.subr.bf16.mxu0 0
      %1845 = vmatpush2.bf16.xpose.msra.mxu0 0
      %1846 = vmatprep.subr.bf16.mxu0 0
      %1847 = vmatpush2.bf16.xpose.msra.mxu0 0
      %1848 = vmatprep.subr.bf16.mxu0 0
      %1849 = vmatpush2.bf16.xpose.msra.mxu0 0
      %1850 = vmatprep.subr.bf16.mxu0 0
      %1851 = vmatpush2.bf16.xpose.msra.mxu0 0
      %1852 = vmatprep.subr.bf16.mxu0 0
      %1853 = vmatpush2.bf16.xpose.msra.mxu0 0
      %1854 = vmatprep.subr.bf16.mxu0 0
      %1855 = vmatpush2.bf16.xpose.msra.mxu0 0
      %1856 = vmatprep.mubr.bf16.mxu0 0
      %1857 = vmatmul.mubr.bf16.gmra.mxu0 %v1819
      %v1858 = vpop.f32.mrf.mxu0
      %v1859 = vadd.f32 %v567, %v1858
      %v1860 = vpop.f32.mrf.mxu0
      %v1861 = vpop.f32.mrf.mxu0
      %v1862 = vadd.f32 %v568, %v1861
      %v1863 = vpop.f32.mrf.mxu0
      %1864 = vdwg.mxu0
      %1865 = vrot.lane.b32.xlu0 %v574, 112
      %v1866 = vpop.permute.xlu0 %1865
      %1867 = vrot.lane.b32.xlu0 %v574, 80
      %v1868 = vpop.permute.xlu0 %1867
      %v1870 = vsel %vm578, %v1866, 0
      %v1873 = vsel %vm578, %v1868, 0
      %1875 = vmatprep.subr.bf16.mxu0 0
      %1876 = vmatpush1.bf16.xpose.msra.mxu0 0
      %1877 = vmatprep.subr.bf16.mxu0 0
      %1878 = vmatpush1.bf16.xpose.msra.mxu0 0
      %1879 = vmatprep.subr.bf16.mxu0 0
      %1880 = vmatpush1.bf16.xpose.msra.mxu0 0
      %1881 = vmatprep.subr.bf16.mxu0 0
      %1882 = vmatpush1.bf16.xpose.msra.mxu0 0
      %1883 = vmatprep.subr.bf16.mxu0 0
      %1884 = vmatpush1.bf16.xpose.msra.mxu0 0
      %1885 = vmatprep.subr.bf16.mxu0 0
      %1886 = vmatpush1.bf16.xpose.msra.mxu0 0
      %1887 = vmatprep.subr.bf16.mxu0 0
      %1888 = vmatpush1.bf16.xpose.msra.mxu0 0
      %1889 = vmatprep.subr.bf16.mxu0 0
      %1890 = vmatpush1.bf16.xpose.msra.mxu0 %v1873
      %1891 = vmatprep.subr.bf16.mxu0 0
      %1892 = vmatpush2.bf16.xpose.msra.mxu0 0
      %1893 = vmatprep.subr.bf16.mxu0 0
      %1894 = vmatpush2.bf16.xpose.msra.mxu0 0
      %1895 = vmatprep.subr.bf16.mxu0 0
      %1896 = vmatpush2.bf16.xpose.msra.mxu0 0
      %1897 = vmatprep.subr.bf16.mxu0 0
      %1898 = vmatpush2.bf16.xpose.msra.mxu0 0
      %1899 = vmatprep.subr.bf16.mxu0 0
      %1900 = vmatpush2.bf16.xpose.msra.mxu0 0
      %1901 = vmatprep.subr.bf16.mxu0 0
      %1902 = vmatpush2.bf16.xpose.msra.mxu0 0
      %1903 = vmatprep.subr.bf16.mxu0 0
      %1904 = vmatpush2.bf16.xpose.msra.mxu0 0
      %1905 = vmatprep.subr.bf16.mxu0 0
      %1906 = vmatpush2.bf16.xpose.msra.mxu0 0
      %1907 = vmatprep.mubr.bf16.mxu0 0
      %1908 = vmatmul.mubr.bf16.gmra.mxu0 %v1870
      %v1909 = vpop.f32.mrf.mxu0
      %v1910 = vadd.f32 %v567, %v1909
      %v1911 = vpop.f32.mrf.mxu0
      %v1912 = vpop.f32.mrf.mxu0
      %v1913 = vadd.f32 %v568, %v1912
      %v1914 = vpop.f32.mrf.mxu0
      %1915 = vdwg.mxu0
      %v1916 = vsel %vm776, %v1757, -inf
      %1917 = vmax.xlane.f32.xlu0 %v1916
      %v1918 = vpop.xlane.xlu0 %1917
      %v1919 = vsel %vm776, %v1760, -inf
      %1920 = vmax.xlane.f32.xlu0 %v1919
      %v1921 = vpop.xlane.xlu0 %1920
      %v1922 = vsel %vm776, %v1808, -inf
      %1923 = vmax.xlane.f32.xlu0 %v1922
      %v1924 = vpop.xlane.xlu0 %1923
      %v1925 = vsel %vm776, %v1811, -inf
      %1926 = vmax.xlane.f32.xlu0 %v1925
      %v1927 = vpop.xlane.xlu0 %1926
      %v1928 = vsel %vm776, %v1859, -inf
      %1929 = vmax.xlane.f32.xlu0 %v1928
      %v1930 = vpop.xlane.xlu0 %1929
      %v1931 = vsel %vm776, %v1862, -inf
      %1932 = vmax.xlane.f32.xlu0 %v1931
      %v1933 = vpop.xlane.xlu0 %1932
      %v1934 = vsel %vm776, %v1910, -inf
      %1935 = vmax.xlane.f32.xlu0 %v1934
      %v1936 = vpop.xlane.xlu0 %1935
      %v1937 = vsel %vm776, %v1913, -inf
      %1938 = vmax.xlane.f32.xlu0 %v1937
      %v1939 = vpop.xlane.xlu0 %1938
      %v1940 = vsub.f32 %v1757, %v1918
      %v1941 = vsub.f32 %v1760, %v1921
      %v1942 = vsub.f32 %v1808, %v1924
      %v1943 = vsub.f32 %v1811, %v1927
      %v1944 = vsub.f32 %v1859, %v1930
      %v1945 = vsub.f32 %v1862, %v1933
      %v1946 = vsub.f32 %v1910, %v1936
      %v1947 = vsub.f32 %v1913, %v1939
      %v1948 = vmul.f32 %v1940, 1.442695
      %v1949 = vpow.pop %v1948
      %v1950 = vmul.f32 %v1941, 1.442695
      %v1951 = vpow.pop %v1950
      %v1952 = vmul.f32 %v1942, 1.442695
      %v1953 = vpow.pop %v1952
      %v1954 = vmul.f32 %v1943, 1.442695
      %v1955 = vpow.pop %v1954
      %v1956 = vmul.f32 %v1944, 1.442695
      %v1957 = vpow.pop %v1956
      %v1958 = vmul.f32 %v1945, 1.442695
      %v1959 = vpow.pop %v1958
      %v1960 = vmul.f32 %v1946, 1.442695
      %v1961 = vpow.pop %v1960
      %v1962 = vmul.f32 %v1947, 1.442695
      %v1963 = vpow.pop %v1962
      %v1964 = vsel %vm776, %v1949, 0.0
      %1965 = vadd.xlane.f32.xlu0 %v1964
      %v1966 = vpop.xlane.xlu0 %1965
      %v1967 = vsel %vm776, %v1951, 0.0
      %1968 = vadd.xlane.f32.xlu0 %v1967
      %v1969 = vpop.xlane.xlu0 %1968
      %v1970 = vsel %vm776, %v1953, 0.0
      %1971 = vadd.xlane.f32.xlu0 %v1970
      %v1972 = vpop.xlane.xlu0 %1971
      %v1973 = vsel %vm776, %v1955, 0.0
      %1974 = vadd.xlane.f32.xlu0 %v1973
      %v1975 = vpop.xlane.xlu0 %1974
      %v1976 = vsel %vm776, %v1957, 0.0
      %1977 = vadd.xlane.f32.xlu0 %v1976
      %v1978 = vpop.xlane.xlu0 %1977
      %v1979 = vsel %vm776, %v1959, 0.0
      %1980 = vadd.xlane.f32.xlu0 %v1979
      %v1981 = vpop.xlane.xlu0 %1980
      %v1982 = vsel %vm776, %v1961, 0.0
      %1983 = vadd.xlane.f32.xlu0 %v1982
      %v1984 = vpop.xlane.xlu0 %1983
      %v1985 = vsel %vm776, %v1963, 0.0
      %1986 = vadd.xlane.f32.xlu0 %v1985
      %v1987 = vpop.xlane.xlu0 %1986
      %v1988 = vrcp.pop %v1966
      %v1989 = vrcp.pop %v1969
      %v1990 = vrcp.pop %v1972
      %v1991 = vrcp.pop %v1975
      %v1992 = vrcp.pop %v1978
      %v1993 = vrcp.pop %v1981
      %v1994 = vrcp.pop %v1984
      %v1995 = vrcp.pop %v1987
      %v1996 = vmul.f32 %v1949, %v1988
      %v1997 = vmul.f32 %v1951, %v1989
      %v1998 = vmul.f32 %v1953, %v1990
      %v1999 = vmul.f32 %v1955, %v1991
      %v2000 = vmul.f32 %v1957, %v1992
      %v2001 = vmul.f32 %v1959, %v1993
      %v2002 = vmul.f32 %v1961, %v1994
      %v2003 = vmul.f32 %v1963, %v1995
      %v2004 = vpack.c.bf16 %v1997, %v1996
      %v2005 = vpack.c.bf16 %v1999, %v1998
      %v2006 = vpack.c.bf16 %v2001, %v2000
      %v2007 = vpack.c.bf16 %v2003, %v2002
      %2008 = vrot.lane.b32.xlu0 %v571, 48
      %v2009 = vpop.permute.xlu0 %2008
      %v2012 = vsel %vm776, %v2004, 0
      %2014 = vmatprep.subr.bf16.mxu0 0
      %2015 = vmatpush1.bf16.msra.mxu0 0
      %2016 = vmatprep.subr.bf16.mxu0 0
      %2017 = vmatpush1.bf16.msra.mxu0 0
      %2018 = vmatprep.subr.bf16.mxu0 0
      %2019 = vmatpush1.bf16.msra.mxu0 0
      %2020 = vmatprep.subr.bf16.mxu0 0
      %2021 = vmatpush1.bf16.msra.mxu0 0
      %2022 = vmatprep.subr.bf16.mxu0 0
      %2023 = vmatpush1.bf16.msra.mxu0 0
      %2024 = vmatprep.subr.bf16.mxu0 0
      %2025 = vmatpush1.bf16.msra.mxu0 0
      %2026 = vmatprep.subr.bf16.mxu0 0
      %2027 = vmatpush1.bf16.msra.mxu0 0
      %2028 = vmatprep.subr.bf16.mxu0 0
      %2029 = vmatpush1.bf16.msra.mxu0 %v2009
      %2030 = vmatprep.subr.bf16.mxu0 0
      %2031 = vmatpush2.bf16.msra.mxu0 0
      %2032 = vmatprep.subr.bf16.mxu0 0
      %2033 = vmatpush2.bf16.msra.mxu0 0
      %2034 = vmatprep.subr.bf16.mxu0 0
      %2035 = vmatpush2.bf16.msra.mxu0 0
      %2036 = vmatprep.subr.bf16.mxu0 0
      %2037 = vmatpush2.bf16.msra.mxu0 0
      %2038 = vmatprep.subr.bf16.mxu0 0
      %2039 = vmatpush2.bf16.msra.mxu0 0
      %2040 = vmatprep.subr.bf16.mxu0 0
      %2041 = vmatpush2.bf16.msra.mxu0 0
      %2042 = vmatprep.subr.bf16.mxu0 0
      %2043 = vmatpush2.bf16.msra.mxu0 0
      %2044 = vmatprep.subr.bf16.mxu0 0
      %2045 = vmatpush2.bf16.msra.mxu0 0
      %2046 = vmatprep.mubr.bf16.mxu0 0
      %2047 = vmatmul.mubr.bf16.gmra.mxu0 %v2012
      %v2048 = vpop.f32.mrf.mxu0
      %v2049 = vadd.f32 0.0, %v2048
      %v2050 = vpop.f32.mrf.mxu0
      %v2051 = vpop.f32.mrf.mxu0
      %v2052 = vadd.f32 0.0, %v2051
      %v2053 = vpop.f32.mrf.mxu0
      %2054 = vdwg.mxu0
      %2055 = vrot.lane.b32.xlu0 %v572, 48
      %v2056 = vpop.permute.xlu0 %2055
      %v2059 = vsel %vm776, %v2005, 0
      %2061 = vmatprep.subr.bf16.mxu0 0
      %2062 = vmatpush1.bf16.msra.mxu0 0
      %2063 = vmatprep.subr.bf16.mxu0 0
      %2064 = vmatpush1.bf16.msra.mxu0 0
      %2065 = vmatprep.subr.bf16.mxu0 0
      %2066 = vmatpush1.bf16.msra.mxu0 0
      %2067 = vmatprep.subr.bf16.mxu0 0
      %2068 = vmatpush1.bf16.msra.mxu0 0
      %2069 = vmatprep.subr.bf16.mxu0 0
      %2070 = vmatpush1.bf16.msra.mxu0 0
      %2071 = vmatprep.subr.bf16.mxu0 0
      %2072 = vmatpush1.bf16.msra.mxu0 0
      %2073 = vmatprep.subr.bf16.mxu0 0
      %2074 = vmatpush1.bf16.msra.mxu0 0
      %2075 = vmatprep.subr.bf16.mxu0 0
      %2076 = vmatpush1.bf16.msra.mxu0 %v2056
      %2077 = vmatprep.subr.bf16.mxu0 0
      %2078 = vmatpush2.bf16.msra.mxu0 0
      %2079 = vmatprep.subr.bf16.mxu0 0
      %2080 = vmatpush2.bf16.msra.mxu0 0
      %2081 = vmatprep.subr.bf16.mxu0 0
      %2082 = vmatpush2.bf16.msra.mxu0 0
      %2083 = vmatprep.subr.bf16.mxu0 0
      %2084 = vmatpush2.bf16.msra.mxu0 0
      %2085 = vmatprep.subr.bf16.mxu0 0
      %2086 = vmatpush2.bf16.msra.mxu0 0
      %2087 = vmatprep.subr.bf16.mxu0 0
      %2088 = vmatpush2.bf16.msra.mxu0 0
      %2089 = vmatprep.subr.bf16.mxu0 0
      %2090 = vmatpush2.bf16.msra.mxu0 0
      %2091 = vmatprep.subr.bf16.mxu0 0
      %2092 = vmatpush2.bf16.msra.mxu0 0
      %2093 = vmatprep.mubr.bf16.mxu0 0
      %2094 = vmatmul.mubr.bf16.gmra.mxu0 %v2059
      %v2095 = vpop.f32.mrf.mxu0
      %v2096 = vadd.f32 0.0, %v2095
      %v2097 = vpop.f32.mrf.mxu0
      %v2098 = vpop.f32.mrf.mxu0
      %v2099 = vadd.f32 0.0, %v2098
      %v2100 = vpop.f32.mrf.mxu0
      %2101 = vdwg.mxu0
      %2102 = vrot.lane.b32.xlu0 %v573, 48
      %v2103 = vpop.permute.xlu0 %2102
      %v2106 = vsel %vm776, %v2006, 0
      %2108 = vmatprep.subr.bf16.mxu0 0
      %2109 = vmatpush1.bf16.msra.mxu0 0
      %2110 = vmatprep.subr.bf16.mxu0 0
      %2111 = vmatpush1.bf16.msra.mxu0 0
      %2112 = vmatprep.subr.bf16.mxu0 0
      %2113 = vmatpush1.bf16.msra.mxu0 0
      %2114 = vmatprep.subr.bf16.mxu0 0
      %2115 = vmatpush1.bf16.msra.mxu0 0
      %2116 = vmatprep.subr.bf16.mxu0 0
      %2117 = vmatpush1.bf16.msra.mxu0 0
      %2118 = vmatprep.subr.bf16.mxu0 0
      %2119 = vmatpush1.bf16.msra.mxu0 0
      %2120 = vmatprep.subr.bf16.mxu0 0
      %2121 = vmatpush1.bf16.msra.mxu0 0
      %2122 = vmatprep.subr.bf16.mxu0 0
      %2123 = vmatpush1.bf16.msra.mxu0 %v2103
      %2124 = vmatprep.subr.bf16.mxu0 0
      %2125 = vmatpush2.bf16.msra.mxu0 0
      %2126 = vmatprep.subr.bf16.mxu0 0
      %2127 = vmatpush2.bf16.msra.mxu0 0
      %2128 = vmatprep.subr.bf16.mxu0 0
      %2129 = vmatpush2.bf16.msra.mxu0 0
      %2130 = vmatprep.subr.bf16.mxu0 0
      %2131 = vmatpush2.bf16.msra.mxu0 0
      %2132 = vmatprep.subr.bf16.mxu0 0
      %2133 = vmatpush2.bf16.msra.mxu0 0
      %2134 = vmatprep.subr.bf16.mxu0 0
      %2135 = vmatpush2.bf16.msra.mxu0 0
      %2136 = vmatprep.subr.bf16.mxu0 0
      %2137 = vmatpush2.bf16.msra.mxu0 0
      %2138 = vmatprep.subr.bf16.mxu0 0
      %2139 = vmatpush2.bf16.msra.mxu0 0
      %2140 = vmatprep.mubr.bf16.mxu0 0
      %2141 = vmatmul.mubr.bf16.gmra.mxu0 %v2106
      %v2142 = vpop.f32.mrf.mxu0
      %v2143 = vadd.f32 0.0, %v2142
      %v2144 = vpop.f32.mrf.mxu0
      %v2145 = vpop.f32.mrf.mxu0
      %v2146 = vadd.f32 0.0, %v2145
      %v2147 = vpop.f32.mrf.mxu0
      %2148 = vdwg.mxu0
      %2149 = vrot.lane.b32.xlu0 %v574, 48
      %v2150 = vpop.permute.xlu0 %2149
      %v2153 = vsel %vm776, %v2007, 0
      %2155 = vmatprep.subr.bf16.mxu0 0
      %2156 = vmatpush1.bf16.msra.mxu0 0
      %2157 = vmatprep.subr.bf16.mxu0 0
      %2158 = vmatpush1.bf16.msra.mxu0 0
      %2159 = vmatprep.subr.bf16.mxu0 0
      %2160 = vmatpush1.bf16.msra.mxu0 0
      %2161 = vmatprep.subr.bf16.mxu0 0
      %2162 = vmatpush1.bf16.msra.mxu0 0
      %2163 = vmatprep.subr.bf16.mxu0 0
      %2164 = vmatpush1.bf16.msra.mxu0 0
      %2165 = vmatprep.subr.bf16.mxu0 0
      %2166 = vmatpush1.bf16.msra.mxu0 0
      %2167 = vmatprep.subr.bf16.mxu0 0
      %2168 = vmatpush1.bf16.msra.mxu0 0
      %2169 = vmatprep.subr.bf16.mxu0 0
      %2170 = vmatpush1.bf16.msra.mxu0 %v2150
      %2171 = vmatprep.subr.bf16.mxu0 0
      %2172 = vmatpush2.bf16.msra.mxu0 0
      %2173 = vmatprep.subr.bf16.mxu0 0
      %2174 = vmatpush2.bf16.msra.mxu0 0
      %2175 = vmatprep.subr.bf16.mxu0 0
      %2176 = vmatpush2.bf16.msra.mxu0 0
      %2177 = vmatprep.subr.bf16.mxu0 0
      %2178 = vmatpush2.bf16.msra.mxu0 0
      %2179 = vmatprep.subr.bf16.mxu0 0
      %2180 = vmatpush2.bf16.msra.mxu0 0
      %2181 = vmatprep.subr.bf16.mxu0 0
      %2182 = vmatpush2.bf16.msra.mxu0 0
      %2183 = vmatprep.subr.bf16.mxu0 0
      %2184 = vmatpush2.bf16.msra.mxu0 0
      %2185 = vmatprep.subr.bf16.mxu0 0
      %2186 = vmatpush2.bf16.msra.mxu0 0
      %2187 = vmatprep.mubr.bf16.mxu0 0
      %2188 = vmatmul.mubr.bf16.gmra.mxu0 %v2153
      %v2189 = vpop.f32.mrf.mxu0
      %v2190 = vadd.f32 0.0, %v2189
      %v2191 = vpop.f32.mrf.mxu0
      %v2192 = vpop.f32.mrf.mxu0
      %v2193 = vadd.f32 0.0, %v2192
      %v2194 = vpop.f32.mrf.mxu0
      %2195 = vdwg.mxu0
      %v2196 = vpack.c.bf16 %v2052, %v2049
      %v2197 = vpack.c.bf16 %v2099, %v2096
      %v2198 = vpack.c.bf16 %v2146, %v2143
      %v2199 = vpack.c.bf16 %v2193, %v2190
      %v2200 = vld [vmem:[%s5 + $0x8] sm:$0xf]
      %v2202 = vsel %vm578, %v2196, 0
      %v2205 = vsel %vm578, %v2197, 0
      %v2208 = vsel %vm578, %v2198, 0
      %v2211 = vsel %vm578, %v2199, 0
      %v2214 = vsel %vm1563, %v2200, 0
      %2216 = vmatprep.subr.bf16.mxu0 0
      %2217 = vmatpush1.bf16.msra.mxu0 0
      %2218 = vmatprep.subr.bf16.mxu0 0
      %2219 = vmatpush1.bf16.msra.mxu0 0
      %2220 = vmatprep.subr.bf16.mxu0 0
      %2221 = vmatpush1.bf16.msra.mxu0 0
      %2222 = vmatprep.subr.bf16.mxu0 0
      %2223 = vmatpush1.bf16.msra.mxu0 0
      %2224 = vmatprep.subr.bf16.mxu0 0
      %2225 = vmatpush1.bf16.msra.mxu0 0
      %2226 = vmatprep.subr.bf16.mxu0 0
      %2227 = vmatpush1.bf16.msra.mxu0 0
      %2228 = vmatprep.subr.bf16.mxu0 0
      %2229 = vmatpush1.bf16.msra.mxu0 0
      %2230 = vmatprep.subr.bf16.mxu0 0
      %2231 = vmatpush1.bf16.msra.mxu0 %v2214
      %2232 = vmatprep.subr.bf16.mxu0 0
      %2233 = vmatpush2.bf16.msra.mxu0 0
      %2234 = vmatprep.subr.bf16.mxu0 0
      %2235 = vmatpush2.bf16.msra.mxu0 0
      %2236 = vmatprep.subr.bf16.mxu0 0
      %2237 = vmatpush2.bf16.msra.mxu0 0
      %2238 = vmatprep.subr.bf16.mxu0 0
      %2239 = vmatpush2.bf16.msra.mxu0 0
      %2240 = vmatprep.subr.bf16.mxu0 0
      %2241 = vmatpush2.bf16.msra.mxu0 0
      %2242 = vmatprep.subr.bf16.mxu0 0
      %2243 = vmatpush2.bf16.msra.mxu0 0
      %2244 = vmatprep.subr.bf16.mxu0 0
      %2245 = vmatpush2.bf16.msra.mxu0 0
      %2246 = vmatprep.subr.bf16.mxu0 0
      %2247 = vmatpush2.bf16.msra.mxu0 0
      %2248 = vmatprep.mubr.bf16.mxu0 0
      %2249 = vmatmul.mubr.bf16.gmra.mxu0 %v2202
      %v2250 = vpop.f32.mrf.mxu0
      %v2251 = vadd.f32 0.0, %v2250
      %v2252 = vpop.f32.mrf.mxu0
      %v2253 = vpop.f32.mrf.mxu0
      %v2254 = vadd.f32 0.0, %v2253
      %v2255 = vpop.f32.mrf.mxu0
      %2256 = vmatprep.mubr.bf16.mxu0 0
      %2257 = vmatmul.mubr.bf16.gmra.mxu0 %v2205
      %v2258 = vpop.f32.mrf.mxu0
      %v2259 = vadd.f32 0.0, %v2258
      %v2260 = vpop.f32.mrf.mxu0
      %v2261 = vpop.f32.mrf.mxu0
      %v2262 = vadd.f32 0.0, %v2261
      %v2263 = vpop.f32.mrf.mxu0
      %2264 = vmatprep.mubr.bf16.mxu0 0
      %2265 = vmatmul.mubr.bf16.gmra.mxu0 %v2208
      %v2266 = vpop.f32.mrf.mxu0
      %v2267 = vadd.f32 0.0, %v2266
      %v2268 = vpop.f32.mrf.mxu0
      %v2269 = vpop.f32.mrf.mxu0
      %v2270 = vadd.f32 0.0, %v2269
      %v2271 = vpop.f32.mrf.mxu0
      %2272 = vmatprep.mubr.bf16.mxu0 0
      %2273 = vmatmul.mubr.bf16.gmra.mxu0 %v2211
      %v2274 = vpop.f32.mrf.mxu0
      %v2275 = vadd.f32 0.0, %v2274
      %v2276 = vpop.f32.mrf.mxu0
      %v2277 = vpop.f32.mrf.mxu0
      %v2278 = vadd.f32 0.0, %v2277
      %v2279 = vpop.f32.mrf.mxu0
      %2280 = vdwg.mxu0
      %v2281 = vadd.f32 %v1682, %v2251
      %v2282 = vadd.f32 %v1685, %v2254
      %v2283 = vadd.f32 %v1690, %v2259
      %v2284 = vadd.f32 %v1693, %v2262
      %v2285 = vadd.f32 %v1698, %v2267
      %v2286 = vadd.f32 %v1701, %v2270
      %v2287 = vadd.f32 %v1706, %v2275
      %v2288 = vadd.f32 %v1709, %v2278
      %2289 = vrot.lane.b32.xlu0 %v571, 104
      %v2290 = vpop.permute.xlu0 %2289
      %2291 = vrot.lane.b32.xlu0 %v571, 72
      %v2292 = vpop.permute.xlu0 %2291
      %v2294 = vsel %vm578, %v2290, 0
      %v2297 = vsel %vm578, %v2292, 0
      %2299 = vmatprep.subr.bf16.mxu0 0
      %2300 = vmatpush1.bf16.xpose.msra.mxu0 0
      %2301 = vmatprep.subr.bf16.mxu0 0
      %2302 = vmatpush1.bf16.xpose.msra.mxu0 0
      %2303 = vmatprep.subr.bf16.mxu0 0
      %2304 = vmatpush1.bf16.xpose.msra.mxu0 0
      %2305 = vmatprep.subr.bf16.mxu0 0
      %2306 = vmatpush1.bf16.xpose.msra.mxu0 0
      %2307 = vmatprep.subr.bf16.mxu0 0
      %2308 = vmatpush1.bf16.xpose.msra.mxu0 0
      %2309 = vmatprep.subr.bf16.mxu0 0
      %2310 = vmatpush1.bf16.xpose.msra.mxu0 0
      %2311 = vmatprep.subr.bf16.mxu0 0
      %2312 = vmatpush1.bf16.xpose.msra.mxu0 0
      %2313 = vmatprep.subr.bf16.mxu0 0
      %2314 = vmatpush1.bf16.xpose.msra.mxu0 %v2297
      %2315 = vmatprep.subr.bf16.mxu0 0
      %2316 = vmatpush2.bf16.xpose.msra.mxu0 0
      %2317 = vmatprep.subr.bf16.mxu0 0
      %2318 = vmatpush2.bf16.xpose.msra.mxu0 0
      %2319 = vmatprep.subr.bf16.mxu0 0
      %2320 = vmatpush2.bf16.xpose.msra.mxu0 0
      %2321 = vmatprep.subr.bf16.mxu0 0
      %2322 = vmatpush2.bf16.xpose.msra.mxu0 0
      %2323 = vmatprep.subr.bf16.mxu0 0
      %2324 = vmatpush2.bf16.xpose.msra.mxu0 0
      %2325 = vmatprep.subr.bf16.mxu0 0
      %2326 = vmatpush2.bf16.xpose.msra.mxu0 0
      %2327 = vmatprep.subr.bf16.mxu0 0
      %2328 = vmatpush2.bf16.xpose.msra.mxu0 0
      %2329 = vmatprep.subr.bf16.mxu0 0
      %2330 = vmatpush2.bf16.xpose.msra.mxu0 0
      %2331 = vmatprep.mubr.bf16.mxu0 0
      %2332 = vmatmul.mubr.bf16.gmra.mxu0 %v2294
      %v2333 = vpop.f32.mrf.mxu0
      %v2334 = vadd.f32 %v569, %v2333
      %v2335 = vpop.f32.mrf.mxu0
      %v2336 = vpop.f32.mrf.mxu0
      %v2337 = vadd.f32 %v570, %v2336
      %v2338 = vpop.f32.mrf.mxu0
      %2339 = vdwg.mxu0
      %2340 = vrot.lane.b32.xlu0 %v572, 104
      %v2341 = vpop.permute.xlu0 %2340
      %2342 = vrot.lane.b32.xlu0 %v572, 72
      %v2343 = vpop.permute.xlu0 %2342
      %v2345 = vsel %vm578, %v2341, 0
      %v2348 = vsel %vm578, %v2343, 0
      %2350 = vmatprep.subr.bf16.mxu0 0
      %2351 = vmatpush1.bf16.xpose.msra.mxu0 0
      %2352 = vmatprep.subr.bf16.mxu0 0
      %2353 = vmatpush1.bf16.xpose.msra.mxu0 0
      %2354 = vmatprep.subr.bf16.mxu0 0
      %2355 = vmatpush1.bf16.xpose.msra.mxu0 0
      %2356 = vmatprep.subr.bf16.mxu0 0
      %2357 = vmatpush1.bf16.xpose.msra.mxu0 0
      %2358 = vmatprep.subr.bf16.mxu0 0
      %2359 = vmatpush1.bf16.xpose.msra.mxu0 0
      %2360 = vmatprep.subr.bf16.mxu0 0
      %2361 = vmatpush1.bf16.xpose.msra.mxu0 0
      %2362 = vmatprep.subr.bf16.mxu0 0
      %2363 = vmatpush1.bf16.xpose.msra.mxu0 0
      %2364 = vmatprep.subr.bf16.mxu0 0
      %2365 = vmatpush1.bf16.xpose.msra.mxu0 %v2348
      %2366 = vmatprep.subr.bf16.mxu0 0
      %2367 = vmatpush2.bf16.xpose.msra.mxu0 0
      %2368 = vmatprep.subr.bf16.mxu0 0
      %2369 = vmatpush2.bf16.xpose.msra.mxu0 0
      %2370 = vmatprep.subr.bf16.mxu0 0
      %2371 = vmatpush2.bf16.xpose.msra.mxu0 0
      %2372 = vmatprep.subr.bf16.mxu0 0
      %2373 = vmatpush2.bf16.xpose.msra.mxu0 0
      %2374 = vmatprep.subr.bf16.mxu0 0
      %2375 = vmatpush2.bf16.xpose.msra.mxu0 0
      %2376 = vmatprep.subr.bf16.mxu0 0
      %2377 = vmatpush2.bf16.xpose.msra.mxu0 0
      %2378 = vmatprep.subr.bf16.mxu0 0
      %2379 = vmatpush2.bf16.xpose.msra.mxu0 0
      %2380 = vmatprep.subr.bf16.mxu0 0
      %2381 = vmatpush2.bf16.xpose.msra.mxu0 0
      %2382 = vmatprep.mubr.bf16.mxu0 0
      %2383 = vmatmul.mubr.bf16.gmra.mxu0 %v2345
      %v2384 = vpop.f32.mrf.mxu0
      %v2385 = vadd.f32 %v569, %v2384
      %v2386 = vpop.f32.mrf.mxu0
      %v2387 = vpop.f32.mrf.mxu0
      %v2388 = vadd.f32 %v570, %v2387
      %v2389 = vpop.f32.mrf.mxu0
      %2390 = vdwg.mxu0
      %2391 = vrot.lane.b32.xlu0 %v573, 104
      %v2392 = vpop.permute.xlu0 %2391
      %2393 = vrot.lane.b32.xlu0 %v573, 72
      %v2394 = vpop.permute.xlu0 %2393
      %v2396 = vsel %vm578, %v2392, 0
      %v2399 = vsel %vm578, %v2394, 0
      %2401 = vmatprep.subr.bf16.mxu0 0
      %2402 = vmatpush1.bf16.xpose.msra.mxu0 0
      %2403 = vmatprep.subr.bf16.mxu0 0
      %2404 = vmatpush1.bf16.xpose.msra.mxu0 0
      %2405 = vmatprep.subr.bf16.mxu0 0
      %2406 = vmatpush1.bf16.xpose.msra.mxu0 0
      %2407 = vmatprep.subr.bf16.mxu0 0
      %2408 = vmatpush1.bf16.xpose.msra.mxu0 0
      %2409 = vmatprep.subr.bf16.mxu0 0
      %2410 = vmatpush1.bf16.xpose.msra.mxu0 0
      %2411 = vmatprep.subr.bf16.mxu0 0
      %2412 = vmatpush1.bf16.xpose.msra.mxu0 0
      %2413 = vmatprep.subr.bf16.mxu0 0
      %2414 = vmatpush1.bf16.xpose.msra.mxu0 0
      %2415 = vmatprep.subr.bf16.mxu0 0
      %2416 = vmatpush1.bf16.xpose.msra.mxu0 %v2399
      %2417 = vmatprep.subr.bf16.mxu0 0
      %2418 = vmatpush2.bf16.xpose.msra.mxu0 0
      %2419 = vmatprep.subr.bf16.mxu0 0
      %2420 = vmatpush2.bf16.xpose.msra.mxu0 0
      %2421 = vmatprep.subr.bf16.mxu0 0
      %2422 = vmatpush2.bf16.xpose.msra.mxu0 0
      %2423 = vmatprep.subr.bf16.mxu0 0
      %2424 = vmatpush2.bf16.xpose.msra.mxu0 0
      %2425 = vmatprep.subr.bf16.mxu0 0
      %2426 = vmatpush2.bf16.xpose.msra.mxu0 0
      %2427 = vmatprep.subr.bf16.mxu0 0
      %2428 = vmatpush2.bf16.xpose.msra.mxu0 0
      %2429 = vmatprep.subr.bf16.mxu0 0
      %2430 = vmatpush2.bf16.xpose.msra.mxu0 0
      %2431 = vmatprep.subr.bf16.mxu0 0
      %2432 = vmatpush2.bf16.xpose.msra.mxu0 0
      %2433 = vmatprep.mubr.bf16.mxu0 0
      %2434 = vmatmul.mubr.bf16.gmra.mxu0 %v2396
      %v2435 = vpop.f32.mrf.mxu0
      %v2436 = vadd.f32 %v569, %v2435
      %v2437 = vpop.f32.mrf.mxu0
      %v2438 = vpop.f32.mrf.mxu0
      %v2439 = vadd.f32 %v570, %v2438
      %v2440 = vpop.f32.mrf.mxu0
      %2441 = vdwg.mxu0
      %2442 = vrot.lane.b32.xlu0 %v574, 104
      %v2443 = vpop.permute.xlu0 %2442
      %2444 = vrot.lane.b32.xlu0 %v574, 72
      %v2445 = vpop.permute.xlu0 %2444
      %v2447 = vsel %vm578, %v2443, 0
      %v2450 = vsel %vm578, %v2445, 0
      %2452 = vmatprep.subr.bf16.mxu0 0
      %2453 = vmatpush1.bf16.xpose.msra.mxu0 0
      %2454 = vmatprep.subr.bf16.mxu0 0
      %2455 = vmatpush1.bf16.xpose.msra.mxu0 0
      %2456 = vmatprep.subr.bf16.mxu0 0
      %2457 = vmatpush1.bf16.xpose.msra.mxu0 0
      %2458 = vmatprep.subr.bf16.mxu0 0
      %2459 = vmatpush1.bf16.xpose.msra.mxu0 0
      %2460 = vmatprep.subr.bf16.mxu0 0
      %2461 = vmatpush1.bf16.xpose.msra.mxu0 0
      %2462 = vmatprep.subr.bf16.mxu0 0
      %2463 = vmatpush1.bf16.xpose.msra.mxu0 0
      %2464 = vmatprep.subr.bf16.mxu0 0
      %2465 = vmatpush1.bf16.xpose.msra.mxu0 0
      %2466 = vmatprep.subr.bf16.mxu0 0
      %2467 = vmatpush1.bf16.xpose.msra.mxu0 %v2450
      %2468 = vmatprep.subr.bf16.mxu0 0
      %2469 = vmatpush2.bf16.xpose.msra.mxu0 0
      %2470 = vmatprep.subr.bf16.mxu0 0
      %2471 = vmatpush2.bf16.xpose.msra.mxu0 0
      %2472 = vmatprep.subr.bf16.mxu0 0
      %2473 = vmatpush2.bf16.xpose.msra.mxu0 0
      %2474 = vmatprep.subr.bf16.mxu0 0
      %2475 = vmatpush2.bf16.xpose.msra.mxu0 0
      %2476 = vmatprep.subr.bf16.mxu0 0
      %2477 = vmatpush2.bf16.xpose.msra.mxu0 0
      %2478 = vmatprep.subr.bf16.mxu0 0
      %2479 = vmatpush2.bf16.xpose.msra.mxu0 0
      %2480 = vmatprep.subr.bf16.mxu0 0
      %2481 = vmatpush2.bf16.xpose.msra.mxu0 0
      %2482 = vmatprep.subr.bf16.mxu0 0
      %2483 = vmatpush2.bf16.xpose.msra.mxu0 0
      %2484 = vmatprep.mubr.bf16.mxu0 0
      %2485 = vmatmul.mubr.bf16.gmra.mxu0 %v2447
      %v2486 = vpop.f32.mrf.mxu0
      %v2487 = vadd.f32 %v569, %v2486
      %v2488 = vpop.f32.mrf.mxu0
      %v2489 = vpop.f32.mrf.mxu0
      %v2490 = vadd.f32 %v570, %v2489
      %v2491 = vpop.f32.mrf.mxu0
      %2492 = vdwg.mxu0
      %v2493 = vsel %vm776, %v2334, -inf
      %2494 = vmax.xlane.f32.xlu0 %v2493
      %v2495 = vpop.xlane.xlu0 %2494
      %v2496 = vsel %vm776, %v2337, -inf
      %2497 = vmax.xlane.f32.xlu0 %v2496
      %v2498 = vpop.xlane.xlu0 %2497
      %v2499 = vsel %vm776, %v2385, -inf
      %2500 = vmax.xlane.f32.xlu0 %v2499
      %v2501 = vpop.xlane.xlu0 %2500
      %v2502 = vsel %vm776, %v2388, -inf
      %2503 = vmax.xlane.f32.xlu0 %v2502
      %v2504 = vpop.xlane.xlu0 %2503
      %v2505 = vsel %vm776, %v2436, -inf
      %2506 = vmax.xlane.f32.xlu0 %v2505
      %v2507 = vpop.xlane.xlu0 %2506
      %v2508 = vsel %vm776, %v2439, -inf
      %2509 = vmax.xlane.f32.xlu0 %v2508
      %v2510 = vpop.xlane.xlu0 %2509
      %v2511 = vsel %vm776, %v2487, -inf
      %2512 = vmax.xlane.f32.xlu0 %v2511
      %v2513 = vpop.xlane.xlu0 %2512
      %v2514 = vsel %vm776, %v2490, -inf
      %2515 = vmax.xlane.f32.xlu0 %v2514
      %v2516 = vpop.xlane.xlu0 %2515
      %v2517 = vsub.f32 %v2334, %v2495
      %v2518 = vsub.f32 %v2337, %v2498
      %v2519 = vsub.f32 %v2385, %v2501
      %v2520 = vsub.f32 %v2388, %v2504
      %v2521 = vsub.f32 %v2436, %v2507
      %v2522 = vsub.f32 %v2439, %v2510
      %v2523 = vsub.f32 %v2487, %v2513
      %v2524 = vsub.f32 %v2490, %v2516
      %v2525 = vmul.f32 %v2517, 1.442695
      %v2526 = vpow.pop %v2525
      %v2527 = vmul.f32 %v2518, 1.442695
      %v2528 = vpow.pop %v2527
      %v2529 = vmul.f32 %v2519, 1.442695
      %v2530 = vpow.pop %v2529
      %v2531 = vmul.f32 %v2520, 1.442695
      %v2532 = vpow.pop %v2531
      %v2533 = vmul.f32 %v2521, 1.442695
      %v2534 = vpow.pop %v2533
      %v2535 = vmul.f32 %v2522, 1.442695
      %v2536 = vpow.pop %v2535
      %v2537 = vmul.f32 %v2523, 1.442695
      %v2538 = vpow.pop %v2537
      %v2539 = vmul.f32 %v2524, 1.442695
      %v2540 = vpow.pop %v2539
      %v2541 = vsel %vm776, %v2526, 0.0
      %2542 = vadd.xlane.f32.xlu0 %v2541
      %v2543 = vpop.xlane.xlu0 %2542
      %v2544 = vsel %vm776, %v2528, 0.0
      %2545 = vadd.xlane.f32.xlu0 %v2544
      %v2546 = vpop.xlane.xlu0 %2545
      %v2547 = vsel %vm776, %v2530, 0.0
      %2548 = vadd.xlane.f32.xlu0 %v2547
      %v2549 = vpop.xlane.xlu0 %2548
      %v2550 = vsel %vm776, %v2532, 0.0
      %2551 = vadd.xlane.f32.xlu0 %v2550
      %v2552 = vpop.xlane.xlu0 %2551
      %v2553 = vsel %vm776, %v2534, 0.0
      %2554 = vadd.xlane.f32.xlu0 %v2553
      %v2555 = vpop.xlane.xlu0 %2554
      %v2556 = vsel %vm776, %v2536, 0.0
      %2557 = vadd.xlane.f32.xlu0 %v2556
      %v2558 = vpop.xlane.xlu0 %2557
      %v2559 = vsel %vm776, %v2538, 0.0
      %2560 = vadd.xlane.f32.xlu0 %v2559
      %v2561 = vpop.xlane.xlu0 %2560
      %v2562 = vsel %vm776, %v2540, 0.0
      %2563 = vadd.xlane.f32.xlu0 %v2562
      %v2564 = vpop.xlane.xlu0 %2563
      %v2565 = vrcp.pop %v2543
      %v2566 = vrcp.pop %v2546
      %v2567 = vrcp.pop %v2549
      %v2568 = vrcp.pop %v2552
      %v2569 = vrcp.pop %v2555
      %v2570 = vrcp.pop %v2558
      %v2571 = vrcp.pop %v2561
      %v2572 = vrcp.pop %v2564
      %v2573 = vmul.f32 %v2526, %v2565
      %v2574 = vmul.f32 %v2528, %v2566
      %v2575 = vmul.f32 %v2530, %v2567
      %v2576 = vmul.f32 %v2532, %v2568
      %v2577 = vmul.f32 %v2534, %v2569
      %v2578 = vmul.f32 %v2536, %v2570
      %v2579 = vmul.f32 %v2538, %v2571
      %v2580 = vmul.f32 %v2540, %v2572
      %v2581 = vpack.c.bf16 %v2574, %v2573
      %v2582 = vpack.c.bf16 %v2576, %v2575
      %v2583 = vpack.c.bf16 %v2578, %v2577
      %v2584 = vpack.c.bf16 %v2580, %v2579
      %2585 = vrot.lane.b32.xlu0 %v571, 40
      %v2586 = vpop.permute.xlu0 %2585
      %v2589 = vsel %vm776, %v2581, 0
      %2591 = vmatprep.subr.bf16.mxu0 0
      %2592 = vmatpush1.bf16.msra.mxu0 0
      %2593 = vmatprep.subr.bf16.mxu0 0
      %2594 = vmatpush1.bf16.msra.mxu0 0
      %2595 = vmatprep.subr.bf16.mxu0 0
      %2596 = vmatpush1.bf16.msra.mxu0 0
      %2597 = vmatprep.subr.bf16.mxu0 0
      %2598 = vmatpush1.bf16.msra.mxu0 0
      %2599 = vmatprep.subr.bf16.mxu0 0
      %2600 = vmatpush1.bf16.msra.mxu0 0
      %2601 = vmatprep.subr.bf16.mxu0 0
      %2602 = vmatpush1.bf16.msra.mxu0 0
      %2603 = vmatprep.subr.bf16.mxu0 0
      %2604 = vmatpush1.bf16.msra.mxu0 0
      %2605 = vmatprep.subr.bf16.mxu0 0
      %2606 = vmatpush1.bf16.msra.mxu0 %v2586
      %2607 = vmatprep.subr.bf16.mxu0 0
      %2608 = vmatpush2.bf16.msra.mxu0 0
      %2609 = vmatprep.subr.bf16.mxu0 0
      %2610 = vmatpush2.bf16.msra.mxu0 0
      %2611 = vmatprep.subr.bf16.mxu0 0
      %2612 = vmatpush2.bf16.msra.mxu0 0
      %2613 = vmatprep.subr.bf16.mxu0 0
      %2614 = vmatpush2.bf16.msra.mxu0 0
      %2615 = vmatprep.subr.bf16.mxu0 0
      %2616 = vmatpush2.bf16.msra.mxu0 0
      %2617 = vmatprep.subr.bf16.mxu0 0
      %2618 = vmatpush2.bf16.msra.mxu0 0
      %2619 = vmatprep.subr.bf16.mxu0 0
      %2620 = vmatpush2.bf16.msra.mxu0 0
      %2621 = vmatprep.subr.bf16.mxu0 0
      %2622 = vmatpush2.bf16.msra.mxu0 0
      %2623 = vmatprep.mubr.bf16.mxu0 0
      %2624 = vmatmul.mubr.bf16.gmra.mxu0 %v2589
      %v2625 = vpop.f32.mrf.mxu0
      %v2626 = vadd.f32 0.0, %v2625
      %v2627 = vpop.f32.mrf.mxu0
      %v2628 = vpop.f32.mrf.mxu0
      %v2629 = vadd.f32 0.0, %v2628
      %v2630 = vpop.f32.mrf.mxu0
      %2631 = vdwg.mxu0
      %2632 = vrot.lane.b32.xlu0 %v572, 40
      %v2633 = vpop.permute.xlu0 %2632
      %v2636 = vsel %vm776, %v2582, 0
      %2638 = vmatprep.subr.bf16.mxu0 0
      %2639 = vmatpush1.bf16.msra.mxu0 0
      %2640 = vmatprep.subr.bf16.mxu0 0
      %2641 = vmatpush1.bf16.msra.mxu0 0
      %2642 = vmatprep.subr.bf16.mxu0 0
      %2643 = vmatpush1.bf16.msra.mxu0 0
      %2644 = vmatprep.subr.bf16.mxu0 0
      %2645 = vmatpush1.bf16.msra.mxu0 0
      %2646 = vmatprep.subr.bf16.mxu0 0
      %2647 = vmatpush1.bf16.msra.mxu0 0
      %2648 = vmatprep.subr.bf16.mxu0 0
      %2649 = vmatpush1.bf16.msra.mxu0 0
      %2650 = vmatprep.subr.bf16.mxu0 0
      %2651 = vmatpush1.bf16.msra.mxu0 0
      %2652 = vmatprep.subr.bf16.mxu0 0
      %2653 = vmatpush1.bf16.msra.mxu0 %v2633
      %2654 = vmatprep.subr.bf16.mxu0 0
      %2655 = vmatpush2.bf16.msra.mxu0 0
      %2656 = vmatprep.subr.bf16.mxu0 0
      %2657 = vmatpush2.bf16.msra.mxu0 0
      %2658 = vmatprep.subr.bf16.mxu0 0
      %2659 = vmatpush2.bf16.msra.mxu0 0
      %2660 = vmatprep.subr.bf16.mxu0 0
      %2661 = vmatpush2.bf16.msra.mxu0 0
      %2662 = vmatprep.subr.bf16.mxu0 0
      %2663 = vmatpush2.bf16.msra.mxu0 0
      %2664 = vmatprep.subr.bf16.mxu0 0
      %2665 = vmatpush2.bf16.msra.mxu0 0
      %2666 = vmatprep.subr.bf16.mxu0 0
      %2667 = vmatpush2.bf16.msra.mxu0 0
      %2668 = vmatprep.subr.bf16.mxu0 0
      %2669 = vmatpush2.bf16.msra.mxu0 0
      %2670 = vmatprep.mubr.bf16.mxu0 0
      %2671 = vmatmul.mubr.bf16.gmra.mxu0 %v2636
      %v2672 = vpop.f32.mrf.mxu0
      %v2673 = vadd.f32 0.0, %v2672
      %v2674 = vpop.f32.mrf.mxu0
      %v2675 = vpop.f32.mrf.mxu0
      %v2676 = vadd.f32 0.0, %v2675
      %v2677 = vpop.f32.mrf.mxu0
      %2678 = vdwg.mxu0
      %2679 = vrot.lane.b32.xlu0 %v573, 40
      %v2680 = vpop.permute.xlu0 %2679
      %v2683 = vsel %vm776, %v2583, 0
      %2685 = vmatprep.subr.bf16.mxu0 0
      %2686 = vmatpush1.bf16.msra.mxu0 0
      %2687 = vmatprep.subr.bf16.mxu0 0
      %2688 = vmatpush1.bf16.msra.mxu0 0
      %2689 = vmatprep.subr.bf16.mxu0 0
      %2690 = vmatpush1.bf16.msra.mxu0 0
      %2691 = vmatprep.subr.bf16.mxu0 0
      %2692 = vmatpush1.bf16.msra.mxu0 0
      %2693 = vmatprep.subr.bf16.mxu0 0
      %2694 = vmatpush1.bf16.msra.mxu0 0
      %2695 = vmatprep.subr.bf16.mxu0 0
      %2696 = vmatpush1.bf16.msra.mxu0 0
      %2697 = vmatprep.subr.bf16.mxu0 0
      %2698 = vmatpush1.bf16.msra.mxu0 0
      %2699 = vmatprep.subr.bf16.mxu0 0
      %2700 = vmatpush1.bf16.msra.mxu0 %v2680
      %2701 = vmatprep.subr.bf16.mxu0 0
      %2702 = vmatpush2.bf16.msra.mxu0 0
      %2703 = vmatprep.subr.bf16.mxu0 0
      %2704 = vmatpush2.bf16.msra.mxu0 0
      %2705 = vmatprep.subr.bf16.mxu0 0
      %2706 = vmatpush2.bf16.msra.mxu0 0
      %2707 = vmatprep.subr.bf16.mxu0 0
      %2708 = vmatpush2.bf16.msra.mxu0 0
      %2709 = vmatprep.subr.bf16.mxu0 0
      %2710 = vmatpush2.bf16.msra.mxu0 0
      %2711 = vmatprep.subr.bf16.mxu0 0
      %2712 = vmatpush2.bf16.msra.mxu0 0
      %2713 = vmatprep.subr.bf16.mxu0 0
      %2714 = vmatpush2.bf16.msra.mxu0 0
      %2715 = vmatprep.subr.bf16.mxu0 0
      %2716 = vmatpush2.bf16.msra.mxu0 0
      %2717 = vmatprep.mubr.bf16.mxu0 0
      %2718 = vmatmul.mubr.bf16.gmra.mxu0 %v2683
      %v2719 = vpop.f32.mrf.mxu0
      %v2720 = vadd.f32 0.0, %v2719
      %v2721 = vpop.f32.mrf.mxu0
      %v2722 = vpop.f32.mrf.mxu0
      %v2723 = vadd.f32 0.0, %v2722
      %v2724 = vpop.f32.mrf.mxu0
      %2725 = vdwg.mxu0
      %2726 = vrot.lane.b32.xlu0 %v574, 40
      %v2727 = vpop.permute.xlu0 %2726
      %v2730 = vsel %vm776, %v2584, 0
      %2732 = vmatprep.subr.bf16.mxu0 0
      %2733 = vmatpush1.bf16.msra.mxu0 0
      %2734 = vmatprep.subr.bf16.mxu0 0
      %2735 = vmatpush1.bf16.msra.mxu0 0
      %2736 = vmatprep.subr.bf16.mxu0 0
      %2737 = vmatpush1.bf16.msra.mxu0 0
      %2738 = vmatprep.subr.bf16.mxu0 0
      %2739 = vmatpush1.bf16.msra.mxu0 0
      %2740 = vmatprep.subr.bf16.mxu0 0
      %2741 = vmatpush1.bf16.msra.mxu0 0
      %2742 = vmatprep.subr.bf16.mxu0 0
      %2743 = vmatpush1.bf16.msra.mxu0 0
      %2744 = vmatprep.subr.bf16.mxu0 0
      %2745 = vmatpush1.bf16.msra.mxu0 0
      %2746 = vmatprep.subr.bf16.mxu0 0
      %2747 = vmatpush1.bf16.msra.mxu0 %v2727
      %2748 = vmatprep.subr.bf16.mxu0 0
      %2749 = vmatpush2.bf16.msra.mxu0 0
      %2750 = vmatprep.subr.bf16.mxu0 0
      %2751 = vmatpush2.bf16.msra.mxu0 0
      %2752 = vmatprep.subr.bf16.mxu0 0
      %2753 = vmatpush2.bf16.msra.mxu0 0
      %2754 = vmatprep.subr.bf16.mxu0 0
      %2755 = vmatpush2.bf16.msra.mxu0 0
      %2756 = vmatprep.subr.bf16.mxu0 0
      %2757 = vmatpush2.bf16.msra.mxu0 0
      %2758 = vmatprep.subr.bf16.mxu0 0
      %2759 = vmatpush2.bf16.msra.mxu0 0
      %2760 = vmatprep.subr.bf16.mxu0 0
      %2761 = vmatpush2.bf16.msra.mxu0 0
      %2762 = vmatprep.subr.bf16.mxu0 0
      %2763 = vmatpush2.bf16.msra.mxu0 0
      %2764 = vmatprep.mubr.bf16.mxu0 0
      %2765 = vmatmul.mubr.bf16.gmra.mxu0 %v2730
      %v2766 = vpop.f32.mrf.mxu0
      %v2767 = vadd.f32 0.0, %v2766
      %v2768 = vpop.f32.mrf.mxu0
      %v2769 = vpop.f32.mrf.mxu0
      %v2770 = vadd.f32 0.0, %v2769
      %v2771 = vpop.f32.mrf.mxu0
      %2772 = vdwg.mxu0
      %v2773 = vpack.c.bf16 %v2629, %v2626
      %v2774 = vpack.c.bf16 %v2676, %v2673
      %v2775 = vpack.c.bf16 %v2723, %v2720
      %v2776 = vpack.c.bf16 %v2770, %v2767
      %v2777 = vld [vmem:[%s5 + $0xc] sm:$0xf]
      %v2779 = vsel %vm578, %v2773, 0
      %v2782 = vsel %vm578, %v2774, 0
      %v2785 = vsel %vm578, %v2775, 0
      %v2788 = vsel %vm578, %v2776, 0
      %v2791 = vsel %vm1563, %v2777, 0
      %2793 = vmatprep.subr.bf16.mxu0 0
      %2794 = vmatpush1.bf16.msra.mxu0 0
      %2795 = vmatprep.subr.bf16.mxu0 0
      %2796 = vmatpush1.bf16.msra.mxu0 0
      %2797 = vmatprep.subr.bf16.mxu0 0
      %2798 = vmatpush1.bf16.msra.mxu0 0
      %2799 = vmatprep.subr.bf16.mxu0 0
      %2800 = vmatpush1.bf16.msra.mxu0 0
      %2801 = vmatprep.subr.bf16.mxu0 0
      %2802 = vmatpush1.bf16.msra.mxu0 0
      %2803 = vmatprep.subr.bf16.mxu0 0
      %2804 = vmatpush1.bf16.msra.mxu0 0
      %2805 = vmatprep.subr.bf16.mxu0 0
      %2806 = vmatpush1.bf16.msra.mxu0 0
      %2807 = vmatprep.subr.bf16.mxu0 0
      %2808 = vmatpush1.bf16.msra.mxu0 %v2791
      %2809 = vmatprep.subr.bf16.mxu0 0
      %2810 = vmatpush2.bf16.msra.mxu0 0
      %2811 = vmatprep.subr.bf16.mxu0 0
      %2812 = vmatpush2.bf16.msra.mxu0 0
      %2813 = vmatprep.subr.bf16.mxu0 0
      %2814 = vmatpush2.bf16.msra.mxu0 0
      %2815 = vmatprep.subr.bf16.mxu0 0
      %2816 = vmatpush2.bf16.msra.mxu0 0
      %2817 = vmatprep.subr.bf16.mxu0 0
      %2818 = vmatpush2.bf16.msra.mxu0 0
      %2819 = vmatprep.subr.bf16.mxu0 0
      %2820 = vmatpush2.bf16.msra.mxu0 0
      %2821 = vmatprep.subr.bf16.mxu0 0
      %2822 = vmatpush2.bf16.msra.mxu0 0
      %2823 = vmatprep.subr.bf16.mxu0 0
      %2824 = vmatpush2.bf16.msra.mxu0 0
      %2825 = vmatprep.mubr.bf16.mxu0 0
      %2826 = vmatmul.mubr.bf16.gmra.mxu0 %v2779
      %v2827 = vpop.f32.mrf.mxu0
      %v2828 = vadd.f32 0.0, %v2827
      %v2829 = vpop.f32.mrf.mxu0
      %v2830 = vpop.f32.mrf.mxu0
      %v2831 = vadd.f32 0.0, %v2830
      %v2832 = vpop.f32.mrf.mxu0
      %2833 = vmatprep.mubr.bf16.mxu0 0
      %2834 = vmatmul.mubr.bf16.gmra.mxu0 %v2782
      %v2835 = vpop.f32.mrf.mxu0
      %v2836 = vadd.f32 0.0, %v2835
      %v2837 = vpop.f32.mrf.mxu0
      %v2838 = vpop.f32.mrf.mxu0
      %v2839 = vadd.f32 0.0, %v2838
      %v2840 = vpop.f32.mrf.mxu0
      %2841 = vmatprep.mubr.bf16.mxu0 0
      %2842 = vmatmul.mubr.bf16.gmra.mxu0 %v2785
      %v2843 = vpop.f32.mrf.mxu0
      %v2844 = vadd.f32 0.0, %v2843
      %v2845 = vpop.f32.mrf.mxu0
      %v2846 = vpop.f32.mrf.mxu0
      %v2847 = vadd.f32 0.0, %v2846
      %v2848 = vpop.f32.mrf.mxu0
      %2849 = vmatprep.mubr.bf16.mxu0 0
      %2850 = vmatmul.mubr.bf16.gmra.mxu0 %v2788
      %v2851 = vpop.f32.mrf.mxu0
      %v2852 = vadd.f32 0.0, %v2851
      %v2853 = vpop.f32.mrf.mxu0
      %v2854 = vpop.f32.mrf.mxu0
      %v2855 = vadd.f32 0.0, %v2854
      %v2856 = vpop.f32.mrf.mxu0
      %2857 = vdwg.mxu0
      %v2858 = vadd.f32 %v2281, %v2828
      %v2859 = vadd.f32 %v2282, %v2831
      %v2860 = vadd.f32 %v2283, %v2836
      %v2861 = vadd.f32 %v2284, %v2839
      %v2862 = vadd.f32 %v2285, %v2844
      %v2863 = vadd.f32 %v2286, %v2847
      %v2864 = vadd.f32 %v2287, %v2852
      %v2865 = vadd.f32 %v2288, %v2855
      %v2866 = vld [vmem:[%s6] sm:$0x1]
      %v2868 = vlaneseq
      %v2869 = vshrl.u32 %v2868, 7
      %v2870 = vsub.s32 0, %v2869
      %v2871 = vrot.slane %v2866, %v2870
      %v2873 = vadd.f32 %v2858, %v2871
      %v2874 = vadd.f32 %v2859, %v2871
      %v2875 = vadd.f32 %v2860, %v2871
      %v2876 = vadd.f32 %v2861, %v2871
      %v2877 = vadd.f32 %v2862, %v2871
      %v2878 = vadd.f32 %v2863, %v2871
      %v2879 = vadd.f32 %v2864, %v2871
      %v2880 = vadd.f32 %v2865, %v2871
      %2881 = vst.msk [vmem:[%s312] sm:$0xff] %vm325, %v2873
      %2882 = vst.msk [vmem:[%s312 + $0x8] sm:$0xff] %vm325, %v2874
      %2883 = vst.msk [vmem:[%s312 + $0x10] sm:$0xff] %vm325, %v2875
      %2884 = vst.msk [vmem:[%s312 + $0x18] sm:$0xff] %vm325, %v2876
      %2885 = vst.msk [vmem:[%s312 + $0x20] sm:$0xff] %vm325, %v2877
      %2886 = vst.msk [vmem:[%s312 + $0x28] sm:$0xff] %vm325, %v2878
      %2887 = vst.msk [vmem:[%s312 + $0x30] sm:$0xff] %vm325, %v2879
      %2888 = vst.msk [vmem:[%s312 + $0x38] sm:$0xff] %vm325, %v2880
      %s2889 = smul.u32 4, %s19
      %p2890 = scmp.lt.s32.totalorder %s2889, 7
      %s2891 = scalar_select %p2890, %s2889, 7
      %s2892 = smul.addr %s2891, 2
      %s2893 = smul.addr %s2892, 8
      %s2894 = scalar_lea.vmem %s8, %s2893
      // Predicated region
      $region53: #{basic_layer_forward.4} parent=51 // pred_check
        %p2895 = pneg %p210
      $region54: #{basic_layer_forward.4} parent=51 // pred_check_branch
        %2897 = sbr.rel (%p2895) target = $region56
      $region55: #{basic_layer_forward.4} parent=51 // pred_region
        %s2898 = smul.u32 4, %s19
      $region56: #{basic_layer_forward.4} parent=51 // pred_fallthru
        _
    $region52: #{basic_layer_forward.4} parent=5 // pred_fallthru
      _
    %p2899 = scmp.le.s32.totalorder 2, %s14
    // Predicated region
    $region57: #{basic_layer_forward.4} parent=5 // pred_check
      %p2900 = pneg %p2899
    $region58: #{basic_layer_forward.4} parent=5 // pred_check_branch
      %2902 = sbr.rel (%p2900) target = $region60
    $region59: #{basic_layer_forward.4} parent=5 // pred_region
      %s2903 = ssub.s32 %s14, 2
      // Predicated region
      $region61: #{basic_layer_forward.4} parent=59 // pred_check
        %p2904 = pneg %p216
      $region62: #{basic_layer_forward.4} parent=59 // pred_check_branch
        %2906 = sbr.rel (%p2904) target = $region64
      $region63: #{basic_layer_forward.4} parent=59 // pred_region
        %s2907 = smul.u32 4, %s20
        %p2908 = scmp.lt.s32.totalorder %s2907, 7
        %s2909 = scalar_select %p2908, %s2907, 7
        %s2910 = smul.addr %s2909, 2
        %s2911 = smul.addr %s2910, 8
        %s2912 = scalar_lea.vmem %s8, %s2911
      $region64: #{basic_layer_forward.4} parent=59 // pred_fallthru
        _
    $region60: #{basic_layer_forward.4} parent=5 // pred_fallthru
      _
  $region6: #{basic_layer_forward.4} parent=0 // loop_footer
    %s18 = sadd.s32 1, %s14
  $region7: #{basic_layer_forward.4} parent=0 // loop_footer_branch
    %13 = sbr.rel target = $region3
  $region8: #{basic_layer_forward.4} parent=0 // loop_exit
    _

// kernel: basic_layer_forward.6
$region0: #{basic_layer_forward.6}
  #allocation0 [shape = 'u32[]', space=smem, size = 0x4, offset = 0x4, fixed_abs, tag = 'smem constant byte address 0x4 - core index']
  #allocation1 [shape = 'u32[144,128]{1,0:T(1,128)}', space=vmem, size = 0x12000, scoped, tag = 'internal scratch']
  %s0 = inlined_call_operand.vmem [shape: f32[8,16,32], index: 0, kind: input, shape index: {}]
  %s1 = inlined_call_operand.vmem [shape: f32[1,32], index: 1, kind: input, shape index: {}]
  %s2 = inlined_call_operand.vmem [shape: f32[1,32], index: 2, kind: input, shape index: {}]
  %s3 = inlined_call_operand.vmem [shape: bf16[32,96], index: 3, kind: input, shape index: {}]
  %s4 = inlined_call_operand.vmem [shape: f32[1,96], index: 4, kind: input, shape index: {}]
  %s5 = inlined_call_operand.vmem [shape: bf16[32,32], index: 5, kind: input, shape index: {}]
  %s6 = inlined_call_operand.vmem [shape: f32[1,32], index: 6, kind: input, shape index: {}]
  %s7 = inlined_call_operand.vmem [shape: f32[4,16,16], index: 7, kind: input, shape index: {}]
  %s8 = inlined_call_operand.vmem [shape: f32[4,16,16], index: 8, kind: input, shape index: {}]
  %s9 = inlined_call_operand.vmem [shape: f32[8,16,32], index: 9, kind: output, shape index: {}]
  %s10 = sld [smem:[#allocation0]]
  $region69: #{basic_layer_forward.6} parent=0
    _
  %s12 = ssub.s32 1, %s10
  %s13 = scalar_select 0, %s12, %s10
  loop: start=0, step=1, limit=4
  $region2: #{basic_layer_forward.6} parent=0 // loop_pre_header
    _
  $region3: #{basic_layer_forward.6} parent=0 // loop_header
    %s15 = sphi 0, %s19
    %p16 = scmp.ge.s32.totalorder %s15, 4
    %s25 = sphi 0, %s27
    %s28 = sphi 0, %s25
    %s29 = sphi 0, %s28
    %s45 = sphi 0, %s29
    %s49 = sphi 0, %s49
    %s51 = sphi 0, %s49
    %s52 = sphi 0, %s51
    %s66 = sphi 0, %s52
    %s70 = sphi 0, %s70
    %s72 = sphi 0, %s70
    %s73 = sphi 0, %s72
    %s87 = sphi 0, %s73
    %s91 = sphi 0, %s91
    %s93 = sphi 0, %s91
    %s94 = sphi 0, %s93
    %s108 = sphi 0, %s94
    %s112 = sphi 0, %s112
    %s114 = sphi 0, %s112
    %s115 = sphi 0, %s114
    %s129 = sphi 0, %s115
    %s133 = sphi 0, %s133
    %s135 = sphi 0, %s133
    %s136 = sphi 0, %s135
    %s150 = sphi 0, %s136
    %s154 = sphi 0, %s154
    %s156 = sphi 0, %s154
    %s157 = sphi 0, %s156
    %s171 = sphi 0, %s157
    %s175 = sphi 0, %s175
    %s177 = sphi 0, %s175
    %s178 = sphi 0, %s177
    %s192 = sphi 0, %s178
    %s196 = sphi 0, %s196
    %s198 = sphi 0, %s196
    %s199 = sphi 0, %s198
    %s213 = sphi 0, %s199
    %s219 = sphi 0, %s221
    %s222 = sphi 0, %s219
    %s223 = sphi 0, %s222
    %s239 = sphi 0, %s223
  $region4: #{basic_layer_forward.6} parent=0 // loop_header_branch
    %18 = sbr.rel (%p16) target = $region8
  $region5: #{basic_layer_forward.6} parent=0 // loop_body
    %s20 = ssub.s32 %s15, 1
    %s21 = ssub.s32 %s15, 2
    %s22 = sadd.s32 %s15, 1
    %s23 = ssub.s32 %s15, %s22
    %p24 = scmp.eq.s32.totalorder %s23, 0
    %s26 = sadd.s32 %s25, 1
    %s27 = scalar_select %p24, %s25, %s26
    %p30 = pneg %p24
    %p31 = scmp.eq.s32.totalorder %s15, 1
    %p32 = por %p30, %p31
    %p33 = scmp.ne.s32.totalorder %s25, %s28
    %p34 = scmp.eq.s32.totalorder %s15, 0
    %p35 = por %p33, %p34
    %p36 = scmp.ne.s32.totalorder %s25, %s28
    %p37 = scmp.eq.s32.totalorder %s20, 1
    %p38 = por %p36, %p37
    %p39 = scmp.ne.s32.totalorder %s28, %s29
    %p40 = scmp.eq.s32.totalorder %s20, 0
    %p41 = por %p39, %p40
    %p42 = scmp.ne.s32.totalorder %s28, %s29
    %p43 = scmp.eq.s32.totalorder %s21, 1
    %p44 = por %p42, %p43
    %p46 = scmp.ne.s32.totalorder %s29, %s45
    %p47 = scmp.eq.s32.totalorder %s21, 0
    %p48 = por %p46, %p47
    %s50 = sadd.s32 %s49, 1
    %p53 = scmp.eq.s32.totalorder %s15, 1
    %p54 = scmp.ne.s32.totalorder %s49, %s51
    %p55 = scmp.eq.s32.totalorder %s15, 0
    %p56 = por %p54, %p55
    %p57 = scmp.ne.s32.totalorder %s49, %s51
    %p58 = scmp.eq.s32.totalorder %s20, 1
    %p59 = por %p57, %p58
    %p60 = scmp.ne.s32.totalorder %s51, %s52
    %p61 = scmp.eq.s32.totalorder %s20, 0
    %p62 = por %p60, %p61
    %p63 = scmp.ne.s32.totalorder %s51, %s52
    %p64 = scmp.eq.s32.totalorder %s21, 1
    %p65 = por %p63, %p64
    %p67 = scmp.ne.s32.totalorder %s52, %s66
    %p68 = scmp.eq.s32.totalorder %s21, 0
    %p69 = por %p67, %p68
    %s71 = sadd.s32 %s70, 1
    %p74 = scmp.eq.s32.totalorder %s15, 1
    %p75 = scmp.ne.s32.totalorder %s70, %s72
    %p76 = scmp.eq.s32.totalorder %s15, 0
    %p77 = por %p75, %p76
    %p78 = scmp.ne.s32.totalorder %s70, %s72
    %p79 = scmp.eq.s32.totalorder %s20, 1
    %p80 = por %p78, %p79
    %p81 = scmp.ne.s32.totalorder %s72, %s73
    %p82 = scmp.eq.s32.totalorder %s20, 0
    %p83 = por %p81, %p82
    %p84 = scmp.ne.s32.totalorder %s72, %s73
    %p85 = scmp.eq.s32.totalorder %s21, 1
    %p86 = por %p84, %p85
    %p88 = scmp.ne.s32.totalorder %s73, %s87
    %p89 = scmp.eq.s32.totalorder %s21, 0
    %p90 = por %p88, %p89
    %s92 = sadd.s32 %s91, 1
    %p95 = scmp.eq.s32.totalorder %s15, 1
    %p96 = scmp.ne.s32.totalorder %s91, %s93
    %p97 = scmp.eq.s32.totalorder %s15, 0
    %p98 = por %p96, %p97
    %p99 = scmp.ne.s32.totalorder %s91, %s93
    %p100 = scmp.eq.s32.totalorder %s20, 1
    %p101 = por %p99, %p100
    %p102 = scmp.ne.s32.totalorder %s93, %s94
    %p103 = scmp.eq.s32.totalorder %s20, 0
    %p104 = por %p102, %p103
    %p105 = scmp.ne.s32.totalorder %s93, %s94
    %p106 = scmp.eq.s32.totalorder %s21, 1
    %p107 = por %p105, %p106
    %p109 = scmp.ne.s32.totalorder %s94, %s108
    %p110 = scmp.eq.s32.totalorder %s21, 0
    %p111 = por %p109, %p110
    %s113 = sadd.s32 %s112, 1
    %p116 = scmp.eq.s32.totalorder %s15, 1
    %p117 = scmp.ne.s32.totalorder %s112, %s114
    %p118 = scmp.eq.s32.totalorder %s15, 0
    %p119 = por %p117, %p118
    %p120 = scmp.ne.s32.totalorder %s112, %s114
    %p121 = scmp.eq.s32.totalorder %s20, 1
    %p122 = por %p120, %p121
    %p123 = scmp.ne.s32.totalorder %s114, %s115
    %p124 = scmp.eq.s32.totalorder %s20, 0
    %p125 = por %p123, %p124
    %p126 = scmp.ne.s32.totalorder %s114, %s115
    %p127 = scmp.eq.s32.totalorder %s21, 1
    %p128 = por %p126, %p127
    %p130 = scmp.ne.s32.totalorder %s115, %s129
    %p131 = scmp.eq.s32.totalorder %s21, 0
    %p132 = por %p130, %p131
    %s134 = sadd.s32 %s133, 1
    %p137 = scmp.eq.s32.totalorder %s15, 1
    %p138 = scmp.ne.s32.totalorder %s133, %s135
    %p139 = scmp.eq.s32.totalorder %s15, 0
    %p140 = por %p138, %p139
    %p141 = scmp.ne.s32.totalorder %s133, %s135
    %p142 = scmp.eq.s32.totalorder %s20, 1
    %p143 = por %p141, %p142
    %p144 = scmp.ne.s32.totalorder %s135, %s136
    %p145 = scmp.eq.s32.totalorder %s20, 0
    %p146 = por %p144, %p145
    %p147 = scmp.ne.s32.totalorder %s135, %s136
    %p148 = scmp.eq.s32.totalorder %s21, 1
    %p149 = por %p147, %p148
    %p151 = scmp.ne.s32.totalorder %s136, %s150
    %p152 = scmp.eq.s32.totalorder %s21, 0
    %p153 = por %p151, %p152
    %s155 = sadd.s32 %s154, 1
    %p158 = scmp.eq.s32.totalorder %s15, 1
    %p159 = scmp.ne.s32.totalorder %s154, %s156
    %p160 = scmp.eq.s32.totalorder %s15, 0
    %p161 = por %p159, %p160
    %p162 = scmp.ne.s32.totalorder %s154, %s156
    %p163 = scmp.eq.s32.totalorder %s20, 1
    %p164 = por %p162, %p163
    %p165 = scmp.ne.s32.totalorder %s156, %s157
    %p166 = scmp.eq.s32.totalorder %s20, 0
    %p167 = por %p165, %p166
    %p168 = scmp.ne.s32.totalorder %s156, %s157
    %p169 = scmp.eq.s32.totalorder %s21, 1
    %p170 = por %p168, %p169
    %p172 = scmp.ne.s32.totalorder %s157, %s171
    %p173 = scmp.eq.s32.totalorder %s21, 0
    %p174 = por %p172, %p173
    %s176 = sadd.s32 %s175, 1
    %p179 = scmp.eq.s32.totalorder %s15, 1
    %p180 = scmp.ne.s32.totalorder %s175, %s177
    %p181 = scmp.eq.s32.totalorder %s15, 0
    %p182 = por %p180, %p181
    %p183 = scmp.ne.s32.totalorder %s175, %s177
    %p184 = scmp.eq.s32.totalorder %s20, 1
    %p185 = por %p183, %p184
    %p186 = scmp.ne.s32.totalorder %s177, %s178
    %p187 = scmp.eq.s32.totalorder %s20, 0
    %p188 = por %p186, %p187
    %p189 = scmp.ne.s32.totalorder %s177, %s178
    %p190 = scmp.eq.s32.totalorder %s21, 1
    %p191 = por %p189, %p190
    %p193 = scmp.ne.s32.totalorder %s178, %s192
    %p194 = scmp.eq.s32.totalorder %s21, 0
    %p195 = por %p193, %p194
    %s197 = sadd.s32 %s196, 1
    %p200 = scmp.eq.s32.totalorder %s15, 1
    %p201 = scmp.ne.s32.totalorder %s196, %s198
    %p202 = scmp.eq.s32.totalorder %s15, 0
    %p203 = por %p201, %p202
    %p204 = scmp.ne.s32.totalorder %s196, %s198
    %p205 = scmp.eq.s32.totalorder %s20, 1
    %p206 = por %p204, %p205
    %p207 = scmp.ne.s32.totalorder %s198, %s199
    %p208 = scmp.eq.s32.totalorder %s20, 0
    %p209 = por %p207, %p208
    %p210 = scmp.ne.s32.totalorder %s198, %s199
    %p211 = scmp.eq.s32.totalorder %s21, 1
    %p212 = por %p210, %p211
    %p214 = scmp.ne.s32.totalorder %s199, %s213
    %p215 = scmp.eq.s32.totalorder %s21, 0
    %p216 = por %p214, %p215
    %s217 = ssub.s32 %s15, %s22
    %p218 = scmp.eq.s32.totalorder %s217, 0
    %s220 = sadd.s32 %s219, 1
    %s221 = scalar_select %p218, %s219, %s220
    %p224 = pneg %p218
    %p225 = scmp.eq.s32.totalorder %s15, 1
    %p226 = por %p224, %p225
    %p227 = scmp.ne.s32.totalorder %s219, %s222
    %p228 = scmp.eq.s32.totalorder %s15, 0
    %p229 = por %p227, %p228
    %p230 = scmp.ne.s32.totalorder %s219, %s222
    %p231 = scmp.eq.s32.totalorder %s20, 1
    %p232 = por %p230, %p231
    %p233 = scmp.ne.s32.totalorder %s222, %s223
    %p234 = scmp.eq.s32.totalorder %s20, 0
    %p235 = por %p233, %p234
    %p236 = scmp.ne.s32.totalorder %s222, %s223
    %p237 = scmp.eq.s32.totalorder %s21, 1
    %p238 = por %p236, %p237
    %p240 = scmp.ne.s32.totalorder %s223, %s239
    %p241 = scmp.eq.s32.totalorder %s21, 0
    %p242 = por %p240, %p241
    %p243 = scmp.le.s32.totalorder 1, %s15
    %p244 = scmp.lt.s32.totalorder %s15, 3
    %p245 = pnand %p243, %p244
    %p246 = pneg %p245
    // Predicated region
    $region9: #{basic_layer_forward.6} parent=5 // pred_check
      _
    $region10: #{basic_layer_forward.6} parent=5 // pred_check_branch
      %248 = sbr.rel (%p245) target = $region12
    $region11: #{basic_layer_forward.6} parent=5 // pred_region
      %s249 = ssub.s32 %s15, 1
      // Predicated region
      $region13: #{basic_layer_forward.6} parent=11 // pred_check
        %p250 = pneg %p62
      $region14: #{basic_layer_forward.6} parent=11 // pred_check_branch
        %252 = sbr.rel (%p250) target = $region16
      $region15: #{basic_layer_forward.6} parent=11 // pred_region
        _
      $region16: #{basic_layer_forward.6} parent=11 // pred_fallthru
        _
      // Predicated region
      $region17: #{basic_layer_forward.6} parent=11 // pred_check
        %p253 = pneg %p83
      $region18: #{basic_layer_forward.6} parent=11 // pred_check_branch
        %255 = sbr.rel (%p253) target = $region20
      $region19: #{basic_layer_forward.6} parent=11 // pred_region
        _
      $region20: #{basic_layer_forward.6} parent=11 // pred_fallthru
        _
      // Predicated region
      $region21: #{basic_layer_forward.6} parent=11 // pred_check
        %p256 = pneg %p104
      $region22: #{basic_layer_forward.6} parent=11 // pred_check_branch
        %258 = sbr.rel (%p256) target = $region24
      $region23: #{basic_layer_forward.6} parent=11 // pred_region
        _
      $region24: #{basic_layer_forward.6} parent=11 // pred_fallthru
        _
      // Predicated region
      $region25: #{basic_layer_forward.6} parent=11 // pred_check
        %p259 = pneg %p125
      $region26: #{basic_layer_forward.6} parent=11 // pred_check_branch
        %261 = sbr.rel (%p259) target = $region28
      $region27: #{basic_layer_forward.6} parent=11 // pred_region
        _
      $region28: #{basic_layer_forward.6} parent=11 // pred_fallthru
        _
      // Predicated region
      $region29: #{basic_layer_forward.6} parent=11 // pred_check
        %p262 = pneg %p146
      $region30: #{basic_layer_forward.6} parent=11 // pred_check_branch
        %264 = sbr.rel (%p262) target = $region32
      $region31: #{basic_layer_forward.6} parent=11 // pred_region
        _
      $region32: #{basic_layer_forward.6} parent=11 // pred_fallthru
        _
      // Predicated region
      $region33: #{basic_layer_forward.6} parent=11 // pred_check
        %p265 = pneg %p167
      $region34: #{basic_layer_forward.6} parent=11 // pred_check_branch
        %267 = sbr.rel (%p265) target = $region36
      $region35: #{basic_layer_forward.6} parent=11 // pred_region
        _
      $region36: #{basic_layer_forward.6} parent=11 // pred_fallthru
        _
      // Predicated region
      $region37: #{basic_layer_forward.6} parent=11 // pred_check
        %p268 = pneg %p188
      $region38: #{basic_layer_forward.6} parent=11 // pred_check_branch
        %270 = sbr.rel (%p268) target = $region40
      $region39: #{basic_layer_forward.6} parent=11 // pred_region
        _
      $region40: #{basic_layer_forward.6} parent=11 // pred_fallthru
        _
      // Predicated region
      $region41: #{basic_layer_forward.6} parent=11 // pred_check
        %p271 = pneg %p209
      $region42: #{basic_layer_forward.6} parent=11 // pred_check_branch
        %273 = sbr.rel (%p271) target = $region44
      $region43: #{basic_layer_forward.6} parent=11 // pred_region
        _
      $region44: #{basic_layer_forward.6} parent=11 // pred_fallthru
        _
    $region12: #{basic_layer_forward.6} parent=5 // pred_fallthru
      _
    %p274 = scmp.lt.s32.totalorder %s15, 2
    // Predicated region
    $region45: #{basic_layer_forward.6} parent=5 // pred_check
      %p275 = pneg %p274
    $region46: #{basic_layer_forward.6} parent=5 // pred_check_branch
      %277 = sbr.rel (%p275) target = $region48
    $region47: #{basic_layer_forward.6} parent=5 // pred_region
      // Predicated region
      $region49: #{basic_layer_forward.6} parent=47 // pred_check
        %p278 = pneg %p35
      $region50: #{basic_layer_forward.6} parent=47 // pred_check_branch
        %280 = sbr.rel (%p278) target = $region52
      $region51: #{basic_layer_forward.6} parent=47 // pred_region
        %s281 = smul.u32 4, %s15
        %p282 = scmp.lt.s32.totalorder %s281, 7
        %s283 = scalar_select %p282, %s281, 7
        %s284 = smul.addr %s283, 2
        %s285 = smul.addr %s284, 8
        %s286 = scalar_lea.vmem %s0, %s285
        %s287 = smul.u32 4, %s15
      $region52: #{basic_layer_forward.6} parent=47 // pred_fallthru
        _
    $region48: #{basic_layer_forward.6} parent=5 // pred_fallthru
      _
    %p288 = scmp.le.s32.totalorder 1, %s15
    %p289 = scmp.lt.s32.totalorder %s15, 3
    %p290 = pnand %p288, %p289
    %p291 = pneg %p290
    // Predicated region
    $region53: #{basic_layer_forward.6} parent=5 // pred_check
      _
    $region54: #{basic_layer_forward.6} parent=5 // pred_check_branch
      %293 = sbr.rel (%p290) target = $region56
    $region55: #{basic_layer_forward.6} parent=5 // pred_region
      %s294 = ssub.s32 %s15, 1
      %s295 = smul.u32 4, %s20
      %p296 = scmp.lt.s32.totalorder %s295, 7
      %s297 = scalar_select %p296, %s295, 7
      %s298 = smul.addr %s297, 2
      %s299 = smul.addr %s298, 8
      %s300 = scalar_lea.vmem %s0, %s299
      %p301 = pneg %p41
      %p302 = pneg %p38
      %p303 = pneg %p62
      %p304 = pneg %p59
      %p305 = pneg %p83
      %p306 = pneg %p80
      %p307 = pneg %p104
      %p308 = pneg %p101
      %p309 = pneg %p125
      %p310 = pneg %p122
      %p311 = pneg %p146
      %p312 = pneg %p143
      %p313 = pneg %p167
      %p314 = pneg %p164
      %p315 = pneg %p188
      %p316 = pneg %p185
      %p317 = pneg %p209
      %p318 = pneg %p206
      %p319 = pneg %p235
      %p320 = pneg %p232
      %s321 = smul.u32 4, %s20
      %p322 = scmp.lt.s32.totalorder %s321, 7
      %s323 = scalar_select %p322, %s321, 7
      %s324 = smul.addr %s323, 2
      %s325 = smul.addr %s324, 8
      %s326 = scalar_lea.vmem %s9, %s325
      %s327 = smul.u32 4, %s20
      %p328 = scmp.lt.s32.totalorder %s327, 7
      %s329 = scalar_select %p328, %s327, 7
      %s330 = smul.addr %s329, 2
      %s331 = smul.addr %s330, 8
      %s332 = scalar_lea.vmem %s0, %s331
      %s333 = smul.u32 4, %s20
      %s334 = smul.u32 4, %s20
      %p335 = scmp.lt.s32.totalorder %s334, 7
      %s336 = scalar_select %p335, %s334, 7
      %s337 = smul.addr %s336, 2
      %s338 = smul.addr %s337, 8
      %s339 = scalar_lea.vmem %s9, %s338
      %s340 = smul.u32 4, %s20
      %v342 = vld [vmem:[%s332] sm:$0xff]
      %v343 = vld [vmem:[%s332 + $0x8] sm:$0xff]
      %v344 = vld [vmem:[%s332 + $0x10] sm:$0xff]
      %v345 = vld [vmem:[%s332 + $0x18] sm:$0xff]
      %v346 = vld [vmem:[%s332 + $0x20] sm:$0xff]
      %v347 = vld [vmem:[%s332 + $0x28] sm:$0xff]
      %v348 = vld [vmem:[%s332 + $0x30] sm:$0xff]
      %v349 = vld [vmem:[%s332 + $0x38] sm:$0xff]
      %v350 = vld [vmem:[%s1] sm:$0x1]
      %v351 = vld [vmem:[%s2] sm:$0x1]
      %vm352 = vcmask 261120
      %v353 = vsel %vm352, %v342, 0.0
      %354 = vadd.xlane.f32.xlu0 %v353
      %v355 = vpop.xlane.xlu0 %354
      %v356 = vsel %vm352, %v343, 0.0
      %357 = vadd.xlane.f32.xlu0 %v356
      %v358 = vpop.xlane.xlu0 %357
      %v359 = vsel %vm352, %v344, 0.0
      %360 = vadd.xlane.f32.xlu0 %v359
      %v361 = vpop.xlane.xlu0 %360
      %v362 = vsel %vm352, %v345, 0.0
      %363 = vadd.xlane.f32.xlu0 %v362
      %v364 = vpop.xlane.xlu0 %363
      %v365 = vsel %vm352, %v346, 0.0
      %366 = vadd.xlane.f32.xlu0 %v365
      %v367 = vpop.xlane.xlu0 %366
      %v368 = vsel %vm352, %v347, 0.0
      %369 = vadd.xlane.f32.xlu0 %v368
      %v370 = vpop.xlane.xlu0 %369
      %v371 = vsel %vm352, %v348, 0.0
      %372 = vadd.xlane.f32.xlu0 %v371
      %v373 = vpop.xlane.xlu0 %372
      %v374 = vsel %vm352, %v349, 0.0
      %375 = vadd.xlane.f32.xlu0 %v374
      %v376 = vpop.xlane.xlu0 %375
      %v377 = vrcp.pop 32.0
      %v378 = vmul.f32 %v355, %v377
      %v379 = vmul.f32 %v358, %v377
      %v380 = vmul.f32 %v361, %v377
      %v381 = vmul.f32 %v364, %v377
      %v382 = vmul.f32 %v367, %v377
      %v383 = vmul.f32 %v370, %v377
      %v384 = vmul.f32 %v373, %v377
      %v385 = vmul.f32 %v376, %v377
      %v386 = vsub.f32 %v342, %v378
      %v387 = vsub.f32 %v343, %v379
      %v388 = vsub.f32 %v344, %v380
      %v389 = vsub.f32 %v345, %v381
      %v390 = vsub.f32 %v346, %v382
      %v391 = vsub.f32 %v347, %v383
      %v392 = vsub.f32 %v348, %v384
      %v393 = vsub.f32 %v349, %v385
      %v394 = vmul.f32 %v386, %v386
      %v395 = vmul.f32 %v387, %v387
      %v396 = vmul.f32 %v388, %v388
      %v397 = vmul.f32 %v389, %v389
      %v398 = vmul.f32 %v390, %v390
      %v399 = vmul.f32 %v391, %v391
      %v400 = vmul.f32 %v392, %v392
      %v401 = vmul.f32 %v393, %v393
      %v402 = vsel %vm352, %v394, 0.0
      %403 = vadd.xlane.f32.xlu0 %v402
      %v404 = vpop.xlane.xlu0 %403
      %v405 = vsel %vm352, %v395, 0.0
      %406 = vadd.xlane.f32.xlu0 %v405
      %v407 = vpop.xlane.xlu0 %406
      %v408 = vsel %vm352, %v396, 0.0
      %409 = vadd.xlane.f32.xlu0 %v408
      %v410 = vpop.xlane.xlu0 %409
      %v411 = vsel %vm352, %v397, 0.0
      %412 = vadd.xlane.f32.xlu0 %v411
      %v413 = vpop.xlane.xlu0 %412
      %v414 = vsel %vm352, %v398, 0.0
      %415 = vadd.xlane.f32.xlu0 %v414
      %v416 = vpop.xlane.xlu0 %415
      %v417 = vsel %vm352, %v399, 0.0
      %418 = vadd.xlane.f32.xlu0 %v417
      %v419 = vpop.xlane.xlu0 %418
      %v420 = vsel %vm352, %v400, 0.0
      %421 = vadd.xlane.f32.xlu0 %v420
      %v422 = vpop.xlane.xlu0 %421
      %v423 = vsel %vm352, %v401, 0.0
      %424 = vadd.xlane.f32.xlu0 %v423
      %v425 = vpop.xlane.xlu0 %424
      %v426 = vmul.f32 %v404, %v377
      %v427 = vmul.f32 %v407, %v377
      %v428 = vmul.f32 %v410, %v377
      %v429 = vmul.f32 %v413, %v377
      %v430 = vmul.f32 %v416, %v377
      %v431 = vmul.f32 %v419, %v377
      %v432 = vmul.f32 %v422, %v377
      %v433 = vmul.f32 %v425, %v377
      %v434 = vadd.f32 %v426, 1e-05
      %v435 = vadd.f32 %v427, 1e-05
      %v436 = vadd.f32 %v428, 1e-05
      %v437 = vadd.f32 %v429, 1e-05
      %v438 = vadd.f32 %v430, 1e-05
      %v439 = vadd.f32 %v431, 1e-05
      %v440 = vadd.f32 %v432, 1e-05
      %v441 = vadd.f32 %v433, 1e-05
      %v442 = vrsqrt.pop %v434
      %v443 = vrsqrt.pop %v435
      %v444 = vrsqrt.pop %v436
      %v445 = vrsqrt.pop %v437
      %v446 = vrsqrt.pop %v438
      %v447 = vrsqrt.pop %v439
      %v448 = vrsqrt.pop %v440
      %v449 = vrsqrt.pop %v441
      %v450 = vmul.f32 %v386, %v442
      %v451 = vmul.f32 %v387, %v443
      %v452 = vmul.f32 %v388, %v444
      %v453 = vmul.f32 %v389, %v445
      %v454 = vmul.f32 %v390, %v446
      %v455 = vmul.f32 %v391, %v447
      %v456 = vmul.f32 %v392, %v448
      %v457 = vmul.f32 %v393, %v449
      %v459 = vlaneseq
      %v460 = vshrl.u32 %v459, 7
      %v461 = vsub.s32 0, %v460
      %v462 = vrot.slane %v350, %v461
      %v464 = vmul.f32 %v450, %v462
      %v465 = vmul.f32 %v451, %v462
      %v466 = vmul.f32 %v452, %v462
      %v467 = vmul.f32 %v453, %v462
      %v468 = vmul.f32 %v454, %v462
      %v469 = vmul.f32 %v455, %v462
      %v470 = vmul.f32 %v456, %v462
      %v471 = vmul.f32 %v457, %v462
      %v473 = vlaneseq
      %v474 = vshrl.u32 %v473, 7
      %v475 = vsub.s32 0, %v474
      %v476 = vrot.slane %v351, %v475
      %v478 = vadd.f32 %v464, %v476
      %v479 = vadd.f32 %v465, %v476
      %v480 = vadd.f32 %v466, %v476
      %v481 = vadd.f32 %v467, %v476
      %v482 = vadd.f32 %v468, %v476
      %v483 = vadd.f32 %v469, %v476
      %v484 = vadd.f32 %v470, %v476
      %v485 = vadd.f32 %v471, %v476
      %v486 = vpack.c.bf16 %v479, %v478
      %v487 = vpack.c.bf16 %v481, %v480
      %v488 = vpack.c.bf16 %v483, %v482
      %v489 = vpack.c.bf16 %v485, %v484
      %v490 = vld [vmem:[%s3] sm:$0xf]
      %v491 = vld [vmem:[%s3 + $0x4] sm:$0xf]
      %v492 = vld [vmem:[%s3 + $0x8] sm:$0xf]
      %v493 = vld [vmem:[%s3 + $0xc] sm:$0xf]
      %v494 = vld [vmem:[%s4] sm:$0x1]
      %v496 = vlaneseq
      %v497 = vshrl.u32 %v496, 7
      %v498 = vsub.s32 0, %v497
      %v499 = vrot.slane %v494, %v498
      %v505 = vunpack.c.l.b16 %v490
      %v506 = vunpack.c.l.b16 %v491
      %v507 = vunpack.c.l.b16 %v492
      %v508 = vunpack.c.l.b16 %v493
      %v509 = vpack.c.b16 %v506, %v505
      %v510 = vpack.c.b16 %v508, %v507
      %v514 = vsel %vm352, %v486, 0
      %v517 = vsel %vm352, %v487, 0
      %v520 = vsel %vm352, %v488, 0
      %v523 = vsel %vm352, %v489, 0
      %525 = vmatprep.subr.bf16.mxu0 0
      %526 = vmatpush1.bf16.msra.mxu0 0
      %527 = vmatprep.subr.bf16.mxu0 0
      %528 = vmatpush1.bf16.msra.mxu0 0
      %529 = vmatprep.subr.bf16.mxu0 0
      %530 = vmatpush1.bf16.msra.mxu0 0
      %531 = vmatprep.subr.bf16.mxu0 0
      %532 = vmatpush1.bf16.msra.mxu0 0
      %533 = vmatprep.subr.bf16.mxu0 0
      %534 = vmatpush1.bf16.msra.mxu0 0
      %535 = vmatprep.subr.bf16.mxu0 0
      %536 = vmatpush1.bf16.msra.mxu0 0
      %537 = vmatprep.subr.bf16.mxu0 0
      %538 = vmatpush1.bf16.msra.mxu0 %v510
      %539 = vmatprep.subr.bf16.mxu0 0
      %540 = vmatpush1.bf16.msra.mxu0 %v509
      %541 = vmatprep.subr.bf16.mxu0 0
      %542 = vmatpush2.bf16.msra.mxu0 0
      %543 = vmatprep.subr.bf16.mxu0 0
      %544 = vmatpush2.bf16.msra.mxu0 0
      %545 = vmatprep.subr.bf16.mxu0 0
      %546 = vmatpush2.bf16.msra.mxu0 0
      %547 = vmatprep.subr.bf16.mxu0 0
      %548 = vmatpush2.bf16.msra.mxu0 0
      %549 = vmatprep.subr.bf16.mxu0 0
      %550 = vmatpush2.bf16.msra.mxu0 0
      %551 = vmatprep.subr.bf16.mxu0 0
      %552 = vmatpush2.bf16.msra.mxu0 0
      %553 = vmatprep.subr.bf16.mxu0 0
      %554 = vmatpush2.bf16.msra.mxu0 0
      %555 = vmatprep.subr.bf16.mxu0 0
      %556 = vmatpush2.bf16.msra.mxu0 0
      %557 = vmatprep.mubr.bf16.mxu0 0
      %558 = vmatmul.mubr.bf16.gmra.mxu0 %v514
      %v559 = vpop.f32.mrf.mxu0
      %v560 = vadd.f32 %v499, %v559
      %v561 = vpop.f32.mrf.mxu0
      %v562 = vpop.f32.mrf.mxu0
      %v563 = vadd.f32 %v499, %v562
      %v564 = vpop.f32.mrf.mxu0
      %565 = vmatprep.mubr.bf16.mxu0 0
      %566 = vmatmul.mubr.bf16.gmra.mxu0 %v517
      %v567 = vpop.f32.mrf.mxu0
      %v568 = vadd.f32 %v499, %v567
      %v569 = vpop.f32.mrf.mxu0
      %v570 = vpop.f32.mrf.mxu0
      %v571 = vadd.f32 %v499, %v570
      %v572 = vpop.f32.mrf.mxu0
      %573 = vmatprep.mubr.bf16.mxu0 0
      %574 = vmatmul.mubr.bf16.gmra.mxu0 %v520
      %v575 = vpop.f32.mrf.mxu0
      %v576 = vadd.f32 %v499, %v575
      %v577 = vpop.f32.mrf.mxu0
      %v578 = vpop.f32.mrf.mxu0
      %v579 = vadd.f32 %v499, %v578
      %v580 = vpop.f32.mrf.mxu0
      %581 = vmatprep.mubr.bf16.mxu0 0
      %582 = vmatmul.mubr.bf16.gmra.mxu0 %v523
      %v583 = vpop.f32.mrf.mxu0
      %v584 = vadd.f32 %v499, %v583
      %v585 = vpop.f32.mrf.mxu0
      %v586 = vpop.f32.mrf.mxu0
      %v587 = vadd.f32 %v499, %v586
      %v588 = vpop.f32.mrf.mxu0
      %589 = vdwg.mxu0
      %v590 = vld [vmem:[%s7] sm:$0xff]
      %v591 = vld [vmem:[%s7 + $0x8] sm:$0xff]
      %v592 = vld [vmem:[%s7 + $0x10] sm:$0xff]
      %v593 = vld [vmem:[%s7 + $0x18] sm:$0xff]
      %v594 = vld [vmem:[%s7 + $0x20] sm:$0xff]
      %v595 = vld [vmem:[%s7 + $0x28] sm:$0xff]
      %v596 = vld [vmem:[%s7 + $0x30] sm:$0xff]
      %v597 = vld [vmem:[%s7 + $0x38] sm:$0xff]
      %v598 = vld [vmem:[%s8] sm:$0xff]
      %v599 = vld [vmem:[%s8 + $0x8] sm:$0xff]
      %v600 = vld [vmem:[%s8 + $0x10] sm:$0xff]
      %v601 = vld [vmem:[%s8 + $0x18] sm:$0xff]
      %v602 = vld [vmem:[%s8 + $0x20] sm:$0xff]
      %v603 = vld [vmem:[%s8 + $0x28] sm:$0xff]
      %v604 = vld [vmem:[%s8 + $0x30] sm:$0xff]
      %v605 = vld [vmem:[%s8 + $0x38] sm:$0xff]
      %v606 = vpack.c.bf16 %v563, %v560
      %v607 = vpack.c.bf16 %v571, %v568
      %v608 = vpack.c.bf16 %v579, %v576
      %v609 = vpack.c.bf16 %v587, %v584
      %611 = vrot.lane.b32.xlu0 %v606, 96
      %v612 = vpop.permute.xlu0 %611
      %vm613 = vcmask 64512
      %v615 = vsel %vm613, %v606, 0
      %v618 = vsel %vm613, %v612, 0
      %620 = vmatprep.subr.bf16.mxu0 0
      %621 = vmatpush1.bf16.xpose.msra.mxu0 0
      %622 = vmatprep.subr.bf16.mxu0 0
      %623 = vmatpush1.bf16.xpose.msra.mxu0 0
      %624 = vmatprep.subr.bf16.mxu0 0
      %625 = vmatpush1.bf16.xpose.msra.mxu0 0
      %626 = vmatprep.subr.bf16.mxu0 0
      %627 = vmatpush1.bf16.xpose.msra.mxu0 0
      %628 = vmatprep.subr.bf16.mxu0 0
      %629 = vmatpush1.bf16.xpose.msra.mxu0 0
      %630 = vmatprep.subr.bf16.mxu0 0
      %631 = vmatpush1.bf16.xpose.msra.mxu0 0
      %632 = vmatprep.subr.bf16.mxu0 0
      %633 = vmatpush1.bf16.xpose.msra.mxu0 0
      %634 = vmatprep.subr.bf16.mxu0 0
      %635 = vmatpush1.bf16.xpose.msra.mxu0 %v618
      %636 = vmatprep.subr.bf16.mxu0 0
      %637 = vmatpush2.bf16.xpose.msra.mxu0 0
      %638 = vmatprep.subr.bf16.mxu0 0
      %639 = vmatpush2.bf16.xpose.msra.mxu0 0
      %640 = vmatprep.subr.bf16.mxu0 0
      %641 = vmatpush2.bf16.xpose.msra.mxu0 0
      %642 = vmatprep.subr.bf16.mxu0 0
      %643 = vmatpush2.bf16.xpose.msra.mxu0 0
      %644 = vmatprep.subr.bf16.mxu0 0
      %645 = vmatpush2.bf16.xpose.msra.mxu0 0
      %646 = vmatprep.subr.bf16.mxu0 0
      %647 = vmatpush2.bf16.xpose.msra.mxu0 0
      %648 = vmatprep.subr.bf16.mxu0 0
      %649 = vmatpush2.bf16.xpose.msra.mxu0 0
      %650 = vmatprep.subr.bf16.mxu0 0
      %651 = vmatpush2.bf16.xpose.msra.mxu0 0
      %652 = vmatprep.mubr.bf16.mxu0 0
      %653 = vmatmul.mubr.bf16.gmra.mxu0 %v615
      %v654 = vpop.f32.mrf.mxu0
      %v655 = vadd.f32 %v590, %v654
      %v656 = vpop.f32.mrf.mxu0
      %v657 = vpop.f32.mrf.mxu0
      %v658 = vadd.f32 %v591, %v657
      %v659 = vpop.f32.mrf.mxu0
      %660 = vdwg.mxu0
      %662 = vrot.lane.b32.xlu0 %v607, 96
      %v663 = vpop.permute.xlu0 %662
      %v665 = vsel %vm613, %v607, 0
      %v668 = vsel %vm613, %v663, 0
      %670 = vmatprep.subr.bf16.mxu0 0
      %671 = vmatpush1.bf16.xpose.msra.mxu0 0
      %672 = vmatprep.subr.bf16.mxu0 0
      %673 = vmatpush1.bf16.xpose.msra.mxu0 0
      %674 = vmatprep.subr.bf16.mxu0 0
      %675 = vmatpush1.bf16.xpose.msra.mxu0 0
      %676 = vmatprep.subr.bf16.mxu0 0
      %677 = vmatpush1.bf16.xpose.msra.mxu0 0
      %678 = vmatprep.subr.bf16.mxu0 0
      %679 = vmatpush1.bf16.xpose.msra.mxu0 0
      %680 = vmatprep.subr.bf16.mxu0 0
      %681 = vmatpush1.bf16.xpose.msra.mxu0 0
      %682 = vmatprep.subr.bf16.mxu0 0
      %683 = vmatpush1.bf16.xpose.msra.mxu0 0
      %684 = vmatprep.subr.bf16.mxu0 0
      %685 = vmatpush1.bf16.xpose.msra.mxu0 %v668
      %686 = vmatprep.subr.bf16.mxu0 0
      %687 = vmatpush2.bf16.xpose.msra.mxu0 0
      %688 = vmatprep.subr.bf16.mxu0 0
      %689 = vmatpush2.bf16.xpose.msra.mxu0 0
      %690 = vmatprep.subr.bf16.mxu0 0
      %691 = vmatpush2.bf16.xpose.msra.mxu0 0
      %692 = vmatprep.subr.bf16.mxu0 0
      %693 = vmatpush2.bf16.xpose.msra.mxu0 0
      %694 = vmatprep.subr.bf16.mxu0 0
      %695 = vmatpush2.bf16.xpose.msra.mxu0 0
      %696 = vmatprep.subr.bf16.mxu0 0
      %697 = vmatpush2.bf16.xpose.msra.mxu0 0
      %698 = vmatprep.subr.bf16.mxu0 0
      %699 = vmatpush2.bf16.xpose.msra.mxu0 0
      %700 = vmatprep.subr.bf16.mxu0 0
      %701 = vmatpush2.bf16.xpose.msra.mxu0 0
      %702 = vmatprep.mubr.bf16.mxu0 0
      %703 = vmatmul.mubr.bf16.gmra.mxu0 %v665
      %v704 = vpop.f32.mrf.mxu0
      %v705 = vadd.f32 %v590, %v704
      %v706 = vpop.f32.mrf.mxu0
      %v707 = vpop.f32.mrf.mxu0
      %v708 = vadd.f32 %v591, %v707
      %v709 = vpop.f32.mrf.mxu0
      %710 = vdwg.mxu0
      %712 = vrot.lane.b32.xlu0 %v608, 96
      %v713 = vpop.permute.xlu0 %712
      %v715 = vsel %vm613, %v608, 0
      %v718 = vsel %vm613, %v713, 0
      %720 = vmatprep.subr.bf16.mxu0 0
      %721 = vmatpush1.bf16.xpose.msra.mxu0 0
      %722 = vmatprep.subr.bf16.mxu0 0
      %723 = vmatpush1.bf16.xpose.msra.mxu0 0
      %724 = vmatprep.subr.bf16.mxu0 0
      %725 = vmatpush1.bf16.xpose.msra.mxu0 0
      %726 = vmatprep.subr.bf16.mxu0 0
      %727 = vmatpush1.bf16.xpose.msra.mxu0 0
      %728 = vmatprep.subr.bf16.mxu0 0
      %729 = vmatpush1.bf16.xpose.msra.mxu0 0
      %730 = vmatprep.subr.bf16.mxu0 0
      %731 = vmatpush1.bf16.xpose.msra.mxu0 0
      %732 = vmatprep.subr.bf16.mxu0 0
      %733 = vmatpush1.bf16.xpose.msra.mxu0 0
      %734 = vmatprep.subr.bf16.mxu0 0
      %735 = vmatpush1.bf16.xpose.msra.mxu0 %v718
      %736 = vmatprep.subr.bf16.mxu0 0
      %737 = vmatpush2.bf16.xpose.msra.mxu0 0
      %738 = vmatprep.subr.bf16.mxu0 0
      %739 = vmatpush2.bf16.xpose.msra.mxu0 0
      %740 = vmatprep.subr.bf16.mxu0 0
      %741 = vmatpush2.bf16.xpose.msra.mxu0 0
      %742 = vmatprep.subr.bf16.mxu0 0
      %743 = vmatpush2.bf16.xpose.msra.mxu0 0
      %744 = vmatprep.subr.bf16.mxu0 0
      %745 = vmatpush2.bf16.xpose.msra.mxu0 0
      %746 = vmatprep.subr.bf16.mxu0 0
      %747 = vmatpush2.bf16.xpose.msra.mxu0 0
      %748 = vmatprep.subr.bf16.mxu0 0
      %749 = vmatpush2.bf16.xpose.msra.mxu0 0
      %750 = vmatprep.subr.bf16.mxu0 0
      %751 = vmatpush2.bf16.xpose.msra.mxu0 0
      %752 = vmatprep.mubr.bf16.mxu0 0
      %753 = vmatmul.mubr.bf16.gmra.mxu0 %v715
      %v754 = vpop.f32.mrf.mxu0
      %v755 = vadd.f32 %v590, %v754
      %v756 = vpop.f32.mrf.mxu0
      %v757 = vpop.f32.mrf.mxu0
      %v758 = vadd.f32 %v591, %v757
      %v759 = vpop.f32.mrf.mxu0
      %760 = vdwg.mxu0
      %762 = vrot.lane.b32.xlu0 %v609, 96
      %v763 = vpop.permute.xlu0 %762
      %v765 = vsel %vm613, %v609, 0
      %v768 = vsel %vm613, %v763, 0
      %770 = vmatprep.subr.bf16.mxu0 0
      %771 = vmatpush1.bf16.xpose.msra.mxu0 0
      %772 = vmatprep.subr.bf16.mxu0 0
      %773 = vmatpush1.bf16.xpose.msra.mxu0 0
      %774 = vmatprep.subr.bf16.mxu0 0
      %775 = vmatpush1.bf16.xpose.msra.mxu0 0
      %776 = vmatprep.subr.bf16.mxu0 0
      %777 = vmatpush1.bf16.xpose.msra.mxu0 0
      %778 = vmatprep.subr.bf16.mxu0 0
      %779 = vmatpush1.bf16.xpose.msra.mxu0 0
      %780 = vmatprep.subr.bf16.mxu0 0
      %781 = vmatpush1.bf16.xpose.msra.mxu0 0
      %782 = vmatprep.subr.bf16.mxu0 0
      %783 = vmatpush1.bf16.xpose.msra.mxu0 0
      %784 = vmatprep.subr.bf16.mxu0 0
      %785 = vmatpush1.bf16.xpose.msra.mxu0 %v768
      %786 = vmatprep.subr.bf16.mxu0 0
      %787 = vmatpush2.bf16.xpose.msra.mxu0 0
      %788 = vmatprep.subr.bf16.mxu0 0
      %789 = vmatpush2.bf16.xpose.msra.mxu0 0
      %790 = vmatprep.subr.bf16.mxu0 0
      %791 = vmatpush2.bf16.xpose.msra.mxu0 0
      %792 = vmatprep.subr.bf16.mxu0 0
      %793 = vmatpush2.bf16.xpose.msra.mxu0 0
      %794 = vmatprep.subr.bf16.mxu0 0
      %795 = vmatpush2.bf16.xpose.msra.mxu0 0
      %796 = vmatprep.subr.bf16.mxu0 0
      %797 = vmatpush2.bf16.xpose.msra.mxu0 0
      %798 = vmatprep.subr.bf16.mxu0 0
      %799 = vmatpush2.bf16.xpose.msra.mxu0 0
      %800 = vmatprep.subr.bf16.mxu0 0
      %801 = vmatpush2.bf16.xpose.msra.mxu0 0
      %802 = vmatprep.mubr.bf16.mxu0 0
      %803 = vmatmul.mubr.bf16.gmra.mxu0 %v765
      %v804 = vpop.f32.mrf.mxu0
      %v805 = vadd.f32 %v590, %v804
      %v806 = vpop.f32.mrf.mxu0
      %v807 = vpop.f32.mrf.mxu0
      %v808 = vadd.f32 %v591, %v807
      %v809 = vpop.f32.mrf.mxu0
      %810 = vdwg.mxu0
      %v811 = vadd.f32 %v655, %v598
      %v812 = vadd.f32 %v658, %v599
      %v813 = vadd.f32 %v705, %v600
      %v814 = vadd.f32 %v708, %v601
      %v815 = vadd.f32 %v755, %v602
      %v816 = vadd.f32 %v758, %v603
      %v817 = vadd.f32 %v805, %v604
      %v818 = vadd.f32 %v808, %v605
      %vm819 = vcmask 130048
      %v820 = vsel %vm819, %v811, -inf
      %821 = vmax.xlane.f32.xlu0 %v820
      %v822 = vpop.xlane.xlu0 %821
      %v823 = vsel %vm819, %v812, -inf
      %824 = vmax.xlane.f32.xlu0 %v823
      %v825 = vpop.xlane.xlu0 %824
      %v826 = vsel %vm819, %v813, -inf
      %827 = vmax.xlane.f32.xlu0 %v826
      %v828 = vpop.xlane.xlu0 %827
      %v829 = vsel %vm819, %v814, -inf
      %830 = vmax.xlane.f32.xlu0 %v829
      %v831 = vpop.xlane.xlu0 %830
      %v832 = vsel %vm819, %v815, -inf
      %833 = vmax.xlane.f32.xlu0 %v832
      %v834 = vpop.xlane.xlu0 %833
      %v835 = vsel %vm819, %v816, -inf
      %836 = vmax.xlane.f32.xlu0 %v835
      %v837 = vpop.xlane.xlu0 %836
      %v838 = vsel %vm819, %v817, -inf
      %839 = vmax.xlane.f32.xlu0 %v838
      %v840 = vpop.xlane.xlu0 %839
      %v841 = vsel %vm819, %v818, -inf
      %842 = vmax.xlane.f32.xlu0 %v841
      %v843 = vpop.xlane.xlu0 %842
      %v844 = vsub.f32 %v811, %v822
      %v845 = vsub.f32 %v812, %v825
      %v846 = vsub.f32 %v813, %v828
      %v847 = vsub.f32 %v814, %v831
      %v848 = vsub.f32 %v815, %v834
      %v849 = vsub.f32 %v816, %v837
      %v850 = vsub.f32 %v817, %v840
      %v851 = vsub.f32 %v818, %v843
      %v852 = vmul.f32 %v844, 1.442695
      %v853 = vpow.pop %v852
      %v854 = vmul.f32 %v845, 1.442695
      %v855 = vpow.pop %v854
      %v856 = vmul.f32 %v846, 1.442695
      %v857 = vpow.pop %v856
      %v858 = vmul.f32 %v847, 1.442695
      %v859 = vpow.pop %v858
      %v860 = vmul.f32 %v848, 1.442695
      %v861 = vpow.pop %v860
      %v862 = vmul.f32 %v849, 1.442695
      %v863 = vpow.pop %v862
      %v864 = vmul.f32 %v850, 1.442695
      %v865 = vpow.pop %v864
      %v866 = vmul.f32 %v851, 1.442695
      %v867 = vpow.pop %v866
      %v868 = vsel %vm819, %v853, 0.0
      %869 = vadd.xlane.f32.xlu0 %v868
      %v870 = vpop.xlane.xlu0 %869
      %v871 = vsel %vm819, %v855, 0.0
      %872 = vadd.xlane.f32.xlu0 %v871
      %v873 = vpop.xlane.xlu0 %872
      %v874 = vsel %vm819, %v857, 0.0
      %875 = vadd.xlane.f32.xlu0 %v874
      %v876 = vpop.xlane.xlu0 %875
      %v877 = vsel %vm819, %v859, 0.0
      %878 = vadd.xlane.f32.xlu0 %v877
      %v879 = vpop.xlane.xlu0 %878
      %v880 = vsel %vm819, %v861, 0.0
      %881 = vadd.xlane.f32.xlu0 %v880
      %v882 = vpop.xlane.xlu0 %881
      %v883 = vsel %vm819, %v863, 0.0
      %884 = vadd.xlane.f32.xlu0 %v883
      %v885 = vpop.xlane.xlu0 %884
      %v886 = vsel %vm819, %v865, 0.0
      %887 = vadd.xlane.f32.xlu0 %v886
      %v888 = vpop.xlane.xlu0 %887
      %v889 = vsel %vm819, %v867, 0.0
      %890 = vadd.xlane.f32.xlu0 %v889
      %v891 = vpop.xlane.xlu0 %890
      %v892 = vrcp.pop %v870
      %v893 = vrcp.pop %v873
      %v894 = vrcp.pop %v876
      %v895 = vrcp.pop %v879
      %v896 = vrcp.pop %v882
      %v897 = vrcp.pop %v885
      %v898 = vrcp.pop %v888
      %v899 = vrcp.pop %v891
      %v900 = vmul.f32 %v853, %v892
      %v901 = vmul.f32 %v855, %v893
      %v902 = vmul.f32 %v857, %v894
      %v903 = vmul.f32 %v859, %v895
      %v904 = vmul.f32 %v861, %v896
      %v905 = vmul.f32 %v863, %v897
      %v906 = vmul.f32 %v865, %v898
      %v907 = vmul.f32 %v867, %v899
      %v908 = vpack.c.bf16 %v901, %v900
      %v909 = vpack.c.bf16 %v903, %v902
      %v910 = vpack.c.bf16 %v905, %v904
      %v911 = vpack.c.bf16 %v907, %v906
      %912 = vrot.lane.b32.xlu0 %v606, 64
      %v913 = vpop.permute.xlu0 %912
      %v916 = vsel %vm819, %v908, 0
      %918 = vmatprep.subr.bf16.mxu0 0
      %919 = vmatpush1.bf16.msra.mxu0 0
      %920 = vmatprep.subr.bf16.mxu0 0
      %921 = vmatpush1.bf16.msra.mxu0 0
      %922 = vmatprep.subr.bf16.mxu0 0
      %923 = vmatpush1.bf16.msra.mxu0 0
      %924 = vmatprep.subr.bf16.mxu0 0
      %925 = vmatpush1.bf16.msra.mxu0 0
      %926 = vmatprep.subr.bf16.mxu0 0
      %927 = vmatpush1.bf16.msra.mxu0 0
      %928 = vmatprep.subr.bf16.mxu0 0
      %929 = vmatpush1.bf16.msra.mxu0 0
      %930 = vmatprep.subr.bf16.mxu0 0
      %931 = vmatpush1.bf16.msra.mxu0 0
      %932 = vmatprep.subr.bf16.mxu0 0
      %933 = vmatpush1.bf16.msra.mxu0 %v913
      %934 = vmatprep.subr.bf16.mxu0 0
      %935 = vmatpush2.bf16.msra.mxu0 0
      %936 = vmatprep.subr.bf16.mxu0 0
      %937 = vmatpush2.bf16.msra.mxu0 0
      %938 = vmatprep.subr.bf16.mxu0 0
      %939 = vmatpush2.bf16.msra.mxu0 0
      %940 = vmatprep.subr.bf16.mxu0 0
      %941 = vmatpush2.bf16.msra.mxu0 0
      %942 = vmatprep.subr.bf16.mxu0 0
      %943 = vmatpush2.bf16.msra.mxu0 0
      %944 = vmatprep.subr.bf16.mxu0 0
      %945 = vmatpush2.bf16.msra.mxu0 0
      %946 = vmatprep.subr.bf16.mxu0 0
      %947 = vmatpush2.bf16.msra.mxu0 0
      %948 = vmatprep.subr.bf16.mxu0 0
      %949 = vmatpush2.bf16.msra.mxu0 0
      %950 = vmatprep.mubr.bf16.mxu0 0
      %951 = vmatmul.mubr.bf16.gmra.mxu0 %v916
      %v952 = vpop.f32.mrf.mxu0
      %v953 = vadd.f32 0.0, %v952
      %v954 = vpop.f32.mrf.mxu0
      %v955 = vpop.f32.mrf.mxu0
      %v956 = vadd.f32 0.0, %v955
      %v957 = vpop.f32.mrf.mxu0
      %958 = vdwg.mxu0
      %959 = vrot.lane.b32.xlu0 %v607, 64
      %v960 = vpop.permute.xlu0 %959
      %v963 = vsel %vm819, %v909, 0
      %965 = vmatprep.subr.bf16.mxu0 0
      %966 = vmatpush1.bf16.msra.mxu0 0
      %967 = vmatprep.subr.bf16.mxu0 0
      %968 = vmatpush1.bf16.msra.mxu0 0
      %969 = vmatprep.subr.bf16.mxu0 0
      %970 = vmatpush1.bf16.msra.mxu0 0
      %971 = vmatprep.subr.bf16.mxu0 0
      %972 = vmatpush1.bf16.msra.mxu0 0
      %973 = vmatprep.subr.bf16.mxu0 0
      %974 = vmatpush1.bf16.msra.mxu0 0
      %975 = vmatprep.subr.bf16.mxu0 0
      %976 = vmatpush1.bf16.msra.mxu0 0
      %977 = vmatprep.subr.bf16.mxu0 0
      %978 = vmatpush1.bf16.msra.mxu0 0
      %979 = vmatprep.subr.bf16.mxu0 0
      %980 = vmatpush1.bf16.msra.mxu0 %v960
      %981 = vmatprep.subr.bf16.mxu0 0
      %982 = vmatpush2.bf16.msra.mxu0 0
      %983 = vmatprep.subr.bf16.mxu0 0
      %984 = vmatpush2.bf16.msra.mxu0 0
      %985 = vmatprep.subr.bf16.mxu0 0
      %986 = vmatpush2.bf16.msra.mxu0 0
      %987 = vmatprep.subr.bf16.mxu0 0
      %988 = vmatpush2.bf16.msra.mxu0 0
      %989 = vmatprep.subr.bf16.mxu0 0
      %990 = vmatpush2.bf16.msra.mxu0 0
      %991 = vmatprep.subr.bf16.mxu0 0
      %992 = vmatpush2.bf16.msra.mxu0 0
      %993 = vmatprep.subr.bf16.mxu0 0
      %994 = vmatpush2.bf16.msra.mxu0 0
      %995 = vmatprep.subr.bf16.mxu0 0
      %996 = vmatpush2.bf16.msra.mxu0 0
      %997 = vmatprep.mubr.bf16.mxu0 0
      %998 = vmatmul.mubr.bf16.gmra.mxu0 %v963
      %v999 = vpop.f32.mrf.mxu0
      %v1000 = vadd.f32 0.0, %v999
      %v1001 = vpop.f32.mrf.mxu0
      %v1002 = vpop.f32.mrf.mxu0
      %v1003 = vadd.f32 0.0, %v1002
      %v1004 = vpop.f32.mrf.mxu0
      %1005 = vdwg.mxu0
      %1006 = vrot.lane.b32.xlu0 %v608, 64
      %v1007 = vpop.permute.xlu0 %1006
      %v1010 = vsel %vm819, %v910, 0
      %1012 = vmatprep.subr.bf16.mxu0 0
      %1013 = vmatpush1.bf16.msra.mxu0 0
      %1014 = vmatprep.subr.bf16.mxu0 0
      %1015 = vmatpush1.bf16.msra.mxu0 0
      %1016 = vmatprep.subr.bf16.mxu0 0
      %1017 = vmatpush1.bf16.msra.mxu0 0
      %1018 = vmatprep.subr.bf16.mxu0 0
      %1019 = vmatpush1.bf16.msra.mxu0 0
      %1020 = vmatprep.subr.bf16.mxu0 0
      %1021 = vmatpush1.bf16.msra.mxu0 0
      %1022 = vmatprep.subr.bf16.mxu0 0
      %1023 = vmatpush1.bf16.msra.mxu0 0
      %1024 = vmatprep.subr.bf16.mxu0 0
      %1025 = vmatpush1.bf16.msra.mxu0 0
      %1026 = vmatprep.subr.bf16.mxu0 0
      %1027 = vmatpush1.bf16.msra.mxu0 %v1007
      %1028 = vmatprep.subr.bf16.mxu0 0
      %1029 = vmatpush2.bf16.msra.mxu0 0
      %1030 = vmatprep.subr.bf16.mxu0 0
      %1031 = vmatpush2.bf16.msra.mxu0 0
      %1032 = vmatprep.subr.bf16.mxu0 0
      %1033 = vmatpush2.bf16.msra.mxu0 0
      %1034 = vmatprep.subr.bf16.mxu0 0
      %1035 = vmatpush2.bf16.msra.mxu0 0
      %1036 = vmatprep.subr.bf16.mxu0 0
      %1037 = vmatpush2.bf16.msra.mxu0 0
      %1038 = vmatprep.subr.bf16.mxu0 0
      %1039 = vmatpush2.bf16.msra.mxu0 0
      %1040 = vmatprep.subr.bf16.mxu0 0
      %1041 = vmatpush2.bf16.msra.mxu0 0
      %1042 = vmatprep.subr.bf16.mxu0 0
      %1043 = vmatpush2.bf16.msra.mxu0 0
      %1044 = vmatprep.mubr.bf16.mxu0 0
      %1045 = vmatmul.mubr.bf16.gmra.mxu0 %v1010
      %v1046 = vpop.f32.mrf.mxu0
      %v1047 = vadd.f32 0.0, %v1046
      %v1048 = vpop.f32.mrf.mxu0
      %v1049 = vpop.f32.mrf.mxu0
      %v1050 = vadd.f32 0.0, %v1049
      %v1051 = vpop.f32.mrf.mxu0
      %1052 = vdwg.mxu0
      %1053 = vrot.lane.b32.xlu0 %v609, 64
      %v1054 = vpop.permute.xlu0 %1053
      %v1057 = vsel %vm819, %v911, 0
      %1059 = vmatprep.subr.bf16.mxu0 0
      %1060 = vmatpush1.bf16.msra.mxu0 0
      %1061 = vmatprep.subr.bf16.mxu0 0
      %1062 = vmatpush1.bf16.msra.mxu0 0
      %1063 = vmatprep.subr.bf16.mxu0 0
      %1064 = vmatpush1.bf16.msra.mxu0 0
      %1065 = vmatprep.subr.bf16.mxu0 0
      %1066 = vmatpush1.bf16.msra.mxu0 0
      %1067 = vmatprep.subr.bf16.mxu0 0
      %1068 = vmatpush1.bf16.msra.mxu0 0
      %1069 = vmatprep.subr.bf16.mxu0 0
      %1070 = vmatpush1.bf16.msra.mxu0 0
      %1071 = vmatprep.subr.bf16.mxu0 0
      %1072 = vmatpush1.bf16.msra.mxu0 0
      %1073 = vmatprep.subr.bf16.mxu0 0
      %1074 = vmatpush1.bf16.msra.mxu0 %v1054
      %1075 = vmatprep.subr.bf16.mxu0 0
      %1076 = vmatpush2.bf16.msra.mxu0 0
      %1077 = vmatprep.subr.bf16.mxu0 0
      %1078 = vmatpush2.bf16.msra.mxu0 0
      %1079 = vmatprep.subr.bf16.mxu0 0
      %1080 = vmatpush2.bf16.msra.mxu0 0
      %1081 = vmatprep.subr.bf16.mxu0 0
      %1082 = vmatpush2.bf16.msra.mxu0 0
      %1083 = vmatprep.subr.bf16.mxu0 0
      %1084 = vmatpush2.bf16.msra.mxu0 0
      %1085 = vmatprep.subr.bf16.mxu0 0
      %1086 = vmatpush2.bf16.msra.mxu0 0
      %1087 = vmatprep.subr.bf16.mxu0 0
      %1088 = vmatpush2.bf16.msra.mxu0 0
      %1089 = vmatprep.subr.bf16.mxu0 0
      %1090 = vmatpush2.bf16.msra.mxu0 0
      %1091 = vmatprep.mubr.bf16.mxu0 0
      %1092 = vmatmul.mubr.bf16.gmra.mxu0 %v1057
      %v1093 = vpop.f32.mrf.mxu0
      %v1094 = vadd.f32 0.0, %v1093
      %v1095 = vpop.f32.mrf.mxu0
      %v1096 = vpop.f32.mrf.mxu0
      %v1097 = vadd.f32 0.0, %v1096
      %v1098 = vpop.f32.mrf.mxu0
      %1099 = vdwg.mxu0
      %v1100 = vpack.c.bf16 %v956, %v953
      %v1101 = vpack.c.bf16 %v1003, %v1000
      %v1102 = vpack.c.bf16 %v1050, %v1047
      %v1103 = vpack.c.bf16 %v1097, %v1094
      %v1104 = vld [vmem:[%s5] sm:$0xf]
      %1105 = vrot.lane.b32.xlu0 %v606, 120
      %v1106 = vpop.permute.xlu0 %1105
      %1107 = vrot.lane.b32.xlu0 %v606, 88
      %v1108 = vpop.permute.xlu0 %1107
      %v1110 = vsel %vm613, %v1106, 0
      %v1113 = vsel %vm613, %v1108, 0
      %1115 = vmatprep.subr.bf16.mxu0 0
      %1116 = vmatpush1.bf16.xpose.msra.mxu0 0
      %1117 = vmatprep.subr.bf16.mxu0 0
      %1118 = vmatpush1.bf16.xpose.msra.mxu0 0
      %1119 = vmatprep.subr.bf16.mxu0 0
      %1120 = vmatpush1.bf16.xpose.msra.mxu0 0
      %1121 = vmatprep.subr.bf16.mxu0 0
      %1122 = vmatpush1.bf16.xpose.msra.mxu0 0
      %1123 = vmatprep.subr.bf16.mxu0 0
      %1124 = vmatpush1.bf16.xpose.msra.mxu0 0
      %1125 = vmatprep.subr.bf16.mxu0 0
      %1126 = vmatpush1.bf16.xpose.msra.mxu0 0
      %1127 = vmatprep.subr.bf16.mxu0 0
      %1128 = vmatpush1.bf16.xpose.msra.mxu0 0
      %1129 = vmatprep.subr.bf16.mxu0 0
      %1130 = vmatpush1.bf16.xpose.msra.mxu0 %v1113
      %1131 = vmatprep.subr.bf16.mxu0 0
      %1132 = vmatpush2.bf16.xpose.msra.mxu0 0
      %1133 = vmatprep.subr.bf16.mxu0 0
      %1134 = vmatpush2.bf16.xpose.msra.mxu0 0
      %1135 = vmatprep.subr.bf16.mxu0 0
      %1136 = vmatpush2.bf16.xpose.msra.mxu0 0
      %1137 = vmatprep.subr.bf16.mxu0 0
      %1138 = vmatpush2.bf16.xpose.msra.mxu0 0
      %1139 = vmatprep.subr.bf16.mxu0 0
      %1140 = vmatpush2.bf16.xpose.msra.mxu0 0
      %1141 = vmatprep.subr.bf16.mxu0 0
      %1142 = vmatpush2.bf16.xpose.msra.mxu0 0
      %1143 = vmatprep.subr.bf16.mxu0 0
      %1144 = vmatpush2.bf16.xpose.msra.mxu0 0
      %1145 = vmatprep.subr.bf16.mxu0 0
      %1146 = vmatpush2.bf16.xpose.msra.mxu0 0
      %1147 = vmatprep.mubr.bf16.mxu0 0
      %1148 = vmatmul.mubr.bf16.gmra.mxu0 %v1110
      %v1149 = vpop.f32.mrf.mxu0
      %v1150 = vadd.f32 %v592, %v1149
      %v1151 = vpop.f32.mrf.mxu0
      %v1152 = vpop.f32.mrf.mxu0
      %v1153 = vadd.f32 %v593, %v1152
      %v1154 = vpop.f32.mrf.mxu0
      %1155 = vdwg.mxu0
      %1156 = vrot.lane.b32.xlu0 %v607, 120
      %v1157 = vpop.permute.xlu0 %1156
      %1158 = vrot.lane.b32.xlu0 %v607, 88
      %v1159 = vpop.permute.xlu0 %1158
      %v1161 = vsel %vm613, %v1157, 0
      %v1164 = vsel %vm613, %v1159, 0
      %1166 = vmatprep.subr.bf16.mxu0 0
      %1167 = vmatpush1.bf16.xpose.msra.mxu0 0
      %1168 = vmatprep.subr.bf16.mxu0 0
      %1169 = vmatpush1.bf16.xpose.msra.mxu0 0
      %1170 = vmatprep.subr.bf16.mxu0 0
      %1171 = vmatpush1.bf16.xpose.msra.mxu0 0
      %1172 = vmatprep.subr.bf16.mxu0 0
      %1173 = vmatpush1.bf16.xpose.msra.mxu0 0
      %1174 = vmatprep.subr.bf16.mxu0 0
      %1175 = vmatpush1.bf16.xpose.msra.mxu0 0
      %1176 = vmatprep.subr.bf16.mxu0 0
      %1177 = vmatpush1.bf16.xpose.msra.mxu0 0
      %1178 = vmatprep.subr.bf16.mxu0 0
      %1179 = vmatpush1.bf16.xpose.msra.mxu0 0
      %1180 = vmatprep.subr.bf16.mxu0 0
      %1181 = vmatpush1.bf16.xpose.msra.mxu0 %v1164
      %1182 = vmatprep.subr.bf16.mxu0 0
      %1183 = vmatpush2.bf16.xpose.msra.mxu0 0
      %1184 = vmatprep.subr.bf16.mxu0 0
      %1185 = vmatpush2.bf16.xpose.msra.mxu0 0
      %1186 = vmatprep.subr.bf16.mxu0 0
      %1187 = vmatpush2.bf16.xpose.msra.mxu0 0
      %1188 = vmatprep.subr.bf16.mxu0 0
      %1189 = vmatpush2.bf16.xpose.msra.mxu0 0
      %1190 = vmatprep.subr.bf16.mxu0 0
      %1191 = vmatpush2.bf16.xpose.msra.mxu0 0
      %1192 = vmatprep.subr.bf16.mxu0 0
      %1193 = vmatpush2.bf16.xpose.msra.mxu0 0
      %1194 = vmatprep.subr.bf16.mxu0 0
      %1195 = vmatpush2.bf16.xpose.msra.mxu0 0
      %1196 = vmatprep.subr.bf16.mxu0 0
      %1197 = vmatpush2.bf16.xpose.msra.mxu0 0
      %1198 = vmatprep.mubr.bf16.mxu0 0
      %1199 = vmatmul.mubr.bf16.gmra.mxu0 %v1161
      %v1200 = vpop.f32.mrf.mxu0
      %v1201 = vadd.f32 %v592, %v1200
      %v1202 = vpop.f32.mrf.mxu0
      %v1203 = vpop.f32.mrf.mxu0
      %v1204 = vadd.f32 %v593, %v1203
      %v1205 = vpop.f32.mrf.mxu0
      %1206 = vdwg.mxu0
      %1207 = vrot.lane.b32.xlu0 %v608, 120
      %v1208 = vpop.permute.xlu0 %1207
      %1209 = vrot.lane.b32.xlu0 %v608, 88
      %v1210 = vpop.permute.xlu0 %1209
      %v1212 = vsel %vm613, %v1208, 0
      %v1215 = vsel %vm613, %v1210, 0
      %1217 = vmatprep.subr.bf16.mxu0 0
      %1218 = vmatpush1.bf16.xpose.msra.mxu0 0
      %1219 = vmatprep.subr.bf16.mxu0 0
      %1220 = vmatpush1.bf16.xpose.msra.mxu0 0
      %1221 = vmatprep.subr.bf16.mxu0 0
      %1222 = vmatpush1.bf16.xpose.msra.mxu0 0
      %1223 = vmatprep.subr.bf16.mxu0 0
      %1224 = vmatpush1.bf16.xpose.msra.mxu0 0
      %1225 = vmatprep.subr.bf16.mxu0 0
      %1226 = vmatpush1.bf16.xpose.msra.mxu0 0
      %1227 = vmatprep.subr.bf16.mxu0 0
      %1228 = vmatpush1.bf16.xpose.msra.mxu0 0
      %1229 = vmatprep.subr.bf16.mxu0 0
      %1230 = vmatpush1.bf16.xpose.msra.mxu0 0
      %1231 = vmatprep.subr.bf16.mxu0 0
      %1232 = vmatpush1.bf16.xpose.msra.mxu0 %v1215
      %1233 = vmatprep.subr.bf16.mxu0 0
      %1234 = vmatpush2.bf16.xpose.msra.mxu0 0
      %1235 = vmatprep.subr.bf16.mxu0 0
      %1236 = vmatpush2.bf16.xpose.msra.mxu0 0
      %1237 = vmatprep.subr.bf16.mxu0 0
      %1238 = vmatpush2.bf16.xpose.msra.mxu0 0
      %1239 = vmatprep.subr.bf16.mxu0 0
      %1240 = vmatpush2.bf16.xpose.msra.mxu0 0
      %1241 = vmatprep.subr.bf16.mxu0 0
      %1242 = vmatpush2.bf16.xpose.msra.mxu0 0
      %1243 = vmatprep.subr.bf16.mxu0 0
      %1244 = vmatpush2.bf16.xpose.msra.mxu0 0
      %1245 = vmatprep.subr.bf16.mxu0 0
      %1246 = vmatpush2.bf16.xpose.msra.mxu0 0
      %1247 = vmatprep.subr.bf16.mxu0 0
      %1248 = vmatpush2.bf16.xpose.msra.mxu0 0
      %1249 = vmatprep.mubr.bf16.mxu0 0
      %1250 = vmatmul.mubr.bf16.gmra.mxu0 %v1212
      %v1251 = vpop.f32.mrf.mxu0
      %v1252 = vadd.f32 %v592, %v1251
      %v1253 = vpop.f32.mrf.mxu0
      %v1254 = vpop.f32.mrf.mxu0
      %v1255 = vadd.f32 %v593, %v1254
      %v1256 = vpop.f32.mrf.mxu0
      %1257 = vdwg.mxu0
      %1258 = vrot.lane.b32.xlu0 %v609, 120
      %v1259 = vpop.permute.xlu0 %1258
      %1260 = vrot.lane.b32.xlu0 %v609, 88
      %v1261 = vpop.permute.xlu0 %1260
      %v1263 = vsel %vm613, %v1259, 0
      %v1266 = vsel %vm613, %v1261, 0
      %1268 = vmatprep.subr.bf16.mxu0 0
      %1269 = vmatpush1.bf16.xpose.msra.mxu0 0
      %1270 = vmatprep.subr.bf16.mxu0 0
      %1271 = vmatpush1.bf16.xpose.msra.mxu0 0
      %1272 = vmatprep.subr.bf16.mxu0 0
      %1273 = vmatpush1.bf16.xpose.msra.mxu0 0
      %1274 = vmatprep.subr.bf16.mxu0 0
      %1275 = vmatpush1.bf16.xpose.msra.mxu0 0
      %1276 = vmatprep.subr.bf16.mxu0 0
      %1277 = vmatpush1.bf16.xpose.msra.mxu0 0
      %1278 = vmatprep.subr.bf16.mxu0 0
      %1279 = vmatpush1.bf16.xpose.msra.mxu0 0
      %1280 = vmatprep.subr.bf16.mxu0 0
      %1281 = vmatpush1.bf16.xpose.msra.mxu0 0
      %1282 = vmatprep.subr.bf16.mxu0 0
      %1283 = vmatpush1.bf16.xpose.msra.mxu0 %v1266
      %1284 = vmatprep.subr.bf16.mxu0 0
      %1285 = vmatpush2.bf16.xpose.msra.mxu0 0
      %1286 = vmatprep.subr.bf16.mxu0 0
      %1287 = vmatpush2.bf16.xpose.msra.mxu0 0
      %1288 = vmatprep.subr.bf16.mxu0 0
      %1289 = vmatpush2.bf16.xpose.msra.mxu0 0
      %1290 = vmatprep.subr.bf16.mxu0 0
      %1291 = vmatpush2.bf16.xpose.msra.mxu0 0
      %1292 = vmatprep.subr.bf16.mxu0 0
      %1293 = vmatpush2.bf16.xpose.msra.mxu0 0
      %1294 = vmatprep.subr.bf16.mxu0 0
      %1295 = vmatpush2.bf16.xpose.msra.mxu0 0
      %1296 = vmatprep.subr.bf16.mxu0 0
      %1297 = vmatpush2.bf16.xpose.msra.mxu0 0
      %1298 = vmatprep.subr.bf16.mxu0 0
      %1299 = vmatpush2.bf16.xpose.msra.mxu0 0
      %1300 = vmatprep.mubr.bf16.mxu0 0
      %1301 = vmatmul.mubr.bf16.gmra.mxu0 %v1263
      %v1302 = vpop.f32.mrf.mxu0
      %v1303 = vadd.f32 %v592, %v1302
      %v1304 = vpop.f32.mrf.mxu0
      %v1305 = vpop.f32.mrf.mxu0
      %v1306 = vadd.f32 %v593, %v1305
      %v1307 = vpop.f32.mrf.mxu0
      %1308 = vdwg.mxu0
      %v1309 = vadd.f32 %v1150, %v598
      %v1310 = vadd.f32 %v1153, %v599
      %v1311 = vadd.f32 %v1201, %v600
      %v1312 = vadd.f32 %v1204, %v601
      %v1313 = vadd.f32 %v1252, %v602
      %v1314 = vadd.f32 %v1255, %v603
      %v1315 = vadd.f32 %v1303, %v604
      %v1316 = vadd.f32 %v1306, %v605
      %v1317 = vsel %vm819, %v1309, -inf
      %1318 = vmax.xlane.f32.xlu0 %v1317
      %v1319 = vpop.xlane.xlu0 %1318
      %v1320 = vsel %vm819, %v1310, -inf
      %1321 = vmax.xlane.f32.xlu0 %v1320
      %v1322 = vpop.xlane.xlu0 %1321
      %v1323 = vsel %vm819, %v1311, -inf
      %1324 = vmax.xlane.f32.xlu0 %v1323
      %v1325 = vpop.xlane.xlu0 %1324
      %v1326 = vsel %vm819, %v1312, -inf
      %1327 = vmax.xlane.f32.xlu0 %v1326
      %v1328 = vpop.xlane.xlu0 %1327
      %v1329 = vsel %vm819, %v1313, -inf
      %1330 = vmax.xlane.f32.xlu0 %v1329
      %v1331 = vpop.xlane.xlu0 %1330
      %v1332 = vsel %vm819, %v1314, -inf
      %1333 = vmax.xlane.f32.xlu0 %v1332
      %v1334 = vpop.xlane.xlu0 %1333
      %v1335 = vsel %vm819, %v1315, -inf
      %1336 = vmax.xlane.f32.xlu0 %v1335
      %v1337 = vpop.xlane.xlu0 %1336
      %v1338 = vsel %vm819, %v1316, -inf
      %1339 = vmax.xlane.f32.xlu0 %v1338
      %v1340 = vpop.xlane.xlu0 %1339
      %v1341 = vsub.f32 %v1309, %v1319
      %v1342 = vsub.f32 %v1310, %v1322
      %v1343 = vsub.f32 %v1311, %v1325
      %v1344 = vsub.f32 %v1312, %v1328
      %v1345 = vsub.f32 %v1313, %v1331
      %v1346 = vsub.f32 %v1314, %v1334
      %v1347 = vsub.f32 %v1315, %v1337
      %v1348 = vsub.f32 %v1316, %v1340
      %v1349 = vmul.f32 %v1341, 1.442695
      %v1350 = vpow.pop %v1349
      %v1351 = vmul.f32 %v1342, 1.442695
      %v1352 = vpow.pop %v1351
      %v1353 = vmul.f32 %v1343, 1.442695
      %v1354 = vpow.pop %v1353
      %v1355 = vmul.f32 %v1344, 1.442695
      %v1356 = vpow.pop %v1355
      %v1357 = vmul.f32 %v1345, 1.442695
      %v1358 = vpow.pop %v1357
      %v1359 = vmul.f32 %v1346, 1.442695
      %v1360 = vpow.pop %v1359
      %v1361 = vmul.f32 %v1347, 1.442695
      %v1362 = vpow.pop %v1361
      %v1363 = vmul.f32 %v1348, 1.442695
      %v1364 = vpow.pop %v1363
      %v1365 = vsel %vm819, %v1350, 0.0
      %1366 = vadd.xlane.f32.xlu0 %v1365
      %v1367 = vpop.xlane.xlu0 %1366
      %v1368 = vsel %vm819, %v1352, 0.0
      %1369 = vadd.xlane.f32.xlu0 %v1368
      %v1370 = vpop.xlane.xlu0 %1369
      %v1371 = vsel %vm819, %v1354, 0.0
      %1372 = vadd.xlane.f32.xlu0 %v1371
      %v1373 = vpop.xlane.xlu0 %1372
      %v1374 = vsel %vm819, %v1356, 0.0
      %1375 = vadd.xlane.f32.xlu0 %v1374
      %v1376 = vpop.xlane.xlu0 %1375
      %v1377 = vsel %vm819, %v1358, 0.0
      %1378 = vadd.xlane.f32.xlu0 %v1377
      %v1379 = vpop.xlane.xlu0 %1378
      %v1380 = vsel %vm819, %v1360, 0.0
      %1381 = vadd.xlane.f32.xlu0 %v1380
      %v1382 = vpop.xlane.xlu0 %1381
      %v1383 = vsel %vm819, %v1362, 0.0
      %1384 = vadd.xlane.f32.xlu0 %v1383
      %v1385 = vpop.xlane.xlu0 %1384
      %v1386 = vsel %vm819, %v1364, 0.0
      %1387 = vadd.xlane.f32.xlu0 %v1386
      %v1388 = vpop.xlane.xlu0 %1387
      %v1389 = vrcp.pop %v1367
      %v1390 = vrcp.pop %v1370
      %v1391 = vrcp.pop %v1373
      %v1392 = vrcp.pop %v1376
      %v1393 = vrcp.pop %v1379
      %v1394 = vrcp.pop %v1382
      %v1395 = vrcp.pop %v1385
      %v1396 = vrcp.pop %v1388
      %v1397 = vmul.f32 %v1350, %v1389
      %v1398 = vmul.f32 %v1352, %v1390
      %v1399 = vmul.f32 %v1354, %v1391
      %v1400 = vmul.f32 %v1356, %v1392
      %v1401 = vmul.f32 %v1358, %v1393
      %v1402 = vmul.f32 %v1360, %v1394
      %v1403 = vmul.f32 %v1362, %v1395
      %v1404 = vmul.f32 %v1364, %v1396
      %v1405 = vpack.c.bf16 %v1398, %v1397
      %v1406 = vpack.c.bf16 %v1400, %v1399
      %v1407 = vpack.c.bf16 %v1402, %v1401
      %v1408 = vpack.c.bf16 %v1404, %v1403
      %1409 = vrot.lane.b32.xlu0 %v606, 56
      %v1410 = vpop.permute.xlu0 %1409
      %v1413 = vsel %vm819, %v1405, 0
      %1415 = vmatprep.subr.bf16.mxu0 0
      %1416 = vmatpush1.bf16.msra.mxu0 0
      %1417 = vmatprep.subr.bf16.mxu0 0
      %1418 = vmatpush1.bf16.msra.mxu0 0
      %1419 = vmatprep.subr.bf16.mxu0 0
      %1420 = vmatpush1.bf16.msra.mxu0 0
      %1421 = vmatprep.subr.bf16.mxu0 0
      %1422 = vmatpush1.bf16.msra.mxu0 0
      %1423 = vmatprep.subr.bf16.mxu0 0
      %1424 = vmatpush1.bf16.msra.mxu0 0
      %1425 = vmatprep.subr.bf16.mxu0 0
      %1426 = vmatpush1.bf16.msra.mxu0 0
      %1427 = vmatprep.subr.bf16.mxu0 0
      %1428 = vmatpush1.bf16.msra.mxu0 0
      %1429 = vmatprep.subr.bf16.mxu0 0
      %1430 = vmatpush1.bf16.msra.mxu0 %v1410
      %1431 = vmatprep.subr.bf16.mxu0 0
      %1432 = vmatpush2.bf16.msra.mxu0 0
      %1433 = vmatprep.subr.bf16.mxu0 0
      %1434 = vmatpush2.bf16.msra.mxu0 0
      %1435 = vmatprep.subr.bf16.mxu0 0
      %1436 = vmatpush2.bf16.msra.mxu0 0
      %1437 = vmatprep.subr.bf16.mxu0 0
      %1438 = vmatpush2.bf16.msra.mxu0 0
      %1439 = vmatprep.subr.bf16.mxu0 0
      %1440 = vmatpush2.bf16.msra.mxu0 0
      %1441 = vmatprep.subr.bf16.mxu0 0
      %1442 = vmatpush2.bf16.msra.mxu0 0
      %1443 = vmatprep.subr.bf16.mxu0 0
      %1444 = vmatpush2.bf16.msra.mxu0 0
      %1445 = vmatprep.subr.bf16.mxu0 0
      %1446 = vmatpush2.bf16.msra.mxu0 0
      %1447 = vmatprep.mubr.bf16.mxu0 0
      %1448 = vmatmul.mubr.bf16.gmra.mxu0 %v1413
      %v1449 = vpop.f32.mrf.mxu0
      %v1450 = vadd.f32 0.0, %v1449
      %v1451 = vpop.f32.mrf.mxu0
      %v1452 = vpop.f32.mrf.mxu0
      %v1453 = vadd.f32 0.0, %v1452
      %v1454 = vpop.f32.mrf.mxu0
      %1455 = vdwg.mxu0
      %1456 = vrot.lane.b32.xlu0 %v607, 56
      %v1457 = vpop.permute.xlu0 %1456
      %v1460 = vsel %vm819, %v1406, 0
      %1462 = vmatprep.subr.bf16.mxu0 0
      %1463 = vmatpush1.bf16.msra.mxu0 0
      %1464 = vmatprep.subr.bf16.mxu0 0
      %1465 = vmatpush1.bf16.msra.mxu0 0
      %1466 = vmatprep.subr.bf16.mxu0 0
      %1467 = vmatpush1.bf16.msra.mxu0 0
      %1468 = vmatprep.subr.bf16.mxu0 0
      %1469 = vmatpush1.bf16.msra.mxu0 0
      %1470 = vmatprep.subr.bf16.mxu0 0
      %1471 = vmatpush1.bf16.msra.mxu0 0
      %1472 = vmatprep.subr.bf16.mxu0 0
      %1473 = vmatpush1.bf16.msra.mxu0 0
      %1474 = vmatprep.subr.bf16.mxu0 0
      %1475 = vmatpush1.bf16.msra.mxu0 0
      %1476 = vmatprep.subr.bf16.mxu0 0
      %1477 = vmatpush1.bf16.msra.mxu0 %v1457
      %1478 = vmatprep.subr.bf16.mxu0 0
      %1479 = vmatpush2.bf16.msra.mxu0 0
      %1480 = vmatprep.subr.bf16.mxu0 0
      %1481 = vmatpush2.bf16.msra.mxu0 0
      %1482 = vmatprep.subr.bf16.mxu0 0
      %1483 = vmatpush2.bf16.msra.mxu0 0
      %1484 = vmatprep.subr.bf16.mxu0 0
      %1485 = vmatpush2.bf16.msra.mxu0 0
      %1486 = vmatprep.subr.bf16.mxu0 0
      %1487 = vmatpush2.bf16.msra.mxu0 0
      %1488 = vmatprep.subr.bf16.mxu0 0
      %1489 = vmatpush2.bf16.msra.mxu0 0
      %1490 = vmatprep.subr.bf16.mxu0 0
      %1491 = vmatpush2.bf16.msra.mxu0 0
      %1492 = vmatprep.subr.bf16.mxu0 0
      %1493 = vmatpush2.bf16.msra.mxu0 0
      %1494 = vmatprep.mubr.bf16.mxu0 0
      %1495 = vmatmul.mubr.bf16.gmra.mxu0 %v1460
      %v1496 = vpop.f32.mrf.mxu0
      %v1497 = vadd.f32 0.0, %v1496
      %v1498 = vpop.f32.mrf.mxu0
      %v1499 = vpop.f32.mrf.mxu0
      %v1500 = vadd.f32 0.0, %v1499
      %v1501 = vpop.f32.mrf.mxu0
      %1502 = vdwg.mxu0
      %1503 = vrot.lane.b32.xlu0 %v608, 56
      %v1504 = vpop.permute.xlu0 %1503
      %v1507 = vsel %vm819, %v1407, 0
      %1509 = vmatprep.subr.bf16.mxu0 0
      %1510 = vmatpush1.bf16.msra.mxu0 0
      %1511 = vmatprep.subr.bf16.mxu0 0
      %1512 = vmatpush1.bf16.msra.mxu0 0
      %1513 = vmatprep.subr.bf16.mxu0 0
      %1514 = vmatpush1.bf16.msra.mxu0 0
      %1515 = vmatprep.subr.bf16.mxu0 0
      %1516 = vmatpush1.bf16.msra.mxu0 0
      %1517 = vmatprep.subr.bf16.mxu0 0
      %1518 = vmatpush1.bf16.msra.mxu0 0
      %1519 = vmatprep.subr.bf16.mxu0 0
      %1520 = vmatpush1.bf16.msra.mxu0 0
      %1521 = vmatprep.subr.bf16.mxu0 0
      %1522 = vmatpush1.bf16.msra.mxu0 0
      %1523 = vmatprep.subr.bf16.mxu0 0
      %1524 = vmatpush1.bf16.msra.mxu0 %v1504
      %1525 = vmatprep.subr.bf16.mxu0 0
      %1526 = vmatpush2.bf16.msra.mxu0 0
      %1527 = vmatprep.subr.bf16.mxu0 0
      %1528 = vmatpush2.bf16.msra.mxu0 0
      %1529 = vmatprep.subr.bf16.mxu0 0
      %1530 = vmatpush2.bf16.msra.mxu0 0
      %1531 = vmatprep.subr.bf16.mxu0 0
      %1532 = vmatpush2.bf16.msra.mxu0 0
      %1533 = vmatprep.subr.bf16.mxu0 0
      %1534 = vmatpush2.bf16.msra.mxu0 0
      %1535 = vmatprep.subr.bf16.mxu0 0
      %1536 = vmatpush2.bf16.msra.mxu0 0
      %1537 = vmatprep.subr.bf16.mxu0 0
      %1538 = vmatpush2.bf16.msra.mxu0 0
      %1539 = vmatprep.subr.bf16.mxu0 0
      %1540 = vmatpush2.bf16.msra.mxu0 0
      %1541 = vmatprep.mubr.bf16.mxu0 0
      %1542 = vmatmul.mubr.bf16.gmra.mxu0 %v1507
      %v1543 = vpop.f32.mrf.mxu0
      %v1544 = vadd.f32 0.0, %v1543
      %v1545 = vpop.f32.mrf.mxu0
      %v1546 = vpop.f32.mrf.mxu0
      %v1547 = vadd.f32 0.0, %v1546
      %v1548 = vpop.f32.mrf.mxu0
      %1549 = vdwg.mxu0
      %1550 = vrot.lane.b32.xlu0 %v609, 56
      %v1551 = vpop.permute.xlu0 %1550
      %v1554 = vsel %vm819, %v1408, 0
      %1556 = vmatprep.subr.bf16.mxu0 0
      %1557 = vmatpush1.bf16.msra.mxu0 0
      %1558 = vmatprep.subr.bf16.mxu0 0
      %1559 = vmatpush1.bf16.msra.mxu0 0
      %1560 = vmatprep.subr.bf16.mxu0 0
      %1561 = vmatpush1.bf16.msra.mxu0 0
      %1562 = vmatprep.subr.bf16.mxu0 0
      %1563 = vmatpush1.bf16.msra.mxu0 0
      %1564 = vmatprep.subr.bf16.mxu0 0
      %1565 = vmatpush1.bf16.msra.mxu0 0
      %1566 = vmatprep.subr.bf16.mxu0 0
      %1567 = vmatpush1.bf16.msra.mxu0 0
      %1568 = vmatprep.subr.bf16.mxu0 0
      %1569 = vmatpush1.bf16.msra.mxu0 0
      %1570 = vmatprep.subr.bf16.mxu0 0
      %1571 = vmatpush1.bf16.msra.mxu0 %v1551
      %1572 = vmatprep.subr.bf16.mxu0 0
      %1573 = vmatpush2.bf16.msra.mxu0 0
      %1574 = vmatprep.subr.bf16.mxu0 0
      %1575 = vmatpush2.bf16.msra.mxu0 0
      %1576 = vmatprep.subr.bf16.mxu0 0
      %1577 = vmatpush2.bf16.msra.mxu0 0
      %1578 = vmatprep.subr.bf16.mxu0 0
      %1579 = vmatpush2.bf16.msra.mxu0 0
      %1580 = vmatprep.subr.bf16.mxu0 0
      %1581 = vmatpush2.bf16.msra.mxu0 0
      %1582 = vmatprep.subr.bf16.mxu0 0
      %1583 = vmatpush2.bf16.msra.mxu0 0
      %1584 = vmatprep.subr.bf16.mxu0 0
      %1585 = vmatpush2.bf16.msra.mxu0 0
      %1586 = vmatprep.subr.bf16.mxu0 0
      %1587 = vmatpush2.bf16.msra.mxu0 0
      %1588 = vmatprep.mubr.bf16.mxu0 0
      %1589 = vmatmul.mubr.bf16.gmra.mxu0 %v1554
      %v1590 = vpop.f32.mrf.mxu0
      %v1591 = vadd.f32 0.0, %v1590
      %v1592 = vpop.f32.mrf.mxu0
      %v1593 = vpop.f32.mrf.mxu0
      %v1594 = vadd.f32 0.0, %v1593
      %v1595 = vpop.f32.mrf.mxu0
      %1596 = vdwg.mxu0
      %v1597 = vpack.c.bf16 %v1453, %v1450
      %v1598 = vpack.c.bf16 %v1500, %v1497
      %v1599 = vpack.c.bf16 %v1547, %v1544
      %v1600 = vpack.c.bf16 %v1594, %v1591
      %v1601 = vld [vmem:[%s5 + $0x4] sm:$0xf]
      %v1603 = vsel %vm613, %v1597, 0
      %v1606 = vsel %vm613, %v1598, 0
      %v1609 = vsel %vm613, %v1599, 0
      %v1612 = vsel %vm613, %v1600, 0
      %vm1614 = vcmask 1043456
      %v1616 = vsel %vm1614, %v1601, 0
      %1618 = vmatprep.subr.bf16.mxu0 0
      %1619 = vmatpush1.bf16.msra.mxu0 0
      %1620 = vmatprep.subr.bf16.mxu0 0
      %1621 = vmatpush1.bf16.msra.mxu0 0
      %1622 = vmatprep.subr.bf16.mxu0 0
      %1623 = vmatpush1.bf16.msra.mxu0 0
      %1624 = vmatprep.subr.bf16.mxu0 0
      %1625 = vmatpush1.bf16.msra.mxu0 0
      %1626 = vmatprep.subr.bf16.mxu0 0
      %1627 = vmatpush1.bf16.msra.mxu0 0
      %1628 = vmatprep.subr.bf16.mxu0 0
      %1629 = vmatpush1.bf16.msra.mxu0 0
      %1630 = vmatprep.subr.bf16.mxu0 0
      %1631 = vmatpush1.bf16.msra.mxu0 0
      %1632 = vmatprep.subr.bf16.mxu0 0
      %1633 = vmatpush1.bf16.msra.mxu0 %v1616
      %1634 = vmatprep.subr.bf16.mxu0 0
      %1635 = vmatpush2.bf16.msra.mxu0 0
      %1636 = vmatprep.subr.bf16.mxu0 0
      %1637 = vmatpush2.bf16.msra.mxu0 0
      %1638 = vmatprep.subr.bf16.mxu0 0
      %1639 = vmatpush2.bf16.msra.mxu0 0
      %1640 = vmatprep.subr.bf16.mxu0 0
      %1641 = vmatpush2.bf16.msra.mxu0 0
      %1642 = vmatprep.subr.bf16.mxu0 0
      %1643 = vmatpush2.bf16.msra.mxu0 0
      %1644 = vmatprep.subr.bf16.mxu0 0
      %1645 = vmatpush2.bf16.msra.mxu0 0
      %1646 = vmatprep.subr.bf16.mxu0 0
      %1647 = vmatpush2.bf16.msra.mxu0 0
      %1648 = vmatprep.subr.bf16.mxu0 0
      %1649 = vmatpush2.bf16.msra.mxu0 0
      %1650 = vmatprep.mubr.bf16.mxu0 0
      %1651 = vmatmul.mubr.bf16.gmra.mxu0 %v1603
      %v1652 = vpop.f32.mrf.mxu0
      %v1653 = vadd.f32 0.0, %v1652
      %v1654 = vpop.f32.mrf.mxu0
      %v1655 = vpop.f32.mrf.mxu0
      %v1656 = vadd.f32 0.0, %v1655
      %v1657 = vpop.f32.mrf.mxu0
      %1658 = vmatprep.mubr.bf16.mxu0 0
      %1659 = vmatmul.mubr.bf16.gmra.mxu0 %v1606
      %v1660 = vpop.f32.mrf.mxu0
      %v1661 = vadd.f32 0.0, %v1660
      %v1662 = vpop.f32.mrf.mxu0
      %v1663 = vpop.f32.mrf.mxu0
      %v1664 = vadd.f32 0.0, %v1663
      %v1665 = vpop.f32.mrf.mxu0
      %1666 = vmatprep.mubr.bf16.mxu0 0
      %1667 = vmatmul.mubr.bf16.gmra.mxu0 %v1609
      %v1668 = vpop.f32.mrf.mxu0
      %v1669 = vadd.f32 0.0, %v1668
      %v1670 = vpop.f32.mrf.mxu0
      %v1671 = vpop.f32.mrf.mxu0
      %v1672 = vadd.f32 0.0, %v1671
      %v1673 = vpop.f32.mrf.mxu0
      %1674 = vmatprep.mubr.bf16.mxu0 0
      %1675 = vmatmul.mubr.bf16.gmra.mxu0 %v1612
      %v1676 = vpop.f32.mrf.mxu0
      %v1677 = vadd.f32 0.0, %v1676
      %v1678 = vpop.f32.mrf.mxu0
      %v1679 = vpop.f32.mrf.mxu0
      %v1680 = vadd.f32 0.0, %v1679
      %v1681 = vpop.f32.mrf.mxu0
      %1682 = vdwg.mxu0
      %v1684 = vsel %vm613, %v1100, 0
      %v1687 = vsel %vm613, %v1101, 0
      %v1690 = vsel %vm613, %v1102, 0
      %v1693 = vsel %vm613, %v1103, 0
      %v1696 = vsel %vm1614, %v1104, 0
      %1698 = vmatprep.subr.bf16.mxu0 0
      %1699 = vmatpush1.bf16.msra.mxu0 0
      %1700 = vmatprep.subr.bf16.mxu0 0
      %1701 = vmatpush1.bf16.msra.mxu0 0
      %1702 = vmatprep.subr.bf16.mxu0 0
      %1703 = vmatpush1.bf16.msra.mxu0 0
      %1704 = vmatprep.subr.bf16.mxu0 0
      %1705 = vmatpush1.bf16.msra.mxu0 0
      %1706 = vmatprep.subr.bf16.mxu0 0
      %1707 = vmatpush1.bf16.msra.mxu0 0
      %1708 = vmatprep.subr.bf16.mxu0 0
      %1709 = vmatpush1.bf16.msra.mxu0 0
      %1710 = vmatprep.subr.bf16.mxu0 0
      %1711 = vmatpush1.bf16.msra.mxu0 0
      %1712 = vmatprep.subr.bf16.mxu0 0
      %1713 = vmatpush1.bf16.msra.mxu0 %v1696
      %1714 = vmatprep.subr.bf16.mxu0 0
      %1715 = vmatpush2.bf16.msra.mxu0 0
      %1716 = vmatprep.subr.bf16.mxu0 0
      %1717 = vmatpush2.bf16.msra.mxu0 0
      %1718 = vmatprep.subr.bf16.mxu0 0
      %1719 = vmatpush2.bf16.msra.mxu0 0
      %1720 = vmatprep.subr.bf16.mxu0 0
      %1721 = vmatpush2.bf16.msra.mxu0 0
      %1722 = vmatprep.subr.bf16.mxu0 0
      %1723 = vmatpush2.bf16.msra.mxu0 0
      %1724 = vmatprep.subr.bf16.mxu0 0
      %1725 = vmatpush2.bf16.msra.mxu0 0
      %1726 = vmatprep.subr.bf16.mxu0 0
      %1727 = vmatpush2.bf16.msra.mxu0 0
      %1728 = vmatprep.subr.bf16.mxu0 0
      %1729 = vmatpush2.bf16.msra.mxu0 0
      %1730 = vmatprep.mubr.bf16.mxu0 0
      %1731 = vmatmul.mubr.bf16.gmra.mxu0 %v1684
      %v1732 = vpop.f32.mrf.mxu0
      %v1733 = vadd.f32 %v1653, %v1732
      %v1734 = vpop.f32.mrf.mxu0
      %v1735 = vpop.f32.mrf.mxu0
      %v1736 = vadd.f32 %v1656, %v1735
      %v1737 = vpop.f32.mrf.mxu0
      %1738 = vmatprep.mubr.bf16.mxu0 0
      %1739 = vmatmul.mubr.bf16.gmra.mxu0 %v1687
      %v1740 = vpop.f32.mrf.mxu0
      %v1741 = vadd.f32 %v1661, %v1740
      %v1742 = vpop.f32.mrf.mxu0
      %v1743 = vpop.f32.mrf.mxu0
      %v1744 = vadd.f32 %v1664, %v1743
      %v1745 = vpop.f32.mrf.mxu0
      %1746 = vmatprep.mubr.bf16.mxu0 0
      %1747 = vmatmul.mubr.bf16.gmra.mxu0 %v1690
      %v1748 = vpop.f32.mrf.mxu0
      %v1749 = vadd.f32 %v1669, %v1748
      %v1750 = vpop.f32.mrf.mxu0
      %v1751 = vpop.f32.mrf.mxu0
      %v1752 = vadd.f32 %v1672, %v1751
      %v1753 = vpop.f32.mrf.mxu0
      %1754 = vmatprep.mubr.bf16.mxu0 0
      %1755 = vmatmul.mubr.bf16.gmra.mxu0 %v1693
      %v1756 = vpop.f32.mrf.mxu0
      %v1757 = vadd.f32 %v1677, %v1756
      %v1758 = vpop.f32.mrf.mxu0
      %v1759 = vpop.f32.mrf.mxu0
      %v1760 = vadd.f32 %v1680, %v1759
      %v1761 = vpop.f32.mrf.mxu0
      %1762 = vdwg.mxu0
      %1763 = vrot.lane.b32.xlu0 %v606, 112
      %v1764 = vpop.permute.xlu0 %1763
      %1765 = vrot.lane.b32.xlu0 %v606, 80
      %v1766 = vpop.permute.xlu0 %1765
      %v1768 = vsel %vm613, %v1764, 0
      %v1771 = vsel %vm613, %v1766, 0
      %1773 = vmatprep.subr.bf16.mxu0 0
      %1774 = vmatpush1.bf16.xpose.msra.mxu0 0
      %1775 = vmatprep.subr.bf16.mxu0 0
      %1776 = vmatpush1.bf16.xpose.msra.mxu0 0
      %1777 = vmatprep.subr.bf16.mxu0 0
      %1778 = vmatpush1.bf16.xpose.msra.mxu0 0
      %1779 = vmatprep.subr.bf16.mxu0 0
      %1780 = vmatpush1.bf16.xpose.msra.mxu0 0
      %1781 = vmatprep.subr.bf16.mxu0 0
      %1782 = vmatpush1.bf16.xpose.msra.mxu0 0
      %1783 = vmatprep.subr.bf16.mxu0 0
      %1784 = vmatpush1.bf16.xpose.msra.mxu0 0
      %1785 = vmatprep.subr.bf16.mxu0 0
      %1786 = vmatpush1.bf16.xpose.msra.mxu0 0
      %1787 = vmatprep.subr.bf16.mxu0 0
      %1788 = vmatpush1.bf16.xpose.msra.mxu0 %v1771
      %1789 = vmatprep.subr.bf16.mxu0 0
      %1790 = vmatpush2.bf16.xpose.msra.mxu0 0
      %1791 = vmatprep.subr.bf16.mxu0 0
      %1792 = vmatpush2.bf16.xpose.msra.mxu0 0
      %1793 = vmatprep.subr.bf16.mxu0 0
      %1794 = vmatpush2.bf16.xpose.msra.mxu0 0
      %1795 = vmatprep.subr.bf16.mxu0 0
      %1796 = vmatpush2.bf16.xpose.msra.mxu0 0
      %1797 = vmatprep.subr.bf16.mxu0 0
      %1798 = vmatpush2.bf16.xpose.msra.mxu0 0
      %1799 = vmatprep.subr.bf16.mxu0 0
      %1800 = vmatpush2.bf16.xpose.msra.mxu0 0
      %1801 = vmatprep.subr.bf16.mxu0 0
      %1802 = vmatpush2.bf16.xpose.msra.mxu0 0
      %1803 = vmatprep.subr.bf16.mxu0 0
      %1804 = vmatpush2.bf16.xpose.msra.mxu0 0
      %1805 = vmatprep.mubr.bf16.mxu0 0
      %1806 = vmatmul.mubr.bf16.gmra.mxu0 %v1768
      %v1807 = vpop.f32.mrf.mxu0
      %v1808 = vadd.f32 %v594, %v1807
      %v1809 = vpop.f32.mrf.mxu0
      %v1810 = vpop.f32.mrf.mxu0
      %v1811 = vadd.f32 %v595, %v1810
      %v1812 = vpop.f32.mrf.mxu0
      %1813 = vdwg.mxu0
      %1814 = vrot.lane.b32.xlu0 %v607, 112
      %v1815 = vpop.permute.xlu0 %1814
      %1816 = vrot.lane.b32.xlu0 %v607, 80
      %v1817 = vpop.permute.xlu0 %1816
      %v1819 = vsel %vm613, %v1815, 0
      %v1822 = vsel %vm613, %v1817, 0
      %1824 = vmatprep.subr.bf16.mxu0 0
      %1825 = vmatpush1.bf16.xpose.msra.mxu0 0
      %1826 = vmatprep.subr.bf16.mxu0 0
      %1827 = vmatpush1.bf16.xpose.msra.mxu0 0
      %1828 = vmatprep.subr.bf16.mxu0 0
      %1829 = vmatpush1.bf16.xpose.msra.mxu0 0
      %1830 = vmatprep.subr.bf16.mxu0 0
      %1831 = vmatpush1.bf16.xpose.msra.mxu0 0
      %1832 = vmatprep.subr.bf16.mxu0 0
      %1833 = vmatpush1.bf16.xpose.msra.mxu0 0
      %1834 = vmatprep.subr.bf16.mxu0 0
      %1835 = vmatpush1.bf16.xpose.msra.mxu0 0
      %1836 = vmatprep.subr.bf16.mxu0 0
      %1837 = vmatpush1.bf16.xpose.msra.mxu0 0
      %1838 = vmatprep.subr.bf16.mxu0 0
      %1839 = vmatpush1.bf16.xpose.msra.mxu0 %v1822
      %1840 = vmatprep.subr.bf16.mxu0 0
      %1841 = vmatpush2.bf16.xpose.msra.mxu0 0
      %1842 = vmatprep.subr.bf16.mxu0 0
      %1843 = vmatpush2.bf16.xpose.msra.mxu0 0
      %1844 = vmatprep.subr.bf16.mxu0 0
      %1845 = vmatpush2.bf16.xpose.msra.mxu0 0
      %1846 = vmatprep.subr.bf16.mxu0 0
      %1847 = vmatpush2.bf16.xpose.msra.mxu0 0
      %1848 = vmatprep.subr.bf16.mxu0 0
      %1849 = vmatpush2.bf16.xpose.msra.mxu0 0
      %1850 = vmatprep.subr.bf16.mxu0 0
      %1851 = vmatpush2.bf16.xpose.msra.mxu0 0
      %1852 = vmatprep.subr.bf16.mxu0 0
      %1853 = vmatpush2.bf16.xpose.msra.mxu0 0
      %1854 = vmatprep.subr.bf16.mxu0 0
      %1855 = vmatpush2.bf16.xpose.msra.mxu0 0
      %1856 = vmatprep.mubr.bf16.mxu0 0
      %1857 = vmatmul.mubr.bf16.gmra.mxu0 %v1819
      %v1858 = vpop.f32.mrf.mxu0
      %v1859 = vadd.f32 %v594, %v1858
      %v1860 = vpop.f32.mrf.mxu0
      %v1861 = vpop.f32.mrf.mxu0
      %v1862 = vadd.f32 %v595, %v1861
      %v1863 = vpop.f32.mrf.mxu0
      %1864 = vdwg.mxu0
      %1865 = vrot.lane.b32.xlu0 %v608, 112
      %v1866 = vpop.permute.xlu0 %1865
      %1867 = vrot.lane.b32.xlu0 %v608, 80
      %v1868 = vpop.permute.xlu0 %1867
      %v1870 = vsel %vm613, %v1866, 0
      %v1873 = vsel %vm613, %v1868, 0
      %1875 = vmatprep.subr.bf16.mxu0 0
      %1876 = vmatpush1.bf16.xpose.msra.mxu0 0
      %1877 = vmatprep.subr.bf16.mxu0 0
      %1878 = vmatpush1.bf16.xpose.msra.mxu0 0
      %1879 = vmatprep.subr.bf16.mxu0 0
      %1880 = vmatpush1.bf16.xpose.msra.mxu0 0
      %1881 = vmatprep.subr.bf16.mxu0 0
      %1882 = vmatpush1.bf16.xpose.msra.mxu0 0
      %1883 = vmatprep.subr.bf16.mxu0 0
      %1884 = vmatpush1.bf16.xpose.msra.mxu0 0
      %1885 = vmatprep.subr.bf16.mxu0 0
      %1886 = vmatpush1.bf16.xpose.msra.mxu0 0
      %1887 = vmatprep.subr.bf16.mxu0 0
      %1888 = vmatpush1.bf16.xpose.msra.mxu0 0
      %1889 = vmatprep.subr.bf16.mxu0 0
      %1890 = vmatpush1.bf16.xpose.msra.mxu0 %v1873
      %1891 = vmatprep.subr.bf16.mxu0 0
      %1892 = vmatpush2.bf16.xpose.msra.mxu0 0
      %1893 = vmatprep.subr.bf16.mxu0 0
      %1894 = vmatpush2.bf16.xpose.msra.mxu0 0
      %1895 = vmatprep.subr.bf16.mxu0 0
      %1896 = vmatpush2.bf16.xpose.msra.mxu0 0
      %1897 = vmatprep.subr.bf16.mxu0 0
      %1898 = vmatpush2.bf16.xpose.msra.mxu0 0
      %1899 = vmatprep.subr.bf16.mxu0 0
      %1900 = vmatpush2.bf16.xpose.msra.mxu0 0
      %1901 = vmatprep.subr.bf16.mxu0 0
      %1902 = vmatpush2.bf16.xpose.msra.mxu0 0
      %1903 = vmatprep.subr.bf16.mxu0 0
      %1904 = vmatpush2.bf16.xpose.msra.mxu0 0
      %1905 = vmatprep.subr.bf16.mxu0 0
      %1906 = vmatpush2.bf16.xpose.msra.mxu0 0
      %1907 = vmatprep.mubr.bf16.mxu0 0
      %1908 = vmatmul.mubr.bf16.gmra.mxu0 %v1870
      %v1909 = vpop.f32.mrf.mxu0
      %v1910 = vadd.f32 %v594, %v1909
      %v1911 = vpop.f32.mrf.mxu0
      %v1912 = vpop.f32.mrf.mxu0
      %v1913 = vadd.f32 %v595, %v1912
      %v1914 = vpop.f32.mrf.mxu0
      %1915 = vdwg.mxu0
      %1916 = vrot.lane.b32.xlu0 %v609, 112
      %v1917 = vpop.permute.xlu0 %1916
      %1918 = vrot.lane.b32.xlu0 %v609, 80
      %v1919 = vpop.permute.xlu0 %1918
      %v1921 = vsel %vm613, %v1917, 0
      %v1924 = vsel %vm613, %v1919, 0
      %1926 = vmatprep.subr.bf16.mxu0 0
      %1927 = vmatpush1.bf16.xpose.msra.mxu0 0
      %1928 = vmatprep.subr.bf16.mxu0 0
      %1929 = vmatpush1.bf16.xpose.msra.mxu0 0
      %1930 = vmatprep.subr.bf16.mxu0 0
      %1931 = vmatpush1.bf16.xpose.msra.mxu0 0
      %1932 = vmatprep.subr.bf16.mxu0 0
      %1933 = vmatpush1.bf16.xpose.msra.mxu0 0
      %1934 = vmatprep.subr.bf16.mxu0 0
      %1935 = vmatpush1.bf16.xpose.msra.mxu0 0
      %1936 = vmatprep.subr.bf16.mxu0 0
      %1937 = vmatpush1.bf16.xpose.msra.mxu0 0
      %1938 = vmatprep.subr.bf16.mxu0 0
      %1939 = vmatpush1.bf16.xpose.msra.mxu0 0
      %1940 = vmatprep.subr.bf16.mxu0 0
      %1941 = vmatpush1.bf16.xpose.msra.mxu0 %v1924
      %1942 = vmatprep.subr.bf16.mxu0 0
      %1943 = vmatpush2.bf16.xpose.msra.mxu0 0
      %1944 = vmatprep.subr.bf16.mxu0 0
      %1945 = vmatpush2.bf16.xpose.msra.mxu0 0
      %1946 = vmatprep.subr.bf16.mxu0 0
      %1947 = vmatpush2.bf16.xpose.msra.mxu0 0
      %1948 = vmatprep.subr.bf16.mxu0 0
      %1949 = vmatpush2.bf16.xpose.msra.mxu0 0
      %1950 = vmatprep.subr.bf16.mxu0 0
      %1951 = vmatpush2.bf16.xpose.msra.mxu0 0
      %1952 = vmatprep.subr.bf16.mxu0 0
      %1953 = vmatpush2.bf16.xpose.msra.mxu0 0
      %1954 = vmatprep.subr.bf16.mxu0 0
      %1955 = vmatpush2.bf16.xpose.msra.mxu0 0
      %1956 = vmatprep.subr.bf16.mxu0 0
      %1957 = vmatpush2.bf16.xpose.msra.mxu0 0
      %1958 = vmatprep.mubr.bf16.mxu0 0
      %1959 = vmatmul.mubr.bf16.gmra.mxu0 %v1921
      %v1960 = vpop.f32.mrf.mxu0
      %v1961 = vadd.f32 %v594, %v1960
      %v1962 = vpop.f32.mrf.mxu0
      %v1963 = vpop.f32.mrf.mxu0
      %v1964 = vadd.f32 %v595, %v1963
      %v1965 = vpop.f32.mrf.mxu0
      %1966 = vdwg.mxu0
      %v1967 = vadd.f32 %v1808, %v598
      %v1968 = vadd.f32 %v1811, %v599
      %v1969 = vadd.f32 %v1859, %v600
      %v1970 = vadd.f32 %v1862, %v601
      %v1971 = vadd.f32 %v1910, %v602
      %v1972 = vadd.f32 %v1913, %v603
      %v1973 = vadd.f32 %v1961, %v604
      %v1974 = vadd.f32 %v1964, %v605
      %v1975 = vsel %vm819, %v1967, -inf
      %1976 = vmax.xlane.f32.xlu0 %v1975
      %v1977 = vpop.xlane.xlu0 %1976
      %v1978 = vsel %vm819, %v1968, -inf
      %1979 = vmax.xlane.f32.xlu0 %v1978
      %v1980 = vpop.xlane.xlu0 %1979
      %v1981 = vsel %vm819, %v1969, -inf
      %1982 = vmax.xlane.f32.xlu0 %v1981
      %v1983 = vpop.xlane.xlu0 %1982
      %v1984 = vsel %vm819, %v1970, -inf
      %1985 = vmax.xlane.f32.xlu0 %v1984
      %v1986 = vpop.xlane.xlu0 %1985
      %v1987 = vsel %vm819, %v1971, -inf
      %1988 = vmax.xlane.f32.xlu0 %v1987
      %v1989 = vpop.xlane.xlu0 %1988
      %v1990 = vsel %vm819, %v1972, -inf
      %1991 = vmax.xlane.f32.xlu0 %v1990
      %v1992 = vpop.xlane.xlu0 %1991
      %v1993 = vsel %vm819, %v1973, -inf
      %1994 = vmax.xlane.f32.xlu0 %v1993
      %v1995 = vpop.xlane.xlu0 %1994
      %v1996 = vsel %vm819, %v1974, -inf
      %1997 = vmax.xlane.f32.xlu0 %v1996
      %v1998 = vpop.xlane.xlu0 %1997
      %v1999 = vsub.f32 %v1967, %v1977
      %v2000 = vsub.f32 %v1968, %v1980
      %v2001 = vsub.f32 %v1969, %v1983
      %v2002 = vsub.f32 %v1970, %v1986
      %v2003 = vsub.f32 %v1971, %v1989
      %v2004 = vsub.f32 %v1972, %v1992
      %v2005 = vsub.f32 %v1973, %v1995
      %v2006 = vsub.f32 %v1974, %v1998
      %v2007 = vmul.f32 %v1999, 1.442695
      %v2008 = vpow.pop %v2007
      %v2009 = vmul.f32 %v2000, 1.442695
      %v2010 = vpow.pop %v2009
      %v2011 = vmul.f32 %v2001, 1.442695
      %v2012 = vpow.pop %v2011
      %v2013 = vmul.f32 %v2002, 1.442695
      %v2014 = vpow.pop %v2013
      %v2015 = vmul.f32 %v2003, 1.442695
      %v2016 = vpow.pop %v2015
      %v2017 = vmul.f32 %v2004, 1.442695
      %v2018 = vpow.pop %v2017
      %v2019 = vmul.f32 %v2005, 1.442695
      %v2020 = vpow.pop %v2019
      %v2021 = vmul.f32 %v2006, 1.442695
      %v2022 = vpow.pop %v2021
      %v2023 = vsel %vm819, %v2008, 0.0
      %2024 = vadd.xlane.f32.xlu0 %v2023
      %v2025 = vpop.xlane.xlu0 %2024
      %v2026 = vsel %vm819, %v2010, 0.0
      %2027 = vadd.xlane.f32.xlu0 %v2026
      %v2028 = vpop.xlane.xlu0 %2027
      %v2029 = vsel %vm819, %v2012, 0.0
      %2030 = vadd.xlane.f32.xlu0 %v2029
      %v2031 = vpop.xlane.xlu0 %2030
      %v2032 = vsel %vm819, %v2014, 0.0
      %2033 = vadd.xlane.f32.xlu0 %v2032
      %v2034 = vpop.xlane.xlu0 %2033
      %v2035 = vsel %vm819, %v2016, 0.0
      %2036 = vadd.xlane.f32.xlu0 %v2035
      %v2037 = vpop.xlane.xlu0 %2036
      %v2038 = vsel %vm819, %v2018, 0.0
      %2039 = vadd.xlane.f32.xlu0 %v2038
      %v2040 = vpop.xlane.xlu0 %2039
      %v2041 = vsel %vm819, %v2020, 0.0
      %2042 = vadd.xlane.f32.xlu0 %v2041
      %v2043 = vpop.xlane.xlu0 %2042
      %v2044 = vsel %vm819, %v2022, 0.0
      %2045 = vadd.xlane.f32.xlu0 %v2044
      %v2046 = vpop.xlane.xlu0 %2045
      %v2047 = vrcp.pop %v2025
      %v2048 = vrcp.pop %v2028
      %v2049 = vrcp.pop %v2031
      %v2050 = vrcp.pop %v2034
      %v2051 = vrcp.pop %v2037
      %v2052 = vrcp.pop %v2040
      %v2053 = vrcp.pop %v2043
      %v2054 = vrcp.pop %v2046
      %v2055 = vmul.f32 %v2008, %v2047
      %v2056 = vmul.f32 %v2010, %v2048
      %v2057 = vmul.f32 %v2012, %v2049
      %v2058 = vmul.f32 %v2014, %v2050
      %v2059 = vmul.f32 %v2016, %v2051
      %v2060 = vmul.f32 %v2018, %v2052
      %v2061 = vmul.f32 %v2020, %v2053
      %v2062 = vmul.f32 %v2022, %v2054
      %v2063 = vpack.c.bf16 %v2056, %v2055
      %v2064 = vpack.c.bf16 %v2058, %v2057
      %v2065 = vpack.c.bf16 %v2060, %v2059
      %v2066 = vpack.c.bf16 %v2062, %v2061
      %2067 = vrot.lane.b32.xlu0 %v606, 48
      %v2068 = vpop.permute.xlu0 %2067
      %v2071 = vsel %vm819, %v2063, 0
      %2073 = vmatprep.subr.bf16.mxu0 0
      %2074 = vmatpush1.bf16.msra.mxu0 0
      %2075 = vmatprep.subr.bf16.mxu0 0
      %2076 = vmatpush1.bf16.msra.mxu0 0
      %2077 = vmatprep.subr.bf16.mxu0 0
      %2078 = vmatpush1.bf16.msra.mxu0 0
      %2079 = vmatprep.subr.bf16.mxu0 0
      %2080 = vmatpush1.bf16.msra.mxu0 0
      %2081 = vmatprep.subr.bf16.mxu0 0
      %2082 = vmatpush1.bf16.msra.mxu0 0
      %2083 = vmatprep.subr.bf16.mxu0 0
      %2084 = vmatpush1.bf16.msra.mxu0 0
      %2085 = vmatprep.subr.bf16.mxu0 0
      %2086 = vmatpush1.bf16.msra.mxu0 0
      %2087 = vmatprep.subr.bf16.mxu0 0
      %2088 = vmatpush1.bf16.msra.mxu0 %v2068
      %2089 = vmatprep.subr.bf16.mxu0 0
      %2090 = vmatpush2.bf16.msra.mxu0 0
      %2091 = vmatprep.subr.bf16.mxu0 0
      %2092 = vmatpush2.bf16.msra.mxu0 0
      %2093 = vmatprep.subr.bf16.mxu0 0
      %2094 = vmatpush2.bf16.msra.mxu0 0
      %2095 = vmatprep.subr.bf16.mxu0 0
      %2096 = vmatpush2.bf16.msra.mxu0 0
      %2097 = vmatprep.subr.bf16.mxu0 0
      %2098 = vmatpush2.bf16.msra.mxu0 0
      %2099 = vmatprep.subr.bf16.mxu0 0
      %2100 = vmatpush2.bf16.msra.mxu0 0
      %2101 = vmatprep.subr.bf16.mxu0 0
      %2102 = vmatpush2.bf16.msra.mxu0 0
      %2103 = vmatprep.subr.bf16.mxu0 0
      %2104 = vmatpush2.bf16.msra.mxu0 0
      %2105 = vmatprep.mubr.bf16.mxu0 0
      %2106 = vmatmul.mubr.bf16.gmra.mxu0 %v2071
      %v2107 = vpop.f32.mrf.mxu0
      %v2108 = vadd.f32 0.0, %v2107
      %v2109 = vpop.f32.mrf.mxu0
      %v2110 = vpop.f32.mrf.mxu0
      %v2111 = vadd.f32 0.0, %v2110
      %v2112 = vpop.f32.mrf.mxu0
      %2113 = vdwg.mxu0
      %2114 = vrot.lane.b32.xlu0 %v607, 48
      %v2115 = vpop.permute.xlu0 %2114
      %v2118 = vsel %vm819, %v2064, 0
      %2120 = vmatprep.subr.bf16.mxu0 0
      %2121 = vmatpush1.bf16.msra.mxu0 0
      %2122 = vmatprep.subr.bf16.mxu0 0
      %2123 = vmatpush1.bf16.msra.mxu0 0
      %2124 = vmatprep.subr.bf16.mxu0 0
      %2125 = vmatpush1.bf16.msra.mxu0 0
      %2126 = vmatprep.subr.bf16.mxu0 0
      %2127 = vmatpush1.bf16.msra.mxu0 0
      %2128 = vmatprep.subr.bf16.mxu0 0
      %2129 = vmatpush1.bf16.msra.mxu0 0
      %2130 = vmatprep.subr.bf16.mxu0 0
      %2131 = vmatpush1.bf16.msra.mxu0 0
      %2132 = vmatprep.subr.bf16.mxu0 0
      %2133 = vmatpush1.bf16.msra.mxu0 0
      %2134 = vmatprep.subr.bf16.mxu0 0
      %2135 = vmatpush1.bf16.msra.mxu0 %v2115
      %2136 = vmatprep.subr.bf16.mxu0 0
      %2137 = vmatpush2.bf16.msra.mxu0 0
      %2138 = vmatprep.subr.bf16.mxu0 0
      %2139 = vmatpush2.bf16.msra.mxu0 0
      %2140 = vmatprep.subr.bf16.mxu0 0
      %2141 = vmatpush2.bf16.msra.mxu0 0
      %2142 = vmatprep.subr.bf16.mxu0 0
      %2143 = vmatpush2.bf16.msra.mxu0 0
      %2144 = vmatprep.subr.bf16.mxu0 0
      %2145 = vmatpush2.bf16.msra.mxu0 0
      %2146 = vmatprep.subr.bf16.mxu0 0
      %2147 = vmatpush2.bf16.msra.mxu0 0
      %2148 = vmatprep.subr.bf16.mxu0 0
      %2149 = vmatpush2.bf16.msra.mxu0 0
      %2150 = vmatprep.subr.bf16.mxu0 0
      %2151 = vmatpush2.bf16.msra.mxu0 0
      %2152 = vmatprep.mubr.bf16.mxu0 0
      %2153 = vmatmul.mubr.bf16.gmra.mxu0 %v2118
      %v2154 = vpop.f32.mrf.mxu0
      %v2155 = vadd.f32 0.0, %v2154
      %v2156 = vpop.f32.mrf.mxu0
      %v2157 = vpop.f32.mrf.mxu0
      %v2158 = vadd.f32 0.0, %v2157
      %v2159 = vpop.f32.mrf.mxu0
      %2160 = vdwg.mxu0
      %2161 = vrot.lane.b32.xlu0 %v608, 48
      %v2162 = vpop.permute.xlu0 %2161
      %v2165 = vsel %vm819, %v2065, 0
      %2167 = vmatprep.subr.bf16.mxu0 0
      %2168 = vmatpush1.bf16.msra.mxu0 0
      %2169 = vmatprep.subr.bf16.mxu0 0
      %2170 = vmatpush1.bf16.msra.mxu0 0
      %2171 = vmatprep.subr.bf16.mxu0 0
      %2172 = vmatpush1.bf16.msra.mxu0 0
      %2173 = vmatprep.subr.bf16.mxu0 0
      %2174 = vmatpush1.bf16.msra.mxu0 0
      %2175 = vmatprep.subr.bf16.mxu0 0
      %2176 = vmatpush1.bf16.msra.mxu0 0
      %2177 = vmatprep.subr.bf16.mxu0 0
      %2178 = vmatpush1.bf16.msra.mxu0 0
      %2179 = vmatprep.subr.bf16.mxu0 0
      %2180 = vmatpush1.bf16.msra.mxu0 0
      %2181 = vmatprep.subr.bf16.mxu0 0
      %2182 = vmatpush1.bf16.msra.mxu0 %v2162
      %2183 = vmatprep.subr.bf16.mxu0 0
      %2184 = vmatpush2.bf16.msra.mxu0 0
      %2185 = vmatprep.subr.bf16.mxu0 0
      %2186 = vmatpush2.bf16.msra.mxu0 0
      %2187 = vmatprep.subr.bf16.mxu0 0
      %2188 = vmatpush2.bf16.msra.mxu0 0
      %2189 = vmatprep.subr.bf16.mxu0 0
      %2190 = vmatpush2.bf16.msra.mxu0 0
      %2191 = vmatprep.subr.bf16.mxu0 0
      %2192 = vmatpush2.bf16.msra.mxu0 0
      %2193 = vmatprep.subr.bf16.mxu0 0
      %2194 = vmatpush2.bf16.msra.mxu0 0
      %2195 = vmatprep.subr.bf16.mxu0 0
      %2196 = vmatpush2.bf16.msra.mxu0 0
      %2197 = vmatprep.subr.bf16.mxu0 0
      %2198 = vmatpush2.bf16.msra.mxu0 0
      %2199 = vmatprep.mubr.bf16.mxu0 0
      %2200 = vmatmul.mubr.bf16.gmra.mxu0 %v2165
      %v2201 = vpop.f32.mrf.mxu0
      %v2202 = vadd.f32 0.0, %v2201
      %v2203 = vpop.f32.mrf.mxu0
      %v2204 = vpop.f32.mrf.mxu0
      %v2205 = vadd.f32 0.0, %v2204
      %v2206 = vpop.f32.mrf.mxu0
      %2207 = vdwg.mxu0
      %2208 = vrot.lane.b32.xlu0 %v609, 48
      %v2209 = vpop.permute.xlu0 %2208
      %v2212 = vsel %vm819, %v2066, 0
      %2214 = vmatprep.subr.bf16.mxu0 0
      %2215 = vmatpush1.bf16.msra.mxu0 0
      %2216 = vmatprep.subr.bf16.mxu0 0
      %2217 = vmatpush1.bf16.msra.mxu0 0
      %2218 = vmatprep.subr.bf16.mxu0 0
      %2219 = vmatpush1.bf16.msra.mxu0 0
      %2220 = vmatprep.subr.bf16.mxu0 0
      %2221 = vmatpush1.bf16.msra.mxu0 0
      %2222 = vmatprep.subr.bf16.mxu0 0
      %2223 = vmatpush1.bf16.msra.mxu0 0
      %2224 = vmatprep.subr.bf16.mxu0 0
      %2225 = vmatpush1.bf16.msra.mxu0 0
      %2226 = vmatprep.subr.bf16.mxu0 0
      %2227 = vmatpush1.bf16.msra.mxu0 0
      %2228 = vmatprep.subr.bf16.mxu0 0
      %2229 = vmatpush1.bf16.msra.mxu0 %v2209
      %2230 = vmatprep.subr.bf16.mxu0 0
      %2231 = vmatpush2.bf16.msra.mxu0 0
      %2232 = vmatprep.subr.bf16.mxu0 0
      %2233 = vmatpush2.bf16.msra.mxu0 0
      %2234 = vmatprep.subr.bf16.mxu0 0
      %2235 = vmatpush2.bf16.msra.mxu0 0
      %2236 = vmatprep.subr.bf16.mxu0 0
      %2237 = vmatpush2.bf16.msra.mxu0 0
      %2238 = vmatprep.subr.bf16.mxu0 0
      %2239 = vmatpush2.bf16.msra.mxu0 0
      %2240 = vmatprep.subr.bf16.mxu0 0
      %2241 = vmatpush2.bf16.msra.mxu0 0
      %2242 = vmatprep.subr.bf16.mxu0 0
      %2243 = vmatpush2.bf16.msra.mxu0 0
      %2244 = vmatprep.subr.bf16.mxu0 0
      %2245 = vmatpush2.bf16.msra.mxu0 0
      %2246 = vmatprep.mubr.bf16.mxu0 0
      %2247 = vmatmul.mubr.bf16.gmra.mxu0 %v2212
      %v2248 = vpop.f32.mrf.mxu0
      %v2249 = vadd.f32 0.0, %v2248
      %v2250 = vpop.f32.mrf.mxu0
      %v2251 = vpop.f32.mrf.mxu0
      %v2252 = vadd.f32 0.0, %v2251
      %v2253 = vpop.f32.mrf.mxu0
      %2254 = vdwg.mxu0
      %v2255 = vpack.c.bf16 %v2111, %v2108
      %v2256 = vpack.c.bf16 %v2158, %v2155
      %v2257 = vpack.c.bf16 %v2205, %v2202
      %v2258 = vpack.c.bf16 %v2252, %v2249
      %v2259 = vld [vmem:[%s5 + $0x8] sm:$0xf]
      %v2261 = vsel %vm613, %v2255, 0
      %v2264 = vsel %vm613, %v2256, 0
      %v2267 = vsel %vm613, %v2257, 0
      %v2270 = vsel %vm613, %v2258, 0
      %v2273 = vsel %vm1614, %v2259, 0
      %2275 = vmatprep.subr.bf16.mxu0 0
      %2276 = vmatpush1.bf16.msra.mxu0 0
      %2277 = vmatprep.subr.bf16.mxu0 0
      %2278 = vmatpush1.bf16.msra.mxu0 0
      %2279 = vmatprep.subr.bf16.mxu0 0
      %2280 = vmatpush1.bf16.msra.mxu0 0
      %2281 = vmatprep.subr.bf16.mxu0 0
      %2282 = vmatpush1.bf16.msra.mxu0 0
      %2283 = vmatprep.subr.bf16.mxu0 0
      %2284 = vmatpush1.bf16.msra.mxu0 0
      %2285 = vmatprep.subr.bf16.mxu0 0
      %2286 = vmatpush1.bf16.msra.mxu0 0
      %2287 = vmatprep.subr.bf16.mxu0 0
      %2288 = vmatpush1.bf16.msra.mxu0 0
      %2289 = vmatprep.subr.bf16.mxu0 0
      %2290 = vmatpush1.bf16.msra.mxu0 %v2273
      %2291 = vmatprep.subr.bf16.mxu0 0
      %2292 = vmatpush2.bf16.msra.mxu0 0
      %2293 = vmatprep.subr.bf16.mxu0 0
      %2294 = vmatpush2.bf16.msra.mxu0 0
      %2295 = vmatprep.subr.bf16.mxu0 0
      %2296 = vmatpush2.bf16.msra.mxu0 0
      %2297 = vmatprep.subr.bf16.mxu0 0
      %2298 = vmatpush2.bf16.msra.mxu0 0
      %2299 = vmatprep.subr.bf16.mxu0 0
      %2300 = vmatpush2.bf16.msra.mxu0 0
      %2301 = vmatprep.subr.bf16.mxu0 0
      %2302 = vmatpush2.bf16.msra.mxu0 0
      %2303 = vmatprep.subr.bf16.mxu0 0
      %2304 = vmatpush2.bf16.msra.mxu0 0
      %2305 = vmatprep.subr.bf16.mxu0 0
      %2306 = vmatpush2.bf16.msra.mxu0 0
      %2307 = vmatprep.mubr.bf16.mxu0 0
      %2308 = vmatmul.mubr.bf16.gmra.mxu0 %v2261
      %v2309 = vpop.f32.mrf.mxu0
      %v2310 = vadd.f32 0.0, %v2309
      %v2311 = vpop.f32.mrf.mxu0
      %v2312 = vpop.f32.mrf.mxu0
      %v2313 = vadd.f32 0.0, %v2312
      %v2314 = vpop.f32.mrf.mxu0
      %2315 = vmatprep.mubr.bf16.mxu0 0
      %2316 = vmatmul.mubr.bf16.gmra.mxu0 %v2264
      %v2317 = vpop.f32.mrf.mxu0
      %v2318 = vadd.f32 0.0, %v2317
      %v2319 = vpop.f32.mrf.mxu0
      %v2320 = vpop.f32.mrf.mxu0
      %v2321 = vadd.f32 0.0, %v2320
      %v2322 = vpop.f32.mrf.mxu0
      %2323 = vmatprep.mubr.bf16.mxu0 0
      %2324 = vmatmul.mubr.bf16.gmra.mxu0 %v2267
      %v2325 = vpop.f32.mrf.mxu0
      %v2326 = vadd.f32 0.0, %v2325
      %v2327 = vpop.f32.mrf.mxu0
      %v2328 = vpop.f32.mrf.mxu0
      %v2329 = vadd.f32 0.0, %v2328
      %v2330 = vpop.f32.mrf.mxu0
      %2331 = vmatprep.mubr.bf16.mxu0 0
      %2332 = vmatmul.mubr.bf16.gmra.mxu0 %v2270
      %v2333 = vpop.f32.mrf.mxu0
      %v2334 = vadd.f32 0.0, %v2333
      %v2335 = vpop.f32.mrf.mxu0
      %v2336 = vpop.f32.mrf.mxu0
      %v2337 = vadd.f32 0.0, %v2336
      %v2338 = vpop.f32.mrf.mxu0
      %2339 = vdwg.mxu0
      %v2340 = vadd.f32 %v1733, %v2310
      %v2341 = vadd.f32 %v1736, %v2313
      %v2342 = vadd.f32 %v1741, %v2318
      %v2343 = vadd.f32 %v1744, %v2321
      %v2344 = vadd.f32 %v1749, %v2326
      %v2345 = vadd.f32 %v1752, %v2329
      %v2346 = vadd.f32 %v1757, %v2334
      %v2347 = vadd.f32 %v1760, %v2337
      %2348 = vrot.lane.b32.xlu0 %v606, 104
      %v2349 = vpop.permute.xlu0 %2348
      %2350 = vrot.lane.b32.xlu0 %v606, 72
      %v2351 = vpop.permute.xlu0 %2350
      %v2353 = vsel %vm613, %v2349, 0
      %v2356 = vsel %vm613, %v2351, 0
      %2358 = vmatprep.subr.bf16.mxu0 0
      %2359 = vmatpush1.bf16.xpose.msra.mxu0 0
      %2360 = vmatprep.subr.bf16.mxu0 0
      %2361 = vmatpush1.bf16.xpose.msra.mxu0 0
      %2362 = vmatprep.subr.bf16.mxu0 0
      %2363 = vmatpush1.bf16.xpose.msra.mxu0 0
      %2364 = vmatprep.subr.bf16.mxu0 0
      %2365 = vmatpush1.bf16.xpose.msra.mxu0 0
      %2366 = vmatprep.subr.bf16.mxu0 0
      %2367 = vmatpush1.bf16.xpose.msra.mxu0 0
      %2368 = vmatprep.subr.bf16.mxu0 0
      %2369 = vmatpush1.bf16.xpose.msra.mxu0 0
      %2370 = vmatprep.subr.bf16.mxu0 0
      %2371 = vmatpush1.bf16.xpose.msra.mxu0 0
      %2372 = vmatprep.subr.bf16.mxu0 0
      %2373 = vmatpush1.bf16.xpose.msra.mxu0 %v2356
      %2374 = vmatprep.subr.bf16.mxu0 0
      %2375 = vmatpush2.bf16.xpose.msra.mxu0 0
      %2376 = vmatprep.subr.bf16.mxu0 0
      %2377 = vmatpush2.bf16.xpose.msra.mxu0 0
      %2378 = vmatprep.subr.bf16.mxu0 0
      %2379 = vmatpush2.bf16.xpose.msra.mxu0 0
      %2380 = vmatprep.subr.bf16.mxu0 0
      %2381 = vmatpush2.bf16.xpose.msra.mxu0 0
      %2382 = vmatprep.subr.bf16.mxu0 0
      %2383 = vmatpush2.bf16.xpose.msra.mxu0 0
      %2384 = vmatprep.subr.bf16.mxu0 0
      %2385 = vmatpush2.bf16.xpose.msra.mxu0 0
      %2386 = vmatprep.subr.bf16.mxu0 0
      %2387 = vmatpush2.bf16.xpose.msra.mxu0 0
      %2388 = vmatprep.subr.bf16.mxu0 0
      %2389 = vmatpush2.bf16.xpose.msra.mxu0 0
      %2390 = vmatprep.mubr.bf16.mxu0 0
      %2391 = vmatmul.mubr.bf16.gmra.mxu0 %v2353
      %v2392 = vpop.f32.mrf.mxu0
      %v2393 = vadd.f32 %v596, %v2392
      %v2394 = vpop.f32.mrf.mxu0
      %v2395 = vpop.f32.mrf.mxu0
      %v2396 = vadd.f32 %v597, %v2395
      %v2397 = vpop.f32.mrf.mxu0
      %2398 = vdwg.mxu0
      %2399 = vrot.lane.b32.xlu0 %v607, 104
      %v2400 = vpop.permute.xlu0 %2399
      %2401 = vrot.lane.b32.xlu0 %v607, 72
      %v2402 = vpop.permute.xlu0 %2401
      %v2404 = vsel %vm613, %v2400, 0
      %v2407 = vsel %vm613, %v2402, 0
      %2409 = vmatprep.subr.bf16.mxu0 0
      %2410 = vmatpush1.bf16.xpose.msra.mxu0 0
      %2411 = vmatprep.subr.bf16.mxu0 0
      %2412 = vmatpush1.bf16.xpose.msra.mxu0 0
      %2413 = vmatprep.subr.bf16.mxu0 0
      %2414 = vmatpush1.bf16.xpose.msra.mxu0 0
      %2415 = vmatprep.subr.bf16.mxu0 0
      %2416 = vmatpush1.bf16.xpose.msra.mxu0 0
      %2417 = vmatprep.subr.bf16.mxu0 0
      %2418 = vmatpush1.bf16.xpose.msra.mxu0 0
      %2419 = vmatprep.subr.bf16.mxu0 0
      %2420 = vmatpush1.bf16.xpose.msra.mxu0 0
      %2421 = vmatprep.subr.bf16.mxu0 0
      %2422 = vmatpush1.bf16.xpose.msra.mxu0 0
      %2423 = vmatprep.subr.bf16.mxu0 0
      %2424 = vmatpush1.bf16.xpose.msra.mxu0 %v2407
      %2425 = vmatprep.subr.bf16.mxu0 0
      %2426 = vmatpush2.bf16.xpose.msra.mxu0 0
      %2427 = vmatprep.subr.bf16.mxu0 0
      %2428 = vmatpush2.bf16.xpose.msra.mxu0 0
      %2429 = vmatprep.subr.bf16.mxu0 0
      %2430 = vmatpush2.bf16.xpose.msra.mxu0 0
      %2431 = vmatprep.subr.bf16.mxu0 0
      %2432 = vmatpush2.bf16.xpose.msra.mxu0 0
      %2433 = vmatprep.subr.bf16.mxu0 0
      %2434 = vmatpush2.bf16.xpose.msra.mxu0 0
      %2435 = vmatprep.subr.bf16.mxu0 0
      %2436 = vmatpush2.bf16.xpose.msra.mxu0 0
      %2437 = vmatprep.subr.bf16.mxu0 0
      %2438 = vmatpush2.bf16.xpose.msra.mxu0 0
      %2439 = vmatprep.subr.bf16.mxu0 0
      %2440 = vmatpush2.bf16.xpose.msra.mxu0 0
      %2441 = vmatprep.mubr.bf16.mxu0 0
      %2442 = vmatmul.mubr.bf16.gmra.mxu0 %v2404
      %v2443 = vpop.f32.mrf.mxu0
      %v2444 = vadd.f32 %v596, %v2443
      %v2445 = vpop.f32.mrf.mxu0
      %v2446 = vpop.f32.mrf.mxu0
      %v2447 = vadd.f32 %v597, %v2446
      %v2448 = vpop.f32.mrf.mxu0
      %2449 = vdwg.mxu0
      %2450 = vrot.lane.b32.xlu0 %v608, 104
      %v2451 = vpop.permute.xlu0 %2450
      %2452 = vrot.lane.b32.xlu0 %v608, 72
      %v2453 = vpop.permute.xlu0 %2452
      %v2455 = vsel %vm613, %v2451, 0
      %v2458 = vsel %vm613, %v2453, 0
      %2460 = vmatprep.subr.bf16.mxu0 0
      %2461 = vmatpush1.bf16.xpose.msra.mxu0 0
      %2462 = vmatprep.subr.bf16.mxu0 0
      %2463 = vmatpush1.bf16.xpose.msra.mxu0 0
      %2464 = vmatprep.subr.bf16.mxu0 0
      %2465 = vmatpush1.bf16.xpose.msra.mxu0 0
      %2466 = vmatprep.subr.bf16.mxu0 0
      %2467 = vmatpush1.bf16.xpose.msra.mxu0 0
      %2468 = vmatprep.subr.bf16.mxu0 0
      %2469 = vmatpush1.bf16.xpose.msra.mxu0 0
      %2470 = vmatprep.subr.bf16.mxu0 0
      %2471 = vmatpush1.bf16.xpose.msra.mxu0 0
      %2472 = vmatprep.subr.bf16.mxu0 0
      %2473 = vmatpush1.bf16.xpose.msra.mxu0 0
      %2474 = vmatprep.subr.bf16.mxu0 0
      %2475 = vmatpush1.bf16.xpose.msra.mxu0 %v2458
      %2476 = vmatprep.subr.bf16.mxu0 0
      %2477 = vmatpush2.bf16.xpose.msra.mxu0 0
      %2478 = vmatprep.subr.bf16.mxu0 0
      %2479 = vmatpush2.bf16.xpose.msra.mxu0 0
      %2480 = vmatprep.subr.bf16.mxu0 0
      %2481 = vmatpush2.bf16.xpose.msra.mxu0 0
      %2482 = vmatprep.subr.bf16.mxu0 0
      %2483 = vmatpush2.bf16.xpose.msra.mxu0 0
      %2484 = vmatprep.subr.bf16.mxu0 0
      %2485 = vmatpush2.bf16.xpose.msra.mxu0 0
      %2486 = vmatprep.subr.bf16.mxu0 0
      %2487 = vmatpush2.bf16.xpose.msra.mxu0 0
      %2488 = vmatprep.subr.bf16.mxu0 0
      %2489 = vmatpush2.bf16.xpose.msra.mxu0 0
      %2490 = vmatprep.subr.bf16.mxu0 0
      %2491 = vmatpush2.bf16.xpose.msra.mxu0 0
      %2492 = vmatprep.mubr.bf16.mxu0 0
      %2493 = vmatmul.mubr.bf16.gmra.mxu0 %v2455
      %v2494 = vpop.f32.mrf.mxu0
      %v2495 = vadd.f32 %v596, %v2494
      %v2496 = vpop.f32.mrf.mxu0
      %v2497 = vpop.f32.mrf.mxu0
      %v2498 = vadd.f32 %v597, %v2497
      %v2499 = vpop.f32.mrf.mxu0
      %2500 = vdwg.mxu0
      %2501 = vrot.lane.b32.xlu0 %v609, 104
      %v2502 = vpop.permute.xlu0 %2501
      %2503 = vrot.lane.b32.xlu0 %v609, 72
      %v2504 = vpop.permute.xlu0 %2503
      %v2506 = vsel %vm613, %v2502, 0
      %v2509 = vsel %vm613, %v2504, 0
      %2511 = vmatprep.subr.bf16.mxu0 0
      %2512 = vmatpush1.bf16.xpose.msra.mxu0 0
      %2513 = vmatprep.subr.bf16.mxu0 0
      %2514 = vmatpush1.bf16.xpose.msra.mxu0 0
      %2515 = vmatprep.subr.bf16.mxu0 0
      %2516 = vmatpush1.bf16.xpose.msra.mxu0 0
      %2517 = vmatprep.subr.bf16.mxu0 0
      %2518 = vmatpush1.bf16.xpose.msra.mxu0 0
      %2519 = vmatprep.subr.bf16.mxu0 0
      %2520 = vmatpush1.bf16.xpose.msra.mxu0 0
      %2521 = vmatprep.subr.bf16.mxu0 0
      %2522 = vmatpush1.bf16.xpose.msra.mxu0 0
      %2523 = vmatprep.subr.bf16.mxu0 0
      %2524 = vmatpush1.bf16.xpose.msra.mxu0 0
      %2525 = vmatprep.subr.bf16.mxu0 0
      %2526 = vmatpush1.bf16.xpose.msra.mxu0 %v2509
      %2527 = vmatprep.subr.bf16.mxu0 0
      %2528 = vmatpush2.bf16.xpose.msra.mxu0 0
      %2529 = vmatprep.subr.bf16.mxu0 0
      %2530 = vmatpush2.bf16.xpose.msra.mxu0 0
      %2531 = vmatprep.subr.bf16.mxu0 0
      %2532 = vmatpush2.bf16.xpose.msra.mxu0 0
      %2533 = vmatprep.subr.bf16.mxu0 0
      %2534 = vmatpush2.bf16.xpose.msra.mxu0 0
      %2535 = vmatprep.subr.bf16.mxu0 0
      %2536 = vmatpush2.bf16.xpose.msra.mxu0 0
      %2537 = vmatprep.subr.bf16.mxu0 0
      %2538 = vmatpush2.bf16.xpose.msra.mxu0 0
      %2539 = vmatprep.subr.bf16.mxu0 0
      %2540 = vmatpush2.bf16.xpose.msra.mxu0 0
      %2541 = vmatprep.subr.bf16.mxu0 0
      %2542 = vmatpush2.bf16.xpose.msra.mxu0 0
      %2543 = vmatprep.mubr.bf16.mxu0 0
      %2544 = vmatmul.mubr.bf16.gmra.mxu0 %v2506
      %v2545 = vpop.f32.mrf.mxu0
      %v2546 = vadd.f32 %v596, %v2545
      %v2547 = vpop.f32.mrf.mxu0
      %v2548 = vpop.f32.mrf.mxu0
      %v2549 = vadd.f32 %v597, %v2548
      %v2550 = vpop.f32.mrf.mxu0
      %2551 = vdwg.mxu0
      %v2552 = vadd.f32 %v2393, %v598
      %v2553 = vadd.f32 %v2396, %v599
      %v2554 = vadd.f32 %v2444, %v600
      %v2555 = vadd.f32 %v2447, %v601
      %v2556 = vadd.f32 %v2495, %v602
      %v2557 = vadd.f32 %v2498, %v603
      %v2558 = vadd.f32 %v2546, %v604
      %v2559 = vadd.f32 %v2549, %v605
      %v2560 = vsel %vm819, %v2552, -inf
      %2561 = vmax.xlane.f32.xlu0 %v2560
      %v2562 = vpop.xlane.xlu0 %2561
      %v2563 = vsel %vm819, %v2553, -inf
      %2564 = vmax.xlane.f32.xlu0 %v2563
      %v2565 = vpop.xlane.xlu0 %2564
      %v2566 = vsel %vm819, %v2554, -inf
      %2567 = vmax.xlane.f32.xlu0 %v2566
      %v2568 = vpop.xlane.xlu0 %2567
      %v2569 = vsel %vm819, %v2555, -inf
      %2570 = vmax.xlane.f32.xlu0 %v2569
      %v2571 = vpop.xlane.xlu0 %2570
      %v2572 = vsel %vm819, %v2556, -inf
      %2573 = vmax.xlane.f32.xlu0 %v2572
      %v2574 = vpop.xlane.xlu0 %2573
      %v2575 = vsel %vm819, %v2557, -inf
      %2576 = vmax.xlane.f32.xlu0 %v2575
      %v2577 = vpop.xlane.xlu0 %2576
      %v2578 = vsel %vm819, %v2558, -inf
      %2579 = vmax.xlane.f32.xlu0 %v2578
      %v2580 = vpop.xlane.xlu0 %2579
      %v2581 = vsel %vm819, %v2559, -inf
      %2582 = vmax.xlane.f32.xlu0 %v2581
      %v2583 = vpop.xlane.xlu0 %2582
      %v2584 = vsub.f32 %v2552, %v2562
      %v2585 = vsub.f32 %v2553, %v2565
      %v2586 = vsub.f32 %v2554, %v2568
      %v2587 = vsub.f32 %v2555, %v2571
      %v2588 = vsub.f32 %v2556, %v2574
      %v2589 = vsub.f32 %v2557, %v2577
      %v2590 = vsub.f32 %v2558, %v2580
      %v2591 = vsub.f32 %v2559, %v2583
      %v2592 = vmul.f32 %v2584, 1.442695
      %v2593 = vpow.pop %v2592
      %v2594 = vmul.f32 %v2585, 1.442695
      %v2595 = vpow.pop %v2594
      %v2596 = vmul.f32 %v2586, 1.442695
      %v2597 = vpow.pop %v2596
      %v2598 = vmul.f32 %v2587, 1.442695
      %v2599 = vpow.pop %v2598
      %v2600 = vmul.f32 %v2588, 1.442695
      %v2601 = vpow.pop %v2600
      %v2602 = vmul.f32 %v2589, 1.442695
      %v2603 = vpow.pop %v2602
      %v2604 = vmul.f32 %v2590, 1.442695
      %v2605 = vpow.pop %v2604
      %v2606 = vmul.f32 %v2591, 1.442695
      %v2607 = vpow.pop %v2606
      %v2608 = vsel %vm819, %v2593, 0.0
      %2609 = vadd.xlane.f32.xlu0 %v2608
      %v2610 = vpop.xlane.xlu0 %2609
      %v2611 = vsel %vm819, %v2595, 0.0
      %2612 = vadd.xlane.f32.xlu0 %v2611
      %v2613 = vpop.xlane.xlu0 %2612
      %v2614 = vsel %vm819, %v2597, 0.0
      %2615 = vadd.xlane.f32.xlu0 %v2614
      %v2616 = vpop.xlane.xlu0 %2615
      %v2617 = vsel %vm819, %v2599, 0.0
      %2618 = vadd.xlane.f32.xlu0 %v2617
      %v2619 = vpop.xlane.xlu0 %2618
      %v2620 = vsel %vm819, %v2601, 0.0
      %2621 = vadd.xlane.f32.xlu0 %v2620
      %v2622 = vpop.xlane.xlu0 %2621
      %v2623 = vsel %vm819, %v2603, 0.0
      %2624 = vadd.xlane.f32.xlu0 %v2623
      %v2625 = vpop.xlane.xlu0 %2624
      %v2626 = vsel %vm819, %v2605, 0.0
      %2627 = vadd.xlane.f32.xlu0 %v2626
      %v2628 = vpop.xlane.xlu0 %2627
      %v2629 = vsel %vm819, %v2607, 0.0
      %2630 = vadd.xlane.f32.xlu0 %v2629
      %v2631 = vpop.xlane.xlu0 %2630
      %v2632 = vrcp.pop %v2610
      %v2633 = vrcp.pop %v2613
      %v2634 = vrcp.pop %v2616
      %v2635 = vrcp.pop %v2619
      %v2636 = vrcp.pop %v2622
      %v2637 = vrcp.pop %v2625
      %v2638 = vrcp.pop %v2628
      %v2639 = vrcp.pop %v2631
      %v2640 = vmul.f32 %v2593, %v2632
      %v2641 = vmul.f32 %v2595, %v2633
      %v2642 = vmul.f32 %v2597, %v2634
      %v2643 = vmul.f32 %v2599, %v2635
      %v2644 = vmul.f32 %v2601, %v2636
      %v2645 = vmul.f32 %v2603, %v2637
      %v2646 = vmul.f32 %v2605, %v2638
      %v2647 = vmul.f32 %v2607, %v2639
      %v2648 = vpack.c.bf16 %v2641, %v2640
      %v2649 = vpack.c.bf16 %v2643, %v2642
      %v2650 = vpack.c.bf16 %v2645, %v2644
      %v2651 = vpack.c.bf16 %v2647, %v2646
      %2652 = vrot.lane.b32.xlu0 %v606, 40
      %v2653 = vpop.permute.xlu0 %2652
      %v2656 = vsel %vm819, %v2648, 0
      %2658 = vmatprep.subr.bf16.mxu0 0
      %2659 = vmatpush1.bf16.msra.mxu0 0
      %2660 = vmatprep.subr.bf16.mxu0 0
      %2661 = vmatpush1.bf16.msra.mxu0 0
      %2662 = vmatprep.subr.bf16.mxu0 0
      %2663 = vmatpush1.bf16.msra.mxu0 0
      %2664 = vmatprep.subr.bf16.mxu0 0
      %2665 = vmatpush1.bf16.msra.mxu0 0
      %2666 = vmatprep.subr.bf16.mxu0 0
      %2667 = vmatpush1.bf16.msra.mxu0 0
      %2668 = vmatprep.subr.bf16.mxu0 0
      %2669 = vmatpush1.bf16.msra.mxu0 0
      %2670 = vmatprep.subr.bf16.mxu0 0
      %2671 = vmatpush1.bf16.msra.mxu0 0
      %2672 = vmatprep.subr.bf16.mxu0 0
      %2673 = vmatpush1.bf16.msra.mxu0 %v2653
      %2674 = vmatprep.subr.bf16.mxu0 0
      %2675 = vmatpush2.bf16.msra.mxu0 0
      %2676 = vmatprep.subr.bf16.mxu0 0
      %2677 = vmatpush2.bf16.msra.mxu0 0
      %2678 = vmatprep.subr.bf16.mxu0 0
      %2679 = vmatpush2.bf16.msra.mxu0 0
      %2680 = vmatprep.subr.bf16.mxu0 0
      %2681 = vmatpush2.bf16.msra.mxu0 0
      %2682 = vmatprep.subr.bf16.mxu0 0
      %2683 = vmatpush2.bf16.msra.mxu0 0
      %2684 = vmatprep.subr.bf16.mxu0 0
      %2685 = vmatpush2.bf16.msra.mxu0 0
      %2686 = vmatprep.subr.bf16.mxu0 0
      %2687 = vmatpush2.bf16.msra.mxu0 0
      %2688 = vmatprep.subr.bf16.mxu0 0
      %2689 = vmatpush2.bf16.msra.mxu0 0
      %2690 = vmatprep.mubr.bf16.mxu0 0
      %2691 = vmatmul.mubr.bf16.gmra.mxu0 %v2656
      %v2692 = vpop.f32.mrf.mxu0
      %v2693 = vadd.f32 0.0, %v2692
      %v2694 = vpop.f32.mrf.mxu0
      %v2695 = vpop.f32.mrf.mxu0
      %v2696 = vadd.f32 0.0, %v2695
      %v2697 = vpop.f32.mrf.mxu0
      %2698 = vdwg.mxu0
      %2699 = vrot.lane.b32.xlu0 %v607, 40
      %v2700 = vpop.permute.xlu0 %2699
      %v2703 = vsel %vm819, %v2649, 0
      %2705 = vmatprep.subr.bf16.mxu0 0
      %2706 = vmatpush1.bf16.msra.mxu0 0
      %2707 = vmatprep.subr.bf16.mxu0 0
      %2708 = vmatpush1.bf16.msra.mxu0 0
      %2709 = vmatprep.subr.bf16.mxu0 0
      %2710 = vmatpush1.bf16.msra.mxu0 0
      %2711 = vmatprep.subr.bf16.mxu0 0
      %2712 = vmatpush1.bf16.msra.mxu0 0
      %2713 = vmatprep.subr.bf16.mxu0 0
      %2714 = vmatpush1.bf16.msra.mxu0 0
      %2715 = vmatprep.subr.bf16.mxu0 0
      %2716 = vmatpush1.bf16.msra.mxu0 0
      %2717 = vmatprep.subr.bf16.mxu0 0
      %2718 = vmatpush1.bf16.msra.mxu0 0
      %2719 = vmatprep.subr.bf16.mxu0 0
      %2720 = vmatpush1.bf16.msra.mxu0 %v2700
      %2721 = vmatprep.subr.bf16.mxu0 0
      %2722 = vmatpush2.bf16.msra.mxu0 0
      %2723 = vmatprep.subr.bf16.mxu0 0
      %2724 = vmatpush2.bf16.msra.mxu0 0
      %2725 = vmatprep.subr.bf16.mxu0 0
      %2726 = vmatpush2.bf16.msra.mxu0 0
      %2727 = vmatprep.subr.bf16.mxu0 0
      %2728 = vmatpush2.bf16.msra.mxu0 0
      %2729 = vmatprep.subr.bf16.mxu0 0
      %2730 = vmatpush2.bf16.msra.mxu0 0
      %2731 = vmatprep.subr.bf16.mxu0 0
      %2732 = vmatpush2.bf16.msra.mxu0 0
      %2733 = vmatprep.subr.bf16.mxu0 0
      %2734 = vmatpush2.bf16.msra.mxu0 0
      %2735 = vmatprep.subr.bf16.mxu0 0
      %2736 = vmatpush2.bf16.msra.mxu0 0
      %2737 = vmatprep.mubr.bf16.mxu0 0
      %2738 = vmatmul.mubr.bf16.gmra.mxu0 %v2703
      %v2739 = vpop.f32.mrf.mxu0
      %v2740 = vadd.f32 0.0, %v2739
      %v2741 = vpop.f32.mrf.mxu0
      %v2742 = vpop.f32.mrf.mxu0
      %v2743 = vadd.f32 0.0, %v2742
      %v2744 = vpop.f32.mrf.mxu0
      %2745 = vdwg.mxu0
      %2746 = vrot.lane.b32.xlu0 %v608, 40
      %v2747 = vpop.permute.xlu0 %2746
      %v2750 = vsel %vm819, %v2650, 0
      %2752 = vmatprep.subr.bf16.mxu0 0
      %2753 = vmatpush1.bf16.msra.mxu0 0
      %2754 = vmatprep.subr.bf16.mxu0 0
      %2755 = vmatpush1.bf16.msra.mxu0 0
      %2756 = vmatprep.subr.bf16.mxu0 0
      %2757 = vmatpush1.bf16.msra.mxu0 0
      %2758 = vmatprep.subr.bf16.mxu0 0
      %2759 = vmatpush1.bf16.msra.mxu0 0
      %2760 = vmatprep.subr.bf16.mxu0 0
      %2761 = vmatpush1.bf16.msra.mxu0 0
      %2762 = vmatprep.subr.bf16.mxu0 0
      %2763 = vmatpush1.bf16.msra.mxu0 0
      %2764 = vmatprep.subr.bf16.mxu0 0
      %2765 = vmatpush1.bf16.msra.mxu0 0
      %2766 = vmatprep.subr.bf16.mxu0 0
      %2767 = vmatpush1.bf16.msra.mxu0 %v2747
      %2768 = vmatprep.subr.bf16.mxu0 0
      %2769 = vmatpush2.bf16.msra.mxu0 0
      %2770 = vmatprep.subr.bf16.mxu0 0
      %2771 = vmatpush2.bf16.msra.mxu0 0
      %2772 = vmatprep.subr.bf16.mxu0 0
      %2773 = vmatpush2.bf16.msra.mxu0 0
      %2774 = vmatprep.subr.bf16.mxu0 0
      %2775 = vmatpush2.bf16.msra.mxu0 0
      %2776 = vmatprep.subr.bf16.mxu0 0
      %2777 = vmatpush2.bf16.msra.mxu0 0
      %2778 = vmatprep.subr.bf16.mxu0 0
      %2779 = vmatpush2.bf16.msra.mxu0 0
      %2780 = vmatprep.subr.bf16.mxu0 0
      %2781 = vmatpush2.bf16.msra.mxu0 0
      %2782 = vmatprep.subr.bf16.mxu0 0
      %2783 = vmatpush2.bf16.msra.mxu0 0
      %2784 = vmatprep.mubr.bf16.mxu0 0
      %2785 = vmatmul.mubr.bf16.gmra.mxu0 %v2750
      %v2786 = vpop.f32.mrf.mxu0
      %v2787 = vadd.f32 0.0, %v2786
      %v2788 = vpop.f32.mrf.mxu0
      %v2789 = vpop.f32.mrf.mxu0
      %v2790 = vadd.f32 0.0, %v2789
      %v2791 = vpop.f32.mrf.mxu0
      %2792 = vdwg.mxu0
      %2793 = vrot.lane.b32.xlu0 %v609, 40
      %v2794 = vpop.permute.xlu0 %2793
      %v2797 = vsel %vm819, %v2651, 0
      %2799 = vmatprep.subr.bf16.mxu0 0
      %2800 = vmatpush1.bf16.msra.mxu0 0
      %2801 = vmatprep.subr.bf16.mxu0 0
      %2802 = vmatpush1.bf16.msra.mxu0 0
      %2803 = vmatprep.subr.bf16.mxu0 0
      %2804 = vmatpush1.bf16.msra.mxu0 0
      %2805 = vmatprep.subr.bf16.mxu0 0
      %2806 = vmatpush1.bf16.msra.mxu0 0
      %2807 = vmatprep.subr.bf16.mxu0 0
      %2808 = vmatpush1.bf16.msra.mxu0 0
      %2809 = vmatprep.subr.bf16.mxu0 0
      %2810 = vmatpush1.bf16.msra.mxu0 0
      %2811 = vmatprep.subr.bf16.mxu0 0
      %2812 = vmatpush1.bf16.msra.mxu0 0
      %2813 = vmatprep.subr.bf16.mxu0 0
      %2814 = vmatpush1.bf16.msra.mxu0 %v2794
      %2815 = vmatprep.subr.bf16.mxu0 0
      %2816 = vmatpush2.bf16.msra.mxu0 0
      %2817 = vmatprep.subr.bf16.mxu0 0
      %2818 = vmatpush2.bf16.msra.mxu0 0
      %2819 = vmatprep.subr.bf16.mxu0 0
      %2820 = vmatpush2.bf16.msra.mxu0 0
      %2821 = vmatprep.subr.bf16.mxu0 0
      %2822 = vmatpush2.bf16.msra.mxu0 0
      %2823 = vmatprep.subr.bf16.mxu0 0
      %2824 = vmatpush2.bf16.msra.mxu0 0
      %2825 = vmatprep.subr.bf16.mxu0 0
      %2826 = vmatpush2.bf16.msra.mxu0 0
      %2827 = vmatprep.subr.bf16.mxu0 0
      %2828 = vmatpush2.bf16.msra.mxu0 0
      %2829 = vmatprep.subr.bf16.mxu0 0
      %2830 = vmatpush2.bf16.msra.mxu0 0
      %2831 = vmatprep.mubr.bf16.mxu0 0
      %2832 = vmatmul.mubr.bf16.gmra.mxu0 %v2797
      %v2833 = vpop.f32.mrf.mxu0
      %v2834 = vadd.f32 0.0, %v2833
      %v2835 = vpop.f32.mrf.mxu0
      %v2836 = vpop.f32.mrf.mxu0
      %v2837 = vadd.f32 0.0, %v2836
      %v2838 = vpop.f32.mrf.mxu0
      %2839 = vdwg.mxu0
      %v2840 = vpack.c.bf16 %v2696, %v2693
      %v2841 = vpack.c.bf16 %v2743, %v2740
      %v2842 = vpack.c.bf16 %v2790, %v2787
      %v2843 = vpack.c.bf16 %v2837, %v2834
      %v2844 = vld [vmem:[%s5 + $0xc] sm:$0xf]
      %v2846 = vsel %vm613, %v2840, 0
      %v2849 = vsel %vm613, %v2841, 0
      %v2852 = vsel %vm613, %v2842, 0
      %v2855 = vsel %vm613, %v2843, 0
      %v2858 = vsel %vm1614, %v2844, 0
      %2860 = vmatprep.subr.bf16.mxu0 0
      %2861 = vmatpush1.bf16.msra.mxu0 0
      %2862 = vmatprep.subr.bf16.mxu0 0
      %2863 = vmatpush1.bf16.msra.mxu0 0
      %2864 = vmatprep.subr.bf16.mxu0 0
      %2865 = vmatpush1.bf16.msra.mxu0 0
      %2866 = vmatprep.subr.bf16.mxu0 0
      %2867 = vmatpush1.bf16.msra.mxu0 0
      %2868 = vmatprep.subr.bf16.mxu0 0
      %2869 = vmatpush1.bf16.msra.mxu0 0
      %2870 = vmatprep.subr.bf16.mxu0 0
      %2871 = vmatpush1.bf16.msra.mxu0 0
      %2872 = vmatprep.subr.bf16.mxu0 0
      %2873 = vmatpush1.bf16.msra.mxu0 0
      %2874 = vmatprep.subr.bf16.mxu0 0
      %2875 = vmatpush1.bf16.msra.mxu0 %v2858
      %2876 = vmatprep.subr.bf16.mxu0 0
      %2877 = vmatpush2.bf16.msra.mxu0 0
      %2878 = vmatprep.subr.bf16.mxu0 0
      %2879 = vmatpush2.bf16.msra.mxu0 0
      %2880 = vmatprep.subr.bf16.mxu0 0
      %2881 = vmatpush2.bf16.msra.mxu0 0
      %2882 = vmatprep.subr.bf16.mxu0 0
      %2883 = vmatpush2.bf16.msra.mxu0 0
      %2884 = vmatprep.subr.bf16.mxu0 0
      %2885 = vmatpush2.bf16.msra.mxu0 0
      %2886 = vmatprep.subr.bf16.mxu0 0
      %2887 = vmatpush2.bf16.msra.mxu0 0
      %2888 = vmatprep.subr.bf16.mxu0 0
      %2889 = vmatpush2.bf16.msra.mxu0 0
      %2890 = vmatprep.subr.bf16.mxu0 0
      %2891 = vmatpush2.bf16.msra.mxu0 0
      %2892 = vmatprep.mubr.bf16.mxu0 0
      %2893 = vmatmul.mubr.bf16.gmra.mxu0 %v2846
      %v2894 = vpop.f32.mrf.mxu0
      %v2895 = vadd.f32 0.0, %v2894
      %v2896 = vpop.f32.mrf.mxu0
      %v2897 = vpop.f32.mrf.mxu0
      %v2898 = vadd.f32 0.0, %v2897
      %v2899 = vpop.f32.mrf.mxu0
      %2900 = vmatprep.mubr.bf16.mxu0 0
      %2901 = vmatmul.mubr.bf16.gmra.mxu0 %v2849
      %v2902 = vpop.f32.mrf.mxu0
      %v2903 = vadd.f32 0.0, %v2902
      %v2904 = vpop.f32.mrf.mxu0
      %v2905 = vpop.f32.mrf.mxu0
      %v2906 = vadd.f32 0.0, %v2905
      %v2907 = vpop.f32.mrf.mxu0
      %2908 = vmatprep.mubr.bf16.mxu0 0
      %2909 = vmatmul.mubr.bf16.gmra.mxu0 %v2852
      %v2910 = vpop.f32.mrf.mxu0
      %v2911 = vadd.f32 0.0, %v2910
      %v2912 = vpop.f32.mrf.mxu0
      %v2913 = vpop.f32.mrf.mxu0
      %v2914 = vadd.f32 0.0, %v2913
      %v2915 = vpop.f32.mrf.mxu0
      %2916 = vmatprep.mubr.bf16.mxu0 0
      %2917 = vmatmul.mubr.bf16.gmra.mxu0 %v2855
      %v2918 = vpop.f32.mrf.mxu0
      %v2919 = vadd.f32 0.0, %v2918
      %v2920 = vpop.f32.mrf.mxu0
      %v2921 = vpop.f32.mrf.mxu0
      %v2922 = vadd.f32 0.0, %v2921
      %v2923 = vpop.f32.mrf.mxu0
      %2924 = vdwg.mxu0
      %v2925 = vadd.f32 %v2340, %v2895
      %v2926 = vadd.f32 %v2341, %v2898
      %v2927 = vadd.f32 %v2342, %v2903
      %v2928 = vadd.f32 %v2343, %v2906
      %v2929 = vadd.f32 %v2344, %v2911
      %v2930 = vadd.f32 %v2345, %v2914
      %v2931 = vadd.f32 %v2346, %v2919
      %v2932 = vadd.f32 %v2347, %v2922
      %v2933 = vld [vmem:[%s6] sm:$0x1]
      %v2935 = vlaneseq
      %v2936 = vshrl.u32 %v2935, 7
      %v2937 = vsub.s32 0, %v2936
      %v2938 = vrot.slane %v2933, %v2937
      %v2940 = vadd.f32 %v2925, %v2938
      %v2941 = vadd.f32 %v2926, %v2938
      %v2942 = vadd.f32 %v2927, %v2938
      %v2943 = vadd.f32 %v2928, %v2938
      %v2944 = vadd.f32 %v2929, %v2938
      %v2945 = vadd.f32 %v2930, %v2938
      %v2946 = vadd.f32 %v2931, %v2938
      %v2947 = vadd.f32 %v2932, %v2938
      %2948 = vst.msk [vmem:[%s339] sm:$0xff] %vm352, %v2940
      %2949 = vst.msk [vmem:[%s339 + $0x8] sm:$0xff] %vm352, %v2941
      %2950 = vst.msk [vmem:[%s339 + $0x10] sm:$0xff] %vm352, %v2942
      %2951 = vst.msk [vmem:[%s339 + $0x18] sm:$0xff] %vm352, %v2943
      %2952 = vst.msk [vmem:[%s339 + $0x20] sm:$0xff] %vm352, %v2944
      %2953 = vst.msk [vmem:[%s339 + $0x28] sm:$0xff] %vm352, %v2945
      %2954 = vst.msk [vmem:[%s339 + $0x30] sm:$0xff] %vm352, %v2946
      %2955 = vst.msk [vmem:[%s339 + $0x38] sm:$0xff] %vm352, %v2947
      %s2956 = smul.u32 4, %s20
      %p2957 = scmp.lt.s32.totalorder %s2956, 7
      %s2958 = scalar_select %p2957, %s2956, 7
      %s2959 = smul.addr %s2958, 2
      %s2960 = smul.addr %s2959, 8
      %s2961 = scalar_lea.vmem %s9, %s2960
      // Predicated region
      $region57: #{basic_layer_forward.6} parent=55 // pred_check
        %p2962 = pneg %p232
      $region58: #{basic_layer_forward.6} parent=55 // pred_check_branch
        %2964 = sbr.rel (%p2962) target = $region60
      $region59: #{basic_layer_forward.6} parent=55 // pred_region
        %s2965 = smul.u32 4, %s20
      $region60: #{basic_layer_forward.6} parent=55 // pred_fallthru
        _
    $region56: #{basic_layer_forward.6} parent=5 // pred_fallthru
      _
    %p2966 = scmp.le.s32.totalorder 2, %s15
    // Predicated region
    $region61: #{basic_layer_forward.6} parent=5 // pred_check
      %p2967 = pneg %p2966
    $region62: #{basic_layer_forward.6} parent=5 // pred_check_branch
      %2969 = sbr.rel (%p2967) target = $region64
    $region63: #{basic_layer_forward.6} parent=5 // pred_region
      %s2970 = ssub.s32 %s15, 2
      // Predicated region
      $region65: #{basic_layer_forward.6} parent=63 // pred_check
        %p2971 = pneg %p238
      $region66: #{basic_layer_forward.6} parent=63 // pred_check_branch
        %2973 = sbr.rel (%p2971) target = $region68
      $region67: #{basic_layer_forward.6} parent=63 // pred_region
        %s2974 = smul.u32 4, %s21
        %p2975 = scmp.lt.s32.totalorder %s2974, 7
        %s2976 = scalar_select %p2975, %s2974, 7
        %s2977 = smul.addr %s2976, 2
        %s2978 = smul.addr %s2977, 8
        %s2979 = scalar_lea.vmem %s9, %s2978
      $region68: #{basic_layer_forward.6} parent=63 // pred_fallthru
        _
    $region64: #{basic_layer_forward.6} parent=5 // pred_fallthru
      _
  $region6: #{basic_layer_forward.6} parent=0 // loop_footer
    %s19 = sadd.s32 1, %s15
  $region7: #{basic_layer_forward.6} parent=0 // loop_footer_branch
    %14 = sbr.rel target = $region3
  $region8: #{basic_layer_forward.6} parent=0 // loop_exit
    _

</llo_original>
